<compile_context>
chip_gen: v7x
topology: tpu7x:2x2x1
jax: 0.10.0
libtpu: 0.0.40
codegen_flags: <defaults>
</compile_context>

<pallas_src>
import functools

import jax
import jax.numpy as jnp
from jax import lax
from jax.experimental import pallas as pl
from jax.experimental.pallas import tpu as pltpu


# ---------------------------------------------------------------------------
# Pallas kernels
# ---------------------------------------------------------------------------
def _stem_kernel(p_ref, w_ref, b_ref, o_ref):
    """Stem conv as a patch GEMM: (tm, K) @ (K, C) + folded-BN shift + ReLU."""
    acc = jnp.dot(p_ref[...], w_ref[...], preferred_element_type=jnp.float32)
    o_ref[...] = jnp.maximum(acc + b_ref[...], 0.0).astype(o_ref.dtype)


def _block_gap_kernel(x_ref, w2a_ref, b2a_ref, w2b_ref, b2b_ref, mask_ref,
                      o_ref, acc_ref, ypad_ref, *, h, w, wpad, y_off):
    """Fused ResNet BasicBlock + global average pool for one batch element.

    The feature map is kept flattened as (h * wpad, C) rows with row stride
    wpad = w + 2, so each 3x3 tap is a plain row-offset slice and every MXU
    contraction runs over the full lane-dense channel dim C.  Columns j >= w
    of each row group are cheap over-compute and are masked out (`mask`).
    """
    mout = h * wpad
    mask = mask_ref[...]                                    # (mout, 1) f32 valid-col mask

    # ---------------- conv2a (+ folded BN + ReLU) ----------------
    acc_ref[...] = jnp.zeros_like(acc_ref)
    for di in range(3):
        for dj in range(3):
            xt = x_ref[0, pl.ds(di * wpad + dj, mout), :].astype(jnp.bfloat16)
            acc_ref[...] += jnp.dot(xt, w2a_ref[di * 3 + dj],
                                    preferred_element_type=jnp.float32)
    y1 = jnp.maximum(acc_ref[...] + b2a_ref[...], 0.0) * mask

    # Stage y1 into a zero-filled flat buffer so conv2b sees a 1-pixel halo.
    # (The masked over-compute columns land exactly on the halo columns.)
    ypad_ref[...] = jnp.zeros_like(ypad_ref)
    ypad_ref[pl.ds(y_off, mout), :] = y1

    # ---------------- conv2b (+ folded BN) + residual + ReLU ----------------
    acc_ref[...] = jnp.zeros_like(acc_ref)
    for di in range(3):
        for dj in range(3):
            off = y_off + (di - 1) * wpad + (dj - 1)
            yt = ypad_ref[pl.ds(off, mout), :].astype(jnp.bfloat16)
            acc_ref[...] += jnp.dot(yt, w2b_ref[di * 3 + dj],
                                    preferred_element_type=jnp.float32)
    resid = x_ref[0, pl.ds(wpad + 1, mout), :]              # un-padded block input
    y2 = jnp.maximum(acc_ref[...] + b2b_ref[...] + resid, 0.0) * mask

    # ---------------- AdaptiveAvgPool2d((1,1)) + flatten ----------------
    o_ref[0] = jnp.sum(y2, axis=0, keepdims=True) * (1.0 / (h * w))


# ---------------------------------------------------------------------------
# Host-side helpers
# ---------------------------------------------------------------------------
def _round_up(x, m):
    return (x + m - 1) // m * m


def _pick_tile_m(m):
    # Largest tile that divides M while keeping grid >= 2 (megacore / dual TC).
    for tm in (1024, 512, 256, 128, 64, 32, 16, 8):
        if m % tm == 0 and m // tm >= 2:
            return tm
    return m


def _im2col(x_nhwc, kh, kw, stride, pad):
    n, h, w, c = x_nhwc.shape
    xp = jnp.pad(x_nhwc, ((0, 0), (pad, pad), (pad, pad), (0, 0)))
    ho = (h + 2 * pad - kh) // stride + 1
    wo = (w + 2 * pad - kw) // stride + 1
    cols = []
    for i in range(kh):
        for j in range(kw):
            cols.append(xp[:, i:i + stride * ho:stride, j:j + stride * wo:stride, :])
    patches = jnp.concatenate(cols, axis=-1)                # (N, Ho, Wo, kh*kw*Cin)
    return patches.reshape(n * ho * wo, kh * kw * c), ho, wo


def _fold_flat(w_oihw, scale):
    # (Cout, Cin, kh, kw) -> (kh*kw*Cin, Cout), BN scale folded in, bf16.
    co, ci, kh, kw = w_oihw.shape
    wm = jnp.transpose(w_oihw, (2, 3, 1, 0)).reshape(kh * kw * ci, co)
    return (wm * scale[None, :]).astype(jnp.bfloat16)


def _fold_taps(w_oihw, scale):
    # (Cout, Cin, kh, kw) -> (kh*kw, Cin, Cout), BN scale folded in, bf16.
    co, ci, kh, kw = w_oihw.shape
    wm = jnp.transpose(w_oihw, (2, 3, 1, 0)).reshape(kh * kw, ci, co)
    return (wm * scale[None, None, :]).astype(jnp.bfloat16)


# ---------------------------------------------------------------------------
# Forward pass
# ---------------------------------------------------------------------------
@jax.jit
def pallas_forward(x_nchw, params):
    """forward(x) followed by reduce_feature_map(x) -> (N, C)."""
    n = x_nchw.shape[0]
    c = params["w1"].shape[0]

    # ---------------- stem: conv 3x3 /2 + BN + ReLU (patch GEMM) ------------
    x = jnp.transpose(x_nchw, (0, 2, 3, 1)).astype(jnp.bfloat16)      # NHWC bf16
    patches, ho, wo = _im2col(x, 3, 3, 2, 1)                          # (M, 27) bf16
    m, k = patches.shape
    w1 = _fold_flat(params["w1"], params["s1"])
    b1 = params["b1"].reshape(1, c).astype(jnp.float32)
    tm = _pick_tile_m(m)
    stem = pl.pallas_call(
        _stem_kernel,
        grid=(m // tm,),
        in_specs=[pl.BlockSpec((tm, k), lambda i: (i, 0)),
                  pl.BlockSpec((k, c), lambda i: (0, 0)),
                  pl.BlockSpec((1, c), lambda i: (0, 0))],
        out_specs=pl.BlockSpec((tm, c), lambda i: (i, 0)),
        out_shape=jax.ShapeDtypeStruct((m, c), jnp.float32),
        compiler_params=pltpu.CompilerParams(dimension_semantics=("parallel",)),
    )(patches, w1, b1)

    # ---------------- fused BasicBlock + global average pool ----------------
    h, w = ho, wo
    hpad, wpad = h + 2, w + 2
    mout = h * wpad
    r_in = _round_up(2 * wpad + 2 + mout, 8)      # padded-flat input rows (+ slack)
    y_off = _round_up(wpad + 1, 8)                # aligned store offset for y1
    r_pad = _round_up(y_off + wpad + 1 + mout, 8)

    x_map = stem.reshape(n, h, w, c)
    x_map = jnp.pad(x_map, ((0, 0), (1, 1), (1, 1), (0, 0)))          # spatial pad 1
    x_flat = x_map.reshape(n, hpad * wpad, c)
    x_flat = jnp.pad(x_flat, ((0, 0), (0, r_in - hpad * wpad), (0, 0)))

    # 1.0 for valid output columns (j < w), 0.0 for the over-compute columns.
    mask = ((jnp.arange(mout) % wpad) < w).astype(jnp.float32).reshape(mout, 1)

    w2a = _fold_taps(params["w2a"], params["s2a"])
    b2a = params["b2a"].reshape(1, c).astype(jnp.float32)
    w2b = _fold_taps(params["w2b"], params["s2b"])
    b2b = params["b2b"].reshape(1, c).astype(jnp.float32)

    feats = pl.pallas_call(
        functools.partial(_block_gap_kernel, h=h, w=w, wpad=wpad, y_off=y_off),
        grid=(n,),
        in_specs=[pl.BlockSpec((1, r_in, c), lambda b: (b, 0, 0)),
                  pl.BlockSpec((9, c, c), lambda b: (0, 0, 0)),
                  pl.BlockSpec((1, c), lambda b: (0, 0)),
                  pl.BlockSpec((9, c, c), lambda b: (0, 0, 0)),
                  pl.BlockSpec((1, c), lambda b: (0, 0)),
                  pl.BlockSpec((mout, 1), lambda b: (0, 0))],
        out_specs=pl.BlockSpec((1, 1, c), lambda b: (b, 0, 0)),
        out_shape=jax.ShapeDtypeStruct((n, 1, c), jnp.float32),
        scratch_shapes=[pltpu.VMEM((mout, c), jnp.float32),
                        pltpu.VMEM((r_pad, c), jnp.float32)],
        compiler_params=pltpu.CompilerParams(dimension_semantics=("parallel",)),
    )(x_flat, w2a, b2a, w2b, b2b, mask)
    return feats[:, 0, :]


# ---------------------------------------------------------------------------
# Deterministic synthetic "ResNet" parameters and pure-JAX reference
# ---------------------------------------------------------------------------
def init_params(key, cin=3, c=128):
    ks = jax.random.split(key, 9)
    eps = 1e-5

    def bn_fold(kg, kb, ch):
        gamma = 1.0 + 0.1 * jax.random.normal(kg, (ch,), jnp.float32)
        beta = 0.1 * jax.random.normal(kb, (ch,), jnp.float32)
        mu = jnp.zeros((ch,), jnp.float32)
        var = jnp.ones((ch,), jnp.float32)
        scale = gamma / jnp.sqrt(var + eps)
        shift = beta - mu * scale
        return scale, shift

    p = {}
    p["w1"] = 0.1 * jax.random.normal(ks[0], (c, cin, 3, 3), jnp.float32)
    p["s1"], p["b1"] = bn_fold(ks[1], ks[2], c)
    p["w2a"] = 0.03 * jax.random.normal(ks[3], (c, c, 3, 3), jnp.float32)
    p["s2a"], p["b2a"] = bn_fold(ks[4], ks[5], c)
    p["w2b"] = 0.03 * jax.random.normal(ks[6], (c, c, 3, 3), jnp.float32)
    p["s2b"], p["b2b"] = bn_fold(ks[7], ks[8], c)
    return p


def reference_forward(x_nchw, params):
    def conv(x, w, stride, pad):
        # Same bf16-operand / f32-accumulate contract as the Pallas kernels.
        return lax.conv_general_dilated(
            x.astype(jnp.bfloat16), w.astype(jnp.bfloat16),
            (stride, stride), ((pad, pad), (pad, pad)),
            dimension_numbers=("NCHW", "OIHW", "NCHW"),
            preferred_element_type=jnp.float32)

    def bn(x, s, b):
        return x * s.reshape(1, -1, 1, 1) + b.reshape(1, -1, 1, 1)

    x = x_nchw.astype(jnp.float32)
    x = jnp.maximum(bn(conv(x, params["w1"], 2, 1), params["s1"], params["b1"]), 0.0)
    idt = x
    y = jnp.maximum(bn(conv(x, params["w2a"], 1, 1), params["s2a"], params["b2a"]), 0.0)
    y = jnp.maximum(bn(conv(y, params["w2b"], 1, 1), params["s2b"], params["b2b"]) + idt, 0.0)
    return jnp.mean(y, axis=(2, 3))  # AdaptiveAvgPool2d((1,1)) + flatten


if __name__ == "__main__":
    key = jax.random.PRNGKey(0)
    kx, kp = jax.random.split(key)
    # Small stand-in for a 224x224x3 image batch.
    x = jax.random.uniform(kx, (2, 3, 32, 32), jnp.float32)
    params = init_params(kp)

    out = pallas_forward(x, params)
    out = jax.block_until_ready(out)

    ref = reference_forward(x, params)
    assert out.shape == (2, 128), out.shape
    if not jnp.allclose(out, ref, rtol=2e-2, atol=2e-2):
        err = float(jnp.max(jnp.abs(out - ref)))
        raise AssertionError(f"Pallas output does not match reference (max err {err})")

    # TODO(synk): PIL / wandb image-logging and file-saving side effects of
    # extract_features have no kernel equivalent and are intentionally omitted.
    print("KERNEL_OK")
</pallas_src>

<mosaic_0001>
module attributes {stable_mosaic.version = 11 : i64} {
  func.func @_stem_kernel(%arg0: i32, %arg1: memref<256x27xbf16, #tpu.memory_space<vmem>>, %arg2: memref<27x128xbf16, #tpu.memory_space<vmem>>, %arg3: memref<1x128xf32, #tpu.memory_space<vmem>>, %arg4: memref<256x128xf32, #tpu.memory_space<vmem>>) attributes {dimension_semantics = [#tpu.dimension_semantics<parallel>], iteration_bounds = array<i64: 2>, scalar_prefetch = 0 : i64, scratch_operands = 0 : i64, tpu.core_type = #tpu.core_type<tc>, window_params = [{transform_indices = @transform_0, window_bounds = array<i64: 256, 27>}, {pipeline_mode = #tpu.pipeline_mode<synchronous>, transform_indices = @transform_1, window_bounds = array<i64: 27, 128>}, {pipeline_mode = #tpu.pipeline_mode<synchronous>, transform_indices = @transform_2, window_bounds = array<i64: 1, 128>}, {transform_indices = @transform_3, window_bounds = array<i64: 256, 128>}]} {
    %c0 = arith.constant 0 : index
    %c0_0 = arith.constant 0 : index
    %0 = vector.load %arg1[%c0, %c0_0] : memref<256x27xbf16, #tpu.memory_space<vmem>>, vector<256x27xbf16>
    %c0_1 = arith.constant 0 : index
    %c0_2 = arith.constant 0 : index
    %1 = vector.load %arg2[%c0_1, %c0_2] : memref<27x128xbf16, #tpu.memory_space<vmem>>, vector<27x128xbf16>
    %cst = arith.constant dense<0.000000e+00> : vector<256x128xf32>
    %2 = tpu.matmul %0, %1, %cst {dimension_numbers = #tpu.dot_dimension_numbers<[1], [0], [0], [1], [0, 0, 1, 1], [], []>} : vector<256x27xbf16>, vector<27x128xbf16>, vector<256x128xf32> -> vector<256x128xf32>
    %c0_3 = arith.constant 0 : index
    %c0_4 = arith.constant 0 : index
    %3 = vector.load %arg3[%c0_3, %c0_4] : memref<1x128xf32, #tpu.memory_space<vmem>>, vector<1x128xf32>
    %4 = vector.broadcast %3 : vector<1x128xf32> to vector<256x128xf32>
    %5 = arith.addf %2, %4 : vector<256x128xf32>
    %cst_5 = arith.constant 0.000000e+00 : f32
    %6 = vector.broadcast %cst_5 : f32 to vector<256x128xf32>
    %7 = arith.maximumf %5, %6 : vector<256x128xf32>
    %c0_6 = arith.constant 0 : index
    %c0_7 = arith.constant 0 : index
    %8 = vector.load %arg4[%c0_6, %c0_7] : memref<256x128xf32, #tpu.memory_space<vmem>>, vector<256x128xf32>
    tpu.vector_store %arg4[%c0_6, %c0_7], %7 {strides = array<i32>} : memref<256x128xf32, #tpu.memory_space<vmem>>, vector<256x128xf32>,
    return
  }
  func.func @transform_0(%arg0: i32) -> (i32, i32) {
    %c0_i32 = arith.constant 0 : i32
    %c0_i32_0 = arith.constant 0 : i32
    return %arg0, %c0_i32 : i32, i32
  }
  func.func @transform_1(%arg0: i32) -> (i32, i32) {
    %c0_i32 = arith.constant 0 : i32
    %c0_i32_0 = arith.constant 0 : i32
    %c0_i32_1 = arith.constant 0 : i32
    return %c0_i32, %c0_i32_0 : i32, i32
  }
  func.func @transform_2(%arg0: i32) -> (i32, i32) {
    %c0_i32 = arith.constant 0 : i32
    %c0_i32_0 = arith.constant 0 : i32
    %c0_i32_1 = arith.constant 0 : i32
    return %c0_i32, %c0_i32_0 : i32, i32
  }
  func.func @transform_3(%arg0: i32) -> (i32, i32) {
    %c0_i32 = arith.constant 0 : i32
    %c0_i32_0 = arith.constant 0 : i32
    return %arg0, %c0_i32 : i32, i32
  }
}

module attributes {stable_mosaic.version = 11 : i64} {
  func.func @_block_gap_kernel(%arg0: i32, %arg1: memref<1x328x128xf32, #tpu.memory_space<vmem>>, %arg2: memref<9x128x128xbf16, #tpu.memory_space<vmem>>, %arg3: memref<1x128xf32, #tpu.memory_space<vmem>>, %arg4: memref<9x128x128xbf16, #tpu.memory_space<vmem>>, %arg5: memref<1x128xf32, #tpu.memory_space<vmem>>, %arg6: memref<288x1xf32, #tpu.memory_space<vmem>>, %arg7: memref<1x1x128xf32, #tpu.memory_space<vmem>>, %arg8: memref<288x128xf32, #tpu.memory_space<vmem>>, %arg9: memref<336x128xf32, #tpu.memory_space<vmem>>) attributes {dimension_semantics = [#tpu.dimension_semantics<parallel>], iteration_bounds = array<i64: 2>, scalar_prefetch = 0 : i64, scratch_operands = 2 : i64, tpu.core_type = #tpu.core_type<tc>, window_params = [{transform_indices = @transform_0, window_bounds = array<i64: 1, 328, 128>}, {pipeline_mode = #tpu.pipeline_mode<synchronous>, transform_indices = @transform_1, window_bounds = array<i64: 9, 128, 128>}, {pipeline_mode = #tpu.pipeline_mode<synchronous>, transform_indices = @transform_2, window_bounds = array<i64: 1, 128>}, {pipeline_mode = #tpu.pipeline_mode<synchronous>, transform_indices = @transform_3, window_bounds = array<i64: 9, 128, 128>}, {pipeline_mode = #tpu.pipeline_mode<synchronous>, transform_indices = @transform_4, window_bounds = array<i64: 1, 128>}, {pipeline_mode = #tpu.pipeline_mode<synchronous>, transform_indices = @transform_5, window_bounds = array<i64: 288, 1>}, {transform_indices = @transform_6, window_bounds = array<i64: 1, 1, 128>}]} {
    %c0 = arith.constant 0 : index
    %c0_0 = arith.constant 0 : index
    %0 = vector.load %arg6[%c0, %c0_0] : memref<288x1xf32, #tpu.memory_space<vmem>>, vector<288x1xf32>
    %cst = arith.constant 0.000000e+00 : f32
    %1 = vector.broadcast %cst : f32 to vector<288x128xf32>
    %c0_1 = arith.constant 0 : index
    %c0_2 = arith.constant 0 : index
    %2 = vector.load %arg8[%c0_1, %c0_2] : memref<288x128xf32, #tpu.memory_space<vmem>>, vector<288x128xf32>
    tpu.vector_store %arg8[%c0_1, %c0_2], %1 {strides = array<i32>} : memref<288x128xf32, #tpu.memory_space<vmem>>, vector<288x128xf32>,
    %c0_3 = arith.constant 0 : index
    %c0_4 = arith.constant 0 : index
    %c0_5 = arith.constant 0 : index
    %3 = vector.load %arg1[%c0_3, %c0_4, %c0_5] : memref<1x328x128xf32, #tpu.memory_space<vmem>>, vector<1x288x128xf32>
    %4 = vector.shape_cast %3 : vector<1x288x128xf32> to vector<288x128xf32>
    %5 = arith.truncf %4 : vector<288x128xf32> to vector<288x128xbf16>
    %c0_6 = arith.constant 0 : index
    %c0_7 = arith.constant 0 : index
    %6 = vector.load %arg8[%c0_6, %c0_7] : memref<288x128xf32, #tpu.memory_space<vmem>>, vector<288x128xf32>
    %c0_8 = arith.constant 0 : index
    %c0_9 = arith.constant 0 : index
    %c0_10 = arith.constant 0 : index
    %7 = vector.load %arg2[%c0_8, %c0_9, %c0_10] : memref<9x128x128xbf16, #tpu.memory_space<vmem>>, vector<1x128x128xbf16>
    %8 = vector.shape_cast %7 : vector<1x128x128xbf16> to vector<128x128xbf16>
    %cst_11 = arith.constant dense<0.000000e+00> : vector<288x128xf32>
    %9 = tpu.matmul %5, %8, %cst_11 {dimension_numbers = #tpu.dot_dimension_numbers<[1], [0], [0], [1], [0, 0, 1, 1], [], []>} : vector<288x128xbf16>, vector<128x128xbf16>, vector<288x128xf32> -> vector<288x128xf32>
    %10 = arith.addf %6, %9 : vector<288x128xf32>
    %c0_12 = arith.constant 0 : index
    %c0_13 = arith.constant 0 : index
    %11 = vector.load %arg8[%c0_12, %c0_13] : memref<288x128xf32, #tpu.memory_space<vmem>>, vector<288x128xf32>
    tpu.vector_store %arg8[%c0_12, %c0_13], %10 {strides = array<i32>} : memref<288x128xf32, #tpu.memory_space<vmem>>, vector<288x128xf32>,
    %c0_14 = arith.constant 0 : index
    %c1 = arith.constant 1 : index
    %c0_15 = arith.constant 0 : index
    %12 = vector.load %arg1[%c0_14, %c1, %c0_15] : memref<1x328x128xf32, #tpu.memory_space<vmem>>, vector<1x288x128xf32>
    %13 = vector.shape_cast %12 : vector<1x288x128xf32> to vector<288x128xf32>
    %14 = arith.truncf %13 : vector<288x128xf32> to vector<288x128xbf16>
    %c0_16 = arith.constant 0 : index
    %c0_17 = arith.constant 0 : index
    %15 = vector.load %arg8[%c0_16, %c0_17] : memref<288x128xf32, #tpu.memory_space<vmem>>, vector<288x128xf32>
    %c1_18 = arith.constant 1 : index
    %c0_19 = arith.constant 0 : index
    %c0_20 = arith.constant 0 : index
    %16 = vector.load %arg2[%c1_18, %c0_19, %c0_20] : memref<9x128x128xbf16, #tpu.memory_space<vmem>>, vector<1x128x128xbf16>
    %17 = vector.shape_cast %16 : vector<1x128x128xbf16> to vector<128x128xbf16>
    %cst_21 = arith.constant dense<0.000000e+00> : vector<288x128xf32>
    %18 = tpu.matmul %14, %17, %cst_21 {dimension_numbers = #tpu.dot_dimension_numbers<[1], [0], [0], [1], [0, 0, 1, 1], [], []>} : vector<288x128xbf16>, vector<128x128xbf16>, vector<288x128xf32> -> vector<288x128xf32>
    %19 = arith.addf %15, %18 : vector<288x128xf32>
    %c0_22 = arith.constant 0 : index
    %c0_23 = arith.constant 0 : index
    %20 = vector.load %arg8[%c0_22, %c0_23] : memref<288x128xf32, #tpu.memory_space<vmem>>, vector<288x128xf32>
    tpu.vector_store %arg8[%c0_22, %c0_23], %19 {strides = array<i32>} : memref<288x128xf32, #tpu.memory_space<vmem>>, vector<288x128xf32>,
    %c0_24 = arith.constant 0 : index
    %c2 = arith.constant 2 : index
    %c0_25 = arith.constant 0 : index
    %21 = vector.load %arg1[%c0_24, %c2, %c0_25] : memref<1x328x128xf32, #tpu.memory_space<vmem>>, vector<1x288x128xf32>
    %22 = vector.shape_cast %21 : vector<1x288x128xf32> to vector<288x128xf32>
    %23 = arith.truncf %22 : vector<288x128xf32> to vector<288x128xbf16>
    %c0_26 = arith.constant 0 : index
    %c0_27 = arith.constant 0 : index
    %24 = vector.load %arg8[%c0_26, %c0_27] : memref<288x128xf32, #tpu.memory_space<vmem>>, vector<288x128xf32>
    %c2_28 = arith.constant 2 : index
    %c0_29 = arith.constant 0 : index
    %c0_30 = arith.constant 0 : index
    %25 = vector.load %arg2[%c2_28, %c0_29, %c0_30] : memref<9x128x128xbf16, #tpu.memory_space<vmem>>, vector<1x128x128xbf16>
    %26 = vector.shape_cast %25 : vector<1x128x128xbf16> to vector<128x128xbf16>
    %cst_31 = arith.constant dense<0.000000e+00> : vector<288x128xf32>
    %27 = tpu.matmul %23, %26, %cst_31 {dimension_numbers = #tpu.dot_dimension_numbers<[1], [0], [0], [1], [0, 0, 1, 1], [], []>} : vector<288x128xbf16>, vector<128x128xbf16>, vector<288x128xf32> -> vector<288x128xf32>
    %28 = arith.addf %24, %27 : vector<288x128xf32>
    %c0_32 = arith.constant 0 : index
    %c0_33 = arith.constant 0 : index
    %29 = vector.load %arg8[%c0_32, %c0_33] : memref<288x128xf32, #tpu.memory_space<vmem>>, vector<288x128xf32>
    tpu.vector_store %arg8[%c0_32, %c0_33], %28 {strides = array<i32>} : memref<288x128xf32, #tpu.memory_space<vmem>>, vector<288x128xf32>,
    %c0_34 = arith.constant 0 : index
    %c18 = arith.constant 18 : index
    %c0_35 = arith.constant 0 : index
    %30 = vector.load %arg1[%c0_34, %c18, %c0_35] : memref<1x328x128xf32, #tpu.memory_space<vmem>>, vector<1x288x128xf32>
    %31 = vector.shape_cast %30 : vector<1x288x128xf32> to vector<288x128xf32>
    %32 = arith.truncf %31 : vector<288x128xf32> to vector<288x128xbf16>
    %c0_36 = arith.constant 0 : index
    %c0_37 = arith.constant 0 : index
    %33 = vector.load %arg8[%c0_36, %c0_37] : memref<288x128xf32, #tpu.memory_space<vmem>>, vector<288x128xf32>
    %c3 = arith.constant 3 : index
    %c0_38 = arith.constant 0 : index
    %c0_39 = arith.constant 0 : index
    %34 = vector.load %arg2[%c3, %c0_38, %c0_39] : memref<9x128x128xbf16, #tpu.memory_space<vmem>>, vector<1x128x128xbf16>
    %35 = vector.shape_cast %34 : vector<1x128x128xbf16> to vector<128x128xbf16>
    %cst_40 = arith.constant dense<0.000000e+00> : vector<288x128xf32>
    %36 = tpu.matmul %32, %35, %cst_40 {dimension_numbers = #tpu.dot_dimension_numbers<[1], [0], [0], [1], [0, 0, 1, 1], [], []>} : vector<288x128xbf16>, vector<128x128xbf16>, vector<288x128xf32> -> vector<288x128xf32>
    %37 = arith.addf %33, %36 : vector<288x128xf32>
    %c0_41 = arith.constant 0 : index
    %c0_42 = arith.constant 0 : index
    %38 = vector.load %arg8[%c0_41, %c0_42] : memref<288x128xf32, #tpu.memory_space<vmem>>, vector<288x128xf32>
    tpu.vector_store %arg8[%c0_41, %c0_42], %37 {strides = array<i32>} : memref<288x128xf32, #tpu.memory_space<vmem>>, vector<288x128xf32>,
    %c0_43 = arith.constant 0 : index
    %c19 = arith.constant 19 : index
    %c0_44 = arith.constant 0 : index
    %39 = vector.load %arg1[%c0_43, %c19, %c0_44] : memref<1x328x128xf32, #tpu.memory_space<vmem>>, vector<1x288x128xf32>
    %40 = vector.shape_cast %39 : vector<1x288x128xf32> to vector<288x128xf32>
    %41 = arith.truncf %40 : vector<288x128xf32> to vector<288x128xbf16>
    %c0_45 = arith.constant 0 : index
    %c0_46 = arith.constant 0 : index
    %42 = vector.load %arg8[%c0_45, %c0_46] : memref<288x128xf32, #tpu.memory_space<vmem>>, vector<288x128xf32>
    %c4 = arith.constant 4 : index
    %c0_47 = arith.constant 0 : index
    %c0_48 = arith.constant 0 : index
    %43 = vector.load %arg2[%c4, %c0_47, %c0_48] : memref<9x128x128xbf16, #tpu.memory_space<vmem>>, vector<1x128x128xbf16>
    %44 = vector.shape_cast %43 : vector<1x128x128xbf16> to vector<128x128xbf16>
    %cst_49 = arith.constant dense<0.000000e+00> : vector<288x128xf32>
    %45 = tpu.matmul %41, %44, %cst_49 {dimension_numbers = #tpu.dot_dimension_numbers<[1], [0], [0], [1], [0, 0, 1, 1], [], []>} : vector<288x128xbf16>, vector<128x128xbf16>, vector<288x128xf32> -> vector<288x128xf32>
    %46 = arith.addf %42, %45 : vector<288x128xf32>
    %c0_50 = arith.constant 0 : index
    %c0_51 = arith.constant 0 : index
    %47 = vector.load %arg8[%c0_50, %c0_51] : memref<288x128xf32, #tpu.memory_space<vmem>>, vector<288x128xf32>
    tpu.vector_store %arg8[%c0_50, %c0_51], %46 {strides = array<i32>} : memref<288x128xf32, #tpu.memory_space<vmem>>, vector<288x128xf32>,
    %c0_52 = arith.constant 0 : index
    %c20 = arith.constant 20 : index
    %c0_53 = arith.constant 0 : index
    %48 = vector.load %arg1[%c0_52, %c20, %c0_53] : memref<1x328x128xf32, #tpu.memory_space<vmem>>, vector<1x288x128xf32>
    %49 = vector.shape_cast %48 : vector<1x288x128xf32> to vector<288x128xf32>
    %50 = arith.truncf %49 : vector<288x128xf32> to vector<288x128xbf16>
    %c0_54 = arith.constant 0 : index
    %c0_55 = arith.constant 0 : index
    %51 = vector.load %arg8[%c0_54, %c0_55] : memref<288x128xf32, #tpu.memory_space<vmem>>, vector<288x128xf32>
    %c5 = arith.constant 5 : index
    %c0_56 = arith.constant 0 : index
    %c0_57 = arith.constant 0 : index
    %52 = vector.load %arg2[%c5, %c0_56, %c0_57] : memref<9x128x128xbf16, #tpu.memory_space<vmem>>, vector<1x128x128xbf16>
    %53 = vector.shape_cast %52 : vector<1x128x128xbf16> to vector<128x128xbf16>
    %cst_58 = arith.constant dense<0.000000e+00> : vector<288x128xf32>
    %54 = tpu.matmul %50, %53, %cst_58 {dimension_numbers = #tpu.dot_dimension_numbers<[1], [0], [0], [1], [0, 0, 1, 1], [], []>} : vector<288x128xbf16>, vector<128x128xbf16>, vector<288x128xf32> -> vector<288x128xf32>
    %55 = arith.addf %51, %54 : vector<288x128xf32>
    %c0_59 = arith.constant 0 : index
    %c0_60 = arith.constant 0 : index
    %56 = vector.load %arg8[%c0_59, %c0_60] : memref<288x128xf32, #tpu.memory_space<vmem>>, vector<288x128xf32>
    tpu.vector_store %arg8[%c0_59, %c0_60], %55 {strides = array<i32>} : memref<288x128xf32, #tpu.memory_space<vmem>>, vector<288x128xf32>,
    %c0_61 = arith.constant 0 : index
    %c36 = arith.constant 36 : index
    %c0_62 = arith.constant 0 : index
    %57 = vector.load %arg1[%c0_61, %c36, %c0_62] : memref<1x328x128xf32, #tpu.memory_space<vmem>>, vector<1x288x128xf32>
    %58 = vector.shape_cast %57 : vector<1x288x128xf32> to vector<288x128xf32>
    %59 = arith.truncf %58 : vector<288x128xf32> to vector<288x128xbf16>
    %c0_63 = arith.constant 0 : index
    %c0_64 = arith.constant 0 : index
    %60 = vector.load %arg8[%c0_63, %c0_64] : memref<288x128xf32, #tpu.memory_space<vmem>>, vector<288x128xf32>
    %c6 = arith.constant 6 : index
    %c0_65 = arith.constant 0 : index
    %c0_66 = arith.constant 0 : index
    %61 = vector.load %arg2[%c6, %c0_65, %c0_66] : memref<9x128x128xbf16, #tpu.memory_space<vmem>>, vector<1x128x128xbf16>
    %62 = vector.shape_cast %61 : vector<1x128x128xbf16> to vector<128x128xbf16>
    %cst_67 = arith.constant dense<0.000000e+00> : vector<288x128xf32>
    %63 = tpu.matmul %59, %62, %cst_67 {dimension_numbers = #tpu.dot_dimension_numbers<[1], [0], [0], [1], [0, 0, 1, 1], [], []>} : vector<288x128xbf16>, vector<128x128xbf16>, vector<288x128xf32> -> vector<288x128xf32>
    %64 = arith.addf %60, %63 : vector<288x128xf32>
    %c0_68 = arith.constant 0 : index
    %c0_69 = arith.constant 0 : index
    %65 = vector.load %arg8[%c0_68, %c0_69] : memref<288x128xf32, #tpu.memory_space<vmem>>, vector<288x128xf32>
    tpu.vector_store %arg8[%c0_68, %c0_69], %64 {strides = array<i32>} : memref<288x128xf32, #tpu.memory_space<vmem>>, vector<288x128xf32>,
    %c0_70 = arith.constant 0 : index
    %c37 = arith.constant 37 : index
    %c0_71 = arith.constant 0 : index
    %66 = vector.load %arg1[%c0_70, %c37, %c0_71] : memref<1x328x128xf32, #tpu.memory_space<vmem>>, vector<1x288x128xf32>
    %67 = vector.shape_cast %66 : vector<1x288x128xf32> to vector<288x128xf32>
    %68 = arith.truncf %67 : vector<288x128xf32> to vector<288x128xbf16>
    %c0_72 = arith.constant 0 : index
    %c0_73 = arith.constant 0 : index
    %69 = vector.load %arg8[%c0_72, %c0_73] : memref<288x128xf32, #tpu.memory_space<vmem>>, vector<288x128xf32>
    %c7 = arith.constant 7 : index
    %c0_74 = arith.constant 0 : index
    %c0_75 = arith.constant 0 : index
    %70 = vector.load %arg2[%c7, %c0_74, %c0_75] : memref<9x128x128xbf16, #tpu.memory_space<vmem>>, vector<1x128x128xbf16>
    %71 = vector.shape_cast %70 : vector<1x128x128xbf16> to vector<128x128xbf16>
    %cst_76 = arith.constant dense<0.000000e+00> : vector<288x128xf32>
    %72 = tpu.matmul %68, %71, %cst_76 {dimension_numbers = #tpu.dot_dimension_numbers<[1], [0], [0], [1], [0, 0, 1, 1], [], []>} : vector<288x128xbf16>, vector<128x128xbf16>, vector<288x128xf32> -> vector<288x128xf32>
    %73 = arith.addf %69, %72 : vector<288x128xf32>
    %c0_77 = arith.constant 0 : index
    %c0_78 = arith.constant 0 : index
    %74 = vector.load %arg8[%c0_77, %c0_78] : memref<288x128xf32, #tpu.memory_space<vmem>>, vector<288x128xf32>
    tpu.vector_store %arg8[%c0_77, %c0_78], %73 {strides = array<i32>} : memref<288x128xf32, #tpu.memory_space<vmem>>, vector<288x128xf32>,
    %c0_79 = arith.constant 0 : index
    %c38 = arith.constant 38 : index
    %c0_80 = arith.constant 0 : index
    %75 = vector.load %arg1[%c0_79, %c38, %c0_80] : memref<1x328x128xf32, #tpu.memory_space<vmem>>, vector<1x288x128xf32>
    %76 = vector.shape_cast %75 : vector<1x288x128xf32> to vector<288x128xf32>
    %77 = arith.truncf %76 : vector<288x128xf32> to vector<288x128xbf16>
    %c0_81 = arith.constant 0 : index
    %c0_82 = arith.constant 0 : index
    %78 = vector.load %arg8[%c0_81, %c0_82] : memref<288x128xf32, #tpu.memory_space<vmem>>, vector<288x128xf32>
    %c8 = arith.constant 8 : index
    %c0_83 = arith.constant 0 : index
    %c0_84 = arith.constant 0 : index
    %79 = vector.load %arg2[%c8, %c0_83, %c0_84] : memref<9x128x128xbf16, #tpu.memory_space<vmem>>, vector<1x128x128xbf16>
    %80 = vector.shape_cast %79 : vector<1x128x128xbf16> to vector<128x128xbf16>
    %cst_85 = arith.constant dense<0.000000e+00> : vector<288x128xf32>
    %81 = tpu.matmul %77, %80, %cst_85 {dimension_numbers = #tpu.dot_dimension_numbers<[1], [0], [0], [1], [0, 0, 1, 1], [], []>} : vector<288x128xbf16>, vector<128x128xbf16>, vector<288x128xf32> -> vector<288x128xf32>
    %82 = arith.addf %78, %81 : vector<288x128xf32>
    %c0_86 = arith.constant 0 : index
    %c0_87 = arith.constant 0 : index
    %83 = vector.load %arg8[%c0_86, %c0_87] : memref<288x128xf32, #tpu.memory_space<vmem>>, vector<288x128xf32>
    tpu.vector_store %arg8[%c0_86, %c0_87], %82 {strides = array<i32>} : memref<288x128xf32, #tpu.memory_space<vmem>>, vector<288x128xf32>,
    %c0_88 = arith.constant 0 : index
    %c0_89 = arith.constant 0 : index
    %84 = vector.load %arg8[%c0_88, %c0_89] : memref<288x128xf32, #tpu.memory_space<vmem>>, vector<288x128xf32>
    %c0_90 = arith.constant 0 : index
    %c0_91 = arith.constant 0 : index
    %85 = vector.load %arg3[%c0_90, %c0_91] : memref<1x128xf32, #tpu.memory_space<vmem>>, vector<1x128xf32>
    %86 = vector.broadcast %85 : vector<1x128xf32> to vector<288x128xf32>
    %87 = arith.addf %84, %86 : vector<288x128xf32>
    %cst_92 = arith.constant 0.000000e+00 : f32
    %88 = vector.broadcast %cst_92 : f32 to vector<288x128xf32>
    %89 = arith.maximumf %87, %88 : vector<288x128xf32>
    %90 = vector.broadcast %0 : vector<288x1xf32> to vector<288x128xf32>
    %91 = arith.mulf %89, %90 : vector<288x128xf32>
    %cst_93 = arith.constant 0.000000e+00 : f32
    %92 = vector.broadcast %cst_93 : f32 to vector<336x128xf32>
    %c0_94 = arith.constant 0 : index
    %c0_95 = arith.constant 0 : index
    %93 = vector.load %arg9[%c0_94, %c0_95] : memref<336x128xf32, #tpu.memory_space<vmem>>, vector<336x128xf32>
    tpu.vector_store %arg9[%c0_94, %c0_95], %92 {strides = array<i32>} : memref<336x128xf32, #tpu.memory_space<vmem>>, vector<336x128xf32>,
    %c24 = arith.constant 24 : index
    %c0_96 = arith.constant 0 : index
    %94 = vector.load %arg9[%c24, %c0_96] : memref<336x128xf32, #tpu.memory_space<vmem>>, vector<288x128xf32>
    tpu.vector_store %arg9[%c24, %c0_96], %91 {strides = array<i32>} : memref<336x128xf32, #tpu.memory_space<vmem>>, vector<288x128xf32>,
    %cst_97 = arith.constant 0.000000e+00 : f32
    %95 = vector.broadcast %cst_97 : f32 to vector<288x128xf32>
    %c0_98 = arith.constant 0 : index
    %c0_99 = arith.constant 0 : index
    %96 = vector.load %arg8[%c0_98, %c0_99] : memref<288x128xf32, #tpu.memory_space<vmem>>, vector<288x128xf32>
    tpu.vector_store %arg8[%c0_98, %c0_99], %95 {strides = array<i32>} : memref<288x128xf32, #tpu.memory_space<vmem>>, vector<288x128xf32>,
    %c5_100 = arith.constant 5 : index
    %c0_101 = arith.constant 0 : index
    %97 = vector.load %arg9[%c5_100, %c0_101] : memref<336x128xf32, #tpu.memory_space<vmem>>, vector<288x128xf32>
    %98 = arith.truncf %97 : vector<288x128xf32> to vector<288x128xbf16>
    %c0_102 = arith.constant 0 : index
    %c0_103 = arith.constant 0 : index
    %99 = vector.load %arg8[%c0_102, %c0_103] : memref<288x128xf32, #tpu.memory_space<vmem>>, vector<288x128xf32>
    %c0_104 = arith.constant 0 : index
    %c0_105 = arith.constant 0 : index
    %c0_106 = arith.constant 0 : index
    %100 = vector.load %arg4[%c0_104, %c0_105, %c0_106] : memref<9x128x128xbf16, #tpu.memory_space<vmem>>, vector<1x128x128xbf16>
    %101 = vector.shape_cast %100 : vector<1x128x128xbf16> to vector<128x128xbf16>
    %cst_107 = arith.constant dense<0.000000e+00> : vector<288x128xf32>
    %102 = tpu.matmul %98, %101, %cst_107 {dimension_numbers = #tpu.dot_dimension_numbers<[1], [0], [0], [1], [0, 0, 1, 1], [], []>} : vector<288x128xbf16>, vector<128x128xbf16>, vector<288x128xf32> -> vector<288x128xf32>
    %103 = arith.addf %99, %102 : vector<288x128xf32>
    %c0_108 = arith.constant 0 : index
    %c0_109 = arith.constant 0 : index
    %104 = vector.load %arg8[%c0_108, %c0_109] : memref<288x128xf32, #tpu.memory_space<vmem>>, vector<288x128xf32>
    tpu.vector_store %arg8[%c0_108, %c0_109], %103 {strides = array<i32>} : memref<288x128xf32, #tpu.memory_space<vmem>>, vector<288x128xf32>,
    %c6_110 = arith.constant 6 : index
    %c0_111 = arith.constant 0 : index
    %105 = vector.load %arg9[%c6_110, %c0_111] : memref<336x128xf32, #tpu.memory_space<vmem>>, vector<288x128xf32>
    %106 = arith.truncf %105 : vector<288x128xf32> to vector<288x128xbf16>
    %c0_112 = arith.constant 0 : index
    %c0_113 = arith.constant 0 : index
    %107 = vector.load %arg8[%c0_112, %c0_113] : memref<288x128xf32, #tpu.memory_space<vmem>>, vector<288x128xf32>
    %c1_114 = arith.constant 1 : index
    %c0_115 = arith.constant 0 : index
    %c0_116 = arith.constant 0 : index
    %108 = vector.load %arg4[%c1_114, %c0_115, %c0_116] : memref<9x128x128xbf16, #tpu.memory_space<vmem>>, vector<1x128x128xbf16>
    %109 = vector.shape_cast %108 : vector<1x128x128xbf16> to vector<128x128xbf16>
    %cst_117 = arith.constant dense<0.000000e+00> : vector<288x128xf32>
    %110 = tpu.matmul %106, %109, %cst_117 {dimension_numbers = #tpu.dot_dimension_numbers<[1], [0], [0], [1], [0, 0, 1, 1], [], []>} : vector<288x128xbf16>, vector<128x128xbf16>, vector<288x128xf32> -> vector<288x128xf32>
    %111 = arith.addf %107, %110 : vector<288x128xf32>
    %c0_118 = arith.constant 0 : index
    %c0_119 = arith.constant 0 : index
    %112 = vector.load %arg8[%c0_118, %c0_119] : memref<288x128xf32, #tpu.memory_space<vmem>>, vector<288x128xf32>
    tpu.vector_store %arg8[%c0_118, %c0_119], %111 {strides = array<i32>} : memref<288x128xf32, #tpu.memory_space<vmem>>, vector<288x128xf32>,
    %c7_120 = arith.constant 7 : index
    %c0_121 = arith.constant 0 : index
    %113 = vector.load %arg9[%c7_120, %c0_121] : memref<336x128xf32, #tpu.memory_space<vmem>>, vector<288x128xf32>
    %114 = arith.truncf %113 : vector<288x128xf32> to vector<288x128xbf16>
    %c0_122 = arith.constant 0 : index
    %c0_123 = arith.constant 0 : index
    %115 = vector.load %arg8[%c0_122, %c0_123] : memref<288x128xf32, #tpu.memory_space<vmem>>, vector<288x128xf32>
    %c2_124 = arith.constant 2 : index
    %c0_125 = arith.constant 0 : index
    %c0_126 = arith.constant 0 : index
    %116 = vector.load %arg4[%c2_124, %c0_125, %c0_126] : memref<9x128x128xbf16, #tpu.memory_space<vmem>>, vector<1x128x128xbf16>
    %117 = vector.shape_cast %116 : vector<1x128x128xbf16> to vector<128x128xbf16>
    %cst_127 = arith.constant dense<0.000000e+00> : vector<288x128xf32>
    %118 = tpu.matmul %114, %117, %cst_127 {dimension_numbers = #tpu.dot_dimension_numbers<[1], [0], [0], [1], [0, 0, 1, 1], [], []>} : vector<288x128xbf16>, vector<128x128xbf16>, vector<288x128xf32> -> vector<288x128xf32>
    %119 = arith.addf %115, %118 : vector<288x128xf32>
    %c0_128 = arith.constant 0 : index
    %c0_129 = arith.constant 0 : index
    %120 = vector.load %arg8[%c0_128, %c0_129] : memref<288x128xf32, #tpu.memory_space<vmem>>, vector<288x128xf32>
    tpu.vector_store %arg8[%c0_128, %c0_129], %119 {strides = array<i32>} : memref<288x128xf32, #tpu.memory_space<vmem>>, vector<288x128xf32>,
    %c23 = arith.constant 23 : index
    %c0_130 = arith.constant 0 : index
    %121 = vector.load %arg9[%c23, %c0_130] : memref<336x128xf32, #tpu.memory_space<vmem>>, vector<288x128xf32>
    %122 = arith.truncf %121 : vector<288x128xf32> to vector<288x128xbf16>
    %c0_131 = arith.constant 0 : index
    %c0_132 = arith.constant 0 : index
    %123 = vector.load %arg8[%c0_131, %c0_132] : memref<288x128xf32, #tpu.memory_space<vmem>>, vector<288x128xf32>
    %c3_133 = arith.constant 3 : index
    %c0_134 = arith.constant 0 : index
    %c0_135 = arith.constant 0 : index
    %124 = vector.load %arg4[%c3_133, %c0_134, %c0_135] : memref<9x128x128xbf16, #tpu.memory_space<vmem>>, vector<1x128x128xbf16>
    %125 = vector.shape_cast %124 : vector<1x128x128xbf16> to vector<128x128xbf16>
    %cst_136 = arith.constant dense<0.000000e+00> : vector<288x128xf32>
    %126 = tpu.matmul %122, %125, %cst_136 {dimension_numbers = #tpu.dot_dimension_numbers<[1], [0], [0], [1], [0, 0, 1, 1], [], []>} : vector<288x128xbf16>, vector<128x128xbf16>, vector<288x128xf32> -> vector<288x128xf32>
    %127 = arith.addf %123, %126 : vector<288x128xf32>
    %c0_137 = arith.constant 0 : index
    %c0_138 = arith.constant 0 : index
    %128 = vector.load %arg8[%c0_137, %c0_138] : memref<288x128xf32, #tpu.memory_space<vmem>>, vector<288x128xf32>
    tpu.vector_store %arg8[%c0_137, %c0_138], %127 {strides = array<i32>} : memref<288x128xf32, #tpu.memory_space<vmem>>, vector<288x128xf32>,
    %c24_139 = arith.constant 24 : index
    %c0_140 = arith.constant 0 : index
    %129 = vector.load %arg9[%c24_139, %c0_140] : memref<336x128xf32, #tpu.memory_space<vmem>>, vector<288x128xf32>
    %130 = arith.truncf %129 : vector<288x128xf32> to vector<288x128xbf16>
    %c0_141 = arith.constant 0 : index
    %c0_142 = arith.constant 0 : index
    %131 = vector.load %arg8[%c0_141, %c0_142] : memref<288x128xf32, #tpu.memory_space<vmem>>, vector<288x128xf32>
    %c4_143 = arith.constant 4 : index
    %c0_144 = arith.constant 0 : index
    %c0_145 = arith.constant 0 : index
    %132 = vector.load %arg4[%c4_143, %c0_144, %c0_145] : memref<9x128x128xbf16, #tpu.memory_space<vmem>>, vector<1x128x128xbf16>
    %133 = vector.shape_cast %132 : vector<1x128x128xbf16> to vector<128x128xbf16>
    %cst_146 = arith.constant dense<0.000000e+00> : vector<288x128xf32>
    %134 = tpu.matmul %130, %133, %cst_146 {dimension_numbers = #tpu.dot_dimension_numbers<[1], [0], [0], [1], [0, 0, 1, 1], [], []>} : vector<288x128xbf16>, vector<128x128xbf16>, vector<288x128xf32> -> vector<288x128xf32>
    %135 = arith.addf %131, %134 : vector<288x128xf32>
    %c0_147 = arith.constant 0 : index
    %c0_148 = arith.constant 0 : index
    %136 = vector.load %arg8[%c0_147, %c0_148] : memref<288x128xf32, #tpu.memory_space<vmem>>, vector<288x128xf32>
    tpu.vector_store %arg8[%c0_147, %c0_148], %135 {strides = array<i32>} : memref<288x128xf32, #tpu.memory_space<vmem>>, vector<288x128xf32>,
    %c25 = arith.constant 25 : index
    %c0_149 = arith.constant 0 : index
    %137 = vector.load %arg9[%c25, %c0_149] : memref<336x128xf32, #tpu.memory_space<vmem>>, vector<288x128xf32>
    %138 = arith.truncf %137 : vector<288x128xf32> to vector<288x128xbf16>
    %c0_150 = arith.constant 0 : index
    %c0_151 = arith.constant 0 : index
    %139 = vector.load %arg8[%c0_150, %c0_151] : memref<288x128xf32, #tpu.memory_space<vmem>>, vector<288x128xf32>
    %c5_152 = arith.constant 5 : index
    %c0_153 = arith.constant 0 : index
    %c0_154 = arith.constant 0 : index
    %140 = vector.load %arg4[%c5_152, %c0_153, %c0_154] : memref<9x128x128xbf16, #tpu.memory_space<vmem>>, vector<1x128x128xbf16>
    %141 = vector.shape_cast %140 : vector<1x128x128xbf16> to vector<128x128xbf16>
    %cst_155 = arith.constant dense<0.000000e+00> : vector<288x128xf32>
    %142 = tpu.matmul %138, %141, %cst_155 {dimension_numbers = #tpu.dot_dimension_numbers<[1], [0], [0], [1], [0, 0, 1, 1], [], []>} : vector<288x128xbf16>, vector<128x128xbf16>, vector<288x128xf32> -> vector<288x128xf32>
    %143 = arith.addf %139, %142 : vector<288x128xf32>
    %c0_156 = arith.constant 0 : index
    %c0_157 = arith.constant 0 : index
    %144 = vector.load %arg8[%c0_156, %c0_157] : memref<288x128xf32, #tpu.memory_space<vmem>>, vector<288x128xf32>
    tpu.vector_store %arg8[%c0_156, %c0_157], %143 {strides = array<i32>} : memref<288x128xf32, #tpu.memory_space<vmem>>, vector<288x128xf32>,
    %c41 = arith.constant 41 : index
    %c0_158 = arith.constant 0 : index
    %145 = vector.load %arg9[%c41, %c0_158] : memref<336x128xf32, #tpu.memory_space<vmem>>, vector<288x128xf32>
    %146 = arith.truncf %145 : vector<288x128xf32> to vector<288x128xbf16>
    %c0_159 = arith.constant 0 : index
    %c0_160 = arith.constant 0 : index
    %147 = vector.load %arg8[%c0_159, %c0_160] : memref<288x128xf32, #tpu.memory_space<vmem>>, vector<288x128xf32>
    %c6_161 = arith.constant 6 : index
    %c0_162 = arith.constant 0 : index
    %c0_163 = arith.constant 0 : index
    %148 = vector.load %arg4[%c6_161, %c0_162, %c0_163] : memref<9x128x128xbf16, #tpu.memory_space<vmem>>, vector<1x128x128xbf16>
    %149 = vector.shape_cast %148 : vector<1x128x128xbf16> to vector<128x128xbf16>
    %cst_164 = arith.constant dense<0.000000e+00> : vector<288x128xf32>
    %150 = tpu.matmul %146, %149, %cst_164 {dimension_numbers = #tpu.dot_dimension_numbers<[1], [0], [0], [1], [0, 0, 1, 1], [], []>} : vector<288x128xbf16>, vector<128x128xbf16>, vector<288x128xf32> -> vector<288x128xf32>
    %151 = arith.addf %147, %150 : vector<288x128xf32>
    %c0_165 = arith.constant 0 : index
    %c0_166 = arith.constant 0 : index
    %152 = vector.load %arg8[%c0_165, %c0_166] : memref<288x128xf32, #tpu.memory_space<vmem>>, vector<288x128xf32>
    tpu.vector_store %arg8[%c0_165, %c0_166], %151 {strides = array<i32>} : memref<288x128xf32, #tpu.memory_space<vmem>>, vector<288x128xf32>,
    %c42 = arith.constant 42 : index
    %c0_167 = arith.constant 0 : index
    %153 = vector.load %arg9[%c42, %c0_167] : memref<336x128xf32, #tpu.memory_space<vmem>>, vector<288x128xf32>
    %154 = arith.truncf %153 : vector<288x128xf32> to vector<288x128xbf16>
    %c0_168 = arith.constant 0 : index
    %c0_169 = arith.constant 0 : index
    %155 = vector.load %arg8[%c0_168, %c0_169] : memref<288x128xf32, #tpu.memory_space<vmem>>, vector<288x128xf32>
    %c7_170 = arith.constant 7 : index
    %c0_171 = arith.constant 0 : index
    %c0_172 = arith.constant 0 : index
    %156 = vector.load %arg4[%c7_170, %c0_171, %c0_172] : memref<9x128x128xbf16, #tpu.memory_space<vmem>>, vector<1x128x128xbf16>
    %157 = vector.shape_cast %156 : vector<1x128x128xbf16> to vector<128x128xbf16>
    %cst_173 = arith.constant dense<0.000000e+00> : vector<288x128xf32>
    %158 = tpu.matmul %154, %157, %cst_173 {dimension_numbers = #tpu.dot_dimension_numbers<[1], [0], [0], [1], [0, 0, 1, 1], [], []>} : vector<288x128xbf16>, vector<128x128xbf16>, vector<288x128xf32> -> vector<288x128xf32>
    %159 = arith.addf %155, %158 : vector<288x128xf32>
    %c0_174 = arith.constant 0 : index
    %c0_175 = arith.constant 0 : index
    %160 = vector.load %arg8[%c0_174, %c0_175] : memref<288x128xf32, #tpu.memory_space<vmem>>, vector<288x128xf32>
    tpu.vector_store %arg8[%c0_174, %c0_175], %159 {strides = array<i32>} : memref<288x128xf32, #tpu.memory_space<vmem>>, vector<288x128xf32>,
    %c43 = arith.constant 43 : index
    %c0_176 = arith.constant 0 : index
    %161 = vector.load %arg9[%c43, %c0_176] : memref<336x128xf32, #tpu.memory_space<vmem>>, vector<288x128xf32>
    %162 = arith.truncf %161 : vector<288x128xf32> to vector<288x128xbf16>
    %c0_177 = arith.constant 0 : index
    %c0_178 = arith.constant 0 : index
    %163 = vector.load %arg8[%c0_177, %c0_178] : memref<288x128xf32, #tpu.memory_space<vmem>>, vector<288x128xf32>
    %c8_179 = arith.constant 8 : index
    %c0_180 = arith.constant 0 : index
    %c0_181 = arith.constant 0 : index
    %164 = vector.load %arg4[%c8_179, %c0_180, %c0_181] : memref<9x128x128xbf16, #tpu.memory_space<vmem>>, vector<1x128x128xbf16>
    %165 = vector.shape_cast %164 : vector<1x128x128xbf16> to vector<128x128xbf16>
    %cst_182 = arith.constant dense<0.000000e+00> : vector<288x128xf32>
    %166 = tpu.matmul %162, %165, %cst_182 {dimension_numbers = #tpu.dot_dimension_numbers<[1], [0], [0], [1], [0, 0, 1, 1], [], []>} : vector<288x128xbf16>, vector<128x128xbf16>, vector<288x128xf32> -> vector<288x128xf32>
    %167 = arith.addf %163, %166 : vector<288x128xf32>
    %c0_183 = arith.constant 0 : index
    %c0_184 = arith.constant 0 : index
    %168 = vector.load %arg8[%c0_183, %c0_184] : memref<288x128xf32, #tpu.memory_space<vmem>>, vector<288x128xf32>
    tpu.vector_store %arg8[%c0_183, %c0_184], %167 {strides = array<i32>} : memref<288x128xf32, #tpu.memory_space<vmem>>, vector<288x128xf32>,
    %c0_185 = arith.constant 0 : index
    %c19_186 = arith.constant 19 : index
    %c0_187 = arith.constant 0 : index
    %169 = vector.load %arg1[%c0_185, %c19_186, %c0_187] : memref<1x328x128xf32, #tpu.memory_space<vmem>>, vector<1x288x128xf32>
    %170 = vector.shape_cast %169 : vector<1x288x128xf32> to vector<288x128xf32>
    %c0_188 = arith.constant 0 : index
    %c0_189 = arith.constant 0 : index
    %171 = vector.load %arg8[%c0_188, %c0_189] : memref<288x128xf32, #tpu.memory_space<vmem>>, vector<288x128xf32>
    %c0_190 = arith.constant 0 : index
    %c0_191 = arith.constant 0 : index
    %172 = vector.load %arg5[%c0_190, %c0_191] : memref<1x128xf32, #tpu.memory_space<vmem>>, vector<1x128xf32>
    %173 = vector.broadcast %172 : vector<1x128xf32> to vector<288x128xf32>
    %174 = arith.addf %171, %173 : vector<288x128xf32>
    %175 = arith.addf %174, %170 : vector<288x128xf32>
    %cst_192 = arith.constant 0.000000e+00 : f32
    %176 = vector.broadcast %cst_192 : f32 to vector<288x128xf32>
    %177 = arith.maximumf %175, %176 : vector<288x128xf32>
    %178 = vector.broadcast %0 : vector<288x1xf32> to vector<288x128xf32>
    %179 = arith.mulf %177, %178 : vector<288x128xf32>
    %cst_193 = arith.constant dense<0.000000e+00> : vector<128xf32>
    %180 = vector.multi_reduction <add>, %179, %cst_193 [0] : vector<288x128xf32> to vector<128xf32>
    %181 = vector.shape_cast %180 : vector<128xf32> to vector<1x128xf32>
    %cst_194 = arith.constant 3.906250e-03 : f32
    %182 = vector.broadcast %cst_194 : f32 to vector<1x128xf32>
    %183 = arith.mulf %181, %182 : vector<1x128xf32>
    %c0_195 = arith.constant 0 : index
    %c0_196 = arith.constant 0 : index
    %c0_197 = arith.constant 0 : index
    %184 = vector.load %arg7[%c0_195, %c0_196, %c0_197] : memref<1x1x128xf32, #tpu.memory_space<vmem>>, vector<1x1x128xf32>
    %185 = vector.shape_cast %184 : vector<1x1x128xf32> to vector<1x128xf32>
    %186 = vector.shape_cast %183 : vector<1x128xf32> to vector<1x1x128xf32>
    tpu.vector_store %arg7[%c0_195, %c0_196, %c0_197], %186 {strides = array<i32>} : memref<1x1x128xf32, #tpu.memory_space<vmem>>, vector<1x1x128xf32>,
    return
  }
  func.func @transform_0(%arg0: i32) -> (i32, i32, i32) {
    %c0_i32 = arith.constant 0 : i32
    %c0_i32_0 = arith.constant 0 : i32
    %c0_i32_1 = arith.constant 0 : i32
    return %arg0, %c0_i32, %c0_i32_0 : i32, i32, i32
  }
  func.func @transform_1(%arg0: i32) -> (i32, i32, i32) {
    %c0_i32 = arith.constant 0 : i32
    %c0_i32_0 = arith.constant 0 : i32
    %c0_i32_1 = arith.constant 0 : i32
    %c0_i32_2 = arith.constant 0 : i32
    return %c0_i32, %c0_i32_0, %c0_i32_1 : i32, i32, i32
  }
  func.func @transform_2(%arg0: i32) -> (i32, i32) {
    %c0_i32 = arith.constant 0 : i32
    %c0_i32_0 = arith.constant 0 : i32
    %c0_i32_1 = arith.constant 0 : i32
    return %c0_i32, %c0_i32_0 : i32, i32
  }
  func.func @transform_3(%arg0: i32) -> (i32, i32, i32) {
    %c0_i32 = arith.constant 0 : i32
    %c0_i32_0 = arith.constant 0 : i32
    %c0_i32_1 = arith.constant 0 : i32
    %c0_i32_2 = arith.constant 0 : i32
    return %c0_i32, %c0_i32_0, %c0_i32_1 : i32, i32, i32
  }
  func.func @transform_4(%arg0: i32) -> (i32, i32) {
    %c0_i32 = arith.constant 0 : i32
    %c0_i32_0 = arith.constant 0 : i32
    %c0_i32_1 = arith.constant 0 : i32
    return %c0_i32, %c0_i32_0 : i32, i32
  }
  func.func @transform_5(%arg0: i32) -> (i32, i32) {
    %c0_i32 = arith.constant 0 : i32
    %c0_i32_0 = arith.constant 0 : i32
    %c0_i32_1 = arith.constant 0 : i32
    return %c0_i32, %c0_i32_0 : i32, i32
  }
  func.func @transform_6(%arg0: i32) -> (i32, i32, i32) {
    %c0_i32 = arith.constant 0 : i32
    %c0_i32_0 = arith.constant 0 : i32
    %c0_i32_1 = arith.constant 0 : i32
    return %arg0, %c0_i32, %c0_i32_0 : i32, i32, i32
  }
}

</mosaic_0001>

<llo_original>
// kernel: pallas_forward.2
$region0: #{pallas_forward.2}
  #allocation0 [shape = 'u32[]', space=smem, size = 0x4, offset = 0x4, fixed_abs, tag = 'smem constant byte address 0x4 - core index']
  #allocation1 [shape = 'u32[144,128]{1,0:T(1,128)}', space=vmem, size = 0x12000, scoped, tag = 'internal scratch']
  %s0 = inlined_call_operand.vmem [shape: bf16[512,27], index: 0, kind: input, shape index: {}]
  %s1 = inlined_call_operand.vmem [shape: bf16[27,128], index: 1, kind: input, shape index: {}]
  %s2 = inlined_call_operand.vmem [shape: f32[1,128], index: 2, kind: input, shape index: {}]
  %s3 = inlined_call_operand.vmem [shape: f32[512,128], index: 3, kind: output, shape index: {}]
  %s4 = sld [smem:[#allocation0]]
  $region45: #{pallas_forward.2} parent=0
    _
  %s6 = ssub.s32 1, %s4
  %s7 = scalar_select 0, %s6, %s4
  loop: start=0, step=1, limit=4
  $region2: #{pallas_forward.2} parent=0 // loop_pre_header
    _
  $region3: #{pallas_forward.2} parent=0 // loop_header
    %s9 = sphi 0, %s13
    %p10 = scmp.ge.s32.totalorder %s9, 4
    %s19 = sphi 0, %s21
    %s22 = sphi 0, %s19
    %s23 = sphi 0, %s22
    %s39 = sphi 0, %s23
    %s43 = sphi 0, %s43
    %s45 = sphi 0, %s43
    %s46 = sphi 0, %s45
    %s60 = sphi 0, %s46
    %s64 = sphi 0, %s64
    %s66 = sphi 0, %s64
    %s67 = sphi 0, %s66
    %s81 = sphi 0, %s67
    %s87 = sphi 0, %s89
    %s90 = sphi 0, %s87
    %s91 = sphi 0, %s90
    %s107 = sphi 0, %s91
  $region4: #{pallas_forward.2} parent=0 // loop_header_branch
    %12 = sbr.rel (%p10) target = $region8
  $region5: #{pallas_forward.2} parent=0 // loop_body
    %s14 = ssub.s32 %s9, 1
    %s15 = ssub.s32 %s9, 2
    %s16 = sadd.s32 %s9, 1
    %s17 = ssub.s32 %s9, %s16
    %p18 = scmp.eq.s32.totalorder %s17, 0
    %s20 = sadd.s32 %s19, 1
    %s21 = scalar_select %p18, %s19, %s20
    %p24 = pneg %p18
    %p25 = scmp.eq.s32.totalorder %s9, 1
    %p26 = por %p24, %p25
    %p27 = scmp.ne.s32.totalorder %s19, %s22
    %p28 = scmp.eq.s32.totalorder %s9, 0
    %p29 = por %p27, %p28
    %p30 = scmp.ne.s32.totalorder %s19, %s22
    %p31 = scmp.eq.s32.totalorder %s14, 1
    %p32 = por %p30, %p31
    %p33 = scmp.ne.s32.totalorder %s22, %s23
    %p34 = scmp.eq.s32.totalorder %s14, 0
    %p35 = por %p33, %p34
    %p36 = scmp.ne.s32.totalorder %s22, %s23
    %p37 = scmp.eq.s32.totalorder %s15, 1
    %p38 = por %p36, %p37
    %p40 = scmp.ne.s32.totalorder %s23, %s39
    %p41 = scmp.eq.s32.totalorder %s15, 0
    %p42 = por %p40, %p41
    %s44 = sadd.s32 %s43, 1
    %p47 = scmp.eq.s32.totalorder %s9, 1
    %p48 = scmp.ne.s32.totalorder %s43, %s45
    %p49 = scmp.eq.s32.totalorder %s9, 0
    %p50 = por %p48, %p49
    %p51 = scmp.ne.s32.totalorder %s43, %s45
    %p52 = scmp.eq.s32.totalorder %s14, 1
    %p53 = por %p51, %p52
    %p54 = scmp.ne.s32.totalorder %s45, %s46
    %p55 = scmp.eq.s32.totalorder %s14, 0
    %p56 = por %p54, %p55
    %p57 = scmp.ne.s32.totalorder %s45, %s46
    %p58 = scmp.eq.s32.totalorder %s15, 1
    %p59 = por %p57, %p58
    %p61 = scmp.ne.s32.totalorder %s46, %s60
    %p62 = scmp.eq.s32.totalorder %s15, 0
    %p63 = por %p61, %p62
    %s65 = sadd.s32 %s64, 1
    %p68 = scmp.eq.s32.totalorder %s9, 1
    %p69 = scmp.ne.s32.totalorder %s64, %s66
    %p70 = scmp.eq.s32.totalorder %s9, 0
    %p71 = por %p69, %p70
    %p72 = scmp.ne.s32.totalorder %s64, %s66
    %p73 = scmp.eq.s32.totalorder %s14, 1
    %p74 = por %p72, %p73
    %p75 = scmp.ne.s32.totalorder %s66, %s67
    %p76 = scmp.eq.s32.totalorder %s14, 0
    %p77 = por %p75, %p76
    %p78 = scmp.ne.s32.totalorder %s66, %s67
    %p79 = scmp.eq.s32.totalorder %s15, 1
    %p80 = por %p78, %p79
    %p82 = scmp.ne.s32.totalorder %s67, %s81
    %p83 = scmp.eq.s32.totalorder %s15, 0
    %p84 = por %p82, %p83
    %s85 = ssub.s32 %s9, %s16
    %p86 = scmp.eq.s32.totalorder %s85, 0
    %s88 = sadd.s32 %s87, 1
    %s89 = scalar_select %p86, %s87, %s88
    %p92 = pneg %p86
    %p93 = scmp.eq.s32.totalorder %s9, 1
    %p94 = por %p92, %p93
    %p95 = scmp.ne.s32.totalorder %s87, %s90
    %p96 = scmp.eq.s32.totalorder %s9, 0
    %p97 = por %p95, %p96
    %p98 = scmp.ne.s32.totalorder %s87, %s90
    %p99 = scmp.eq.s32.totalorder %s14, 1
    %p100 = por %p98, %p99
    %p101 = scmp.ne.s32.totalorder %s90, %s91
    %p102 = scmp.eq.s32.totalorder %s14, 0
    %p103 = por %p101, %p102
    %p104 = scmp.ne.s32.totalorder %s90, %s91
    %p105 = scmp.eq.s32.totalorder %s15, 1
    %p106 = por %p104, %p105
    %p108 = scmp.ne.s32.totalorder %s91, %s107
    %p109 = scmp.eq.s32.totalorder %s15, 0
    %p110 = por %p108, %p109
    %p111 = scmp.le.s32.totalorder 1, %s9
    %p112 = scmp.lt.s32.totalorder %s9, 3
    %p113 = pnand %p111, %p112
    %p114 = pneg %p113
    // Predicated region
    $region9: #{pallas_forward.2} parent=5 // pred_check
      _
    $region10: #{pallas_forward.2} parent=5 // pred_check_branch
      %116 = sbr.rel (%p113) target = $region12
    $region11: #{pallas_forward.2} parent=5 // pred_region
      %s117 = ssub.s32 %s9, 1
      // Predicated region
      $region13: #{pallas_forward.2} parent=11 // pred_check
        %p118 = pneg %p56
      $region14: #{pallas_forward.2} parent=11 // pred_check_branch
        %120 = sbr.rel (%p118) target = $region16
      $region15: #{pallas_forward.2} parent=11 // pred_region
        _
      $region16: #{pallas_forward.2} parent=11 // pred_fallthru
        _
      // Predicated region
      $region17: #{pallas_forward.2} parent=11 // pred_check
        %p121 = pneg %p77
      $region18: #{pallas_forward.2} parent=11 // pred_check_branch
        %123 = sbr.rel (%p121) target = $region20
      $region19: #{pallas_forward.2} parent=11 // pred_region
        _
      $region20: #{pallas_forward.2} parent=11 // pred_fallthru
        _
    $region12: #{pallas_forward.2} parent=5 // pred_fallthru
      _
    %p124 = scmp.lt.s32.totalorder %s9, 2
    // Predicated region
    $region21: #{pallas_forward.2} parent=5 // pred_check
      %p125 = pneg %p124
    $region22: #{pallas_forward.2} parent=5 // pred_check_branch
      %127 = sbr.rel (%p125) target = $region24
    $region23: #{pallas_forward.2} parent=5 // pred_region
      // Predicated region
      $region25: #{pallas_forward.2} parent=23 // pred_check
        %p128 = pneg %p29
      $region26: #{pallas_forward.2} parent=23 // pred_check_branch
        %130 = sbr.rel (%p128) target = $region28
      $region27: #{pallas_forward.2} parent=23 // pred_region
        %s131 = smul.u32 32, %s9
        %p132 = scmp.lt.s32.totalorder %s131, 63
        %s133 = scalar_select %p132, %s131, 63
        %s134 = smul.addr %s133, 4
        %s135 = scalar_lea.vmem %s0, %s134
        %s136 = smul.u32 32, %s9
      $region28: #{pallas_forward.2} parent=23 // pred_fallthru
        _
    $region24: #{pallas_forward.2} parent=5 // pred_fallthru
      _
    %p137 = scmp.le.s32.totalorder 1, %s9
    %p138 = scmp.lt.s32.totalorder %s9, 3
    %p139 = pnand %p137, %p138
    %p140 = pneg %p139
    // Predicated region
    $region29: #{pallas_forward.2} parent=5 // pred_check
      _
    $region30: #{pallas_forward.2} parent=5 // pred_check_branch
      %142 = sbr.rel (%p139) target = $region32
    $region31: #{pallas_forward.2} parent=5 // pred_region
      %s143 = ssub.s32 %s9, 1
      %s144 = smul.u32 32, %s14
      %p145 = scmp.lt.s32.totalorder %s144, 63
      %s146 = scalar_select %p145, %s144, 63
      %s147 = smul.addr %s146, 4
      %s148 = scalar_lea.vmem %s0, %s147
      %p149 = pneg %p35
      %p150 = pneg %p32
      %p151 = pneg %p56
      %p152 = pneg %p53
      %p153 = pneg %p77
      %p154 = pneg %p74
      %p155 = pneg %p103
      %p156 = pneg %p100
      %s157 = smul.u32 32, %s14
      %p158 = scmp.lt.s32.totalorder %s157, 63
      %s159 = scalar_select %p158, %s157, 63
      %s160 = smul.addr %s159, 8
      %s161 = scalar_lea.vmem %s3, %s160
      %s162 = smul.u32 32, %s14
      %p163 = scmp.lt.s32.totalorder %s162, 63
      %s164 = scalar_select %p163, %s162, 63
      %s165 = smul.addr %s164, 4
      %s166 = scalar_lea.vmem %s0, %s165
      %s167 = smul.u32 32, %s14
      %s168 = smul.u32 32, %s14
      %p169 = scmp.lt.s32.totalorder %s168, 63
      %s170 = scalar_select %p169, %s168, 63
      %s171 = smul.addr %s170, 8
      %s172 = scalar_lea.vmem %s3, %s171
      %s173 = smul.u32 32, %s14
      %v175 = vld [vmem:[%s166] sm:$0xf]
      %v176 = vld [vmem:[%s166 + $0x4] sm:$0xf]
      %v177 = vld [vmem:[%s166 + $0x8] sm:$0xf]
      %v178 = vld [vmem:[%s166 + $0xc] sm:$0xf]
      %v179 = vld [vmem:[%s166 + $0x10] sm:$0xf]
      %v180 = vld [vmem:[%s166 + $0x14] sm:$0xf]
      %v181 = vld [vmem:[%s166 + $0x18] sm:$0xf]
      %v182 = vld [vmem:[%s166 + $0x1c] sm:$0xf]
      %v183 = vld [vmem:[%s166 + $0x20] sm:$0xf]
      %v184 = vld [vmem:[%s166 + $0x24] sm:$0xf]
      %v185 = vld [vmem:[%s166 + $0x28] sm:$0xf]
      %v186 = vld [vmem:[%s166 + $0x2c] sm:$0xf]
      %v187 = vld [vmem:[%s166 + $0x30] sm:$0xf]
      %v188 = vld [vmem:[%s166 + $0x34] sm:$0xf]
      %v189 = vld [vmem:[%s166 + $0x38] sm:$0xf]
      %v190 = vld [vmem:[%s166 + $0x3c] sm:$0xf]
      %v191 = vld [vmem:[%s166 + $0x40] sm:$0xf]
      %v192 = vld [vmem:[%s166 + $0x44] sm:$0xf]
      %v193 = vld [vmem:[%s166 + $0x48] sm:$0xf]
      %v194 = vld [vmem:[%s166 + $0x4c] sm:$0xf]
      %v195 = vld [vmem:[%s166 + $0x50] sm:$0xf]
      %v196 = vld [vmem:[%s166 + $0x54] sm:$0xf]
      %v197 = vld [vmem:[%s166 + $0x58] sm:$0xf]
      %v198 = vld [vmem:[%s166 + $0x5c] sm:$0xf]
      %v199 = vld [vmem:[%s166 + $0x60] sm:$0xf]
      %v200 = vld [vmem:[%s166 + $0x64] sm:$0xf]
      %v201 = vld [vmem:[%s166 + $0x68] sm:$0xf]
      %v202 = vld [vmem:[%s166 + $0x6c] sm:$0xf]
      %v203 = vld [vmem:[%s166 + $0x70] sm:$0xf]
      %v204 = vld [vmem:[%s166 + $0x74] sm:$0xf]
      %v205 = vld [vmem:[%s166 + $0x78] sm:$0xf]
      %v206 = vld [vmem:[%s166 + $0x7c] sm:$0xf]
      %v207 = vld [vmem:[%s1] sm:$0xf]
      %v208 = vld [vmem:[%s1 + $0x4] sm:$0xf]
      %v209 = vld [vmem:[%s1 + $0x8] sm:$0xf]
      %v210 = vld [vmem:[%s1 + $0xc] sm:$0x3]
      %v211 = vld [vmem:[%s2] sm:$0x1]
      %v213 = vlaneseq
      %v214 = vshrl.u32 %v213, 7
      %v215 = vsub.s32 0, %v214
      %v216 = vrot.slane %v211, %v215
      %v250 = vunpack.c.l.b16 %v175
      %v251 = vunpack.c.l.b16 %v176
      %v252 = vunpack.c.l.b16 %v177
      %v253 = vunpack.c.l.b16 %v178
      %v254 = vunpack.c.l.b16 %v179
      %v255 = vunpack.c.l.b16 %v180
      %v256 = vunpack.c.l.b16 %v181
      %v257 = vunpack.c.l.b16 %v182
      %v258 = vunpack.c.l.b16 %v183
      %v259 = vunpack.c.l.b16 %v184
      %v260 = vunpack.c.l.b16 %v185
      %v261 = vunpack.c.l.b16 %v186
      %v262 = vunpack.c.l.b16 %v187
      %v263 = vunpack.c.l.b16 %v188
      %v264 = vunpack.c.l.b16 %v189
      %v265 = vunpack.c.l.b16 %v190
      %v266 = vunpack.c.l.b16 %v191
      %v267 = vunpack.c.l.b16 %v192
      %v268 = vunpack.c.l.b16 %v193
      %v269 = vunpack.c.l.b16 %v194
      %v270 = vunpack.c.l.b16 %v195
      %v271 = vunpack.c.l.b16 %v196
      %v272 = vunpack.c.l.b16 %v197
      %v273 = vunpack.c.l.b16 %v198
      %v274 = vunpack.c.l.b16 %v199
      %v275 = vunpack.c.l.b16 %v200
      %v276 = vunpack.c.l.b16 %v201
      %v277 = vunpack.c.l.b16 %v202
      %v278 = vunpack.c.l.b16 %v203
      %v279 = vunpack.c.l.b16 %v204
      %v280 = vunpack.c.l.b16 %v205
      %v281 = vunpack.c.l.b16 %v206
      %v282 = vpack.c.b16 %v251, %v250
      %v283 = vpack.c.b16 %v253, %v252
      %v284 = vpack.c.b16 %v255, %v254
      %v285 = vpack.c.b16 %v257, %v256
      %v286 = vpack.c.b16 %v259, %v258
      %v287 = vpack.c.b16 %v261, %v260
      %v288 = vpack.c.b16 %v263, %v262
      %v289 = vpack.c.b16 %v265, %v264
      %v290 = vpack.c.b16 %v267, %v266
      %v291 = vpack.c.b16 %v269, %v268
      %v292 = vpack.c.b16 %v271, %v270
      %v293 = vpack.c.b16 %v273, %v272
      %v294 = vpack.c.b16 %v275, %v274
      %v295 = vpack.c.b16 %v277, %v276
      %v296 = vpack.c.b16 %v279, %v278
      %v297 = vpack.c.b16 %v281, %v280
      %v302 = vunpack.c.l.b16 %v207
      %v303 = vunpack.c.l.b16 %v208
      %v304 = vunpack.c.l.b16 %v209
      %v305 = vunpack.c.l.b16 %v210
      %v306 = vpack.c.b16 %v303, %v302
      %v307 = vpack.c.b16 %v305, %v304
      %vm309 = vcmask 220160
      %v311 = vsel %vm309, %v282, 0
      %v314 = vsel %vm309, %v283, 0
      %v317 = vsel %vm309, %v284, 0
      %v320 = vsel %vm309, %v285, 0
      %v323 = vsel %vm309, %v286, 0
      %v326 = vsel %vm309, %v287, 0
      %v329 = vsel %vm309, %v288, 0
      %v332 = vsel %vm309, %v289, 0
      %v335 = vsel %vm309, %v290, 0
      %v338 = vsel %vm309, %v291, 0
      %v341 = vsel %vm309, %v292, 0
      %v344 = vsel %vm309, %v293, 0
      %v347 = vsel %vm309, %v294, 0
      %v350 = vsel %vm309, %v295, 0
      %v353 = vsel %vm309, %v296, 0
      %v356 = vsel %vm309, %v297, 0
      %vm358 = vcmask 1044480
      %vm359 = vcmask 1045504
      %v360 = vsel %vm358, 4294967295, 65535
      %v361 = vsel %vm359, %v360, 0
      %v363 = vand.u32 %v307, %v361
      %365 = vmatprep.subr.bf16.mxu0 0
      %366 = vmatpush1.bf16.msra.mxu0 %v306
      %367 = vmatprep.subr.bf16.mxu0 0
      %368 = vmatpush1.bf16.msra.mxu0 %v363
      %369 = vmatprep.subr.bf16.mxu0 0
      %370 = vmatpush1.bf16.msra.mxu0 0
      %371 = vmatprep.subr.bf16.mxu0 0
      %372 = vmatpush1.bf16.msra.mxu0 0
      %373 = vmatprep.subr.bf16.mxu0 0
      %374 = vmatpush1.bf16.msra.mxu0 0
      %375 = vmatprep.subr.bf16.mxu0 0
      %376 = vmatpush1.bf16.msra.mxu0 0
      %377 = vmatprep.subr.bf16.mxu0 0
      %378 = vmatpush1.bf16.msra.mxu0 0
      %379 = vmatprep.subr.bf16.mxu0 0
      %380 = vmatpush1.bf16.msra.mxu0 0
      %381 = vmatprep.subr.bf16.mxu0 0
      %382 = vmatpush1.bf16.msra.mxu0 0
      %383 = vmatprep.subr.bf16.mxu0 0
      %384 = vmatpush1.bf16.msra.mxu0 0
      %385 = vmatprep.subr.bf16.mxu0 0
      %386 = vmatpush1.bf16.msra.mxu0 0
      %387 = vmatprep.subr.bf16.mxu0 0
      %388 = vmatpush1.bf16.msra.mxu0 0
      %389 = vmatprep.subr.bf16.mxu0 0
      %390 = vmatpush1.bf16.msra.mxu0 0
      %391 = vmatprep.subr.bf16.mxu0 0
      %392 = vmatpush1.bf16.msra.mxu0 0
      %393 = vmatprep.subr.bf16.mxu0 0
      %394 = vmatpush1.bf16.msra.mxu0 0
      %395 = vmatprep.subr.bf16.mxu0 0
      %396 = vmatpush1.bf16.msra.mxu0 0
      %397 = vmatprep.mubr.bf16.mxu0 0
      %398 = vmatmul.mubr.bf16.gmra.mrb[0].mxu0 %v311
      %v399 = vpop.f32.mrb[0].mxu0
      %v400 = vadd.f32 %v216, %v399
      %v401 = vpop.f32.mrb[0].mxu0
      %v402 = vpop.f32.mrb[0].mxu0
      %v403 = vadd.f32 %v216, %v402
      %v404 = vpop.f32.mrb[0].mxu0
      %405 = vmatprep.mubr.bf16.mxu0 0
      %406 = vmatmul.mubr.bf16.gmra.mrb[0].mxu0 %v314
      %v407 = vpop.f32.mrb[0].mxu0
      %v408 = vadd.f32 %v216, %v407
      %v409 = vpop.f32.mrb[0].mxu0
      %v410 = vpop.f32.mrb[0].mxu0
      %v411 = vadd.f32 %v216, %v410
      %v412 = vpop.f32.mrb[0].mxu0
      %413 = vmatprep.mubr.bf16.mxu0 0
      %414 = vmatmul.mubr.bf16.gmra.mrb[0].mxu0 %v317
      %v415 = vpop.f32.mrb[0].mxu0
      %v416 = vadd.f32 %v216, %v415
      %v417 = vpop.f32.mrb[0].mxu0
      %v418 = vpop.f32.mrb[0].mxu0
      %v419 = vadd.f32 %v216, %v418
      %v420 = vpop.f32.mrb[0].mxu0
      %421 = vmatprep.mubr.bf16.mxu0 0
      %422 = vmatmul.mubr.bf16.gmra.mrb[0].mxu0 %v320
      %v423 = vpop.f32.mrb[0].mxu0
      %v424 = vadd.f32 %v216, %v423
      %v425 = vpop.f32.mrb[0].mxu0
      %v426 = vpop.f32.mrb[0].mxu0
      %v427 = vadd.f32 %v216, %v426
      %v428 = vpop.f32.mrb[0].mxu0
      %429 = vmatprep.mubr.bf16.mxu0 0
      %430 = vmatmul.mubr.bf16.gmra.mrb[0].mxu0 %v323
      %v431 = vpop.f32.mrb[0].mxu0
      %v432 = vadd.f32 %v216, %v431
      %v433 = vpop.f32.mrb[0].mxu0
      %v434 = vpop.f32.mrb[0].mxu0
      %v435 = vadd.f32 %v216, %v434
      %v436 = vpop.f32.mrb[0].mxu0
      %437 = vmatprep.mubr.bf16.mxu0 0
      %438 = vmatmul.mubr.bf16.gmra.mrb[0].mxu0 %v326
      %v439 = vpop.f32.mrb[0].mxu0
      %v440 = vadd.f32 %v216, %v439
      %v441 = vpop.f32.mrb[0].mxu0
      %v442 = vpop.f32.mrb[0].mxu0
      %v443 = vadd.f32 %v216, %v442
      %v444 = vpop.f32.mrb[0].mxu0
      %445 = vmatprep.mubr.bf16.mxu0 0
      %446 = vmatmul.mubr.bf16.gmra.mrb[0].mxu0 %v329
      %v447 = vpop.f32.mrb[0].mxu0
      %v448 = vadd.f32 %v216, %v447
      %v449 = vpop.f32.mrb[0].mxu0
      %v450 = vpop.f32.mrb[0].mxu0
      %v451 = vadd.f32 %v216, %v450
      %v452 = vpop.f32.mrb[0].mxu0
      %453 = vmatprep.mubr.bf16.mxu0 0
      %454 = vmatmul.mubr.bf16.gmra.mrb[0].mxu0 %v332
      %v455 = vpop.f32.mrb[0].mxu0
      %v456 = vadd.f32 %v216, %v455
      %v457 = vpop.f32.mrb[0].mxu0
      %v458 = vpop.f32.mrb[0].mxu0
      %v459 = vadd.f32 %v216, %v458
      %v460 = vpop.f32.mrb[0].mxu0
      %461 = vmatprep.mubr.bf16.mxu0 0
      %462 = vmatmul.mubr.bf16.gmra.mrb[0].mxu0 %v335
      %v463 = vpop.f32.mrb[0].mxu0
      %v464 = vadd.f32 %v216, %v463
      %v465 = vpop.f32.mrb[0].mxu0
      %v466 = vpop.f32.mrb[0].mxu0
      %v467 = vadd.f32 %v216, %v466
      %v468 = vpop.f32.mrb[0].mxu0
      %469 = vmatprep.mubr.bf16.mxu0 0
      %470 = vmatmul.mubr.bf16.gmra.mrb[0].mxu0 %v338
      %v471 = vpop.f32.mrb[0].mxu0
      %v472 = vadd.f32 %v216, %v471
      %v473 = vpop.f32.mrb[0].mxu0
      %v474 = vpop.f32.mrb[0].mxu0
      %v475 = vadd.f32 %v216, %v474
      %v476 = vpop.f32.mrb[0].mxu0
      %477 = vmatprep.mubr.bf16.mxu0 0
      %478 = vmatmul.mubr.bf16.gmra.mrb[0].mxu0 %v341
      %v479 = vpop.f32.mrb[0].mxu0
      %v480 = vadd.f32 %v216, %v479
      %v481 = vpop.f32.mrb[0].mxu0
      %v482 = vpop.f32.mrb[0].mxu0
      %v483 = vadd.f32 %v216, %v482
      %v484 = vpop.f32.mrb[0].mxu0
      %485 = vmatprep.mubr.bf16.mxu0 0
      %486 = vmatmul.mubr.bf16.gmra.mrb[0].mxu0 %v344
      %v487 = vpop.f32.mrb[0].mxu0
      %v488 = vadd.f32 %v216, %v487
      %v489 = vpop.f32.mrb[0].mxu0
      %v490 = vpop.f32.mrb[0].mxu0
      %v491 = vadd.f32 %v216, %v490
      %v492 = vpop.f32.mrb[0].mxu0
      %493 = vmatprep.mubr.bf16.mxu0 0
      %494 = vmatmul.mubr.bf16.gmra.mrb[0].mxu0 %v347
      %v495 = vpop.f32.mrb[0].mxu0
      %v496 = vadd.f32 %v216, %v495
      %v497 = vpop.f32.mrb[0].mxu0
      %v498 = vpop.f32.mrb[0].mxu0
      %v499 = vadd.f32 %v216, %v498
      %v500 = vpop.f32.mrb[0].mxu0
      %501 = vmatprep.mubr.bf16.mxu0 0
      %502 = vmatmul.mubr.bf16.gmra.mrb[0].mxu0 %v350
      %v503 = vpop.f32.mrb[0].mxu0
      %v504 = vadd.f32 %v216, %v503
      %v505 = vpop.f32.mrb[0].mxu0
      %v506 = vpop.f32.mrb[0].mxu0
      %v507 = vadd.f32 %v216, %v506
      %v508 = vpop.f32.mrb[0].mxu0
      %509 = vmatprep.mubr.bf16.mxu0 0
      %510 = vmatmul.mubr.bf16.gmra.mrb[0].mxu0 %v353
      %v511 = vpop.f32.mrb[0].mxu0
      %v512 = vadd.f32 %v216, %v511
      %v513 = vpop.f32.mrb[0].mxu0
      %v514 = vpop.f32.mrb[0].mxu0
      %v515 = vadd.f32 %v216, %v514
      %v516 = vpop.f32.mrb[0].mxu0
      %517 = vmatprep.mubr.bf16.mxu0 0
      %518 = vmatmul.mubr.bf16.gmra.mrb[0].mxu0 %v356
      %v519 = vpop.f32.mrb[0].mxu0
      %v520 = vadd.f32 %v216, %v519
      %v521 = vpop.f32.mrb[0].mxu0
      %v522 = vpop.f32.mrb[0].mxu0
      %v523 = vadd.f32 %v216, %v522
      %v524 = vpop.f32.mrb[0].mxu0
      %525 = vdwg.mxu0
      %v526 = vmax.f32 %v400, 0.0
      %v527 = vmax.f32 %v403, 0.0
      %v528 = vmax.f32 %v408, 0.0
      %v529 = vmax.f32 %v411, 0.0
      %v530 = vmax.f32 %v416, 0.0
      %v531 = vmax.f32 %v419, 0.0
      %v532 = vmax.f32 %v424, 0.0
      %v533 = vmax.f32 %v427, 0.0
      %v534 = vmax.f32 %v432, 0.0
      %v535 = vmax.f32 %v435, 0.0
      %v536 = vmax.f32 %v440, 0.0
      %v537 = vmax.f32 %v443, 0.0
      %v538 = vmax.f32 %v448, 0.0
      %v539 = vmax.f32 %v451, 0.0
      %v540 = vmax.f32 %v456, 0.0
      %v541 = vmax.f32 %v459, 0.0
      %v542 = vmax.f32 %v464, 0.0
      %v543 = vmax.f32 %v467, 0.0
      %v544 = vmax.f32 %v472, 0.0
      %v545 = vmax.f32 %v475, 0.0
      %v546 = vmax.f32 %v480, 0.0
      %v547 = vmax.f32 %v483, 0.0
      %v548 = vmax.f32 %v488, 0.0
      %v549 = vmax.f32 %v491, 0.0
      %v550 = vmax.f32 %v496, 0.0
      %v551 = vmax.f32 %v499, 0.0
      %v552 = vmax.f32 %v504, 0.0
      %v553 = vmax.f32 %v507, 0.0
      %v554 = vmax.f32 %v512, 0.0
      %v555 = vmax.f32 %v515, 0.0
      %v556 = vmax.f32 %v520, 0.0
      %v557 = vmax.f32 %v523, 0.0
      %558 = vst [vmem:[%s172] sm:$0xff] %v526
      %559 = vst [vmem:[%s172 + $0x8] sm:$0xff] %v527
      %560 = vst [vmem:[%s172 + $0x10] sm:$0xff] %v528
      %561 = vst [vmem:[%s172 + $0x18] sm:$0xff] %v529
      %562 = vst [vmem:[%s172 + $0x20] sm:$0xff] %v530
      %563 = vst [vmem:[%s172 + $0x28] sm:$0xff] %v531
      %564 = vst [vmem:[%s172 + $0x30] sm:$0xff] %v532
      %565 = vst [vmem:[%s172 + $0x38] sm:$0xff] %v533
      %566 = vst [vmem:[%s172 + $0x40] sm:$0xff] %v534
      %567 = vst [vmem:[%s172 + $0x48] sm:$0xff] %v535
      %568 = vst [vmem:[%s172 + $0x50] sm:$0xff] %v536
      %569 = vst [vmem:[%s172 + $0x58] sm:$0xff] %v537
      %570 = vst [vmem:[%s172 + $0x60] sm:$0xff] %v538
      %571 = vst [vmem:[%s172 + $0x68] sm:$0xff] %v539
      %572 = vst [vmem:[%s172 + $0x70] sm:$0xff] %v540
      %573 = vst [vmem:[%s172 + $0x78] sm:$0xff] %v541
      %574 = vst [vmem:[%s172 + $0x80] sm:$0xff] %v542
      %575 = vst [vmem:[%s172 + $0x88] sm:$0xff] %v543
      %576 = vst [vmem:[%s172 + $0x90] sm:$0xff] %v544
      %577 = vst [vmem:[%s172 + $0x98] sm:$0xff] %v545
      %578 = vst [vmem:[%s172 + $0xa0] sm:$0xff] %v546
      %579 = vst [vmem:[%s172 + $0xa8] sm:$0xff] %v547
      %580 = vst [vmem:[%s172 + $0xb0] sm:$0xff] %v548
      %581 = vst [vmem:[%s172 + $0xb8] sm:$0xff] %v549
      %582 = vst [vmem:[%s172 + $0xc0] sm:$0xff] %v550
      %583 = vst [vmem:[%s172 + $0xc8] sm:$0xff] %v551
      %584 = vst [vmem:[%s172 + $0xd0] sm:$0xff] %v552
      %585 = vst [vmem:[%s172 + $0xd8] sm:$0xff] %v553
      %586 = vst [vmem:[%s172 + $0xe0] sm:$0xff] %v554
      %587 = vst [vmem:[%s172 + $0xe8] sm:$0xff] %v555
      %588 = vst [vmem:[%s172 + $0xf0] sm:$0xff] %v556
      %589 = vst [vmem:[%s172 + $0xf8] sm:$0xff] %v557
      %s590 = smul.u32 32, %s14
      %p591 = scmp.lt.s32.totalorder %s590, 63
      %s592 = scalar_select %p591, %s590, 63
      %s593 = smul.addr %s592, 8
      %s594 = scalar_lea.vmem %s3, %s593
      // Predicated region
      $region33: #{pallas_forward.2} parent=31 // pred_check
        %p595 = pneg %p100
      $region34: #{pallas_forward.2} parent=31 // pred_check_branch
        %597 = sbr.rel (%p595) target = $region36
      $region35: #{pallas_forward.2} parent=31 // pred_region
        %s598 = smul.u32 32, %s14
      $region36: #{pallas_forward.2} parent=31 // pred_fallthru
        _
    $region32: #{pallas_forward.2} parent=5 // pred_fallthru
      _
    %p599 = scmp.le.s32.totalorder 2, %s9
    // Predicated region
    $region37: #{pallas_forward.2} parent=5 // pred_check
      %p600 = pneg %p599
    $region38: #{pallas_forward.2} parent=5 // pred_check_branch
      %602 = sbr.rel (%p600) target = $region40
    $region39: #{pallas_forward.2} parent=5 // pred_region
      %s603 = ssub.s32 %s9, 2
      // Predicated region
      $region41: #{pallas_forward.2} parent=39 // pred_check
        %p604 = pneg %p106
      $region42: #{pallas_forward.2} parent=39 // pred_check_branch
        %606 = sbr.rel (%p604) target = $region44
      $region43: #{pallas_forward.2} parent=39 // pred_region
        %s607 = smul.u32 32, %s15
        %p608 = scmp.lt.s32.totalorder %s607, 63
        %s609 = scalar_select %p608, %s607, 63
        %s610 = smul.addr %s609, 8
        %s611 = scalar_lea.vmem %s3, %s610
      $region44: #{pallas_forward.2} parent=39 // pred_fallthru
        _
    $region40: #{pallas_forward.2} parent=5 // pred_fallthru
      _
  $region6: #{pallas_forward.2} parent=0 // loop_footer
    %s13 = sadd.s32 1, %s9
  $region7: #{pallas_forward.2} parent=0 // loop_footer_branch
    %8 = sbr.rel target = $region3
  $region8: #{pallas_forward.2} parent=0 // loop_exit
    _

// kernel: pallas_forward.3
$region0: #{pallas_forward.3}
  #allocation0 [shape = 'u32[]', space=smem, size = 0x4, offset = 0x4, fixed_abs, tag = 'smem constant byte address 0x4 - core index']
  #allocation1 [shape = 'u32[144,128]{1,0:T(1,128)}', space=vmem, size = 0x12000, scoped, tag = 'internal scratch']
  #allocation2 [shape = 'f32[288,128]{1,0:T(8,128)}', space=vmem, size = 0x24000, scoped, tag = 'scratch operand']
  #allocation3 [shape = 'f32[336,128]{1,0:T(8,128)}', space=vmem, size = 0x2a000, scoped, tag = 'scratch operand']
  %s0 = inlined_call_operand.vmem [shape: f32[2,328,128], index: 0, kind: input, shape index: {}]
  %s1 = inlined_call_operand.vmem [shape: bf16[9,128,128], index: 1, kind: input, shape index: {}]
  %s2 = inlined_call_operand.vmem [shape: f32[1,128], index: 2, kind: input, shape index: {}]
  %s3 = inlined_call_operand.vmem [shape: bf16[9,128,128], index: 3, kind: input, shape index: {}]
  %s4 = inlined_call_operand.vmem [shape: f32[1,128], index: 4, kind: input, shape index: {}]
  %s5 = inlined_call_operand.vmem [shape: f32[288,1], index: 5, kind: input, shape index: {}]
  %s6 = inlined_call_operand.hbm [shape: f32[2,1,128], index: 6, kind: output, shape index: {}]
  %s7 = sld [smem:[#allocation0]]
  $region57: #{pallas_forward.3} parent=0
    _
  %s9 = ssub.s32 1, %s7
  %s10 = scalar_select 0, %s9, %s7
  $region1: #{pallas_forward.3} parent=0
    #allocation4 [shape = 'u8[1024]{0}', space=vmem, size = 0x400, scoped, tag = 'output window, operand 0']
    #allocation5 [shape = 's32[2]{0}', space=sflag, size = 0x8, scoped, tag = 'scoped memory for pallas_forward.3']
    %11 = vsyncpa [#allocation5], 0
    %s12 = scalar_lea.sflag [#allocation5], 1
    %13 = vsyncpa %s12, 0
    loop: start=0, step=1, limit=4
    $region2: #{pallas_forward.3} parent=1 // loop_pre_header
      _
    $region3: #{pallas_forward.3} parent=1 // loop_header
      %s15 = sphi 0, %s19
      %p16 = scmp.ge.s32.totalorder %s15, 4
      %s25 = sphi 0, %s27
      %s28 = sphi 0, %s25
      %s29 = sphi 0, %s28
      %s45 = sphi 0, %s29
      %s49 = sphi 0, %s49
      %s51 = sphi 0, %s49
      %s52 = sphi 0, %s51
      %s66 = sphi 0, %s52
      %s70 = sphi 0, %s70
      %s72 = sphi 0, %s70
      %s73 = sphi 0, %s72
      %s87 = sphi 0, %s73
      %s91 = sphi 0, %s91
      %s93 = sphi 0, %s91
      %s94 = sphi 0, %s93
      %s108 = sphi 0, %s94
      %s112 = sphi 0, %s112
      %s114 = sphi 0, %s112
      %s115 = sphi 0, %s114
      %s129 = sphi 0, %s115
      %s133 = sphi 0, %s133
      %s135 = sphi 0, %s133
      %s136 = sphi 0, %s135
      %s150 = sphi 0, %s136
      %s156 = sphi 0, %s158
      %s159 = sphi 0, %s156
      %s160 = sphi 0, %s159
      %s176 = sphi 0, %s160
    $region4: #{pallas_forward.3} parent=1 // loop_header_branch
      %18 = sbr.rel (%p16) target = $region8
    $region5: #{pallas_forward.3} parent=1 // loop_body
      %s20 = ssub.s32 %s15, 1
      %s21 = ssub.s32 %s15, 2
      %s22 = sadd.s32 %s15, 1
      %s23 = ssub.s32 %s15, %s22
      %p24 = scmp.eq.s32.totalorder %s23, 0
      %s26 = sadd.s32 %s25, 1
      %s27 = scalar_select %p24, %s25, %s26
      %p30 = pneg %p24
      %p31 = scmp.eq.s32.totalorder %s15, 1
      %p32 = por %p30, %p31
      %p33 = scmp.ne.s32.totalorder %s25, %s28
      %p34 = scmp.eq.s32.totalorder %s15, 0
      %p35 = por %p33, %p34
      %p36 = scmp.ne.s32.totalorder %s25, %s28
      %p37 = scmp.eq.s32.totalorder %s20, 1
      %p38 = por %p36, %p37
      %p39 = scmp.ne.s32.totalorder %s28, %s29
      %p40 = scmp.eq.s32.totalorder %s20, 0
      %p41 = por %p39, %p40
      %p42 = scmp.ne.s32.totalorder %s28, %s29
      %p43 = scmp.eq.s32.totalorder %s21, 1
      %p44 = por %p42, %p43
      %p46 = scmp.ne.s32.totalorder %s29, %s45
      %p47 = scmp.eq.s32.totalorder %s21, 0
      %p48 = por %p46, %p47
      %s50 = sadd.s32 %s49, 1
      %p53 = scmp.eq.s32.totalorder %s15, 1
      %p54 = scmp.ne.s32.totalorder %s49, %s51
      %p55 = scmp.eq.s32.totalorder %s15, 0
      %p56 = por %p54, %p55
      %p57 = scmp.ne.s32.totalorder %s49, %s51
      %p58 = scmp.eq.s32.totalorder %s20, 1
      %p59 = por %p57, %p58
      %p60 = scmp.ne.s32.totalorder %s51, %s52
      %p61 = scmp.eq.s32.totalorder %s20, 0
      %p62 = por %p60, %p61
      %p63 = scmp.ne.s32.totalorder %s51, %s52
      %p64 = scmp.eq.s32.totalorder %s21, 1
      %p65 = por %p63, %p64
      %p67 = scmp.ne.s32.totalorder %s52, %s66
      %p68 = scmp.eq.s32.totalorder %s21, 0
      %p69 = por %p67, %p68
      %s71 = sadd.s32 %s70, 1
      %p74 = scmp.eq.s32.totalorder %s15, 1
      %p75 = scmp.ne.s32.totalorder %s70, %s72
      %p76 = scmp.eq.s32.totalorder %s15, 0
      %p77 = por %p75, %p76
      %p78 = scmp.ne.s32.totalorder %s70, %s72
      %p79 = scmp.eq.s32.totalorder %s20, 1
      %p80 = por %p78, %p79
      %p81 = scmp.ne.s32.totalorder %s72, %s73
      %p82 = scmp.eq.s32.totalorder %s20, 0
      %p83 = por %p81, %p82
      %p84 = scmp.ne.s32.totalorder %s72, %s73
      %p85 = scmp.eq.s32.totalorder %s21, 1
      %p86 = por %p84, %p85
      %p88 = scmp.ne.s32.totalorder %s73, %s87
      %p89 = scmp.eq.s32.totalorder %s21, 0
      %p90 = por %p88, %p89
      %s92 = sadd.s32 %s91, 1
      %p95 = scmp.eq.s32.totalorder %s15, 1
      %p96 = scmp.ne.s32.totalorder %s91, %s93
      %p97 = scmp.eq.s32.totalorder %s15, 0
      %p98 = por %p96, %p97
      %p99 = scmp.ne.s32.totalorder %s91, %s93
      %p100 = scmp.eq.s32.totalorder %s20, 1
      %p101 = por %p99, %p100
      %p102 = scmp.ne.s32.totalorder %s93, %s94
      %p103 = scmp.eq.s32.totalorder %s20, 0
      %p104 = por %p102, %p103
      %p105 = scmp.ne.s32.totalorder %s93, %s94
      %p106 = scmp.eq.s32.totalorder %s21, 1
      %p107 = por %p105, %p106
      %p109 = scmp.ne.s32.totalorder %s94, %s108
      %p110 = scmp.eq.s32.totalorder %s21, 0
      %p111 = por %p109, %p110
      %s113 = sadd.s32 %s112, 1
      %p116 = scmp.eq.s32.totalorder %s15, 1
      %p117 = scmp.ne.s32.totalorder %s112, %s114
      %p118 = scmp.eq.s32.totalorder %s15, 0
      %p119 = por %p117, %p118
      %p120 = scmp.ne.s32.totalorder %s112, %s114
      %p121 = scmp.eq.s32.totalorder %s20, 1
      %p122 = por %p120, %p121
      %p123 = scmp.ne.s32.totalorder %s114, %s115
      %p124 = scmp.eq.s32.totalorder %s20, 0
      %p125 = por %p123, %p124
      %p126 = scmp.ne.s32.totalorder %s114, %s115
      %p127 = scmp.eq.s32.totalorder %s21, 1
      %p128 = por %p126, %p127
      %p130 = scmp.ne.s32.totalorder %s115, %s129
      %p131 = scmp.eq.s32.totalorder %s21, 0
      %p132 = por %p130, %p131
      %s134 = sadd.s32 %s133, 1
      %p137 = scmp.eq.s32.totalorder %s15, 1
      %p138 = scmp.ne.s32.totalorder %s133, %s135
      %p139 = scmp.eq.s32.totalorder %s15, 0
      %p140 = por %p138, %p139
      %p141 = scmp.ne.s32.totalorder %s133, %s135
      %p142 = scmp.eq.s32.totalorder %s20, 1
      %p143 = por %p141, %p142
      %p144 = scmp.ne.s32.totalorder %s135, %s136
      %p145 = scmp.eq.s32.totalorder %s20, 0
      %p146 = por %p144, %p145
      %p147 = scmp.ne.s32.totalorder %s135, %s136
      %p148 = scmp.eq.s32.totalorder %s21, 1
      %p149 = por %p147, %p148
      %p151 = scmp.ne.s32.totalorder %s136, %s150
      %p152 = scmp.eq.s32.totalorder %s21, 0
      %p153 = por %p151, %p152
      %s154 = ssub.s32 %s15, %s22
      %p155 = scmp.eq.s32.totalorder %s154, 0
      %s157 = sadd.s32 %s156, 1
      %s158 = scalar_select %p155, %s156, %s157
      %p161 = pneg %p155
      %p162 = scmp.eq.s32.totalorder %s15, 1
      %p163 = por %p161, %p162
      %p164 = scmp.ne.s32.totalorder %s156, %s159
      %p165 = scmp.eq.s32.totalorder %s15, 0
      %p166 = por %p164, %p165
      %p167 = scmp.ne.s32.totalorder %s156, %s159
      %p168 = scmp.eq.s32.totalorder %s20, 1
      %p169 = por %p167, %p168
      %p170 = scmp.ne.s32.totalorder %s159, %s160
      %p171 = scmp.eq.s32.totalorder %s20, 0
      %p172 = por %p170, %p171
      %p173 = scmp.ne.s32.totalorder %s159, %s160
      %p174 = scmp.eq.s32.totalorder %s21, 1
      %p175 = por %p173, %p174
      %p177 = scmp.ne.s32.totalorder %s160, %s176
      %p178 = scmp.eq.s32.totalorder %s21, 0
      %p179 = por %p177, %p178
      %p180 = scmp.le.s32.totalorder 1, %s15
      %p181 = scmp.lt.s32.totalorder %s15, 3
      %p182 = pnand %p180, %p181
      %p183 = pneg %p182
      // Predicated region
      $region9: #{pallas_forward.3} parent=5 // pred_check
        _
      $region10: #{pallas_forward.3} parent=5 // pred_check_branch
        %185 = sbr.rel (%p182) target = $region12
      $region11: #{pallas_forward.3} parent=5 // pred_region
        %s186 = ssub.s32 %s15, 1
        // Predicated region
        $region13: #{pallas_forward.3} parent=11 // pred_check
          %p187 = pneg %p62
        $region14: #{pallas_forward.3} parent=11 // pred_check_branch
          %189 = sbr.rel (%p187) target = $region16
        $region15: #{pallas_forward.3} parent=11 // pred_region
          _
        $region16: #{pallas_forward.3} parent=11 // pred_fallthru
          _
        // Predicated region
        $region17: #{pallas_forward.3} parent=11 // pred_check
          %p190 = pneg %p83
        $region18: #{pallas_forward.3} parent=11 // pred_check_branch
          %192 = sbr.rel (%p190) target = $region20
        $region19: #{pallas_forward.3} parent=11 // pred_region
          _
        $region20: #{pallas_forward.3} parent=11 // pred_fallthru
          _
        // Predicated region
        $region21: #{pallas_forward.3} parent=11 // pred_check
          %p193 = pneg %p104
        $region22: #{pallas_forward.3} parent=11 // pred_check_branch
          %195 = sbr.rel (%p193) target = $region24
        $region23: #{pallas_forward.3} parent=11 // pred_region
          _
        $region24: #{pallas_forward.3} parent=11 // pred_fallthru
          _
        // Predicated region
        $region25: #{pallas_forward.3} parent=11 // pred_check
          %p196 = pneg %p125
        $region26: #{pallas_forward.3} parent=11 // pred_check_branch
          %198 = sbr.rel (%p196) target = $region28
        $region27: #{pallas_forward.3} parent=11 // pred_region
          _
        $region28: #{pallas_forward.3} parent=11 // pred_fallthru
          _
        // Predicated region
        $region29: #{pallas_forward.3} parent=11 // pred_check
          %p199 = pneg %p146
        $region30: #{pallas_forward.3} parent=11 // pred_check_branch
          %201 = sbr.rel (%p199) target = $region32
        $region31: #{pallas_forward.3} parent=11 // pred_region
          _
        $region32: #{pallas_forward.3} parent=11 // pred_fallthru
          _
      $region12: #{pallas_forward.3} parent=5 // pred_fallthru
        _
      %p202 = scmp.lt.s32.totalorder %s15, 2
      // Predicated region
      $region33: #{pallas_forward.3} parent=5 // pred_check
        %p203 = pneg %p202
      $region34: #{pallas_forward.3} parent=5 // pred_check_branch
        %205 = sbr.rel (%p203) target = $region36
      $region35: #{pallas_forward.3} parent=5 // pred_region
        // Predicated region
        $region37: #{pallas_forward.3} parent=35 // pred_check
          %p206 = pneg %p35
        $region38: #{pallas_forward.3} parent=35 // pred_check_branch
          %208 = sbr.rel (%p206) target = $region40
        $region39: #{pallas_forward.3} parent=35 // pred_region
          %p209 = scmp.lt.s32.totalorder %s15, 1
          %s210 = scalar_select %p209, %s15, 1
          %s211 = smul.addr %s210, 41
          %s212 = smul.addr %s211, 8
          %s213 = scalar_lea.vmem %s0, %s212
        $region40: #{pallas_forward.3} parent=35 // pred_fallthru
          _
      $region36: #{pallas_forward.3} parent=5 // pred_fallthru
        _
      %p214 = scmp.le.s32.totalorder 1, %s15
      %p215 = scmp.lt.s32.totalorder %s15, 3
      %p216 = pnand %p214, %p215
      %p217 = pneg %p216
      // Predicated region
      $region41: #{pallas_forward.3} parent=5 // pred_check
        _
      $region42: #{pallas_forward.3} parent=5 // pred_check_branch
        %219 = sbr.rel (%p216) target = $region44
      $region43: #{pallas_forward.3} parent=5 // pred_region
        %s220 = ssub.s32 %s15, 1
        %p221 = scmp.lt.s32.totalorder %s20, 1
        %s222 = scalar_select %p221, %s20, 1
        %s223 = smul.addr %s222, 41
        %s224 = smul.addr %s223, 8
        %s225 = scalar_lea.vmem %s0, %s224
        %p226 = pneg %p41
        %p227 = pneg %p38
        %p228 = pneg %p62
        %p229 = pneg %p59
        %p230 = pneg %p83
        %p231 = pneg %p80
        %p232 = pneg %p104
        %p233 = pneg %p101
        %p234 = pneg %p125
        %p235 = pneg %p122
        %p236 = pneg %p146
        %p237 = pneg %p143
        %p238 = pneg %p172
        %p239 = pneg %p169
        %s240 = sand.u32 %s159, 1
        %s241 = scalar_lea.sflag [#allocation5], %s240
        %s242 = sand.u32 %s159, 1
        %s243 = scalar_lea.vmem [#allocation4], %s242
        %p244 = scmp.lt.s32.totalorder %s20, 1
        %s245 = scalar_select %p244, %s20, 1
        %s246 = smul.addr %s245, 41
        %s247 = smul.addr %s246, 8
        %s248 = scalar_lea.vmem %s0, %s247
        %v250 = vld [vmem:[%s5] sm:$0xff]
        %v251 = vld [vmem:[%s5 + $0x8] sm:$0xff]
        %v252 = vld [vmem:[%s5 + $0x10] sm:$0xff]
        %v253 = vld [vmem:[%s5 + $0x18] sm:$0xff]
        %v254 = vld [vmem:[%s5 + $0x20] sm:$0xff]
        %v255 = vld [vmem:[%s5 + $0x28] sm:$0xff]
        %v256 = vld [vmem:[%s5 + $0x30] sm:$0xff]
        %v257 = vld [vmem:[%s5 + $0x38] sm:$0xff]
        %v258 = vld [vmem:[%s5 + $0x40] sm:$0xff]
        %v259 = vld [vmem:[%s5 + $0x48] sm:$0xff]
        %v260 = vld [vmem:[%s5 + $0x50] sm:$0xff]
        %v261 = vld [vmem:[%s5 + $0x58] sm:$0xff]
        %v262 = vld [vmem:[%s5 + $0x60] sm:$0xff]
        %v263 = vld [vmem:[%s5 + $0x68] sm:$0xff]
        %v264 = vld [vmem:[%s5 + $0x70] sm:$0xff]
        %v265 = vld [vmem:[%s5 + $0x78] sm:$0xff]
        %v266 = vld [vmem:[%s5 + $0x80] sm:$0xff]
        %v267 = vld [vmem:[%s5 + $0x88] sm:$0xff]
        %v268 = vld [vmem:[%s5 + $0x90] sm:$0xff]
        %v269 = vld [vmem:[%s5 + $0x98] sm:$0xff]
        %v270 = vld [vmem:[%s5 + $0xa0] sm:$0xff]
        %v271 = vld [vmem:[%s5 + $0xa8] sm:$0xff]
        %v272 = vld [vmem:[%s5 + $0xb0] sm:$0xff]
        %v273 = vld [vmem:[%s5 + $0xb8] sm:$0xff]
        %v274 = vld [vmem:[%s5 + $0xc0] sm:$0xff]
        %v275 = vld [vmem:[%s5 + $0xc8] sm:$0xff]
        %v276 = vld [vmem:[%s5 + $0xd0] sm:$0xff]
        %v277 = vld [vmem:[%s5 + $0xd8] sm:$0xff]
        %v278 = vld [vmem:[%s5 + $0xe0] sm:$0xff]
        %v279 = vld [vmem:[%s5 + $0xe8] sm:$0xff]
        %v280 = vld [vmem:[%s5 + $0xf0] sm:$0xff]
        %v281 = vld [vmem:[%s5 + $0xf8] sm:$0xff]
        %v282 = vld [vmem:[%s5 + $0x100] sm:$0xff]
        %v283 = vld [vmem:[%s5 + $0x108] sm:$0xff]
        %v284 = vld [vmem:[%s5 + $0x110] sm:$0xff]
        %v285 = vld [vmem:[%s5 + $0x118] sm:$0xff]
        %286 = vst [vmem:[#allocation2] sm:$0xff] 0.0
        %287 = vst [vmem:[#allocation2 + $0x8] sm:$0xff] 0.0
        %288 = vst [vmem:[#allocation2 + $0x10] sm:$0xff] 0.0
        %289 = vst [vmem:[#allocation2 + $0x18] sm:$0xff] 0.0
        %290 = vst [vmem:[#allocation2 + $0x20] sm:$0xff] 0.0
        %291 = vst [vmem:[#allocation2 + $0x28] sm:$0xff] 0.0
        %292 = vst [vmem:[#allocation2 + $0x30] sm:$0xff] 0.0
        %293 = vst [vmem:[#allocation2 + $0x38] sm:$0xff] 0.0
        %294 = vst [vmem:[#allocation2 + $0x40] sm:$0xff] 0.0
        %295 = vst [vmem:[#allocation2 + $0x48] sm:$0xff] 0.0
        %296 = vst [vmem:[#allocation2 + $0x50] sm:$0xff] 0.0
        %297 = vst [vmem:[#allocation2 + $0x58] sm:$0xff] 0.0
        %298 = vst [vmem:[#allocation2 + $0x60] sm:$0xff] 0.0
        %299 = vst [vmem:[#allocation2 + $0x68] sm:$0xff] 0.0
        %300 = vst [vmem:[#allocation2 + $0x70] sm:$0xff] 0.0
        %301 = vst [vmem:[#allocation2 + $0x78] sm:$0xff] 0.0
        %302 = vst [vmem:[#allocation2 + $0x80] sm:$0xff] 0.0
        %303 = vst [vmem:[#allocation2 + $0x88] sm:$0xff] 0.0
        %304 = vst [vmem:[#allocation2 + $0x90] sm:$0xff] 0.0
        %305 = vst [vmem:[#allocation2 + $0x98] sm:$0xff] 0.0
        %306 = vst [vmem:[#allocation2 + $0xa0] sm:$0xff] 0.0
        %307 = vst [vmem:[#allocation2 + $0xa8] sm:$0xff] 0.0
        %308 = vst [vmem:[#allocation2 + $0xb0] sm:$0xff] 0.0
        %309 = vst [vmem:[#allocation2 + $0xb8] sm:$0xff] 0.0
        %310 = vst [vmem:[#allocation2 + $0xc0] sm:$0xff] 0.0
        %311 = vst [vmem:[#allocation2 + $0xc8] sm:$0xff] 0.0
        %312 = vst [vmem:[#allocation2 + $0xd0] sm:$0xff] 0.0
        %313 = vst [vmem:[#allocation2 + $0xd8] sm:$0xff] 0.0
        %314 = vst [vmem:[#allocation2 + $0xe0] sm:$0xff] 0.0
        %315 = vst [vmem:[#allocation2 + $0xe8] sm:$0xff] 0.0
        %316 = vst [vmem:[#allocation2 + $0xf0] sm:$0xff] 0.0
        %317 = vst [vmem:[#allocation2 + $0xf8] sm:$0xff] 0.0
        %318 = vst [vmem:[#allocation2 + $0x100] sm:$0xff] 0.0
        %319 = vst [vmem:[#allocation2 + $0x108] sm:$0xff] 0.0
        %320 = vst [vmem:[#allocation2 + $0x110] sm:$0xff] 0.0
        %321 = vst [vmem:[#allocation2 + $0x118] sm:$0xff] 0.0
        %v322 = vld [vmem:[%s248] sm:$0xff]
        %v323 = vld [vmem:[%s248 + $0x8] sm:$0xff]
        %v324 = vld [vmem:[%s248 + $0x10] sm:$0xff]
        %v325 = vld [vmem:[%s248 + $0x18] sm:$0xff]
        %v326 = vld [vmem:[%s248 + $0x20] sm:$0xff]
        %v327 = vld [vmem:[%s248 + $0x28] sm:$0xff]
        %v328 = vld [vmem:[%s248 + $0x30] sm:$0xff]
        %v329 = vld [vmem:[%s248 + $0x38] sm:$0xff]
        %v330 = vld [vmem:[%s248 + $0x40] sm:$0xff]
        %v331 = vld [vmem:[%s248 + $0x48] sm:$0xff]
        %v332 = vld [vmem:[%s248 + $0x50] sm:$0xff]
        %v333 = vld [vmem:[%s248 + $0x58] sm:$0xff]
        %v334 = vld [vmem:[%s248 + $0x60] sm:$0xff]
        %v335 = vld [vmem:[%s248 + $0x68] sm:$0xff]
        %v336 = vld [vmem:[%s248 + $0x70] sm:$0xff]
        %v337 = vld [vmem:[%s248 + $0x78] sm:$0xff]
        %v338 = vld [vmem:[%s248 + $0x80] sm:$0xff]
        %v339 = vld [vmem:[%s248 + $0x88] sm:$0xff]
        %v340 = vld [vmem:[%s248 + $0x90] sm:$0xff]
        %v341 = vld [vmem:[%s248 + $0x98] sm:$0xff]
        %v342 = vld [vmem:[%s248 + $0xa0] sm:$0xff]
        %v343 = vld [vmem:[%s248 + $0xa8] sm:$0xff]
        %v344 = vld [vmem:[%s248 + $0xb0] sm:$0xff]
        %v345 = vld [vmem:[%s248 + $0xb8] sm:$0xff]
        %v346 = vld [vmem:[%s248 + $0xc0] sm:$0xff]
        %v347 = vld [vmem:[%s248 + $0xc8] sm:$0xff]
        %v348 = vld [vmem:[%s248 + $0xd0] sm:$0xff]
        %v349 = vld [vmem:[%s248 + $0xd8] sm:$0xff]
        %v350 = vld [vmem:[%s248 + $0xe0] sm:$0xff]
        %v351 = vld [vmem:[%s248 + $0xe8] sm:$0xff]
        %v352 = vld [vmem:[%s248 + $0xf0] sm:$0xff]
        %v353 = vld [vmem:[%s248 + $0xf8] sm:$0xff]
        %v354 = vld [vmem:[%s248 + $0x100] sm:$0xff]
        %v355 = vld [vmem:[%s248 + $0x108] sm:$0xff]
        %v356 = vld [vmem:[%s248 + $0x110] sm:$0xff]
        %v357 = vld [vmem:[%s248 + $0x118] sm:$0xff]
        %v358 = vpack.c.bf16 %v323, %v322
        %v359 = vpack.c.bf16 %v325, %v324
        %v360 = vpack.c.bf16 %v327, %v326
        %v361 = vpack.c.bf16 %v329, %v328
        %v362 = vpack.c.bf16 %v331, %v330
        %v363 = vpack.c.bf16 %v333, %v332
        %v364 = vpack.c.bf16 %v335, %v334
        %v365 = vpack.c.bf16 %v337, %v336
        %v366 = vpack.c.bf16 %v339, %v338
        %v367 = vpack.c.bf16 %v341, %v340
        %v368 = vpack.c.bf16 %v343, %v342
        %v369 = vpack.c.bf16 %v345, %v344
        %v370 = vpack.c.bf16 %v347, %v346
        %v371 = vpack.c.bf16 %v349, %v348
        %v372 = vpack.c.bf16 %v351, %v350
        %v373 = vpack.c.bf16 %v353, %v352
        %v374 = vpack.c.bf16 %v355, %v354
        %v375 = vpack.c.bf16 %v357, %v356
        %v376 = vld [vmem:[#allocation2] sm:$0xff]
        %v377 = vld [vmem:[#allocation2 + $0x8] sm:$0xff]
        %v378 = vld [vmem:[#allocation2 + $0x10] sm:$0xff]
        %v379 = vld [vmem:[#allocation2 + $0x18] sm:$0xff]
        %v380 = vld [vmem:[#allocation2 + $0x20] sm:$0xff]
        %v381 = vld [vmem:[#allocation2 + $0x28] sm:$0xff]
        %v382 = vld [vmem:[#allocation2 + $0x30] sm:$0xff]
        %v383 = vld [vmem:[#allocation2 + $0x38] sm:$0xff]
        %v384 = vld [vmem:[#allocation2 + $0x40] sm:$0xff]
        %v385 = vld [vmem:[#allocation2 + $0x48] sm:$0xff]
        %v386 = vld [vmem:[#allocation2 + $0x50] sm:$0xff]
        %v387 = vld [vmem:[#allocation2 + $0x58] sm:$0xff]
        %v388 = vld [vmem:[#allocation2 + $0x60] sm:$0xff]
        %v389 = vld [vmem:[#allocation2 + $0x68] sm:$0xff]
        %v390 = vld [vmem:[#allocation2 + $0x70] sm:$0xff]
        %v391 = vld [vmem:[#allocation2 + $0x78] sm:$0xff]
        %v392 = vld [vmem:[#allocation2 + $0x80] sm:$0xff]
        %v393 = vld [vmem:[#allocation2 + $0x88] sm:$0xff]
        %v394 = vld [vmem:[#allocation2 + $0x90] sm:$0xff]
        %v395 = vld [vmem:[#allocation2 + $0x98] sm:$0xff]
        %v396 = vld [vmem:[#allocation2 + $0xa0] sm:$0xff]
        %v397 = vld [vmem:[#allocation2 + $0xa8] sm:$0xff]
        %v398 = vld [vmem:[#allocation2 + $0xb0] sm:$0xff]
        %v399 = vld [vmem:[#allocation2 + $0xb8] sm:$0xff]
        %v400 = vld [vmem:[#allocation2 + $0xc0] sm:$0xff]
        %v401 = vld [vmem:[#allocation2 + $0xc8] sm:$0xff]
        %v402 = vld [vmem:[#allocation2 + $0xd0] sm:$0xff]
        %v403 = vld [vmem:[#allocation2 + $0xd8] sm:$0xff]
        %v404 = vld [vmem:[#allocation2 + $0xe0] sm:$0xff]
        %v405 = vld [vmem:[#allocation2 + $0xe8] sm:$0xff]
        %v406 = vld [vmem:[#allocation2 + $0xf0] sm:$0xff]
        %v407 = vld [vmem:[#allocation2 + $0xf8] sm:$0xff]
        %v408 = vld [vmem:[#allocation2 + $0x100] sm:$0xff]
        %v409 = vld [vmem:[#allocation2 + $0x108] sm:$0xff]
        %v410 = vld [vmem:[#allocation2 + $0x110] sm:$0xff]
        %v411 = vld [vmem:[#allocation2 + $0x118] sm:$0xff]
        %v412 = vld [vmem:[%s1] sm:$0xf]
        %v413 = vld [vmem:[%s1 + $0x4] sm:$0xf]
        %v414 = vld [vmem:[%s1 + $0x8] sm:$0xf]
        %v415 = vld [vmem:[%s1 + $0xc] sm:$0xf]
        %v416 = vld [vmem:[%s1 + $0x10] sm:$0xf]
        %v417 = vld [vmem:[%s1 + $0x14] sm:$0xf]
        %v418 = vld [vmem:[%s1 + $0x18] sm:$0xf]
        %v419 = vld [vmem:[%s1 + $0x1c] sm:$0xf]
        %v420 = vld [vmem:[%s1 + $0x20] sm:$0xf]
        %v421 = vld [vmem:[%s1 + $0x24] sm:$0xf]
        %v422 = vld [vmem:[%s1 + $0x28] sm:$0xf]
        %v423 = vld [vmem:[%s1 + $0x2c] sm:$0xf]
        %v424 = vld [vmem:[%s1 + $0x30] sm:$0xf]
        %v425 = vld [vmem:[%s1 + $0x34] sm:$0xf]
        %v426 = vld [vmem:[%s1 + $0x38] sm:$0xf]
        %v427 = vld [vmem:[%s1 + $0x3c] sm:$0xf]
        %v444 = vunpack.c.l.b16 %v412
        %v445 = vunpack.c.l.b16 %v413
        %v446 = vunpack.c.l.b16 %v414
        %v447 = vunpack.c.l.b16 %v415
        %v448 = vunpack.c.l.b16 %v416
        %v449 = vunpack.c.l.b16 %v417
        %v450 = vunpack.c.l.b16 %v418
        %v451 = vunpack.c.l.b16 %v419
        %v452 = vunpack.c.l.b16 %v420
        %v453 = vunpack.c.l.b16 %v421
        %v454 = vunpack.c.l.b16 %v422
        %v455 = vunpack.c.l.b16 %v423
        %v456 = vunpack.c.l.b16 %v424
        %v457 = vunpack.c.l.b16 %v425
        %v458 = vunpack.c.l.b16 %v426
        %v459 = vunpack.c.l.b16 %v427
        %v460 = vpack.c.b16 %v445, %v444
        %v461 = vpack.c.b16 %v447, %v446
        %v462 = vpack.c.b16 %v449, %v448
        %v463 = vpack.c.b16 %v451, %v450
        %v464 = vpack.c.b16 %v453, %v452
        %v465 = vpack.c.b16 %v455, %v454
        %v466 = vpack.c.b16 %v457, %v456
        %v467 = vpack.c.b16 %v459, %v458
        %476 = vmatprep.subr.bf16.mxu0 0
        %477 = vmatpush1.bf16.msra.mxu0 %v460
        %478 = vmatprep.subr.bf16.mxu0 0
        %479 = vmatpush1.bf16.msra.mxu0 %v461
        %480 = vmatprep.subr.bf16.mxu0 0
        %481 = vmatpush1.bf16.msra.mxu0 %v462
        %482 = vmatprep.subr.bf16.mxu0 0
        %483 = vmatpush1.bf16.msra.mxu0 %v463
        %484 = vmatprep.subr.bf16.mxu0 0
        %485 = vmatpush1.bf16.msra.mxu0 %v464
        %486 = vmatprep.subr.bf16.mxu0 0
        %487 = vmatpush1.bf16.msra.mxu0 %v465
        %488 = vmatprep.subr.bf16.mxu0 0
        %489 = vmatpush1.bf16.msra.mxu0 %v466
        %490 = vmatprep.subr.bf16.mxu0 0
        %491 = vmatpush1.bf16.msra.mxu0 %v467
        %492 = vmatprep.subr.bf16.mxu0 0
        %493 = vmatpush1.bf16.msra.mxu0 0
        %494 = vmatprep.subr.bf16.mxu0 0
        %495 = vmatpush1.bf16.msra.mxu0 0
        %496 = vmatprep.subr.bf16.mxu0 0
        %497 = vmatpush1.bf16.msra.mxu0 0
        %498 = vmatprep.subr.bf16.mxu0 0
        %499 = vmatpush1.bf16.msra.mxu0 0
        %500 = vmatprep.subr.bf16.mxu0 0
        %501 = vmatpush1.bf16.msra.mxu0 0
        %502 = vmatprep.subr.bf16.mxu0 0
        %503 = vmatpush1.bf16.msra.mxu0 0
        %504 = vmatprep.subr.bf16.mxu0 0
        %505 = vmatpush1.bf16.msra.mxu0 0
        %506 = vmatprep.subr.bf16.mxu0 0
        %507 = vmatpush1.bf16.msra.mxu0 0
        %508 = vmatprep.mubr.bf16.mxu0 0
        %509 = vmatmul.mubr.bf16.gmra.mrb[0].mxu0 %v358
        %v510 = vpop.f32.mrb[0].mxu0
        %v511 = vadd.f32 0.0, %v510
        %v512 = vpop.f32.mrb[0].mxu0
        %v513 = vpop.f32.mrb[0].mxu0
        %v514 = vadd.f32 0.0, %v513
        %v515 = vpop.f32.mrb[0].mxu0
        %516 = vmatprep.mubr.bf16.mxu0 0
        %517 = vmatmul.mubr.bf16.gmra.mrb[0].mxu0 %v359
        %v518 = vpop.f32.mrb[0].mxu0
        %v519 = vadd.f32 0.0, %v518
        %v520 = vpop.f32.mrb[0].mxu0
        %v521 = vpop.f32.mrb[0].mxu0
        %v522 = vadd.f32 0.0, %v521
        %v523 = vpop.f32.mrb[0].mxu0
        %524 = vmatprep.mubr.bf16.mxu0 0
        %525 = vmatmul.mubr.bf16.gmra.mrb[0].mxu0 %v360
        %v526 = vpop.f32.mrb[0].mxu0
        %v527 = vadd.f32 0.0, %v526
        %v528 = vpop.f32.mrb[0].mxu0
        %v529 = vpop.f32.mrb[0].mxu0
        %v530 = vadd.f32 0.0, %v529
        %v531 = vpop.f32.mrb[0].mxu0
        %532 = vmatprep.mubr.bf16.mxu0 0
        %533 = vmatmul.mubr.bf16.gmra.mrb[0].mxu0 %v361
        %v534 = vpop.f32.mrb[0].mxu0
        %v535 = vadd.f32 0.0, %v534
        %v536 = vpop.f32.mrb[0].mxu0
        %v537 = vpop.f32.mrb[0].mxu0
        %v538 = vadd.f32 0.0, %v537
        %v539 = vpop.f32.mrb[0].mxu0
        %540 = vmatprep.mubr.bf16.mxu0 0
        %541 = vmatmul.mubr.bf16.gmra.mrb[0].mxu0 %v362
        %v542 = vpop.f32.mrb[0].mxu0
        %v543 = vadd.f32 0.0, %v542
        %v544 = vpop.f32.mrb[0].mxu0
        %v545 = vpop.f32.mrb[0].mxu0
        %v546 = vadd.f32 0.0, %v545
        %v547 = vpop.f32.mrb[0].mxu0
        %548 = vmatprep.mubr.bf16.mxu0 0
        %549 = vmatmul.mubr.bf16.gmra.mrb[0].mxu0 %v363
        %v550 = vpop.f32.mrb[0].mxu0
        %v551 = vadd.f32 0.0, %v550
        %v552 = vpop.f32.mrb[0].mxu0
        %v553 = vpop.f32.mrb[0].mxu0
        %v554 = vadd.f32 0.0, %v553
        %v555 = vpop.f32.mrb[0].mxu0
        %556 = vmatprep.mubr.bf16.mxu0 0
        %557 = vmatmul.mubr.bf16.gmra.mrb[0].mxu0 %v364
        %v558 = vpop.f32.mrb[0].mxu0
        %v559 = vadd.f32 0.0, %v558
        %v560 = vpop.f32.mrb[0].mxu0
        %v561 = vpop.f32.mrb[0].mxu0
        %v562 = vadd.f32 0.0, %v561
        %v563 = vpop.f32.mrb[0].mxu0
        %564 = vmatprep.mubr.bf16.mxu0 0
        %565 = vmatmul.mubr.bf16.gmra.mrb[0].mxu0 %v365
        %v566 = vpop.f32.mrb[0].mxu0
        %v567 = vadd.f32 0.0, %v566
        %v568 = vpop.f32.mrb[0].mxu0
        %v569 = vpop.f32.mrb[0].mxu0
        %v570 = vadd.f32 0.0, %v569
        %v571 = vpop.f32.mrb[0].mxu0
        %572 = vmatprep.mubr.bf16.mxu0 0
        %573 = vmatmul.mubr.bf16.gmra.mrb[0].mxu0 %v366
        %v574 = vpop.f32.mrb[0].mxu0
        %v575 = vadd.f32 0.0, %v574
        %v576 = vpop.f32.mrb[0].mxu0
        %v577 = vpop.f32.mrb[0].mxu0
        %v578 = vadd.f32 0.0, %v577
        %v579 = vpop.f32.mrb[0].mxu0
        %580 = vmatprep.mubr.bf16.mxu0 0
        %581 = vmatmul.mubr.bf16.gmra.mrb[0].mxu0 %v367
        %v582 = vpop.f32.mrb[0].mxu0
        %v583 = vadd.f32 0.0, %v582
        %v584 = vpop.f32.mrb[0].mxu0
        %v585 = vpop.f32.mrb[0].mxu0
        %v586 = vadd.f32 0.0, %v585
        %v587 = vpop.f32.mrb[0].mxu0
        %588 = vmatprep.mubr.bf16.mxu0 0
        %589 = vmatmul.mubr.bf16.gmra.mrb[0].mxu0 %v368
        %v590 = vpop.f32.mrb[0].mxu0
        %v591 = vadd.f32 0.0, %v590
        %v592 = vpop.f32.mrb[0].mxu0
        %v593 = vpop.f32.mrb[0].mxu0
        %v594 = vadd.f32 0.0, %v593
        %v595 = vpop.f32.mrb[0].mxu0
        %596 = vmatprep.mubr.bf16.mxu0 0
        %597 = vmatmul.mubr.bf16.gmra.mrb[0].mxu0 %v369
        %v598 = vpop.f32.mrb[0].mxu0
        %v599 = vadd.f32 0.0, %v598
        %v600 = vpop.f32.mrb[0].mxu0
        %v601 = vpop.f32.mrb[0].mxu0
        %v602 = vadd.f32 0.0, %v601
        %v603 = vpop.f32.mrb[0].mxu0
        %604 = vmatprep.mubr.bf16.mxu0 0
        %605 = vmatmul.mubr.bf16.gmra.mrb[0].mxu0 %v370
        %v606 = vpop.f32.mrb[0].mxu0
        %v607 = vadd.f32 0.0, %v606
        %v608 = vpop.f32.mrb[0].mxu0
        %v609 = vpop.f32.mrb[0].mxu0
        %v610 = vadd.f32 0.0, %v609
        %v611 = vpop.f32.mrb[0].mxu0
        %612 = vmatprep.mubr.bf16.mxu0 0
        %613 = vmatmul.mubr.bf16.gmra.mrb[0].mxu0 %v371
        %v614 = vpop.f32.mrb[0].mxu0
        %v615 = vadd.f32 0.0, %v614
        %v616 = vpop.f32.mrb[0].mxu0
        %v617 = vpop.f32.mrb[0].mxu0
        %v618 = vadd.f32 0.0, %v617
        %v619 = vpop.f32.mrb[0].mxu0
        %620 = vmatprep.mubr.bf16.mxu0 0
        %621 = vmatmul.mubr.bf16.gmra.mrb[0].mxu0 %v372
        %v622 = vpop.f32.mrb[0].mxu0
        %v623 = vadd.f32 0.0, %v622
        %v624 = vpop.f32.mrb[0].mxu0
        %v625 = vpop.f32.mrb[0].mxu0
        %v626 = vadd.f32 0.0, %v625
        %v627 = vpop.f32.mrb[0].mxu0
        %628 = vmatprep.mubr.bf16.mxu0 0
        %629 = vmatmul.mubr.bf16.gmra.mrb[0].mxu0 %v373
        %v630 = vpop.f32.mrb[0].mxu0
        %v631 = vadd.f32 0.0, %v630
        %v632 = vpop.f32.mrb[0].mxu0
        %v633 = vpop.f32.mrb[0].mxu0
        %v634 = vadd.f32 0.0, %v633
        %v635 = vpop.f32.mrb[0].mxu0
        %636 = vmatprep.mubr.bf16.mxu0 0
        %637 = vmatmul.mubr.bf16.gmra.mrb[0].mxu0 %v374
        %v638 = vpop.f32.mrb[0].mxu0
        %v639 = vadd.f32 0.0, %v638
        %v640 = vpop.f32.mrb[0].mxu0
        %v641 = vpop.f32.mrb[0].mxu0
        %v642 = vadd.f32 0.0, %v641
        %v643 = vpop.f32.mrb[0].mxu0
        %644 = vmatprep.mubr.bf16.mxu0 0
        %645 = vmatmul.mubr.bf16.gmra.mrb[0].mxu0 %v375
        %v646 = vpop.f32.mrb[0].mxu0
        %v647 = vadd.f32 0.0, %v646
        %v648 = vpop.f32.mrb[0].mxu0
        %v649 = vpop.f32.mrb[0].mxu0
        %v650 = vadd.f32 0.0, %v649
        %v651 = vpop.f32.mrb[0].mxu0
        %652 = vdwg.mxu0
        %v653 = vadd.f32 %v376, %v511
        %v654 = vadd.f32 %v377, %v514
        %v655 = vadd.f32 %v378, %v519
        %v656 = vadd.f32 %v379, %v522
        %v657 = vadd.f32 %v380, %v527
        %v658 = vadd.f32 %v381, %v530
        %v659 = vadd.f32 %v382, %v535
        %v660 = vadd.f32 %v383, %v538
        %v661 = vadd.f32 %v384, %v543
        %v662 = vadd.f32 %v385, %v546
        %v663 = vadd.f32 %v386, %v551
        %v664 = vadd.f32 %v387, %v554
        %v665 = vadd.f32 %v388, %v559
        %v666 = vadd.f32 %v389, %v562
        %v667 = vadd.f32 %v390, %v567
        %v668 = vadd.f32 %v391, %v570
        %v669 = vadd.f32 %v392, %v575
        %v670 = vadd.f32 %v393, %v578
        %v671 = vadd.f32 %v394, %v583
        %v672 = vadd.f32 %v395, %v586
        %v673 = vadd.f32 %v396, %v591
        %v674 = vadd.f32 %v397, %v594
        %v675 = vadd.f32 %v398, %v599
        %v676 = vadd.f32 %v399, %v602
        %v677 = vadd.f32 %v400, %v607
        %v678 = vadd.f32 %v401, %v610
        %v679 = vadd.f32 %v402, %v615
        %v680 = vadd.f32 %v403, %v618
        %v681 = vadd.f32 %v404, %v623
        %v682 = vadd.f32 %v405, %v626
        %v683 = vadd.f32 %v406, %v631
        %v684 = vadd.f32 %v407, %v634
        %v685 = vadd.f32 %v408, %v639
        %v686 = vadd.f32 %v409, %v642
        %v687 = vadd.f32 %v410, %v647
        %v688 = vadd.f32 %v411, %v650
        %689 = vst [vmem:[#allocation2] sm:$0xff] %v653
        %690 = vst [vmem:[#allocation2 + $0x8] sm:$0xff] %v654
        %691 = vst [vmem:[#allocation2 + $0x10] sm:$0xff] %v655
        %692 = vst [vmem:[#allocation2 + $0x18] sm:$0xff] %v656
        %693 = vst [vmem:[#allocation2 + $0x20] sm:$0xff] %v657
        %694 = vst [vmem:[#allocation2 + $0x28] sm:$0xff] %v658
        %695 = vst [vmem:[#allocation2 + $0x30] sm:$0xff] %v659
        %696 = vst [vmem:[#allocation2 + $0x38] sm:$0xff] %v660
        %697 = vst [vmem:[#allocation2 + $0x40] sm:$0xff] %v661
        %698 = vst [vmem:[#allocation2 + $0x48] sm:$0xff] %v662
        %699 = vst [vmem:[#allocation2 + $0x50] sm:$0xff] %v663
        %700 = vst [vmem:[#allocation2 + $0x58] sm:$0xff] %v664
        %701 = vst [vmem:[#allocation2 + $0x60] sm:$0xff] %v665
        %702 = vst [vmem:[#allocation2 + $0x68] sm:$0xff] %v666
        %703 = vst [vmem:[#allocation2 + $0x70] sm:$0xff] %v667
        %704 = vst [vmem:[#allocation2 + $0x78] sm:$0xff] %v668
        %705 = vst [vmem:[#allocation2 + $0x80] sm:$0xff] %v669
        %706 = vst [vmem:[#allocation2 + $0x88] sm:$0xff] %v670
        %707 = vst [vmem:[#allocation2 + $0x90] sm:$0xff] %v671
        %708 = vst [vmem:[#allocation2 + $0x98] sm:$0xff] %v672
        %709 = vst [vmem:[#allocation2 + $0xa0] sm:$0xff] %v673
        %710 = vst [vmem:[#allocation2 + $0xa8] sm:$0xff] %v674
        %711 = vst [vmem:[#allocation2 + $0xb0] sm:$0xff] %v675
        %712 = vst [vmem:[#allocation2 + $0xb8] sm:$0xff] %v676
        %713 = vst [vmem:[#allocation2 + $0xc0] sm:$0xff] %v677
        %714 = vst [vmem:[#allocation2 + $0xc8] sm:$0xff] %v678
        %715 = vst [vmem:[#allocation2 + $0xd0] sm:$0xff] %v679
        %716 = vst [vmem:[#allocation2 + $0xd8] sm:$0xff] %v680
        %717 = vst [vmem:[#allocation2 + $0xe0] sm:$0xff] %v681
        %718 = vst [vmem:[#allocation2 + $0xe8] sm:$0xff] %v682
        %719 = vst [vmem:[#allocation2 + $0xf0] sm:$0xff] %v683
        %720 = vst [vmem:[#allocation2 + $0xf8] sm:$0xff] %v684
        %721 = vst [vmem:[#allocation2 + $0x100] sm:$0xff] %v685
        %722 = vst [vmem:[#allocation2 + $0x108] sm:$0xff] %v686
        %723 = vst [vmem:[#allocation2 + $0x110] sm:$0xff] %v687
        %724 = vst [vmem:[#allocation2 + $0x118] sm:$0xff] %v688
        %v725 = vld [vmem:[%s248 + $0x1] sm:$0xff]
        %v726 = vld [vmem:[%s248 + $0x9] sm:$0xff]
        %v727 = vld [vmem:[%s248 + $0x11] sm:$0xff]
        %v728 = vld [vmem:[%s248 + $0x19] sm:$0xff]
        %v729 = vld [vmem:[%s248 + $0x21] sm:$0xff]
        %v730 = vld [vmem:[%s248 + $0x29] sm:$0xff]
        %v731 = vld [vmem:[%s248 + $0x31] sm:$0xff]
        %v732 = vld [vmem:[%s248 + $0x39] sm:$0xff]
        %v733 = vld [vmem:[%s248 + $0x41] sm:$0xff]
        %v734 = vld [vmem:[%s248 + $0x49] sm:$0xff]
        %v735 = vld [vmem:[%s248 + $0x51] sm:$0xff]
        %v736 = vld [vmem:[%s248 + $0x59] sm:$0xff]
        %v737 = vld [vmem:[%s248 + $0x61] sm:$0xff]
        %v738 = vld [vmem:[%s248 + $0x69] sm:$0xff]
        %v739 = vld [vmem:[%s248 + $0x71] sm:$0xff]
        %v740 = vld [vmem:[%s248 + $0x79] sm:$0xff]
        %v741 = vld [vmem:[%s248 + $0x81] sm:$0xff]
        %v742 = vld [vmem:[%s248 + $0x89] sm:$0xff]
        %v743 = vld [vmem:[%s248 + $0x91] sm:$0xff]
        %v744 = vld [vmem:[%s248 + $0x99] sm:$0xff]
        %v745 = vld [vmem:[%s248 + $0xa1] sm:$0xff]
        %v746 = vld [vmem:[%s248 + $0xa9] sm:$0xff]
        %v747 = vld [vmem:[%s248 + $0xb1] sm:$0xff]
        %v748 = vld [vmem:[%s248 + $0xb9] sm:$0xff]
        %v749 = vld [vmem:[%s248 + $0xc1] sm:$0xff]
        %v750 = vld [vmem:[%s248 + $0xc9] sm:$0xff]
        %v751 = vld [vmem:[%s248 + $0xd1] sm:$0xff]
        %v752 = vld [vmem:[%s248 + $0xd9] sm:$0xff]
        %v753 = vld [vmem:[%s248 + $0xe1] sm:$0xff]
        %v754 = vld [vmem:[%s248 + $0xe9] sm:$0xff]
        %v755 = vld [vmem:[%s248 + $0xf1] sm:$0xff]
        %v756 = vld [vmem:[%s248 + $0xf9] sm:$0xff]
        %v757 = vld [vmem:[%s248 + $0x101] sm:$0xff]
        %v758 = vld [vmem:[%s248 + $0x109] sm:$0xff]
        %v759 = vld [vmem:[%s248 + $0x111] sm:$0xff]
        %v760 = vld [vmem:[%s248 + $0x119] sm:$0xff]
        %v761 = vpack.c.bf16 %v726, %v725
        %v762 = vpack.c.bf16 %v728, %v727
        %v763 = vpack.c.bf16 %v730, %v729
        %v764 = vpack.c.bf16 %v732, %v731
        %v765 = vpack.c.bf16 %v734, %v733
        %v766 = vpack.c.bf16 %v736, %v735
        %v767 = vpack.c.bf16 %v738, %v737
        %v768 = vpack.c.bf16 %v740, %v739
        %v769 = vpack.c.bf16 %v742, %v741
        %v770 = vpack.c.bf16 %v744, %v743
        %v771 = vpack.c.bf16 %v746, %v745
        %v772 = vpack.c.bf16 %v748, %v747
        %v773 = vpack.c.bf16 %v750, %v749
        %v774 = vpack.c.bf16 %v752, %v751
        %v775 = vpack.c.bf16 %v754, %v753
        %v776 = vpack.c.bf16 %v756, %v755
        %v777 = vpack.c.bf16 %v758, %v757
        %v778 = vpack.c.bf16 %v760, %v759
        %v779 = vld [vmem:[#allocation2] sm:$0xff]
        %v780 = vld [vmem:[#allocation2 + $0x8] sm:$0xff]
        %v781 = vld [vmem:[#allocation2 + $0x10] sm:$0xff]
        %v782 = vld [vmem:[#allocation2 + $0x18] sm:$0xff]
        %v783 = vld [vmem:[#allocation2 + $0x20] sm:$0xff]
        %v784 = vld [vmem:[#allocation2 + $0x28] sm:$0xff]
        %v785 = vld [vmem:[#allocation2 + $0x30] sm:$0xff]
        %v786 = vld [vmem:[#allocation2 + $0x38] sm:$0xff]
        %v787 = vld [vmem:[#allocation2 + $0x40] sm:$0xff]
        %v788 = vld [vmem:[#allocation2 + $0x48] sm:$0xff]
        %v789 = vld [vmem:[#allocation2 + $0x50] sm:$0xff]
        %v790 = vld [vmem:[#allocation2 + $0x58] sm:$0xff]
        %v791 = vld [vmem:[#allocation2 + $0x60] sm:$0xff]
        %v792 = vld [vmem:[#allocation2 + $0x68] sm:$0xff]
        %v793 = vld [vmem:[#allocation2 + $0x70] sm:$0xff]
        %v794 = vld [vmem:[#allocation2 + $0x78] sm:$0xff]
        %v795 = vld [vmem:[#allocation2 + $0x80] sm:$0xff]
        %v796 = vld [vmem:[#allocation2 + $0x88] sm:$0xff]
        %v797 = vld [vmem:[#allocation2 + $0x90] sm:$0xff]
        %v798 = vld [vmem:[#allocation2 + $0x98] sm:$0xff]
        %v799 = vld [vmem:[#allocation2 + $0xa0] sm:$0xff]
        %v800 = vld [vmem:[#allocation2 + $0xa8] sm:$0xff]
        %v801 = vld [vmem:[#allocation2 + $0xb0] sm:$0xff]
        %v802 = vld [vmem:[#allocation2 + $0xb8] sm:$0xff]
        %v803 = vld [vmem:[#allocation2 + $0xc0] sm:$0xff]
        %v804 = vld [vmem:[#allocation2 + $0xc8] sm:$0xff]
        %v805 = vld [vmem:[#allocation2 + $0xd0] sm:$0xff]
        %v806 = vld [vmem:[#allocation2 + $0xd8] sm:$0xff]
        %v807 = vld [vmem:[#allocation2 + $0xe0] sm:$0xff]
        %v808 = vld [vmem:[#allocation2 + $0xe8] sm:$0xff]
        %v809 = vld [vmem:[#allocation2 + $0xf0] sm:$0xff]
        %v810 = vld [vmem:[#allocation2 + $0xf8] sm:$0xff]
        %v811 = vld [vmem:[#allocation2 + $0x100] sm:$0xff]
        %v812 = vld [vmem:[#allocation2 + $0x108] sm:$0xff]
        %v813 = vld [vmem:[#allocation2 + $0x110] sm:$0xff]
        %v814 = vld [vmem:[#allocation2 + $0x118] sm:$0xff]
        %s815 = scalar_lea.vmem %s1, 64
        %v816 = vld [vmem:[%s815] sm:$0xf]
        %v817 = vld [vmem:[%s815 + $0x4] sm:$0xf]
        %v818 = vld [vmem:[%s815 + $0x8] sm:$0xf]
        %v819 = vld [vmem:[%s815 + $0xc] sm:$0xf]
        %v820 = vld [vmem:[%s815 + $0x10] sm:$0xf]
        %v821 = vld [vmem:[%s815 + $0x14] sm:$0xf]
        %v822 = vld [vmem:[%s815 + $0x18] sm:$0xf]
        %v823 = vld [vmem:[%s815 + $0x1c] sm:$0xf]
        %v824 = vld [vmem:[%s815 + $0x20] sm:$0xf]
        %v825 = vld [vmem:[%s815 + $0x24] sm:$0xf]
        %v826 = vld [vmem:[%s815 + $0x28] sm:$0xf]
        %v827 = vld [vmem:[%s815 + $0x2c] sm:$0xf]
        %v828 = vld [vmem:[%s815 + $0x30] sm:$0xf]
        %v829 = vld [vmem:[%s815 + $0x34] sm:$0xf]
        %v830 = vld [vmem:[%s815 + $0x38] sm:$0xf]
        %v831 = vld [vmem:[%s815 + $0x3c] sm:$0xf]
        %v848 = vunpack.c.l.b16 %v816
        %v849 = vunpack.c.l.b16 %v817
        %v850 = vunpack.c.l.b16 %v818
        %v851 = vunpack.c.l.b16 %v819
        %v852 = vunpack.c.l.b16 %v820
        %v853 = vunpack.c.l.b16 %v821
        %v854 = vunpack.c.l.b16 %v822
        %v855 = vunpack.c.l.b16 %v823
        %v856 = vunpack.c.l.b16 %v824
        %v857 = vunpack.c.l.b16 %v825
        %v858 = vunpack.c.l.b16 %v826
        %v859 = vunpack.c.l.b16 %v827
        %v860 = vunpack.c.l.b16 %v828
        %v861 = vunpack.c.l.b16 %v829
        %v862 = vunpack.c.l.b16 %v830
        %v863 = vunpack.c.l.b16 %v831
        %v864 = vpack.c.b16 %v849, %v848
        %v865 = vpack.c.b16 %v851, %v850
        %v866 = vpack.c.b16 %v853, %v852
        %v867 = vpack.c.b16 %v855, %v854
        %v868 = vpack.c.b16 %v857, %v856
        %v869 = vpack.c.b16 %v859, %v858
        %v870 = vpack.c.b16 %v861, %v860
        %v871 = vpack.c.b16 %v863, %v862
        %880 = vmatprep.subr.bf16.mxu0 0
        %881 = vmatpush1.bf16.msra.mxu0 %v864
        %882 = vmatprep.subr.bf16.mxu0 0
        %883 = vmatpush1.bf16.msra.mxu0 %v865
        %884 = vmatprep.subr.bf16.mxu0 0
        %885 = vmatpush1.bf16.msra.mxu0 %v866
        %886 = vmatprep.subr.bf16.mxu0 0
        %887 = vmatpush1.bf16.msra.mxu0 %v867
        %888 = vmatprep.subr.bf16.mxu0 0
        %889 = vmatpush1.bf16.msra.mxu0 %v868
        %890 = vmatprep.subr.bf16.mxu0 0
        %891 = vmatpush1.bf16.msra.mxu0 %v869
        %892 = vmatprep.subr.bf16.mxu0 0
        %893 = vmatpush1.bf16.msra.mxu0 %v870
        %894 = vmatprep.subr.bf16.mxu0 0
        %895 = vmatpush1.bf16.msra.mxu0 %v871
        %896 = vmatprep.subr.bf16.mxu0 0
        %897 = vmatpush1.bf16.msra.mxu0 0
        %898 = vmatprep.subr.bf16.mxu0 0
        %899 = vmatpush1.bf16.msra.mxu0 0
        %900 = vmatprep.subr.bf16.mxu0 0
        %901 = vmatpush1.bf16.msra.mxu0 0
        %902 = vmatprep.subr.bf16.mxu0 0
        %903 = vmatpush1.bf16.msra.mxu0 0
        %904 = vmatprep.subr.bf16.mxu0 0
        %905 = vmatpush1.bf16.msra.mxu0 0
        %906 = vmatprep.subr.bf16.mxu0 0
        %907 = vmatpush1.bf16.msra.mxu0 0
        %908 = vmatprep.subr.bf16.mxu0 0
        %909 = vmatpush1.bf16.msra.mxu0 0
        %910 = vmatprep.subr.bf16.mxu0 0
        %911 = vmatpush1.bf16.msra.mxu0 0
        %912 = vmatprep.mubr.bf16.mxu0 0
        %913 = vmatmul.mubr.bf16.gmra.mrb[0].mxu0 %v761
        %v914 = vpop.f32.mrb[0].mxu0
        %v915 = vadd.f32 0.0, %v914
        %v916 = vpop.f32.mrb[0].mxu0
        %v917 = vpop.f32.mrb[0].mxu0
        %v918 = vadd.f32 0.0, %v917
        %v919 = vpop.f32.mrb[0].mxu0
        %920 = vmatprep.mubr.bf16.mxu0 0
        %921 = vmatmul.mubr.bf16.gmra.mrb[0].mxu0 %v762
        %v922 = vpop.f32.mrb[0].mxu0
        %v923 = vadd.f32 0.0, %v922
        %v924 = vpop.f32.mrb[0].mxu0
        %v925 = vpop.f32.mrb[0].mxu0
        %v926 = vadd.f32 0.0, %v925
        %v927 = vpop.f32.mrb[0].mxu0
        %928 = vmatprep.mubr.bf16.mxu0 0
        %929 = vmatmul.mubr.bf16.gmra.mrb[0].mxu0 %v763
        %v930 = vpop.f32.mrb[0].mxu0
        %v931 = vadd.f32 0.0, %v930
        %v932 = vpop.f32.mrb[0].mxu0
        %v933 = vpop.f32.mrb[0].mxu0
        %v934 = vadd.f32 0.0, %v933
        %v935 = vpop.f32.mrb[0].mxu0
        %936 = vmatprep.mubr.bf16.mxu0 0
        %937 = vmatmul.mubr.bf16.gmra.mrb[0].mxu0 %v764
        %v938 = vpop.f32.mrb[0].mxu0
        %v939 = vadd.f32 0.0, %v938
        %v940 = vpop.f32.mrb[0].mxu0
        %v941 = vpop.f32.mrb[0].mxu0
        %v942 = vadd.f32 0.0, %v941
        %v943 = vpop.f32.mrb[0].mxu0
        %944 = vmatprep.mubr.bf16.mxu0 0
        %945 = vmatmul.mubr.bf16.gmra.mrb[0].mxu0 %v765
        %v946 = vpop.f32.mrb[0].mxu0
        %v947 = vadd.f32 0.0, %v946
        %v948 = vpop.f32.mrb[0].mxu0
        %v949 = vpop.f32.mrb[0].mxu0
        %v950 = vadd.f32 0.0, %v949
        %v951 = vpop.f32.mrb[0].mxu0
        %952 = vmatprep.mubr.bf16.mxu0 0
        %953 = vmatmul.mubr.bf16.gmra.mrb[0].mxu0 %v766
        %v954 = vpop.f32.mrb[0].mxu0
        %v955 = vadd.f32 0.0, %v954
        %v956 = vpop.f32.mrb[0].mxu0
        %v957 = vpop.f32.mrb[0].mxu0
        %v958 = vadd.f32 0.0, %v957
        %v959 = vpop.f32.mrb[0].mxu0
        %960 = vmatprep.mubr.bf16.mxu0 0
        %961 = vmatmul.mubr.bf16.gmra.mrb[0].mxu0 %v767
        %v962 = vpop.f32.mrb[0].mxu0
        %v963 = vadd.f32 0.0, %v962
        %v964 = vpop.f32.mrb[0].mxu0
        %v965 = vpop.f32.mrb[0].mxu0
        %v966 = vadd.f32 0.0, %v965
        %v967 = vpop.f32.mrb[0].mxu0
        %968 = vmatprep.mubr.bf16.mxu0 0
        %969 = vmatmul.mubr.bf16.gmra.mrb[0].mxu0 %v768
        %v970 = vpop.f32.mrb[0].mxu0
        %v971 = vadd.f32 0.0, %v970
        %v972 = vpop.f32.mrb[0].mxu0
        %v973 = vpop.f32.mrb[0].mxu0
        %v974 = vadd.f32 0.0, %v973
        %v975 = vpop.f32.mrb[0].mxu0
        %976 = vmatprep.mubr.bf16.mxu0 0
        %977 = vmatmul.mubr.bf16.gmra.mrb[0].mxu0 %v769
        %v978 = vpop.f32.mrb[0].mxu0
        %v979 = vadd.f32 0.0, %v978
        %v980 = vpop.f32.mrb[0].mxu0
        %v981 = vpop.f32.mrb[0].mxu0
        %v982 = vadd.f32 0.0, %v981
        %v983 = vpop.f32.mrb[0].mxu0
        %984 = vmatprep.mubr.bf16.mxu0 0
        %985 = vmatmul.mubr.bf16.gmra.mrb[0].mxu0 %v770
        %v986 = vpop.f32.mrb[0].mxu0
        %v987 = vadd.f32 0.0, %v986
        %v988 = vpop.f32.mrb[0].mxu0
        %v989 = vpop.f32.mrb[0].mxu0
        %v990 = vadd.f32 0.0, %v989
        %v991 = vpop.f32.mrb[0].mxu0
        %992 = vmatprep.mubr.bf16.mxu0 0
        %993 = vmatmul.mubr.bf16.gmra.mrb[0].mxu0 %v771
        %v994 = vpop.f32.mrb[0].mxu0
        %v995 = vadd.f32 0.0, %v994
        %v996 = vpop.f32.mrb[0].mxu0
        %v997 = vpop.f32.mrb[0].mxu0
        %v998 = vadd.f32 0.0, %v997
        %v999 = vpop.f32.mrb[0].mxu0
        %1000 = vmatprep.mubr.bf16.mxu0 0
        %1001 = vmatmul.mubr.bf16.gmra.mrb[0].mxu0 %v772
        %v1002 = vpop.f32.mrb[0].mxu0
        %v1003 = vadd.f32 0.0, %v1002
        %v1004 = vpop.f32.mrb[0].mxu0
        %v1005 = vpop.f32.mrb[0].mxu0
        %v1006 = vadd.f32 0.0, %v1005
        %v1007 = vpop.f32.mrb[0].mxu0
        %1008 = vmatprep.mubr.bf16.mxu0 0
        %1009 = vmatmul.mubr.bf16.gmra.mrb[0].mxu0 %v773
        %v1010 = vpop.f32.mrb[0].mxu0
        %v1011 = vadd.f32 0.0, %v1010
        %v1012 = vpop.f32.mrb[0].mxu0
        %v1013 = vpop.f32.mrb[0].mxu0
        %v1014 = vadd.f32 0.0, %v1013
        %v1015 = vpop.f32.mrb[0].mxu0
        %1016 = vmatprep.mubr.bf16.mxu0 0
        %1017 = vmatmul.mubr.bf16.gmra.mrb[0].mxu0 %v774
        %v1018 = vpop.f32.mrb[0].mxu0
        %v1019 = vadd.f32 0.0, %v1018
        %v1020 = vpop.f32.mrb[0].mxu0
        %v1021 = vpop.f32.mrb[0].mxu0
        %v1022 = vadd.f32 0.0, %v1021
        %v1023 = vpop.f32.mrb[0].mxu0
        %1024 = vmatprep.mubr.bf16.mxu0 0
        %1025 = vmatmul.mubr.bf16.gmra.mrb[0].mxu0 %v775
        %v1026 = vpop.f32.mrb[0].mxu0
        %v1027 = vadd.f32 0.0, %v1026
        %v1028 = vpop.f32.mrb[0].mxu0
        %v1029 = vpop.f32.mrb[0].mxu0
        %v1030 = vadd.f32 0.0, %v1029
        %v1031 = vpop.f32.mrb[0].mxu0
        %1032 = vmatprep.mubr.bf16.mxu0 0
        %1033 = vmatmul.mubr.bf16.gmra.mrb[0].mxu0 %v776
        %v1034 = vpop.f32.mrb[0].mxu0
        %v1035 = vadd.f32 0.0, %v1034
        %v1036 = vpop.f32.mrb[0].mxu0
        %v1037 = vpop.f32.mrb[0].mxu0
        %v1038 = vadd.f32 0.0, %v1037
        %v1039 = vpop.f32.mrb[0].mxu0
        %1040 = vmatprep.mubr.bf16.mxu0 0
        %1041 = vmatmul.mubr.bf16.gmra.mrb[0].mxu0 %v777
        %v1042 = vpop.f32.mrb[0].mxu0
        %v1043 = vadd.f32 0.0, %v1042
        %v1044 = vpop.f32.mrb[0].mxu0
        %v1045 = vpop.f32.mrb[0].mxu0
        %v1046 = vadd.f32 0.0, %v1045
        %v1047 = vpop.f32.mrb[0].mxu0
        %1048 = vmatprep.mubr.bf16.mxu0 0
        %1049 = vmatmul.mubr.bf16.gmra.mrb[0].mxu0 %v778
        %v1050 = vpop.f32.mrb[0].mxu0
        %v1051 = vadd.f32 0.0, %v1050
        %v1052 = vpop.f32.mrb[0].mxu0
        %v1053 = vpop.f32.mrb[0].mxu0
        %v1054 = vadd.f32 0.0, %v1053
        %v1055 = vpop.f32.mrb[0].mxu0
        %1056 = vdwg.mxu0
        %v1057 = vadd.f32 %v779, %v915
        %v1058 = vadd.f32 %v780, %v918
        %v1059 = vadd.f32 %v781, %v923
        %v1060 = vadd.f32 %v782, %v926
        %v1061 = vadd.f32 %v783, %v931
        %v1062 = vadd.f32 %v784, %v934
        %v1063 = vadd.f32 %v785, %v939
        %v1064 = vadd.f32 %v786, %v942
        %v1065 = vadd.f32 %v787, %v947
        %v1066 = vadd.f32 %v788, %v950
        %v1067 = vadd.f32 %v789, %v955
        %v1068 = vadd.f32 %v790, %v958
        %v1069 = vadd.f32 %v791, %v963
        %v1070 = vadd.f32 %v792, %v966
        %v1071 = vadd.f32 %v793, %v971
        %v1072 = vadd.f32 %v794, %v974
        %v1073 = vadd.f32 %v795, %v979
        %v1074 = vadd.f32 %v796, %v982
        %v1075 = vadd.f32 %v797, %v987
        %v1076 = vadd.f32 %v798, %v990
        %v1077 = vadd.f32 %v799, %v995
        %v1078 = vadd.f32 %v800, %v998
        %v1079 = vadd.f32 %v801, %v1003
        %v1080 = vadd.f32 %v802, %v1006
        %v1081 = vadd.f32 %v803, %v1011
        %v1082 = vadd.f32 %v804, %v1014
        %v1083 = vadd.f32 %v805, %v1019
        %v1084 = vadd.f32 %v806, %v1022
        %v1085 = vadd.f32 %v807, %v1027
        %v1086 = vadd.f32 %v808, %v1030
        %v1087 = vadd.f32 %v809, %v1035
        %v1088 = vadd.f32 %v810, %v1038
        %v1089 = vadd.f32 %v811, %v1043
        %v1090 = vadd.f32 %v812, %v1046
        %v1091 = vadd.f32 %v813, %v1051
        %v1092 = vadd.f32 %v814, %v1054
        %1093 = vst [vmem:[#allocation2] sm:$0xff] %v1057
        %1094 = vst [vmem:[#allocation2 + $0x8] sm:$0xff] %v1058
        %1095 = vst [vmem:[#allocation2 + $0x10] sm:$0xff] %v1059
        %1096 = vst [vmem:[#allocation2 + $0x18] sm:$0xff] %v1060
        %1097 = vst [vmem:[#allocation2 + $0x20] sm:$0xff] %v1061
        %1098 = vst [vmem:[#allocation2 + $0x28] sm:$0xff] %v1062
        %1099 = vst [vmem:[#allocation2 + $0x30] sm:$0xff] %v1063
        %1100 = vst [vmem:[#allocation2 + $0x38] sm:$0xff] %v1064
        %1101 = vst [vmem:[#allocation2 + $0x40] sm:$0xff] %v1065
        %1102 = vst [vmem:[#allocation2 + $0x48] sm:$0xff] %v1066
        %1103 = vst [vmem:[#allocation2 + $0x50] sm:$0xff] %v1067
        %1104 = vst [vmem:[#allocation2 + $0x58] sm:$0xff] %v1068
        %1105 = vst [vmem:[#allocation2 + $0x60] sm:$0xff] %v1069
        %1106 = vst [vmem:[#allocation2 + $0x68] sm:$0xff] %v1070
        %1107 = vst [vmem:[#allocation2 + $0x70] sm:$0xff] %v1071
        %1108 = vst [vmem:[#allocation2 + $0x78] sm:$0xff] %v1072
        %1109 = vst [vmem:[#allocation2 + $0x80] sm:$0xff] %v1073
        %1110 = vst [vmem:[#allocation2 + $0x88] sm:$0xff] %v1074
        %1111 = vst [vmem:[#allocation2 + $0x90] sm:$0xff] %v1075
        %1112 = vst [vmem:[#allocation2 + $0x98] sm:$0xff] %v1076
        %1113 = vst [vmem:[#allocation2 + $0xa0] sm:$0xff] %v1077
        %1114 = vst [vmem:[#allocation2 + $0xa8] sm:$0xff] %v1078
        %1115 = vst [vmem:[#allocation2 + $0xb0] sm:$0xff] %v1079
        %1116 = vst [vmem:[#allocation2 + $0xb8] sm:$0xff] %v1080
        %1117 = vst [vmem:[#allocation2 + $0xc0] sm:$0xff] %v1081
        %1118 = vst [vmem:[#allocation2 + $0xc8] sm:$0xff] %v1082
        %1119 = vst [vmem:[#allocation2 + $0xd0] sm:$0xff] %v1083
        %1120 = vst [vmem:[#allocation2 + $0xd8] sm:$0xff] %v1084
        %1121 = vst [vmem:[#allocation2 + $0xe0] sm:$0xff] %v1085
        %1122 = vst [vmem:[#allocation2 + $0xe8] sm:$0xff] %v1086
        %1123 = vst [vmem:[#allocation2 + $0xf0] sm:$0xff] %v1087
        %1124 = vst [vmem:[#allocation2 + $0xf8] sm:$0xff] %v1088
        %1125 = vst [vmem:[#allocation2 + $0x100] sm:$0xff] %v1089
        %1126 = vst [vmem:[#allocation2 + $0x108] sm:$0xff] %v1090
        %1127 = vst [vmem:[#allocation2 + $0x110] sm:$0xff] %v1091
        %1128 = vst [vmem:[#allocation2 + $0x118] sm:$0xff] %v1092
        %v1129 = vld [vmem:[%s248 + $0x2] sm:$0xff]
        %v1130 = vld [vmem:[%s248 + $0xa] sm:$0xff]
        %v1131 = vld [vmem:[%s248 + $0x12] sm:$0xff]
        %v1132 = vld [vmem:[%s248 + $0x1a] sm:$0xff]
        %v1133 = vld [vmem:[%s248 + $0x22] sm:$0xff]
        %v1134 = vld [vmem:[%s248 + $0x2a] sm:$0xff]
        %v1135 = vld [vmem:[%s248 + $0x32] sm:$0xff]
        %v1136 = vld [vmem:[%s248 + $0x3a] sm:$0xff]
        %v1137 = vld [vmem:[%s248 + $0x42] sm:$0xff]
        %v1138 = vld [vmem:[%s248 + $0x4a] sm:$0xff]
        %v1139 = vld [vmem:[%s248 + $0x52] sm:$0xff]
        %v1140 = vld [vmem:[%s248 + $0x5a] sm:$0xff]
        %v1141 = vld [vmem:[%s248 + $0x62] sm:$0xff]
        %v1142 = vld [vmem:[%s248 + $0x6a] sm:$0xff]
        %v1143 = vld [vmem:[%s248 + $0x72] sm:$0xff]
        %v1144 = vld [vmem:[%s248 + $0x7a] sm:$0xff]
        %v1145 = vld [vmem:[%s248 + $0x82] sm:$0xff]
        %v1146 = vld [vmem:[%s248 + $0x8a] sm:$0xff]
        %v1147 = vld [vmem:[%s248 + $0x92] sm:$0xff]
        %v1148 = vld [vmem:[%s248 + $0x9a] sm:$0xff]
        %v1149 = vld [vmem:[%s248 + $0xa2] sm:$0xff]
        %v1150 = vld [vmem:[%s248 + $0xaa] sm:$0xff]
        %v1151 = vld [vmem:[%s248 + $0xb2] sm:$0xff]
        %v1152 = vld [vmem:[%s248 + $0xba] sm:$0xff]
        %v1153 = vld [vmem:[%s248 + $0xc2] sm:$0xff]
        %v1154 = vld [vmem:[%s248 + $0xca] sm:$0xff]
        %v1155 = vld [vmem:[%s248 + $0xd2] sm:$0xff]
        %v1156 = vld [vmem:[%s248 + $0xda] sm:$0xff]
        %v1157 = vld [vmem:[%s248 + $0xe2] sm:$0xff]
        %v1158 = vld [vmem:[%s248 + $0xea] sm:$0xff]
        %v1159 = vld [vmem:[%s248 + $0xf2] sm:$0xff]
        %v1160 = vld [vmem:[%s248 + $0xfa] sm:$0xff]
        %v1161 = vld [vmem:[%s248 + $0x102] sm:$0xff]
        %v1162 = vld [vmem:[%s248 + $0x10a] sm:$0xff]
        %v1163 = vld [vmem:[%s248 + $0x112] sm:$0xff]
        %v1164 = vld [vmem:[%s248 + $0x11a] sm:$0xff]
        %v1165 = vpack.c.bf16 %v1130, %v1129
        %v1166 = vpack.c.bf16 %v1132, %v1131
        %v1167 = vpack.c.bf16 %v1134, %v1133
        %v1168 = vpack.c.bf16 %v1136, %v1135
        %v1169 = vpack.c.bf16 %v1138, %v1137
        %v1170 = vpack.c.bf16 %v1140, %v1139
        %v1171 = vpack.c.bf16 %v1142, %v1141
        %v1172 = vpack.c.bf16 %v1144, %v1143
        %v1173 = vpack.c.bf16 %v1146, %v1145
        %v1174 = vpack.c.bf16 %v1148, %v1147
        %v1175 = vpack.c.bf16 %v1150, %v1149
        %v1176 = vpack.c.bf16 %v1152, %v1151
        %v1177 = vpack.c.bf16 %v1154, %v1153
        %v1178 = vpack.c.bf16 %v1156, %v1155
        %v1179 = vpack.c.bf16 %v1158, %v1157
        %v1180 = vpack.c.bf16 %v1160, %v1159
        %v1181 = vpack.c.bf16 %v1162, %v1161
        %v1182 = vpack.c.bf16 %v1164, %v1163
        %v1183 = vld [vmem:[#allocation2] sm:$0xff]
        %v1184 = vld [vmem:[#allocation2 + $0x8] sm:$0xff]
        %v1185 = vld [vmem:[#allocation2 + $0x10] sm:$0xff]
        %v1186 = vld [vmem:[#allocation2 + $0x18] sm:$0xff]
        %v1187 = vld [vmem:[#allocation2 + $0x20] sm:$0xff]
        %v1188 = vld [vmem:[#allocation2 + $0x28] sm:$0xff]
        %v1189 = vld [vmem:[#allocation2 + $0x30] sm:$0xff]
        %v1190 = vld [vmem:[#allocation2 + $0x38] sm:$0xff]
        %v1191 = vld [vmem:[#allocation2 + $0x40] sm:$0xff]
        %v1192 = vld [vmem:[#allocation2 + $0x48] sm:$0xff]
        %v1193 = vld [vmem:[#allocation2 + $0x50] sm:$0xff]
        %v1194 = vld [vmem:[#allocation2 + $0x58] sm:$0xff]
        %v1195 = vld [vmem:[#allocation2 + $0x60] sm:$0xff]
        %v1196 = vld [vmem:[#allocation2 + $0x68] sm:$0xff]
        %v1197 = vld [vmem:[#allocation2 + $0x70] sm:$0xff]
        %v1198 = vld [vmem:[#allocation2 + $0x78] sm:$0xff]
        %v1199 = vld [vmem:[#allocation2 + $0x80] sm:$0xff]
        %v1200 = vld [vmem:[#allocation2 + $0x88] sm:$0xff]
        %v1201 = vld [vmem:[#allocation2 + $0x90] sm:$0xff]
        %v1202 = vld [vmem:[#allocation2 + $0x98] sm:$0xff]
        %v1203 = vld [vmem:[#allocation2 + $0xa0] sm:$0xff]
        %v1204 = vld [vmem:[#allocation2 + $0xa8] sm:$0xff]
        %v1205 = vld [vmem:[#allocation2 + $0xb0] sm:$0xff]
        %v1206 = vld [vmem:[#allocation2 + $0xb8] sm:$0xff]
        %v1207 = vld [vmem:[#allocation2 + $0xc0] sm:$0xff]
        %v1208 = vld [vmem:[#allocation2 + $0xc8] sm:$0xff]
        %v1209 = vld [vmem:[#allocation2 + $0xd0] sm:$0xff]
        %v1210 = vld [vmem:[#allocation2 + $0xd8] sm:$0xff]
        %v1211 = vld [vmem:[#allocation2 + $0xe0] sm:$0xff]
        %v1212 = vld [vmem:[#allocation2 + $0xe8] sm:$0xff]
        %v1213 = vld [vmem:[#allocation2 + $0xf0] sm:$0xff]
        %v1214 = vld [vmem:[#allocation2 + $0xf8] sm:$0xff]
        %v1215 = vld [vmem:[#allocation2 + $0x100] sm:$0xff]
        %v1216 = vld [vmem:[#allocation2 + $0x108] sm:$0xff]
        %v1217 = vld [vmem:[#allocation2 + $0x110] sm:$0xff]
        %v1218 = vld [vmem:[#allocation2 + $0x118] sm:$0xff]
        %s1219 = scalar_lea.vmem %s1, 128
        %v1220 = vld [vmem:[%s1219] sm:$0xf]
        %v1221 = vld [vmem:[%s1219 + $0x4] sm:$0xf]
        %v1222 = vld [vmem:[%s1219 + $0x8] sm:$0xf]
        %v1223 = vld [vmem:[%s1219 + $0xc] sm:$0xf]
        %v1224 = vld [vmem:[%s1219 + $0x10] sm:$0xf]
        %v1225 = vld [vmem:[%s1219 + $0x14] sm:$0xf]
        %v1226 = vld [vmem:[%s1219 + $0x18] sm:$0xf]
        %v1227 = vld [vmem:[%s1219 + $0x1c] sm:$0xf]
        %v1228 = vld [vmem:[%s1219 + $0x20] sm:$0xf]
        %v1229 = vld [vmem:[%s1219 + $0x24] sm:$0xf]
        %v1230 = vld [vmem:[%s1219 + $0x28] sm:$0xf]
        %v1231 = vld [vmem:[%s1219 + $0x2c] sm:$0xf]
        %v1232 = vld [vmem:[%s1219 + $0x30] sm:$0xf]
        %v1233 = vld [vmem:[%s1219 + $0x34] sm:$0xf]
        %v1234 = vld [vmem:[%s1219 + $0x38] sm:$0xf]
        %v1235 = vld [vmem:[%s1219 + $0x3c] sm:$0xf]
        %v1252 = vunpack.c.l.b16 %v1220
        %v1253 = vunpack.c.l.b16 %v1221
        %v1254 = vunpack.c.l.b16 %v1222
        %v1255 = vunpack.c.l.b16 %v1223
        %v1256 = vunpack.c.l.b16 %v1224
        %v1257 = vunpack.c.l.b16 %v1225
        %v1258 = vunpack.c.l.b16 %v1226
        %v1259 = vunpack.c.l.b16 %v1227
        %v1260 = vunpack.c.l.b16 %v1228
        %v1261 = vunpack.c.l.b16 %v1229
        %v1262 = vunpack.c.l.b16 %v1230
        %v1263 = vunpack.c.l.b16 %v1231
        %v1264 = vunpack.c.l.b16 %v1232
        %v1265 = vunpack.c.l.b16 %v1233
        %v1266 = vunpack.c.l.b16 %v1234
        %v1267 = vunpack.c.l.b16 %v1235
        %v1268 = vpack.c.b16 %v1253, %v1252
        %v1269 = vpack.c.b16 %v1255, %v1254
        %v1270 = vpack.c.b16 %v1257, %v1256
        %v1271 = vpack.c.b16 %v1259, %v1258
        %v1272 = vpack.c.b16 %v1261, %v1260
        %v1273 = vpack.c.b16 %v1263, %v1262
        %v1274 = vpack.c.b16 %v1265, %v1264
        %v1275 = vpack.c.b16 %v1267, %v1266
        %1284 = vmatprep.subr.bf16.mxu0 0
        %1285 = vmatpush1.bf16.msra.mxu0 %v1268
        %1286 = vmatprep.subr.bf16.mxu0 0
        %1287 = vmatpush1.bf16.msra.mxu0 %v1269
        %1288 = vmatprep.subr.bf16.mxu0 0
        %1289 = vmatpush1.bf16.msra.mxu0 %v1270
        %1290 = vmatprep.subr.bf16.mxu0 0
        %1291 = vmatpush1.bf16.msra.mxu0 %v1271
        %1292 = vmatprep.subr.bf16.mxu0 0
        %1293 = vmatpush1.bf16.msra.mxu0 %v1272
        %1294 = vmatprep.subr.bf16.mxu0 0
        %1295 = vmatpush1.bf16.msra.mxu0 %v1273
        %1296 = vmatprep.subr.bf16.mxu0 0
        %1297 = vmatpush1.bf16.msra.mxu0 %v1274
        %1298 = vmatprep.subr.bf16.mxu0 0
        %1299 = vmatpush1.bf16.msra.mxu0 %v1275
        %1300 = vmatprep.subr.bf16.mxu0 0
        %1301 = vmatpush1.bf16.msra.mxu0 0
        %1302 = vmatprep.subr.bf16.mxu0 0
        %1303 = vmatpush1.bf16.msra.mxu0 0
        %1304 = vmatprep.subr.bf16.mxu0 0
        %1305 = vmatpush1.bf16.msra.mxu0 0
        %1306 = vmatprep.subr.bf16.mxu0 0
        %1307 = vmatpush1.bf16.msra.mxu0 0
        %1308 = vmatprep.subr.bf16.mxu0 0
        %1309 = vmatpush1.bf16.msra.mxu0 0
        %1310 = vmatprep.subr.bf16.mxu0 0
        %1311 = vmatpush1.bf16.msra.mxu0 0
        %1312 = vmatprep.subr.bf16.mxu0 0
        %1313 = vmatpush1.bf16.msra.mxu0 0
        %1314 = vmatprep.subr.bf16.mxu0 0
        %1315 = vmatpush1.bf16.msra.mxu0 0
        %1316 = vmatprep.mubr.bf16.mxu0 0
        %1317 = vmatmul.mubr.bf16.gmra.mrb[0].mxu0 %v1165
        %v1318 = vpop.f32.mrb[0].mxu0
        %v1319 = vadd.f32 0.0, %v1318
        %v1320 = vpop.f32.mrb[0].mxu0
        %v1321 = vpop.f32.mrb[0].mxu0
        %v1322 = vadd.f32 0.0, %v1321
        %v1323 = vpop.f32.mrb[0].mxu0
        %1324 = vmatprep.mubr.bf16.mxu0 0
        %1325 = vmatmul.mubr.bf16.gmra.mrb[0].mxu0 %v1166
        %v1326 = vpop.f32.mrb[0].mxu0
        %v1327 = vadd.f32 0.0, %v1326
        %v1328 = vpop.f32.mrb[0].mxu0
        %v1329 = vpop.f32.mrb[0].mxu0
        %v1330 = vadd.f32 0.0, %v1329
        %v1331 = vpop.f32.mrb[0].mxu0
        %1332 = vmatprep.mubr.bf16.mxu0 0
        %1333 = vmatmul.mubr.bf16.gmra.mrb[0].mxu0 %v1167
        %v1334 = vpop.f32.mrb[0].mxu0
        %v1335 = vadd.f32 0.0, %v1334
        %v1336 = vpop.f32.mrb[0].mxu0
        %v1337 = vpop.f32.mrb[0].mxu0
        %v1338 = vadd.f32 0.0, %v1337
        %v1339 = vpop.f32.mrb[0].mxu0
        %1340 = vmatprep.mubr.bf16.mxu0 0
        %1341 = vmatmul.mubr.bf16.gmra.mrb[0].mxu0 %v1168
        %v1342 = vpop.f32.mrb[0].mxu0
        %v1343 = vadd.f32 0.0, %v1342
        %v1344 = vpop.f32.mrb[0].mxu0
        %v1345 = vpop.f32.mrb[0].mxu0
        %v1346 = vadd.f32 0.0, %v1345
        %v1347 = vpop.f32.mrb[0].mxu0
        %1348 = vmatprep.mubr.bf16.mxu0 0
        %1349 = vmatmul.mubr.bf16.gmra.mrb[0].mxu0 %v1169
        %v1350 = vpop.f32.mrb[0].mxu0
        %v1351 = vadd.f32 0.0, %v1350
        %v1352 = vpop.f32.mrb[0].mxu0
        %v1353 = vpop.f32.mrb[0].mxu0
        %v1354 = vadd.f32 0.0, %v1353
        %v1355 = vpop.f32.mrb[0].mxu0
        %1356 = vmatprep.mubr.bf16.mxu0 0
        %1357 = vmatmul.mubr.bf16.gmra.mrb[0].mxu0 %v1170
        %v1358 = vpop.f32.mrb[0].mxu0
        %v1359 = vadd.f32 0.0, %v1358
        %v1360 = vpop.f32.mrb[0].mxu0
        %v1361 = vpop.f32.mrb[0].mxu0
        %v1362 = vadd.f32 0.0, %v1361
        %v1363 = vpop.f32.mrb[0].mxu0
        %1364 = vmatprep.mubr.bf16.mxu0 0
        %1365 = vmatmul.mubr.bf16.gmra.mrb[0].mxu0 %v1171
        %v1366 = vpop.f32.mrb[0].mxu0
        %v1367 = vadd.f32 0.0, %v1366
        %v1368 = vpop.f32.mrb[0].mxu0
        %v1369 = vpop.f32.mrb[0].mxu0
        %v1370 = vadd.f32 0.0, %v1369
        %v1371 = vpop.f32.mrb[0].mxu0
        %1372 = vmatprep.mubr.bf16.mxu0 0
        %1373 = vmatmul.mubr.bf16.gmra.mrb[0].mxu0 %v1172
        %v1374 = vpop.f32.mrb[0].mxu0
        %v1375 = vadd.f32 0.0, %v1374
        %v1376 = vpop.f32.mrb[0].mxu0
        %v1377 = vpop.f32.mrb[0].mxu0
        %v1378 = vadd.f32 0.0, %v1377
        %v1379 = vpop.f32.mrb[0].mxu0
        %1380 = vmatprep.mubr.bf16.mxu0 0
        %1381 = vmatmul.mubr.bf16.gmra.mrb[0].mxu0 %v1173
        %v1382 = vpop.f32.mrb[0].mxu0
        %v1383 = vadd.f32 0.0, %v1382
        %v1384 = vpop.f32.mrb[0].mxu0
        %v1385 = vpop.f32.mrb[0].mxu0
        %v1386 = vadd.f32 0.0, %v1385
        %v1387 = vpop.f32.mrb[0].mxu0
        %1388 = vmatprep.mubr.bf16.mxu0 0
        %1389 = vmatmul.mubr.bf16.gmra.mrb[0].mxu0 %v1174
        %v1390 = vpop.f32.mrb[0].mxu0
        %v1391 = vadd.f32 0.0, %v1390
        %v1392 = vpop.f32.mrb[0].mxu0
        %v1393 = vpop.f32.mrb[0].mxu0
        %v1394 = vadd.f32 0.0, %v1393
        %v1395 = vpop.f32.mrb[0].mxu0
        %1396 = vmatprep.mubr.bf16.mxu0 0
        %1397 = vmatmul.mubr.bf16.gmra.mrb[0].mxu0 %v1175
        %v1398 = vpop.f32.mrb[0].mxu0
        %v1399 = vadd.f32 0.0, %v1398
        %v1400 = vpop.f32.mrb[0].mxu0
        %v1401 = vpop.f32.mrb[0].mxu0
        %v1402 = vadd.f32 0.0, %v1401
        %v1403 = vpop.f32.mrb[0].mxu0
        %1404 = vmatprep.mubr.bf16.mxu0 0
        %1405 = vmatmul.mubr.bf16.gmra.mrb[0].mxu0 %v1176
        %v1406 = vpop.f32.mrb[0].mxu0
        %v1407 = vadd.f32 0.0, %v1406
        %v1408 = vpop.f32.mrb[0].mxu0
        %v1409 = vpop.f32.mrb[0].mxu0
        %v1410 = vadd.f32 0.0, %v1409
        %v1411 = vpop.f32.mrb[0].mxu0
        %1412 = vmatprep.mubr.bf16.mxu0 0
        %1413 = vmatmul.mubr.bf16.gmra.mrb[0].mxu0 %v1177
        %v1414 = vpop.f32.mrb[0].mxu0
        %v1415 = vadd.f32 0.0, %v1414
        %v1416 = vpop.f32.mrb[0].mxu0
        %v1417 = vpop.f32.mrb[0].mxu0
        %v1418 = vadd.f32 0.0, %v1417
        %v1419 = vpop.f32.mrb[0].mxu0
        %1420 = vmatprep.mubr.bf16.mxu0 0
        %1421 = vmatmul.mubr.bf16.gmra.mrb[0].mxu0 %v1178
        %v1422 = vpop.f32.mrb[0].mxu0
        %v1423 = vadd.f32 0.0, %v1422
        %v1424 = vpop.f32.mrb[0].mxu0
        %v1425 = vpop.f32.mrb[0].mxu0
        %v1426 = vadd.f32 0.0, %v1425
        %v1427 = vpop.f32.mrb[0].mxu0
        %1428 = vmatprep.mubr.bf16.mxu0 0
        %1429 = vmatmul.mubr.bf16.gmra.mrb[0].mxu0 %v1179
        %v1430 = vpop.f32.mrb[0].mxu0
        %v1431 = vadd.f32 0.0, %v1430
        %v1432 = vpop.f32.mrb[0].mxu0
        %v1433 = vpop.f32.mrb[0].mxu0
        %v1434 = vadd.f32 0.0, %v1433
        %v1435 = vpop.f32.mrb[0].mxu0
        %1436 = vmatprep.mubr.bf16.mxu0 0
        %1437 = vmatmul.mubr.bf16.gmra.mrb[0].mxu0 %v1180
        %v1438 = vpop.f32.mrb[0].mxu0
        %v1439 = vadd.f32 0.0, %v1438
        %v1440 = vpop.f32.mrb[0].mxu0
        %v1441 = vpop.f32.mrb[0].mxu0
        %v1442 = vadd.f32 0.0, %v1441
        %v1443 = vpop.f32.mrb[0].mxu0
        %1444 = vmatprep.mubr.bf16.mxu0 0
        %1445 = vmatmul.mubr.bf16.gmra.mrb[0].mxu0 %v1181
        %v1446 = vpop.f32.mrb[0].mxu0
        %v1447 = vadd.f32 0.0, %v1446
        %v1448 = vpop.f32.mrb[0].mxu0
        %v1449 = vpop.f32.mrb[0].mxu0
        %v1450 = vadd.f32 0.0, %v1449
        %v1451 = vpop.f32.mrb[0].mxu0
        %1452 = vmatprep.mubr.bf16.mxu0 0
        %1453 = vmatmul.mubr.bf16.gmra.mrb[0].mxu0 %v1182
        %v1454 = vpop.f32.mrb[0].mxu0
        %v1455 = vadd.f32 0.0, %v1454
        %v1456 = vpop.f32.mrb[0].mxu0
        %v1457 = vpop.f32.mrb[0].mxu0
        %v1458 = vadd.f32 0.0, %v1457
        %v1459 = vpop.f32.mrb[0].mxu0
        %1460 = vdwg.mxu0
        %v1461 = vadd.f32 %v1183, %v1319
        %v1462 = vadd.f32 %v1184, %v1322
        %v1463 = vadd.f32 %v1185, %v1327
        %v1464 = vadd.f32 %v1186, %v1330
        %v1465 = vadd.f32 %v1187, %v1335
        %v1466 = vadd.f32 %v1188, %v1338
        %v1467 = vadd.f32 %v1189, %v1343
        %v1468 = vadd.f32 %v1190, %v1346
        %v1469 = vadd.f32 %v1191, %v1351
        %v1470 = vadd.f32 %v1192, %v1354
        %v1471 = vadd.f32 %v1193, %v1359
        %v1472 = vadd.f32 %v1194, %v1362
        %v1473 = vadd.f32 %v1195, %v1367
        %v1474 = vadd.f32 %v1196, %v1370
        %v1475 = vadd.f32 %v1197, %v1375
        %v1476 = vadd.f32 %v1198, %v1378
        %v1477 = vadd.f32 %v1199, %v1383
        %v1478 = vadd.f32 %v1200, %v1386
        %v1479 = vadd.f32 %v1201, %v1391
        %v1480 = vadd.f32 %v1202, %v1394
        %v1481 = vadd.f32 %v1203, %v1399
        %v1482 = vadd.f32 %v1204, %v1402
        %v1483 = vadd.f32 %v1205, %v1407
        %v1484 = vadd.f32 %v1206, %v1410
        %v1485 = vadd.f32 %v1207, %v1415
        %v1486 = vadd.f32 %v1208, %v1418
        %v1487 = vadd.f32 %v1209, %v1423
        %v1488 = vadd.f32 %v1210, %v1426
        %v1489 = vadd.f32 %v1211, %v1431
        %v1490 = vadd.f32 %v1212, %v1434
        %v1491 = vadd.f32 %v1213, %v1439
        %v1492 = vadd.f32 %v1214, %v1442
        %v1493 = vadd.f32 %v1215, %v1447
        %v1494 = vadd.f32 %v1216, %v1450
        %v1495 = vadd.f32 %v1217, %v1455
        %v1496 = vadd.f32 %v1218, %v1458
        %1497 = vst [vmem:[#allocation2] sm:$0xff] %v1461
        %1498 = vst [vmem:[#allocation2 + $0x8] sm:$0xff] %v1462
        %1499 = vst [vmem:[#allocation2 + $0x10] sm:$0xff] %v1463
        %1500 = vst [vmem:[#allocation2 + $0x18] sm:$0xff] %v1464
        %1501 = vst [vmem:[#allocation2 + $0x20] sm:$0xff] %v1465
        %1502 = vst [vmem:[#allocation2 + $0x28] sm:$0xff] %v1466
        %1503 = vst [vmem:[#allocation2 + $0x30] sm:$0xff] %v1467
        %1504 = vst [vmem:[#allocation2 + $0x38] sm:$0xff] %v1468
        %1505 = vst [vmem:[#allocation2 + $0x40] sm:$0xff] %v1469
        %1506 = vst [vmem:[#allocation2 + $0x48] sm:$0xff] %v1470
        %1507 = vst [vmem:[#allocation2 + $0x50] sm:$0xff] %v1471
        %1508 = vst [vmem:[#allocation2 + $0x58] sm:$0xff] %v1472
        %1509 = vst [vmem:[#allocation2 + $0x60] sm:$0xff] %v1473
        %1510 = vst [vmem:[#allocation2 + $0x68] sm:$0xff] %v1474
        %1511 = vst [vmem:[#allocation2 + $0x70] sm:$0xff] %v1475
        %1512 = vst [vmem:[#allocation2 + $0x78] sm:$0xff] %v1476
        %1513 = vst [vmem:[#allocation2 + $0x80] sm:$0xff] %v1477
        %1514 = vst [vmem:[#allocation2 + $0x88] sm:$0xff] %v1478
        %1515 = vst [vmem:[#allocation2 + $0x90] sm:$0xff] %v1479
        %1516 = vst [vmem:[#allocation2 + $0x98] sm:$0xff] %v1480
        %1517 = vst [vmem:[#allocation2 + $0xa0] sm:$0xff] %v1481
        %1518 = vst [vmem:[#allocation2 + $0xa8] sm:$0xff] %v1482
        %1519 = vst [vmem:[#allocation2 + $0xb0] sm:$0xff] %v1483
        %1520 = vst [vmem:[#allocation2 + $0xb8] sm:$0xff] %v1484
        %1521 = vst [vmem:[#allocation2 + $0xc0] sm:$0xff] %v1485
        %1522 = vst [vmem:[#allocation2 + $0xc8] sm:$0xff] %v1486
        %1523 = vst [vmem:[#allocation2 + $0xd0] sm:$0xff] %v1487
        %1524 = vst [vmem:[#allocation2 + $0xd8] sm:$0xff] %v1488
        %1525 = vst [vmem:[#allocation2 + $0xe0] sm:$0xff] %v1489
        %1526 = vst [vmem:[#allocation2 + $0xe8] sm:$0xff] %v1490
        %1527 = vst [vmem:[#allocation2 + $0xf0] sm:$0xff] %v1491
        %1528 = vst [vmem:[#allocation2 + $0xf8] sm:$0xff] %v1492
        %1529 = vst [vmem:[#allocation2 + $0x100] sm:$0xff] %v1493
        %1530 = vst [vmem:[#allocation2 + $0x108] sm:$0xff] %v1494
        %1531 = vst [vmem:[#allocation2 + $0x110] sm:$0xff] %v1495
        %1532 = vst [vmem:[#allocation2 + $0x118] sm:$0xff] %v1496
        %v1533 = vld [vmem:[%s248 + $0x12] sm:$0xff]
        %v1534 = vld [vmem:[%s248 + $0x1a] sm:$0xff]
        %v1535 = vld [vmem:[%s248 + $0x22] sm:$0xff]
        %v1536 = vld [vmem:[%s248 + $0x2a] sm:$0xff]
        %v1537 = vld [vmem:[%s248 + $0x32] sm:$0xff]
        %v1538 = vld [vmem:[%s248 + $0x3a] sm:$0xff]
        %v1539 = vld [vmem:[%s248 + $0x42] sm:$0xff]
        %v1540 = vld [vmem:[%s248 + $0x4a] sm:$0xff]
        %v1541 = vld [vmem:[%s248 + $0x52] sm:$0xff]
        %v1542 = vld [vmem:[%s248 + $0x5a] sm:$0xff]
        %v1543 = vld [vmem:[%s248 + $0x62] sm:$0xff]
        %v1544 = vld [vmem:[%s248 + $0x6a] sm:$0xff]
        %v1545 = vld [vmem:[%s248 + $0x72] sm:$0xff]
        %v1546 = vld [vmem:[%s248 + $0x7a] sm:$0xff]
        %v1547 = vld [vmem:[%s248 + $0x82] sm:$0xff]
        %v1548 = vld [vmem:[%s248 + $0x8a] sm:$0xff]
        %v1549 = vld [vmem:[%s248 + $0x92] sm:$0xff]
        %v1550 = vld [vmem:[%s248 + $0x9a] sm:$0xff]
        %v1551 = vld [vmem:[%s248 + $0xa2] sm:$0xff]
        %v1552 = vld [vmem:[%s248 + $0xaa] sm:$0xff]
        %v1553 = vld [vmem:[%s248 + $0xb2] sm:$0xff]
        %v1554 = vld [vmem:[%s248 + $0xba] sm:$0xff]
        %v1555 = vld [vmem:[%s248 + $0xc2] sm:$0xff]
        %v1556 = vld [vmem:[%s248 + $0xca] sm:$0xff]
        %v1557 = vld [vmem:[%s248 + $0xd2] sm:$0xff]
        %v1558 = vld [vmem:[%s248 + $0xda] sm:$0xff]
        %v1559 = vld [vmem:[%s248 + $0xe2] sm:$0xff]
        %v1560 = vld [vmem:[%s248 + $0xea] sm:$0xff]
        %v1561 = vld [vmem:[%s248 + $0xf2] sm:$0xff]
        %v1562 = vld [vmem:[%s248 + $0xfa] sm:$0xff]
        %v1563 = vld [vmem:[%s248 + $0x102] sm:$0xff]
        %v1564 = vld [vmem:[%s248 + $0x10a] sm:$0xff]
        %v1565 = vld [vmem:[%s248 + $0x112] sm:$0xff]
        %v1566 = vld [vmem:[%s248 + $0x11a] sm:$0xff]
        %v1567 = vld [vmem:[%s248 + $0x122] sm:$0xff]
        %v1568 = vld [vmem:[%s248 + $0x12a] sm:$0xff]
        %v1569 = vpack.c.bf16 %v1534, %v1533
        %v1570 = vpack.c.bf16 %v1536, %v1535
        %v1571 = vpack.c.bf16 %v1538, %v1537
        %v1572 = vpack.c.bf16 %v1540, %v1539
        %v1573 = vpack.c.bf16 %v1542, %v1541
        %v1574 = vpack.c.bf16 %v1544, %v1543
        %v1575 = vpack.c.bf16 %v1546, %v1545
        %v1576 = vpack.c.bf16 %v1548, %v1547
        %v1577 = vpack.c.bf16 %v1550, %v1549
        %v1578 = vpack.c.bf16 %v1552, %v1551
        %v1579 = vpack.c.bf16 %v1554, %v1553
        %v1580 = vpack.c.bf16 %v1556, %v1555
        %v1581 = vpack.c.bf16 %v1558, %v1557
        %v1582 = vpack.c.bf16 %v1560, %v1559
        %v1583 = vpack.c.bf16 %v1562, %v1561
        %v1584 = vpack.c.bf16 %v1564, %v1563
        %v1585 = vpack.c.bf16 %v1566, %v1565
        %v1586 = vpack.c.bf16 %v1568, %v1567
        %v1587 = vld [vmem:[#allocation2] sm:$0xff]
        %v1588 = vld [vmem:[#allocation2 + $0x8] sm:$0xff]
        %v1589 = vld [vmem:[#allocation2 + $0x10] sm:$0xff]
        %v1590 = vld [vmem:[#allocation2 + $0x18] sm:$0xff]
        %v1591 = vld [vmem:[#allocation2 + $0x20] sm:$0xff]
        %v1592 = vld [vmem:[#allocation2 + $0x28] sm:$0xff]
        %v1593 = vld [vmem:[#allocation2 + $0x30] sm:$0xff]
        %v1594 = vld [vmem:[#allocation2 + $0x38] sm:$0xff]
        %v1595 = vld [vmem:[#allocation2 + $0x40] sm:$0xff]
        %v1596 = vld [vmem:[#allocation2 + $0x48] sm:$0xff]
        %v1597 = vld [vmem:[#allocation2 + $0x50] sm:$0xff]
        %v1598 = vld [vmem:[#allocation2 + $0x58] sm:$0xff]
        %v1599 = vld [vmem:[#allocation2 + $0x60] sm:$0xff]
        %v1600 = vld [vmem:[#allocation2 + $0x68] sm:$0xff]
        %v1601 = vld [vmem:[#allocation2 + $0x70] sm:$0xff]
        %v1602 = vld [vmem:[#allocation2 + $0x78] sm:$0xff]
        %v1603 = vld [vmem:[#allocation2 + $0x80] sm:$0xff]
        %v1604 = vld [vmem:[#allocation2 + $0x88] sm:$0xff]
        %v1605 = vld [vmem:[#allocation2 + $0x90] sm:$0xff]
        %v1606 = vld [vmem:[#allocation2 + $0x98] sm:$0xff]
        %v1607 = vld [vmem:[#allocation2 + $0xa0] sm:$0xff]
        %v1608 = vld [vmem:[#allocation2 + $0xa8] sm:$0xff]
        %v1609 = vld [vmem:[#allocation2 + $0xb0] sm:$0xff]
        %v1610 = vld [vmem:[#allocation2 + $0xb8] sm:$0xff]
        %v1611 = vld [vmem:[#allocation2 + $0xc0] sm:$0xff]
        %v1612 = vld [vmem:[#allocation2 + $0xc8] sm:$0xff]
        %v1613 = vld [vmem:[#allocation2 + $0xd0] sm:$0xff]
        %v1614 = vld [vmem:[#allocation2 + $0xd8] sm:$0xff]
        %v1615 = vld [vmem:[#allocation2 + $0xe0] sm:$0xff]
        %v1616 = vld [vmem:[#allocation2 + $0xe8] sm:$0xff]
        %v1617 = vld [vmem:[#allocation2 + $0xf0] sm:$0xff]
        %v1618 = vld [vmem:[#allocation2 + $0xf8] sm:$0xff]
        %v1619 = vld [vmem:[#allocation2 + $0x100] sm:$0xff]
        %v1620 = vld [vmem:[#allocation2 + $0x108] sm:$0xff]
        %v1621 = vld [vmem:[#allocation2 + $0x110] sm:$0xff]
        %v1622 = vld [vmem:[#allocation2 + $0x118] sm:$0xff]
        %s1623 = scalar_lea.vmem %s1, 192
        %v1624 = vld [vmem:[%s1623] sm:$0xf]
        %v1625 = vld [vmem:[%s1623 + $0x4] sm:$0xf]
        %v1626 = vld [vmem:[%s1623 + $0x8] sm:$0xf]
        %v1627 = vld [vmem:[%s1623 + $0xc] sm:$0xf]
        %v1628 = vld [vmem:[%s1623 + $0x10] sm:$0xf]
        %v1629 = vld [vmem:[%s1623 + $0x14] sm:$0xf]
        %v1630 = vld [vmem:[%s1623 + $0x18] sm:$0xf]
        %v1631 = vld [vmem:[%s1623 + $0x1c] sm:$0xf]
        %v1632 = vld [vmem:[%s1623 + $0x20] sm:$0xf]
        %v1633 = vld [vmem:[%s1623 + $0x24] sm:$0xf]
        %v1634 = vld [vmem:[%s1623 + $0x28] sm:$0xf]
        %v1635 = vld [vmem:[%s1623 + $0x2c] sm:$0xf]
        %v1636 = vld [vmem:[%s1623 + $0x30] sm:$0xf]
        %v1637 = vld [vmem:[%s1623 + $0x34] sm:$0xf]
        %v1638 = vld [vmem:[%s1623 + $0x38] sm:$0xf]
        %v1639 = vld [vmem:[%s1623 + $0x3c] sm:$0xf]
        %v1656 = vunpack.c.l.b16 %v1624
        %v1657 = vunpack.c.l.b16 %v1625
        %v1658 = vunpack.c.l.b16 %v1626
        %v1659 = vunpack.c.l.b16 %v1627
        %v1660 = vunpack.c.l.b16 %v1628
        %v1661 = vunpack.c.l.b16 %v1629
        %v1662 = vunpack.c.l.b16 %v1630
        %v1663 = vunpack.c.l.b16 %v1631
        %v1664 = vunpack.c.l.b16 %v1632
        %v1665 = vunpack.c.l.b16 %v1633
        %v1666 = vunpack.c.l.b16 %v1634
        %v1667 = vunpack.c.l.b16 %v1635
        %v1668 = vunpack.c.l.b16 %v1636
        %v1669 = vunpack.c.l.b16 %v1637
        %v1670 = vunpack.c.l.b16 %v1638
        %v1671 = vunpack.c.l.b16 %v1639
        %v1672 = vpack.c.b16 %v1657, %v1656
        %v1673 = vpack.c.b16 %v1659, %v1658
        %v1674 = vpack.c.b16 %v1661, %v1660
        %v1675 = vpack.c.b16 %v1663, %v1662
        %v1676 = vpack.c.b16 %v1665, %v1664
        %v1677 = vpack.c.b16 %v1667, %v1666
        %v1678 = vpack.c.b16 %v1669, %v1668
        %v1679 = vpack.c.b16 %v1671, %v1670
        %1688 = vmatprep.subr.bf16.mxu0 0
        %1689 = vmatpush1.bf16.msra.mxu0 %v1672
        %1690 = vmatprep.subr.bf16.mxu0 0
        %1691 = vmatpush1.bf16.msra.mxu0 %v1673
        %1692 = vmatprep.subr.bf16.mxu0 0
        %1693 = vmatpush1.bf16.msra.mxu0 %v1674
        %1694 = vmatprep.subr.bf16.mxu0 0
        %1695 = vmatpush1.bf16.msra.mxu0 %v1675
        %1696 = vmatprep.subr.bf16.mxu0 0
        %1697 = vmatpush1.bf16.msra.mxu0 %v1676
        %1698 = vmatprep.subr.bf16.mxu0 0
        %1699 = vmatpush1.bf16.msra.mxu0 %v1677
        %1700 = vmatprep.subr.bf16.mxu0 0
        %1701 = vmatpush1.bf16.msra.mxu0 %v1678
        %1702 = vmatprep.subr.bf16.mxu0 0
        %1703 = vmatpush1.bf16.msra.mxu0 %v1679
        %1704 = vmatprep.subr.bf16.mxu0 0
        %1705 = vmatpush1.bf16.msra.mxu0 0
        %1706 = vmatprep.subr.bf16.mxu0 0
        %1707 = vmatpush1.bf16.msra.mxu0 0
        %1708 = vmatprep.subr.bf16.mxu0 0
        %1709 = vmatpush1.bf16.msra.mxu0 0
        %1710 = vmatprep.subr.bf16.mxu0 0
        %1711 = vmatpush1.bf16.msra.mxu0 0
        %1712 = vmatprep.subr.bf16.mxu0 0
        %1713 = vmatpush1.bf16.msra.mxu0 0
        %1714 = vmatprep.subr.bf16.mxu0 0
        %1715 = vmatpush1.bf16.msra.mxu0 0
        %1716 = vmatprep.subr.bf16.mxu0 0
        %1717 = vmatpush1.bf16.msra.mxu0 0
        %1718 = vmatprep.subr.bf16.mxu0 0
        %1719 = vmatpush1.bf16.msra.mxu0 0
        %1720 = vmatprep.mubr.bf16.mxu0 0
        %1721 = vmatmul.mubr.bf16.gmra.mrb[0].mxu0 %v1569
        %v1722 = vpop.f32.mrb[0].mxu0
        %v1723 = vadd.f32 0.0, %v1722
        %v1724 = vpop.f32.mrb[0].mxu0
        %v1725 = vpop.f32.mrb[0].mxu0
        %v1726 = vadd.f32 0.0, %v1725
        %v1727 = vpop.f32.mrb[0].mxu0
        %1728 = vmatprep.mubr.bf16.mxu0 0
        %1729 = vmatmul.mubr.bf16.gmra.mrb[0].mxu0 %v1570
        %v1730 = vpop.f32.mrb[0].mxu0
        %v1731 = vadd.f32 0.0, %v1730
        %v1732 = vpop.f32.mrb[0].mxu0
        %v1733 = vpop.f32.mrb[0].mxu0
        %v1734 = vadd.f32 0.0, %v1733
        %v1735 = vpop.f32.mrb[0].mxu0
        %1736 = vmatprep.mubr.bf16.mxu0 0
        %1737 = vmatmul.mubr.bf16.gmra.mrb[0].mxu0 %v1571
        %v1738 = vpop.f32.mrb[0].mxu0
        %v1739 = vadd.f32 0.0, %v1738
        %v1740 = vpop.f32.mrb[0].mxu0
        %v1741 = vpop.f32.mrb[0].mxu0
        %v1742 = vadd.f32 0.0, %v1741
        %v1743 = vpop.f32.mrb[0].mxu0
        %1744 = vmatprep.mubr.bf16.mxu0 0
        %1745 = vmatmul.mubr.bf16.gmra.mrb[0].mxu0 %v1572
        %v1746 = vpop.f32.mrb[0].mxu0
        %v1747 = vadd.f32 0.0, %v1746
        %v1748 = vpop.f32.mrb[0].mxu0
        %v1749 = vpop.f32.mrb[0].mxu0
        %v1750 = vadd.f32 0.0, %v1749
        %v1751 = vpop.f32.mrb[0].mxu0
        %1752 = vmatprep.mubr.bf16.mxu0 0
        %1753 = vmatmul.mubr.bf16.gmra.mrb[0].mxu0 %v1573
        %v1754 = vpop.f32.mrb[0].mxu0
        %v1755 = vadd.f32 0.0, %v1754
        %v1756 = vpop.f32.mrb[0].mxu0
        %v1757 = vpop.f32.mrb[0].mxu0
        %v1758 = vadd.f32 0.0, %v1757
        %v1759 = vpop.f32.mrb[0].mxu0
        %1760 = vmatprep.mubr.bf16.mxu0 0
        %1761 = vmatmul.mubr.bf16.gmra.mrb[0].mxu0 %v1574
        %v1762 = vpop.f32.mrb[0].mxu0
        %v1763 = vadd.f32 0.0, %v1762
        %v1764 = vpop.f32.mrb[0].mxu0
        %v1765 = vpop.f32.mrb[0].mxu0
        %v1766 = vadd.f32 0.0, %v1765
        %v1767 = vpop.f32.mrb[0].mxu0
        %1768 = vmatprep.mubr.bf16.mxu0 0
        %1769 = vmatmul.mubr.bf16.gmra.mrb[0].mxu0 %v1575
        %v1770 = vpop.f32.mrb[0].mxu0
        %v1771 = vadd.f32 0.0, %v1770
        %v1772 = vpop.f32.mrb[0].mxu0
        %v1773 = vpop.f32.mrb[0].mxu0
        %v1774 = vadd.f32 0.0, %v1773
        %v1775 = vpop.f32.mrb[0].mxu0
        %1776 = vmatprep.mubr.bf16.mxu0 0
        %1777 = vmatmul.mubr.bf16.gmra.mrb[0].mxu0 %v1576
        %v1778 = vpop.f32.mrb[0].mxu0
        %v1779 = vadd.f32 0.0, %v1778
        %v1780 = vpop.f32.mrb[0].mxu0
        %v1781 = vpop.f32.mrb[0].mxu0
        %v1782 = vadd.f32 0.0, %v1781
        %v1783 = vpop.f32.mrb[0].mxu0
        %1784 = vmatprep.mubr.bf16.mxu0 0
        %1785 = vmatmul.mubr.bf16.gmra.mrb[0].mxu0 %v1577
        %v1786 = vpop.f32.mrb[0].mxu0
        %v1787 = vadd.f32 0.0, %v1786
        %v1788 = vpop.f32.mrb[0].mxu0
        %v1789 = vpop.f32.mrb[0].mxu0
        %v1790 = vadd.f32 0.0, %v1789
        %v1791 = vpop.f32.mrb[0].mxu0
        %1792 = vmatprep.mubr.bf16.mxu0 0
        %1793 = vmatmul.mubr.bf16.gmra.mrb[0].mxu0 %v1578
        %v1794 = vpop.f32.mrb[0].mxu0
        %v1795 = vadd.f32 0.0, %v1794
        %v1796 = vpop.f32.mrb[0].mxu0
        %v1797 = vpop.f32.mrb[0].mxu0
        %v1798 = vadd.f32 0.0, %v1797
        %v1799 = vpop.f32.mrb[0].mxu0
        %1800 = vmatprep.mubr.bf16.mxu0 0
        %1801 = vmatmul.mubr.bf16.gmra.mrb[0].mxu0 %v1579
        %v1802 = vpop.f32.mrb[0].mxu0
        %v1803 = vadd.f32 0.0, %v1802
        %v1804 = vpop.f32.mrb[0].mxu0
        %v1805 = vpop.f32.mrb[0].mxu0
        %v1806 = vadd.f32 0.0, %v1805
        %v1807 = vpop.f32.mrb[0].mxu0
        %1808 = vmatprep.mubr.bf16.mxu0 0
        %1809 = vmatmul.mubr.bf16.gmra.mrb[0].mxu0 %v1580
        %v1810 = vpop.f32.mrb[0].mxu0
        %v1811 = vadd.f32 0.0, %v1810
        %v1812 = vpop.f32.mrb[0].mxu0
        %v1813 = vpop.f32.mrb[0].mxu0
        %v1814 = vadd.f32 0.0, %v1813
        %v1815 = vpop.f32.mrb[0].mxu0
        %1816 = vmatprep.mubr.bf16.mxu0 0
        %1817 = vmatmul.mubr.bf16.gmra.mrb[0].mxu0 %v1581
        %v1818 = vpop.f32.mrb[0].mxu0
        %v1819 = vadd.f32 0.0, %v1818
        %v1820 = vpop.f32.mrb[0].mxu0
        %v1821 = vpop.f32.mrb[0].mxu0
        %v1822 = vadd.f32 0.0, %v1821
        %v1823 = vpop.f32.mrb[0].mxu0
        %1824 = vmatprep.mubr.bf16.mxu0 0
        %1825 = vmatmul.mubr.bf16.gmra.mrb[0].mxu0 %v1582
        %v1826 = vpop.f32.mrb[0].mxu0
        %v1827 = vadd.f32 0.0, %v1826
        %v1828 = vpop.f32.mrb[0].mxu0
        %v1829 = vpop.f32.mrb[0].mxu0
        %v1830 = vadd.f32 0.0, %v1829
        %v1831 = vpop.f32.mrb[0].mxu0
        %1832 = vmatprep.mubr.bf16.mxu0 0
        %1833 = vmatmul.mubr.bf16.gmra.mrb[0].mxu0 %v1583
        %v1834 = vpop.f32.mrb[0].mxu0
        %v1835 = vadd.f32 0.0, %v1834
        %v1836 = vpop.f32.mrb[0].mxu0
        %v1837 = vpop.f32.mrb[0].mxu0
        %v1838 = vadd.f32 0.0, %v1837
        %v1839 = vpop.f32.mrb[0].mxu0
        %1840 = vmatprep.mubr.bf16.mxu0 0
        %1841 = vmatmul.mubr.bf16.gmra.mrb[0].mxu0 %v1584
        %v1842 = vpop.f32.mrb[0].mxu0
        %v1843 = vadd.f32 0.0, %v1842
        %v1844 = vpop.f32.mrb[0].mxu0
        %v1845 = vpop.f32.mrb[0].mxu0
        %v1846 = vadd.f32 0.0, %v1845
        %v1847 = vpop.f32.mrb[0].mxu0
        %1848 = vmatprep.mubr.bf16.mxu0 0
        %1849 = vmatmul.mubr.bf16.gmra.mrb[0].mxu0 %v1585
        %v1850 = vpop.f32.mrb[0].mxu0
        %v1851 = vadd.f32 0.0, %v1850
        %v1852 = vpop.f32.mrb[0].mxu0
        %v1853 = vpop.f32.mrb[0].mxu0
        %v1854 = vadd.f32 0.0, %v1853
        %v1855 = vpop.f32.mrb[0].mxu0
        %1856 = vmatprep.mubr.bf16.mxu0 0
        %1857 = vmatmul.mubr.bf16.gmra.mrb[0].mxu0 %v1586
        %v1858 = vpop.f32.mrb[0].mxu0
        %v1859 = vadd.f32 0.0, %v1858
        %v1860 = vpop.f32.mrb[0].mxu0
        %v1861 = vpop.f32.mrb[0].mxu0
        %v1862 = vadd.f32 0.0, %v1861
        %v1863 = vpop.f32.mrb[0].mxu0
        %1864 = vdwg.mxu0
        %v1865 = vadd.f32 %v1587, %v1723
        %v1866 = vadd.f32 %v1588, %v1726
        %v1867 = vadd.f32 %v1589, %v1731
        %v1868 = vadd.f32 %v1590, %v1734
        %v1869 = vadd.f32 %v1591, %v1739
        %v1870 = vadd.f32 %v1592, %v1742
        %v1871 = vadd.f32 %v1593, %v1747
        %v1872 = vadd.f32 %v1594, %v1750
        %v1873 = vadd.f32 %v1595, %v1755
        %v1874 = vadd.f32 %v1596, %v1758
        %v1875 = vadd.f32 %v1597, %v1763
        %v1876 = vadd.f32 %v1598, %v1766
        %v1877 = vadd.f32 %v1599, %v1771
        %v1878 = vadd.f32 %v1600, %v1774
        %v1879 = vadd.f32 %v1601, %v1779
        %v1880 = vadd.f32 %v1602, %v1782
        %v1881 = vadd.f32 %v1603, %v1787
        %v1882 = vadd.f32 %v1604, %v1790
        %v1883 = vadd.f32 %v1605, %v1795
        %v1884 = vadd.f32 %v1606, %v1798
        %v1885 = vadd.f32 %v1607, %v1803
        %v1886 = vadd.f32 %v1608, %v1806
        %v1887 = vadd.f32 %v1609, %v1811
        %v1888 = vadd.f32 %v1610, %v1814
        %v1889 = vadd.f32 %v1611, %v1819
        %v1890 = vadd.f32 %v1612, %v1822
        %v1891 = vadd.f32 %v1613, %v1827
        %v1892 = vadd.f32 %v1614, %v1830
        %v1893 = vadd.f32 %v1615, %v1835
        %v1894 = vadd.f32 %v1616, %v1838
        %v1895 = vadd.f32 %v1617, %v1843
        %v1896 = vadd.f32 %v1618, %v1846
        %v1897 = vadd.f32 %v1619, %v1851
        %v1898 = vadd.f32 %v1620, %v1854
        %v1899 = vadd.f32 %v1621, %v1859
        %v1900 = vadd.f32 %v1622, %v1862
        %1901 = vst [vmem:[#allocation2] sm:$0xff] %v1865
        %1902 = vst [vmem:[#allocation2 + $0x8] sm:$0xff] %v1866
        %1903 = vst [vmem:[#allocation2 + $0x10] sm:$0xff] %v1867
        %1904 = vst [vmem:[#allocation2 + $0x18] sm:$0xff] %v1868
        %1905 = vst [vmem:[#allocation2 + $0x20] sm:$0xff] %v1869
        %1906 = vst [vmem:[#allocation2 + $0x28] sm:$0xff] %v1870
        %1907 = vst [vmem:[#allocation2 + $0x30] sm:$0xff] %v1871
        %1908 = vst [vmem:[#allocation2 + $0x38] sm:$0xff] %v1872
        %1909 = vst [vmem:[#allocation2 + $0x40] sm:$0xff] %v1873
        %1910 = vst [vmem:[#allocation2 + $0x48] sm:$0xff] %v1874
        %1911 = vst [vmem:[#allocation2 + $0x50] sm:$0xff] %v1875
        %1912 = vst [vmem:[#allocation2 + $0x58] sm:$0xff] %v1876
        %1913 = vst [vmem:[#allocation2 + $0x60] sm:$0xff] %v1877
        %1914 = vst [vmem:[#allocation2 + $0x68] sm:$0xff] %v1878
        %1915 = vst [vmem:[#allocation2 + $0x70] sm:$0xff] %v1879
        %1916 = vst [vmem:[#allocation2 + $0x78] sm:$0xff] %v1880
        %1917 = vst [vmem:[#allocation2 + $0x80] sm:$0xff] %v1881
        %1918 = vst [vmem:[#allocation2 + $0x88] sm:$0xff] %v1882
        %1919 = vst [vmem:[#allocation2 + $0x90] sm:$0xff] %v1883
        %1920 = vst [vmem:[#allocation2 + $0x98] sm:$0xff] %v1884
        %1921 = vst [vmem:[#allocation2 + $0xa0] sm:$0xff] %v1885
        %1922 = vst [vmem:[#allocation2 + $0xa8] sm:$0xff] %v1886
        %1923 = vst [vmem:[#allocation2 + $0xb0] sm:$0xff] %v1887
        %1924 = vst [vmem:[#allocation2 + $0xb8] sm:$0xff] %v1888
        %1925 = vst [vmem:[#allocation2 + $0xc0] sm:$0xff] %v1889
        %1926 = vst [vmem:[#allocation2 + $0xc8] sm:$0xff] %v1890
        %1927 = vst [vmem:[#allocation2 + $0xd0] sm:$0xff] %v1891
        %1928 = vst [vmem:[#allocation2 + $0xd8] sm:$0xff] %v1892
        %1929 = vst [vmem:[#allocation2 + $0xe0] sm:$0xff] %v1893
        %1930 = vst [vmem:[#allocation2 + $0xe8] sm:$0xff] %v1894
        %1931 = vst [vmem:[#allocation2 + $0xf0] sm:$0xff] %v1895
        %1932 = vst [vmem:[#allocation2 + $0xf8] sm:$0xff] %v1896
        %1933 = vst [vmem:[#allocation2 + $0x100] sm:$0xff] %v1897
        %1934 = vst [vmem:[#allocation2 + $0x108] sm:$0xff] %v1898
        %1935 = vst [vmem:[#allocation2 + $0x110] sm:$0xff] %v1899
        %1936 = vst [vmem:[#allocation2 + $0x118] sm:$0xff] %v1900
        %v1937 = vld [vmem:[%s248 + $0x13] sm:$0xff]
        %v1938 = vld [vmem:[%s248 + $0x1b] sm:$0xff]
        %v1939 = vld [vmem:[%s248 + $0x23] sm:$0xff]
        %v1940 = vld [vmem:[%s248 + $0x2b] sm:$0xff]
        %v1941 = vld [vmem:[%s248 + $0x33] sm:$0xff]
        %v1942 = vld [vmem:[%s248 + $0x3b] sm:$0xff]
        %v1943 = vld [vmem:[%s248 + $0x43] sm:$0xff]
        %v1944 = vld [vmem:[%s248 + $0x4b] sm:$0xff]
        %v1945 = vld [vmem:[%s248 + $0x53] sm:$0xff]
        %v1946 = vld [vmem:[%s248 + $0x5b] sm:$0xff]
        %v1947 = vld [vmem:[%s248 + $0x63] sm:$0xff]
        %v1948 = vld [vmem:[%s248 + $0x6b] sm:$0xff]
        %v1949 = vld [vmem:[%s248 + $0x73] sm:$0xff]
        %v1950 = vld [vmem:[%s248 + $0x7b] sm:$0xff]
        %v1951 = vld [vmem:[%s248 + $0x83] sm:$0xff]
        %v1952 = vld [vmem:[%s248 + $0x8b] sm:$0xff]
        %v1953 = vld [vmem:[%s248 + $0x93] sm:$0xff]
        %v1954 = vld [vmem:[%s248 + $0x9b] sm:$0xff]
        %v1955 = vld [vmem:[%s248 + $0xa3] sm:$0xff]
        %v1956 = vld [vmem:[%s248 + $0xab] sm:$0xff]
        %v1957 = vld [vmem:[%s248 + $0xb3] sm:$0xff]
        %v1958 = vld [vmem:[%s248 + $0xbb] sm:$0xff]
        %v1959 = vld [vmem:[%s248 + $0xc3] sm:$0xff]
        %v1960 = vld [vmem:[%s248 + $0xcb] sm:$0xff]
        %v1961 = vld [vmem:[%s248 + $0xd3] sm:$0xff]
        %v1962 = vld [vmem:[%s248 + $0xdb] sm:$0xff]
        %v1963 = vld [vmem:[%s248 + $0xe3] sm:$0xff]
        %v1964 = vld [vmem:[%s248 + $0xeb] sm:$0xff]
        %v1965 = vld [vmem:[%s248 + $0xf3] sm:$0xff]
        %v1966 = vld [vmem:[%s248 + $0xfb] sm:$0xff]
        %v1967 = vld [vmem:[%s248 + $0x103] sm:$0xff]
        %v1968 = vld [vmem:[%s248 + $0x10b] sm:$0xff]
        %v1969 = vld [vmem:[%s248 + $0x113] sm:$0xff]
        %v1970 = vld [vmem:[%s248 + $0x11b] sm:$0xff]
        %v1971 = vld [vmem:[%s248 + $0x123] sm:$0xff]
        %v1972 = vld [vmem:[%s248 + $0x12b] sm:$0xff]
        %v1973 = vpack.c.bf16 %v1938, %v1937
        %v1974 = vpack.c.bf16 %v1940, %v1939
        %v1975 = vpack.c.bf16 %v1942, %v1941
        %v1976 = vpack.c.bf16 %v1944, %v1943
        %v1977 = vpack.c.bf16 %v1946, %v1945
        %v1978 = vpack.c.bf16 %v1948, %v1947
        %v1979 = vpack.c.bf16 %v1950, %v1949
        %v1980 = vpack.c.bf16 %v1952, %v1951
        %v1981 = vpack.c.bf16 %v1954, %v1953
        %v1982 = vpack.c.bf16 %v1956, %v1955
        %v1983 = vpack.c.bf16 %v1958, %v1957
        %v1984 = vpack.c.bf16 %v1960, %v1959
        %v1985 = vpack.c.bf16 %v1962, %v1961
        %v1986 = vpack.c.bf16 %v1964, %v1963
        %v1987 = vpack.c.bf16 %v1966, %v1965
        %v1988 = vpack.c.bf16 %v1968, %v1967
        %v1989 = vpack.c.bf16 %v1970, %v1969
        %v1990 = vpack.c.bf16 %v1972, %v1971
        %v1991 = vld [vmem:[#allocation2] sm:$0xff]
        %v1992 = vld [vmem:[#allocation2 + $0x8] sm:$0xff]
        %v1993 = vld [vmem:[#allocation2 + $0x10] sm:$0xff]
        %v1994 = vld [vmem:[#allocation2 + $0x18] sm:$0xff]
        %v1995 = vld [vmem:[#allocation2 + $0x20] sm:$0xff]
        %v1996 = vld [vmem:[#allocation2 + $0x28] sm:$0xff]
        %v1997 = vld [vmem:[#allocation2 + $0x30] sm:$0xff]
        %v1998 = vld [vmem:[#allocation2 + $0x38] sm:$0xff]
        %v1999 = vld [vmem:[#allocation2 + $0x40] sm:$0xff]
        %v2000 = vld [vmem:[#allocation2 + $0x48] sm:$0xff]
        %v2001 = vld [vmem:[#allocation2 + $0x50] sm:$0xff]
        %v2002 = vld [vmem:[#allocation2 + $0x58] sm:$0xff]
        %v2003 = vld [vmem:[#allocation2 + $0x60] sm:$0xff]
        %v2004 = vld [vmem:[#allocation2 + $0x68] sm:$0xff]
        %v2005 = vld [vmem:[#allocation2 + $0x70] sm:$0xff]
        %v2006 = vld [vmem:[#allocation2 + $0x78] sm:$0xff]
        %v2007 = vld [vmem:[#allocation2 + $0x80] sm:$0xff]
        %v2008 = vld [vmem:[#allocation2 + $0x88] sm:$0xff]
        %v2009 = vld [vmem:[#allocation2 + $0x90] sm:$0xff]
        %v2010 = vld [vmem:[#allocation2 + $0x98] sm:$0xff]
        %v2011 = vld [vmem:[#allocation2 + $0xa0] sm:$0xff]
        %v2012 = vld [vmem:[#allocation2 + $0xa8] sm:$0xff]
        %v2013 = vld [vmem:[#allocation2 + $0xb0] sm:$0xff]
        %v2014 = vld [vmem:[#allocation2 + $0xb8] sm:$0xff]
        %v2015 = vld [vmem:[#allocation2 + $0xc0] sm:$0xff]
        %v2016 = vld [vmem:[#allocation2 + $0xc8] sm:$0xff]
        %v2017 = vld [vmem:[#allocation2 + $0xd0] sm:$0xff]
        %v2018 = vld [vmem:[#allocation2 + $0xd8] sm:$0xff]
        %v2019 = vld [vmem:[#allocation2 + $0xe0] sm:$0xff]
        %v2020 = vld [vmem:[#allocation2 + $0xe8] sm:$0xff]
        %v2021 = vld [vmem:[#allocation2 + $0xf0] sm:$0xff]
        %v2022 = vld [vmem:[#allocation2 + $0xf8] sm:$0xff]
        %v2023 = vld [vmem:[#allocation2 + $0x100] sm:$0xff]
        %v2024 = vld [vmem:[#allocation2 + $0x108] sm:$0xff]
        %v2025 = vld [vmem:[#allocation2 + $0x110] sm:$0xff]
        %v2026 = vld [vmem:[#allocation2 + $0x118] sm:$0xff]
        %s2027 = scalar_lea.vmem %s1, 256
        %v2028 = vld [vmem:[%s2027] sm:$0xf]
        %v2029 = vld [vmem:[%s2027 + $0x4] sm:$0xf]
        %v2030 = vld [vmem:[%s2027 + $0x8] sm:$0xf]
        %v2031 = vld [vmem:[%s2027 + $0xc] sm:$0xf]
        %v2032 = vld [vmem:[%s2027 + $0x10] sm:$0xf]
        %v2033 = vld [vmem:[%s2027 + $0x14] sm:$0xf]
        %v2034 = vld [vmem:[%s2027 + $0x18] sm:$0xf]
        %v2035 = vld [vmem:[%s2027 + $0x1c] sm:$0xf]
        %v2036 = vld [vmem:[%s2027 + $0x20] sm:$0xf]
        %v2037 = vld [vmem:[%s2027 + $0x24] sm:$0xf]
        %v2038 = vld [vmem:[%s2027 + $0x28] sm:$0xf]
        %v2039 = vld [vmem:[%s2027 + $0x2c] sm:$0xf]
        %v2040 = vld [vmem:[%s2027 + $0x30] sm:$0xf]
        %v2041 = vld [vmem:[%s2027 + $0x34] sm:$0xf]
        %v2042 = vld [vmem:[%s2027 + $0x38] sm:$0xf]
        %v2043 = vld [vmem:[%s2027 + $0x3c] sm:$0xf]
        %v2060 = vunpack.c.l.b16 %v2028
        %v2061 = vunpack.c.l.b16 %v2029
        %v2062 = vunpack.c.l.b16 %v2030
        %v2063 = vunpack.c.l.b16 %v2031
        %v2064 = vunpack.c.l.b16 %v2032
        %v2065 = vunpack.c.l.b16 %v2033
        %v2066 = vunpack.c.l.b16 %v2034
        %v2067 = vunpack.c.l.b16 %v2035
        %v2068 = vunpack.c.l.b16 %v2036
        %v2069 = vunpack.c.l.b16 %v2037
        %v2070 = vunpack.c.l.b16 %v2038
        %v2071 = vunpack.c.l.b16 %v2039
        %v2072 = vunpack.c.l.b16 %v2040
        %v2073 = vunpack.c.l.b16 %v2041
        %v2074 = vunpack.c.l.b16 %v2042
        %v2075 = vunpack.c.l.b16 %v2043
        %v2076 = vpack.c.b16 %v2061, %v2060
        %v2077 = vpack.c.b16 %v2063, %v2062
        %v2078 = vpack.c.b16 %v2065, %v2064
        %v2079 = vpack.c.b16 %v2067, %v2066
        %v2080 = vpack.c.b16 %v2069, %v2068
        %v2081 = vpack.c.b16 %v2071, %v2070
        %v2082 = vpack.c.b16 %v2073, %v2072
        %v2083 = vpack.c.b16 %v2075, %v2074
        %2092 = vmatprep.subr.bf16.mxu0 0
        %2093 = vmatpush1.bf16.msra.mxu0 %v2076
        %2094 = vmatprep.subr.bf16.mxu0 0
        %2095 = vmatpush1.bf16.msra.mxu0 %v2077
        %2096 = vmatprep.subr.bf16.mxu0 0
        %2097 = vmatpush1.bf16.msra.mxu0 %v2078
        %2098 = vmatprep.subr.bf16.mxu0 0
        %2099 = vmatpush1.bf16.msra.mxu0 %v2079
        %2100 = vmatprep.subr.bf16.mxu0 0
        %2101 = vmatpush1.bf16.msra.mxu0 %v2080
        %2102 = vmatprep.subr.bf16.mxu0 0
        %2103 = vmatpush1.bf16.msra.mxu0 %v2081
        %2104 = vmatprep.subr.bf16.mxu0 0
        %2105 = vmatpush1.bf16.msra.mxu0 %v2082
        %2106 = vmatprep.subr.bf16.mxu0 0
        %2107 = vmatpush1.bf16.msra.mxu0 %v2083
        %2108 = vmatprep.subr.bf16.mxu0 0
        %2109 = vmatpush1.bf16.msra.mxu0 0
        %2110 = vmatprep.subr.bf16.mxu0 0
        %2111 = vmatpush1.bf16.msra.mxu0 0
        %2112 = vmatprep.subr.bf16.mxu0 0
        %2113 = vmatpush1.bf16.msra.mxu0 0
        %2114 = vmatprep.subr.bf16.mxu0 0
        %2115 = vmatpush1.bf16.msra.mxu0 0
        %2116 = vmatprep.subr.bf16.mxu0 0
        %2117 = vmatpush1.bf16.msra.mxu0 0
        %2118 = vmatprep.subr.bf16.mxu0 0
        %2119 = vmatpush1.bf16.msra.mxu0 0
        %2120 = vmatprep.subr.bf16.mxu0 0
        %2121 = vmatpush1.bf16.msra.mxu0 0
        %2122 = vmatprep.subr.bf16.mxu0 0
        %2123 = vmatpush1.bf16.msra.mxu0 0
        %2124 = vmatprep.mubr.bf16.mxu0 0
        %2125 = vmatmul.mubr.bf16.gmra.mrb[0].mxu0 %v1973
        %v2126 = vpop.f32.mrb[0].mxu0
        %v2127 = vadd.f32 0.0, %v2126
        %v2128 = vpop.f32.mrb[0].mxu0
        %v2129 = vpop.f32.mrb[0].mxu0
        %v2130 = vadd.f32 0.0, %v2129
        %v2131 = vpop.f32.mrb[0].mxu0
        %2132 = vmatprep.mubr.bf16.mxu0 0
        %2133 = vmatmul.mubr.bf16.gmra.mrb[0].mxu0 %v1974
        %v2134 = vpop.f32.mrb[0].mxu0
        %v2135 = vadd.f32 0.0, %v2134
        %v2136 = vpop.f32.mrb[0].mxu0
        %v2137 = vpop.f32.mrb[0].mxu0
        %v2138 = vadd.f32 0.0, %v2137
        %v2139 = vpop.f32.mrb[0].mxu0
        %2140 = vmatprep.mubr.bf16.mxu0 0
        %2141 = vmatmul.mubr.bf16.gmra.mrb[0].mxu0 %v1975
        %v2142 = vpop.f32.mrb[0].mxu0
        %v2143 = vadd.f32 0.0, %v2142
        %v2144 = vpop.f32.mrb[0].mxu0
        %v2145 = vpop.f32.mrb[0].mxu0
        %v2146 = vadd.f32 0.0, %v2145
        %v2147 = vpop.f32.mrb[0].mxu0
        %2148 = vmatprep.mubr.bf16.mxu0 0
        %2149 = vmatmul.mubr.bf16.gmra.mrb[0].mxu0 %v1976
        %v2150 = vpop.f32.mrb[0].mxu0
        %v2151 = vadd.f32 0.0, %v2150
        %v2152 = vpop.f32.mrb[0].mxu0
        %v2153 = vpop.f32.mrb[0].mxu0
        %v2154 = vadd.f32 0.0, %v2153
        %v2155 = vpop.f32.mrb[0].mxu0
        %2156 = vmatprep.mubr.bf16.mxu0 0
        %2157 = vmatmul.mubr.bf16.gmra.mrb[0].mxu0 %v1977
        %v2158 = vpop.f32.mrb[0].mxu0
        %v2159 = vadd.f32 0.0, %v2158
        %v2160 = vpop.f32.mrb[0].mxu0
        %v2161 = vpop.f32.mrb[0].mxu0
        %v2162 = vadd.f32 0.0, %v2161
        %v2163 = vpop.f32.mrb[0].mxu0
        %2164 = vmatprep.mubr.bf16.mxu0 0
        %2165 = vmatmul.mubr.bf16.gmra.mrb[0].mxu0 %v1978
        %v2166 = vpop.f32.mrb[0].mxu0
        %v2167 = vadd.f32 0.0, %v2166
        %v2168 = vpop.f32.mrb[0].mxu0
        %v2169 = vpop.f32.mrb[0].mxu0
        %v2170 = vadd.f32 0.0, %v2169
        %v2171 = vpop.f32.mrb[0].mxu0
        %2172 = vmatprep.mubr.bf16.mxu0 0
        %2173 = vmatmul.mubr.bf16.gmra.mrb[0].mxu0 %v1979
        %v2174 = vpop.f32.mrb[0].mxu0
        %v2175 = vadd.f32 0.0, %v2174
        %v2176 = vpop.f32.mrb[0].mxu0
        %v2177 = vpop.f32.mrb[0].mxu0
        %v2178 = vadd.f32 0.0, %v2177
        %v2179 = vpop.f32.mrb[0].mxu0
        %2180 = vmatprep.mubr.bf16.mxu0 0
        %2181 = vmatmul.mubr.bf16.gmra.mrb[0].mxu0 %v1980
        %v2182 = vpop.f32.mrb[0].mxu0
        %v2183 = vadd.f32 0.0, %v2182
        %v2184 = vpop.f32.mrb[0].mxu0
        %v2185 = vpop.f32.mrb[0].mxu0
        %v2186 = vadd.f32 0.0, %v2185
        %v2187 = vpop.f32.mrb[0].mxu0
        %2188 = vmatprep.mubr.bf16.mxu0 0
        %2189 = vmatmul.mubr.bf16.gmra.mrb[0].mxu0 %v1981
        %v2190 = vpop.f32.mrb[0].mxu0
        %v2191 = vadd.f32 0.0, %v2190
        %v2192 = vpop.f32.mrb[0].mxu0
        %v2193 = vpop.f32.mrb[0].mxu0
        %v2194 = vadd.f32 0.0, %v2193
        %v2195 = vpop.f32.mrb[0].mxu0
        %2196 = vmatprep.mubr.bf16.mxu0 0
        %2197 = vmatmul.mubr.bf16.gmra.mrb[0].mxu0 %v1982
        %v2198 = vpop.f32.mrb[0].mxu0
        %v2199 = vadd.f32 0.0, %v2198
        %v2200 = vpop.f32.mrb[0].mxu0
        %v2201 = vpop.f32.mrb[0].mxu0
        %v2202 = vadd.f32 0.0, %v2201
        %v2203 = vpop.f32.mrb[0].mxu0
        %2204 = vmatprep.mubr.bf16.mxu0 0
        %2205 = vmatmul.mubr.bf16.gmra.mrb[0].mxu0 %v1983
        %v2206 = vpop.f32.mrb[0].mxu0
        %v2207 = vadd.f32 0.0, %v2206
        %v2208 = vpop.f32.mrb[0].mxu0
        %v2209 = vpop.f32.mrb[0].mxu0
        %v2210 = vadd.f32 0.0, %v2209
        %v2211 = vpop.f32.mrb[0].mxu0
        %2212 = vmatprep.mubr.bf16.mxu0 0
        %2213 = vmatmul.mubr.bf16.gmra.mrb[0].mxu0 %v1984
        %v2214 = vpop.f32.mrb[0].mxu0
        %v2215 = vadd.f32 0.0, %v2214
        %v2216 = vpop.f32.mrb[0].mxu0
        %v2217 = vpop.f32.mrb[0].mxu0
        %v2218 = vadd.f32 0.0, %v2217
        %v2219 = vpop.f32.mrb[0].mxu0
        %2220 = vmatprep.mubr.bf16.mxu0 0
        %2221 = vmatmul.mubr.bf16.gmra.mrb[0].mxu0 %v1985
        %v2222 = vpop.f32.mrb[0].mxu0
        %v2223 = vadd.f32 0.0, %v2222
        %v2224 = vpop.f32.mrb[0].mxu0
        %v2225 = vpop.f32.mrb[0].mxu0
        %v2226 = vadd.f32 0.0, %v2225
        %v2227 = vpop.f32.mrb[0].mxu0
        %2228 = vmatprep.mubr.bf16.mxu0 0
        %2229 = vmatmul.mubr.bf16.gmra.mrb[0].mxu0 %v1986
        %v2230 = vpop.f32.mrb[0].mxu0
        %v2231 = vadd.f32 0.0, %v2230
        %v2232 = vpop.f32.mrb[0].mxu0
        %v2233 = vpop.f32.mrb[0].mxu0
        %v2234 = vadd.f32 0.0, %v2233
        %v2235 = vpop.f32.mrb[0].mxu0
        %2236 = vmatprep.mubr.bf16.mxu0 0
        %2237 = vmatmul.mubr.bf16.gmra.mrb[0].mxu0 %v1987
        %v2238 = vpop.f32.mrb[0].mxu0
        %v2239 = vadd.f32 0.0, %v2238
        %v2240 = vpop.f32.mrb[0].mxu0
        %v2241 = vpop.f32.mrb[0].mxu0
        %v2242 = vadd.f32 0.0, %v2241
        %v2243 = vpop.f32.mrb[0].mxu0
        %2244 = vmatprep.mubr.bf16.mxu0 0
        %2245 = vmatmul.mubr.bf16.gmra.mrb[0].mxu0 %v1988
        %v2246 = vpop.f32.mrb[0].mxu0
        %v2247 = vadd.f32 0.0, %v2246
        %v2248 = vpop.f32.mrb[0].mxu0
        %v2249 = vpop.f32.mrb[0].mxu0
        %v2250 = vadd.f32 0.0, %v2249
        %v2251 = vpop.f32.mrb[0].mxu0
        %2252 = vmatprep.mubr.bf16.mxu0 0
        %2253 = vmatmul.mubr.bf16.gmra.mrb[0].mxu0 %v1989
        %v2254 = vpop.f32.mrb[0].mxu0
        %v2255 = vadd.f32 0.0, %v2254
        %v2256 = vpop.f32.mrb[0].mxu0
        %v2257 = vpop.f32.mrb[0].mxu0
        %v2258 = vadd.f32 0.0, %v2257
        %v2259 = vpop.f32.mrb[0].mxu0
        %2260 = vmatprep.mubr.bf16.mxu0 0
        %2261 = vmatmul.mubr.bf16.gmra.mrb[0].mxu0 %v1990
        %v2262 = vpop.f32.mrb[0].mxu0
        %v2263 = vadd.f32 0.0, %v2262
        %v2264 = vpop.f32.mrb[0].mxu0
        %v2265 = vpop.f32.mrb[0].mxu0
        %v2266 = vadd.f32 0.0, %v2265
        %v2267 = vpop.f32.mrb[0].mxu0
        %2268 = vdwg.mxu0
        %v2269 = vadd.f32 %v1991, %v2127
        %v2270 = vadd.f32 %v1992, %v2130
        %v2271 = vadd.f32 %v1993, %v2135
        %v2272 = vadd.f32 %v1994, %v2138
        %v2273 = vadd.f32 %v1995, %v2143
        %v2274 = vadd.f32 %v1996, %v2146
        %v2275 = vadd.f32 %v1997, %v2151
        %v2276 = vadd.f32 %v1998, %v2154
        %v2277 = vadd.f32 %v1999, %v2159
        %v2278 = vadd.f32 %v2000, %v2162
        %v2279 = vadd.f32 %v2001, %v2167
        %v2280 = vadd.f32 %v2002, %v2170
        %v2281 = vadd.f32 %v2003, %v2175
        %v2282 = vadd.f32 %v2004, %v2178
        %v2283 = vadd.f32 %v2005, %v2183
        %v2284 = vadd.f32 %v2006, %v2186
        %v2285 = vadd.f32 %v2007, %v2191
        %v2286 = vadd.f32 %v2008, %v2194
        %v2287 = vadd.f32 %v2009, %v2199
        %v2288 = vadd.f32 %v2010, %v2202
        %v2289 = vadd.f32 %v2011, %v2207
        %v2290 = vadd.f32 %v2012, %v2210
        %v2291 = vadd.f32 %v2013, %v2215
        %v2292 = vadd.f32 %v2014, %v2218
        %v2293 = vadd.f32 %v2015, %v2223
        %v2294 = vadd.f32 %v2016, %v2226
        %v2295 = vadd.f32 %v2017, %v2231
        %v2296 = vadd.f32 %v2018, %v2234
        %v2297 = vadd.f32 %v2019, %v2239
        %v2298 = vadd.f32 %v2020, %v2242
        %v2299 = vadd.f32 %v2021, %v2247
        %v2300 = vadd.f32 %v2022, %v2250
        %v2301 = vadd.f32 %v2023, %v2255
        %v2302 = vadd.f32 %v2024, %v2258
        %v2303 = vadd.f32 %v2025, %v2263
        %v2304 = vadd.f32 %v2026, %v2266
        %2305 = vst [vmem:[#allocation2] sm:$0xff] %v2269
        %2306 = vst [vmem:[#allocation2 + $0x8] sm:$0xff] %v2270
        %2307 = vst [vmem:[#allocation2 + $0x10] sm:$0xff] %v2271
        %2308 = vst [vmem:[#allocation2 + $0x18] sm:$0xff] %v2272
        %2309 = vst [vmem:[#allocation2 + $0x20] sm:$0xff] %v2273
        %2310 = vst [vmem:[#allocation2 + $0x28] sm:$0xff] %v2274
        %2311 = vst [vmem:[#allocation2 + $0x30] sm:$0xff] %v2275
        %2312 = vst [vmem:[#allocation2 + $0x38] sm:$0xff] %v2276
        %2313 = vst [vmem:[#allocation2 + $0x40] sm:$0xff] %v2277
        %2314 = vst [vmem:[#allocation2 + $0x48] sm:$0xff] %v2278
        %2315 = vst [vmem:[#allocation2 + $0x50] sm:$0xff] %v2279
        %2316 = vst [vmem:[#allocation2 + $0x58] sm:$0xff] %v2280
        %2317 = vst [vmem:[#allocation2 + $0x60] sm:$0xff] %v2281
        %2318 = vst [vmem:[#allocation2 + $0x68] sm:$0xff] %v2282
        %2319 = vst [vmem:[#allocation2 + $0x70] sm:$0xff] %v2283
        %2320 = vst [vmem:[#allocation2 + $0x78] sm:$0xff] %v2284
        %2321 = vst [vmem:[#allocation2 + $0x80] sm:$0xff] %v2285
        %2322 = vst [vmem:[#allocation2 + $0x88] sm:$0xff] %v2286
        %2323 = vst [vmem:[#allocation2 + $0x90] sm:$0xff] %v2287
        %2324 = vst [vmem:[#allocation2 + $0x98] sm:$0xff] %v2288
        %2325 = vst [vmem:[#allocation2 + $0xa0] sm:$0xff] %v2289
        %2326 = vst [vmem:[#allocation2 + $0xa8] sm:$0xff] %v2290
        %2327 = vst [vmem:[#allocation2 + $0xb0] sm:$0xff] %v2291
        %2328 = vst [vmem:[#allocation2 + $0xb8] sm:$0xff] %v2292
        %2329 = vst [vmem:[#allocation2 + $0xc0] sm:$0xff] %v2293
        %2330 = vst [vmem:[#allocation2 + $0xc8] sm:$0xff] %v2294
        %2331 = vst [vmem:[#allocation2 + $0xd0] sm:$0xff] %v2295
        %2332 = vst [vmem:[#allocation2 + $0xd8] sm:$0xff] %v2296
        %2333 = vst [vmem:[#allocation2 + $0xe0] sm:$0xff] %v2297
        %2334 = vst [vmem:[#allocation2 + $0xe8] sm:$0xff] %v2298
        %2335 = vst [vmem:[#allocation2 + $0xf0] sm:$0xff] %v2299
        %2336 = vst [vmem:[#allocation2 + $0xf8] sm:$0xff] %v2300
        %2337 = vst [vmem:[#allocation2 + $0x100] sm:$0xff] %v2301
        %2338 = vst [vmem:[#allocation2 + $0x108] sm:$0xff] %v2302
        %2339 = vst [vmem:[#allocation2 + $0x110] sm:$0xff] %v2303
        %2340 = vst [vmem:[#allocation2 + $0x118] sm:$0xff] %v2304
        %v2341 = vld [vmem:[%s248 + $0x14] sm:$0xff]
        %v2342 = vld [vmem:[%s248 + $0x1c] sm:$0xff]
        %v2343 = vld [vmem:[%s248 + $0x24] sm:$0xff]
        %v2344 = vld [vmem:[%s248 + $0x2c] sm:$0xff]
        %v2345 = vld [vmem:[%s248 + $0x34] sm:$0xff]
        %v2346 = vld [vmem:[%s248 + $0x3c] sm:$0xff]
        %v2347 = vld [vmem:[%s248 + $0x44] sm:$0xff]
        %v2348 = vld [vmem:[%s248 + $0x4c] sm:$0xff]
        %v2349 = vld [vmem:[%s248 + $0x54] sm:$0xff]
        %v2350 = vld [vmem:[%s248 + $0x5c] sm:$0xff]
        %v2351 = vld [vmem:[%s248 + $0x64] sm:$0xff]
        %v2352 = vld [vmem:[%s248 + $0x6c] sm:$0xff]
        %v2353 = vld [vmem:[%s248 + $0x74] sm:$0xff]
        %v2354 = vld [vmem:[%s248 + $0x7c] sm:$0xff]
        %v2355 = vld [vmem:[%s248 + $0x84] sm:$0xff]
        %v2356 = vld [vmem:[%s248 + $0x8c] sm:$0xff]
        %v2357 = vld [vmem:[%s248 + $0x94] sm:$0xff]
        %v2358 = vld [vmem:[%s248 + $0x9c] sm:$0xff]
        %v2359 = vld [vmem:[%s248 + $0xa4] sm:$0xff]
        %v2360 = vld [vmem:[%s248 + $0xac] sm:$0xff]
        %v2361 = vld [vmem:[%s248 + $0xb4] sm:$0xff]
        %v2362 = vld [vmem:[%s248 + $0xbc] sm:$0xff]
        %v2363 = vld [vmem:[%s248 + $0xc4] sm:$0xff]
        %v2364 = vld [vmem:[%s248 + $0xcc] sm:$0xff]
        %v2365 = vld [vmem:[%s248 + $0xd4] sm:$0xff]
        %v2366 = vld [vmem:[%s248 + $0xdc] sm:$0xff]
        %v2367 = vld [vmem:[%s248 + $0xe4] sm:$0xff]
        %v2368 = vld [vmem:[%s248 + $0xec] sm:$0xff]
        %v2369 = vld [vmem:[%s248 + $0xf4] sm:$0xff]
        %v2370 = vld [vmem:[%s248 + $0xfc] sm:$0xff]
        %v2371 = vld [vmem:[%s248 + $0x104] sm:$0xff]
        %v2372 = vld [vmem:[%s248 + $0x10c] sm:$0xff]
        %v2373 = vld [vmem:[%s248 + $0x114] sm:$0xff]
        %v2374 = vld [vmem:[%s248 + $0x11c] sm:$0xff]
        %v2375 = vld [vmem:[%s248 + $0x124] sm:$0xff]
        %v2376 = vld [vmem:[%s248 + $0x12c] sm:$0xff]
        %v2377 = vpack.c.bf16 %v2342, %v2341
        %v2378 = vpack.c.bf16 %v2344, %v2343
        %v2379 = vpack.c.bf16 %v2346, %v2345
        %v2380 = vpack.c.bf16 %v2348, %v2347
        %v2381 = vpack.c.bf16 %v2350, %v2349
        %v2382 = vpack.c.bf16 %v2352, %v2351
        %v2383 = vpack.c.bf16 %v2354, %v2353
        %v2384 = vpack.c.bf16 %v2356, %v2355
        %v2385 = vpack.c.bf16 %v2358, %v2357
        %v2386 = vpack.c.bf16 %v2360, %v2359
        %v2387 = vpack.c.bf16 %v2362, %v2361
        %v2388 = vpack.c.bf16 %v2364, %v2363
        %v2389 = vpack.c.bf16 %v2366, %v2365
        %v2390 = vpack.c.bf16 %v2368, %v2367
        %v2391 = vpack.c.bf16 %v2370, %v2369
        %v2392 = vpack.c.bf16 %v2372, %v2371
        %v2393 = vpack.c.bf16 %v2374, %v2373
        %v2394 = vpack.c.bf16 %v2376, %v2375
        %v2395 = vld [vmem:[#allocation2] sm:$0xff]
        %v2396 = vld [vmem:[#allocation2 + $0x8] sm:$0xff]
        %v2397 = vld [vmem:[#allocation2 + $0x10] sm:$0xff]
        %v2398 = vld [vmem:[#allocation2 + $0x18] sm:$0xff]
        %v2399 = vld [vmem:[#allocation2 + $0x20] sm:$0xff]
        %v2400 = vld [vmem:[#allocation2 + $0x28] sm:$0xff]
        %v2401 = vld [vmem:[#allocation2 + $0x30] sm:$0xff]
        %v2402 = vld [vmem:[#allocation2 + $0x38] sm:$0xff]
        %v2403 = vld [vmem:[#allocation2 + $0x40] sm:$0xff]
        %v2404 = vld [vmem:[#allocation2 + $0x48] sm:$0xff]
        %v2405 = vld [vmem:[#allocation2 + $0x50] sm:$0xff]
        %v2406 = vld [vmem:[#allocation2 + $0x58] sm:$0xff]
        %v2407 = vld [vmem:[#allocation2 + $0x60] sm:$0xff]
        %v2408 = vld [vmem:[#allocation2 + $0x68] sm:$0xff]
        %v2409 = vld [vmem:[#allocation2 + $0x70] sm:$0xff]
        %v2410 = vld [vmem:[#allocation2 + $0x78] sm:$0xff]
        %v2411 = vld [vmem:[#allocation2 + $0x80] sm:$0xff]
        %v2412 = vld [vmem:[#allocation2 + $0x88] sm:$0xff]
        %v2413 = vld [vmem:[#allocation2 + $0x90] sm:$0xff]
        %v2414 = vld [vmem:[#allocation2 + $0x98] sm:$0xff]
        %v2415 = vld [vmem:[#allocation2 + $0xa0] sm:$0xff]
        %v2416 = vld [vmem:[#allocation2 + $0xa8] sm:$0xff]
        %v2417 = vld [vmem:[#allocation2 + $0xb0] sm:$0xff]
        %v2418 = vld [vmem:[#allocation2 + $0xb8] sm:$0xff]
        %v2419 = vld [vmem:[#allocation2 + $0xc0] sm:$0xff]
        %v2420 = vld [vmem:[#allocation2 + $0xc8] sm:$0xff]
        %v2421 = vld [vmem:[#allocation2 + $0xd0] sm:$0xff]
        %v2422 = vld [vmem:[#allocation2 + $0xd8] sm:$0xff]
        %v2423 = vld [vmem:[#allocation2 + $0xe0] sm:$0xff]
        %v2424 = vld [vmem:[#allocation2 + $0xe8] sm:$0xff]
        %v2425 = vld [vmem:[#allocation2 + $0xf0] sm:$0xff]
        %v2426 = vld [vmem:[#allocation2 + $0xf8] sm:$0xff]
        %v2427 = vld [vmem:[#allocation2 + $0x100] sm:$0xff]
        %v2428 = vld [vmem:[#allocation2 + $0x108] sm:$0xff]
        %v2429 = vld [vmem:[#allocation2 + $0x110] sm:$0xff]
        %v2430 = vld [vmem:[#allocation2 + $0x118] sm:$0xff]
        %s2431 = scalar_lea.vmem %s1, 320
        %v2432 = vld [vmem:[%s2431] sm:$0xf]
        %v2433 = vld [vmem:[%s2431 + $0x4] sm:$0xf]
        %v2434 = vld [vmem:[%s2431 + $0x8] sm:$0xf]
        %v2435 = vld [vmem:[%s2431 + $0xc] sm:$0xf]
        %v2436 = vld [vmem:[%s2431 + $0x10] sm:$0xf]
        %v2437 = vld [vmem:[%s2431 + $0x14] sm:$0xf]
        %v2438 = vld [vmem:[%s2431 + $0x18] sm:$0xf]
        %v2439 = vld [vmem:[%s2431 + $0x1c] sm:$0xf]
        %v2440 = vld [vmem:[%s2431 + $0x20] sm:$0xf]
        %v2441 = vld [vmem:[%s2431 + $0x24] sm:$0xf]
        %v2442 = vld [vmem:[%s2431 + $0x28] sm:$0xf]
        %v2443 = vld [vmem:[%s2431 + $0x2c] sm:$0xf]
        %v2444 = vld [vmem:[%s2431 + $0x30] sm:$0xf]
        %v2445 = vld [vmem:[%s2431 + $0x34] sm:$0xf]
        %v2446 = vld [vmem:[%s2431 + $0x38] sm:$0xf]
        %v2447 = vld [vmem:[%s2431 + $0x3c] sm:$0xf]
        %v2464 = vunpack.c.l.b16 %v2432
        %v2465 = vunpack.c.l.b16 %v2433
        %v2466 = vunpack.c.l.b16 %v2434
        %v2467 = vunpack.c.l.b16 %v2435
        %v2468 = vunpack.c.l.b16 %v2436
        %v2469 = vunpack.c.l.b16 %v2437
        %v2470 = vunpack.c.l.b16 %v2438
        %v2471 = vunpack.c.l.b16 %v2439
        %v2472 = vunpack.c.l.b16 %v2440
        %v2473 = vunpack.c.l.b16 %v2441
        %v2474 = vunpack.c.l.b16 %v2442
        %v2475 = vunpack.c.l.b16 %v2443
        %v2476 = vunpack.c.l.b16 %v2444
        %v2477 = vunpack.c.l.b16 %v2445
        %v2478 = vunpack.c.l.b16 %v2446
        %v2479 = vunpack.c.l.b16 %v2447
        %v2480 = vpack.c.b16 %v2465, %v2464
        %v2481 = vpack.c.b16 %v2467, %v2466
        %v2482 = vpack.c.b16 %v2469, %v2468
        %v2483 = vpack.c.b16 %v2471, %v2470
        %v2484 = vpack.c.b16 %v2473, %v2472
        %v2485 = vpack.c.b16 %v2475, %v2474
        %v2486 = vpack.c.b16 %v2477, %v2476
        %v2487 = vpack.c.b16 %v2479, %v2478
        %2496 = vmatprep.subr.bf16.mxu0 0
        %2497 = vmatpush1.bf16.msra.mxu0 %v2480
        %2498 = vmatprep.subr.bf16.mxu0 0
        %2499 = vmatpush1.bf16.msra.mxu0 %v2481
        %2500 = vmatprep.subr.bf16.mxu0 0
        %2501 = vmatpush1.bf16.msra.mxu0 %v2482
        %2502 = vmatprep.subr.bf16.mxu0 0
        %2503 = vmatpush1.bf16.msra.mxu0 %v2483
        %2504 = vmatprep.subr.bf16.mxu0 0
        %2505 = vmatpush1.bf16.msra.mxu0 %v2484
        %2506 = vmatprep.subr.bf16.mxu0 0
        %2507 = vmatpush1.bf16.msra.mxu0 %v2485
        %2508 = vmatprep.subr.bf16.mxu0 0
        %2509 = vmatpush1.bf16.msra.mxu0 %v2486
        %2510 = vmatprep.subr.bf16.mxu0 0
        %2511 = vmatpush1.bf16.msra.mxu0 %v2487
        %2512 = vmatprep.subr.bf16.mxu0 0
        %2513 = vmatpush1.bf16.msra.mxu0 0
        %2514 = vmatprep.subr.bf16.mxu0 0
        %2515 = vmatpush1.bf16.msra.mxu0 0
        %2516 = vmatprep.subr.bf16.mxu0 0
        %2517 = vmatpush1.bf16.msra.mxu0 0
        %2518 = vmatprep.subr.bf16.mxu0 0
        %2519 = vmatpush1.bf16.msra.mxu0 0
        %2520 = vmatprep.subr.bf16.mxu0 0
        %2521 = vmatpush1.bf16.msra.mxu0 0
        %2522 = vmatprep.subr.bf16.mxu0 0
        %2523 = vmatpush1.bf16.msra.mxu0 0
        %2524 = vmatprep.subr.bf16.mxu0 0
        %2525 = vmatpush1.bf16.msra.mxu0 0
        %2526 = vmatprep.subr.bf16.mxu0 0
        %2527 = vmatpush1.bf16.msra.mxu0 0
        %2528 = vmatprep.mubr.bf16.mxu0 0
        %2529 = vmatmul.mubr.bf16.gmra.mrb[0].mxu0 %v2377
        %v2530 = vpop.f32.mrb[0].mxu0
        %v2531 = vadd.f32 0.0, %v2530
        %v2532 = vpop.f32.mrb[0].mxu0
        %v2533 = vpop.f32.mrb[0].mxu0
        %v2534 = vadd.f32 0.0, %v2533
        %v2535 = vpop.f32.mrb[0].mxu0
        %2536 = vmatprep.mubr.bf16.mxu0 0
        %2537 = vmatmul.mubr.bf16.gmra.mrb[0].mxu0 %v2378
        %v2538 = vpop.f32.mrb[0].mxu0
        %v2539 = vadd.f32 0.0, %v2538
        %v2540 = vpop.f32.mrb[0].mxu0
        %v2541 = vpop.f32.mrb[0].mxu0
        %v2542 = vadd.f32 0.0, %v2541
        %v2543 = vpop.f32.mrb[0].mxu0
        %2544 = vmatprep.mubr.bf16.mxu0 0
        %2545 = vmatmul.mubr.bf16.gmra.mrb[0].mxu0 %v2379
        %v2546 = vpop.f32.mrb[0].mxu0
        %v2547 = vadd.f32 0.0, %v2546
        %v2548 = vpop.f32.mrb[0].mxu0
        %v2549 = vpop.f32.mrb[0].mxu0
        %v2550 = vadd.f32 0.0, %v2549
        %v2551 = vpop.f32.mrb[0].mxu0
        %2552 = vmatprep.mubr.bf16.mxu0 0
        %2553 = vmatmul.mubr.bf16.gmra.mrb[0].mxu0 %v2380
        %v2554 = vpop.f32.mrb[0].mxu0
        %v2555 = vadd.f32 0.0, %v2554
        %v2556 = vpop.f32.mrb[0].mxu0
        %v2557 = vpop.f32.mrb[0].mxu0
        %v2558 = vadd.f32 0.0, %v2557
        %v2559 = vpop.f32.mrb[0].mxu0
        %2560 = vmatprep.mubr.bf16.mxu0 0
        %2561 = vmatmul.mubr.bf16.gmra.mrb[0].mxu0 %v2381
        %v2562 = vpop.f32.mrb[0].mxu0
        %v2563 = vadd.f32 0.0, %v2562
        %v2564 = vpop.f32.mrb[0].mxu0
        %v2565 = vpop.f32.mrb[0].mxu0
        %v2566 = vadd.f32 0.0, %v2565
        %v2567 = vpop.f32.mrb[0].mxu0
        %2568 = vmatprep.mubr.bf16.mxu0 0
        %2569 = vmatmul.mubr.bf16.gmra.mrb[0].mxu0 %v2382
        %v2570 = vpop.f32.mrb[0].mxu0
        %v2571 = vadd.f32 0.0, %v2570
        %v2572 = vpop.f32.mrb[0].mxu0
        %v2573 = vpop.f32.mrb[0].mxu0
        %v2574 = vadd.f32 0.0, %v2573
        %v2575 = vpop.f32.mrb[0].mxu0
        %2576 = vmatprep.mubr.bf16.mxu0 0
        %2577 = vmatmul.mubr.bf16.gmra.mrb[0].mxu0 %v2383
        %v2578 = vpop.f32.mrb[0].mxu0
        %v2579 = vadd.f32 0.0, %v2578
        %v2580 = vpop.f32.mrb[0].mxu0
        %v2581 = vpop.f32.mrb[0].mxu0
        %v2582 = vadd.f32 0.0, %v2581
        %v2583 = vpop.f32.mrb[0].mxu0
        %2584 = vmatprep.mubr.bf16.mxu0 0
        %2585 = vmatmul.mubr.bf16.gmra.mrb[0].mxu0 %v2384
        %v2586 = vpop.f32.mrb[0].mxu0
        %v2587 = vadd.f32 0.0, %v2586
        %v2588 = vpop.f32.mrb[0].mxu0
        %v2589 = vpop.f32.mrb[0].mxu0
        %v2590 = vadd.f32 0.0, %v2589
        %v2591 = vpop.f32.mrb[0].mxu0
        %2592 = vmatprep.mubr.bf16.mxu0 0
        %2593 = vmatmul.mubr.bf16.gmra.mrb[0].mxu0 %v2385
        %v2594 = vpop.f32.mrb[0].mxu0
        %v2595 = vadd.f32 0.0, %v2594
        %v2596 = vpop.f32.mrb[0].mxu0
        %v2597 = vpop.f32.mrb[0].mxu0
        %v2598 = vadd.f32 0.0, %v2597
        %v2599 = vpop.f32.mrb[0].mxu0
        %2600 = vmatprep.mubr.bf16.mxu0 0
        %2601 = vmatmul.mubr.bf16.gmra.mrb[0].mxu0 %v2386
        %v2602 = vpop.f32.mrb[0].mxu0
        %v2603 = vadd.f32 0.0, %v2602
        %v2604 = vpop.f32.mrb[0].mxu0
        %v2605 = vpop.f32.mrb[0].mxu0
        %v2606 = vadd.f32 0.0, %v2605
        %v2607 = vpop.f32.mrb[0].mxu0
        %2608 = vmatprep.mubr.bf16.mxu0 0
        %2609 = vmatmul.mubr.bf16.gmra.mrb[0].mxu0 %v2387
        %v2610 = vpop.f32.mrb[0].mxu0
        %v2611 = vadd.f32 0.0, %v2610
        %v2612 = vpop.f32.mrb[0].mxu0
        %v2613 = vpop.f32.mrb[0].mxu0
        %v2614 = vadd.f32 0.0, %v2613
        %v2615 = vpop.f32.mrb[0].mxu0
        %2616 = vmatprep.mubr.bf16.mxu0 0
        %2617 = vmatmul.mubr.bf16.gmra.mrb[0].mxu0 %v2388
        %v2618 = vpop.f32.mrb[0].mxu0
        %v2619 = vadd.f32 0.0, %v2618
        %v2620 = vpop.f32.mrb[0].mxu0
        %v2621 = vpop.f32.mrb[0].mxu0
        %v2622 = vadd.f32 0.0, %v2621
        %v2623 = vpop.f32.mrb[0].mxu0
        %2624 = vmatprep.mubr.bf16.mxu0 0
        %2625 = vmatmul.mubr.bf16.gmra.mrb[0].mxu0 %v2389
        %v2626 = vpop.f32.mrb[0].mxu0
        %v2627 = vadd.f32 0.0, %v2626
        %v2628 = vpop.f32.mrb[0].mxu0
        %v2629 = vpop.f32.mrb[0].mxu0
        %v2630 = vadd.f32 0.0, %v2629
        %v2631 = vpop.f32.mrb[0].mxu0
        %2632 = vmatprep.mubr.bf16.mxu0 0
        %2633 = vmatmul.mubr.bf16.gmra.mrb[0].mxu0 %v2390
        %v2634 = vpop.f32.mrb[0].mxu0
        %v2635 = vadd.f32 0.0, %v2634
        %v2636 = vpop.f32.mrb[0].mxu0
        %v2637 = vpop.f32.mrb[0].mxu0
        %v2638 = vadd.f32 0.0, %v2637
        %v2639 = vpop.f32.mrb[0].mxu0
        %2640 = vmatprep.mubr.bf16.mxu0 0
        %2641 = vmatmul.mubr.bf16.gmra.mrb[0].mxu0 %v2391
        %v2642 = vpop.f32.mrb[0].mxu0
        %v2643 = vadd.f32 0.0, %v2642
        %v2644 = vpop.f32.mrb[0].mxu0
        %v2645 = vpop.f32.mrb[0].mxu0
        %v2646 = vadd.f32 0.0, %v2645
        %v2647 = vpop.f32.mrb[0].mxu0
        %2648 = vmatprep.mubr.bf16.mxu0 0
        %2649 = vmatmul.mubr.bf16.gmra.mrb[0].mxu0 %v2392
        %v2650 = vpop.f32.mrb[0].mxu0
        %v2651 = vadd.f32 0.0, %v2650
        %v2652 = vpop.f32.mrb[0].mxu0
        %v2653 = vpop.f32.mrb[0].mxu0
        %v2654 = vadd.f32 0.0, %v2653
        %v2655 = vpop.f32.mrb[0].mxu0
        %2656 = vmatprep.mubr.bf16.mxu0 0
        %2657 = vmatmul.mubr.bf16.gmra.mrb[0].mxu0 %v2393
        %v2658 = vpop.f32.mrb[0].mxu0
        %v2659 = vadd.f32 0.0, %v2658
        %v2660 = vpop.f32.mrb[0].mxu0
        %v2661 = vpop.f32.mrb[0].mxu0
        %v2662 = vadd.f32 0.0, %v2661
        %v2663 = vpop.f32.mrb[0].mxu0
        %2664 = vmatprep.mubr.bf16.mxu0 0
        %2665 = vmatmul.mubr.bf16.gmra.mrb[0].mxu0 %v2394
        %v2666 = vpop.f32.mrb[0].mxu0
        %v2667 = vadd.f32 0.0, %v2666
        %v2668 = vpop.f32.mrb[0].mxu0
        %v2669 = vpop.f32.mrb[0].mxu0
        %v2670 = vadd.f32 0.0, %v2669
        %v2671 = vpop.f32.mrb[0].mxu0
        %2672 = vdwg.mxu0
        %v2673 = vadd.f32 %v2395, %v2531
        %v2674 = vadd.f32 %v2396, %v2534
        %v2675 = vadd.f32 %v2397, %v2539
        %v2676 = vadd.f32 %v2398, %v2542
        %v2677 = vadd.f32 %v2399, %v2547
        %v2678 = vadd.f32 %v2400, %v2550
        %v2679 = vadd.f32 %v2401, %v2555
        %v2680 = vadd.f32 %v2402, %v2558
        %v2681 = vadd.f32 %v2403, %v2563
        %v2682 = vadd.f32 %v2404, %v2566
        %v2683 = vadd.f32 %v2405, %v2571
        %v2684 = vadd.f32 %v2406, %v2574
        %v2685 = vadd.f32 %v2407, %v2579
        %v2686 = vadd.f32 %v2408, %v2582
        %v2687 = vadd.f32 %v2409, %v2587
        %v2688 = vadd.f32 %v2410, %v2590
        %v2689 = vadd.f32 %v2411, %v2595
        %v2690 = vadd.f32 %v2412, %v2598
        %v2691 = vadd.f32 %v2413, %v2603
        %v2692 = vadd.f32 %v2414, %v2606
        %v2693 = vadd.f32 %v2415, %v2611
        %v2694 = vadd.f32 %v2416, %v2614
        %v2695 = vadd.f32 %v2417, %v2619
        %v2696 = vadd.f32 %v2418, %v2622
        %v2697 = vadd.f32 %v2419, %v2627
        %v2698 = vadd.f32 %v2420, %v2630
        %v2699 = vadd.f32 %v2421, %v2635
        %v2700 = vadd.f32 %v2422, %v2638
        %v2701 = vadd.f32 %v2423, %v2643
        %v2702 = vadd.f32 %v2424, %v2646
        %v2703 = vadd.f32 %v2425, %v2651
        %v2704 = vadd.f32 %v2426, %v2654
        %v2705 = vadd.f32 %v2427, %v2659
        %v2706 = vadd.f32 %v2428, %v2662
        %v2707 = vadd.f32 %v2429, %v2667
        %v2708 = vadd.f32 %v2430, %v2670
        %2709 = vst [vmem:[#allocation2] sm:$0xff] %v2673
        %2710 = vst [vmem:[#allocation2 + $0x8] sm:$0xff] %v2674
        %2711 = vst [vmem:[#allocation2 + $0x10] sm:$0xff] %v2675
        %2712 = vst [vmem:[#allocation2 + $0x18] sm:$0xff] %v2676
        %2713 = vst [vmem:[#allocation2 + $0x20] sm:$0xff] %v2677
        %2714 = vst [vmem:[#allocation2 + $0x28] sm:$0xff] %v2678
        %2715 = vst [vmem:[#allocation2 + $0x30] sm:$0xff] %v2679
        %2716 = vst [vmem:[#allocation2 + $0x38] sm:$0xff] %v2680
        %2717 = vst [vmem:[#allocation2 + $0x40] sm:$0xff] %v2681
        %2718 = vst [vmem:[#allocation2 + $0x48] sm:$0xff] %v2682
        %2719 = vst [vmem:[#allocation2 + $0x50] sm:$0xff] %v2683
        %2720 = vst [vmem:[#allocation2 + $0x58] sm:$0xff] %v2684
        %2721 = vst [vmem:[#allocation2 + $0x60] sm:$0xff] %v2685
        %2722 = vst [vmem:[#allocation2 + $0x68] sm:$0xff] %v2686
        %2723 = vst [vmem:[#allocation2 + $0x70] sm:$0xff] %v2687
        %2724 = vst [vmem:[#allocation2 + $0x78] sm:$0xff] %v2688
        %2725 = vst [vmem:[#allocation2 + $0x80] sm:$0xff] %v2689
        %2726 = vst [vmem:[#allocation2 + $0x88] sm:$0xff] %v2690
        %2727 = vst [vmem:[#allocation2 + $0x90] sm:$0xff] %v2691
        %2728 = vst [vmem:[#allocation2 + $0x98] sm:$0xff] %v2692
        %2729 = vst [vmem:[#allocation2 + $0xa0] sm:$0xff] %v2693
        %2730 = vst [vmem:[#allocation2 + $0xa8] sm:$0xff] %v2694
        %2731 = vst [vmem:[#allocation2 + $0xb0] sm:$0xff] %v2695
        %2732 = vst [vmem:[#allocation2 + $0xb8] sm:$0xff] %v2696
        %2733 = vst [vmem:[#allocation2 + $0xc0] sm:$0xff] %v2697
        %2734 = vst [vmem:[#allocation2 + $0xc8] sm:$0xff] %v2698
        %2735 = vst [vmem:[#allocation2 + $0xd0] sm:$0xff] %v2699
        %2736 = vst [vmem:[#allocation2 + $0xd8] sm:$0xff] %v2700
        %2737 = vst [vmem:[#allocation2 + $0xe0] sm:$0xff] %v2701
        %2738 = vst [vmem:[#allocation2 + $0xe8] sm:$0xff] %v2702
        %2739 = vst [vmem:[#allocation2 + $0xf0] sm:$0xff] %v2703
        %2740 = vst [vmem:[#allocation2 + $0xf8] sm:$0xff] %v2704
        %2741 = vst [vmem:[#allocation2 + $0x100] sm:$0xff] %v2705
        %2742 = vst [vmem:[#allocation2 + $0x108] sm:$0xff] %v2706
        %2743 = vst [vmem:[#allocation2 + $0x110] sm:$0xff] %v2707
        %2744 = vst [vmem:[#allocation2 + $0x118] sm:$0xff] %v2708
        %v2745 = vld [vmem:[%s248 + $0x24] sm:$0xff]
        %v2746 = vld [vmem:[%s248 + $0x2c] sm:$0xff]
        %v2747 = vld [vmem:[%s248 + $0x34] sm:$0xff]
        %v2748 = vld [vmem:[%s248 + $0x3c] sm:$0xff]
        %v2749 = vld [vmem:[%s248 + $0x44] sm:$0xff]
        %v2750 = vld [vmem:[%s248 + $0x4c] sm:$0xff]
        %v2751 = vld [vmem:[%s248 + $0x54] sm:$0xff]
        %v2752 = vld [vmem:[%s248 + $0x5c] sm:$0xff]
        %v2753 = vld [vmem:[%s248 + $0x64] sm:$0xff]
        %v2754 = vld [vmem:[%s248 + $0x6c] sm:$0xff]
        %v2755 = vld [vmem:[%s248 + $0x74] sm:$0xff]
        %v2756 = vld [vmem:[%s248 + $0x7c] sm:$0xff]
        %v2757 = vld [vmem:[%s248 + $0x84] sm:$0xff]
        %v2758 = vld [vmem:[%s248 + $0x8c] sm:$0xff]
        %v2759 = vld [vmem:[%s248 + $0x94] sm:$0xff]
        %v2760 = vld [vmem:[%s248 + $0x9c] sm:$0xff]
        %v2761 = vld [vmem:[%s248 + $0xa4] sm:$0xff]
        %v2762 = vld [vmem:[%s248 + $0xac] sm:$0xff]
        %v2763 = vld [vmem:[%s248 + $0xb4] sm:$0xff]
        %v2764 = vld [vmem:[%s248 + $0xbc] sm:$0xff]
        %v2765 = vld [vmem:[%s248 + $0xc4] sm:$0xff]
        %v2766 = vld [vmem:[%s248 + $0xcc] sm:$0xff]
        %v2767 = vld [vmem:[%s248 + $0xd4] sm:$0xff]
        %v2768 = vld [vmem:[%s248 + $0xdc] sm:$0xff]
        %v2769 = vld [vmem:[%s248 + $0xe4] sm:$0xff]
        %v2770 = vld [vmem:[%s248 + $0xec] sm:$0xff]
        %v2771 = vld [vmem:[%s248 + $0xf4] sm:$0xff]
        %v2772 = vld [vmem:[%s248 + $0xfc] sm:$0xff]
        %v2773 = vld [vmem:[%s248 + $0x104] sm:$0xff]
        %v2774 = vld [vmem:[%s248 + $0x10c] sm:$0xff]
        %v2775 = vld [vmem:[%s248 + $0x114] sm:$0xff]
        %v2776 = vld [vmem:[%s248 + $0x11c] sm:$0xff]
        %v2777 = vld [vmem:[%s248 + $0x124] sm:$0xff]
        %v2778 = vld [vmem:[%s248 + $0x12c] sm:$0xff]
        %v2779 = vld [vmem:[%s248 + $0x134] sm:$0xff]
        %v2780 = vld [vmem:[%s248 + $0x13c] sm:$0xff]
        %v2781 = vpack.c.bf16 %v2746, %v2745
        %v2782 = vpack.c.bf16 %v2748, %v2747
        %v2783 = vpack.c.bf16 %v2750, %v2749
        %v2784 = vpack.c.bf16 %v2752, %v2751
        %v2785 = vpack.c.bf16 %v2754, %v2753
        %v2786 = vpack.c.bf16 %v2756, %v2755
        %v2787 = vpack.c.bf16 %v2758, %v2757
        %v2788 = vpack.c.bf16 %v2760, %v2759
        %v2789 = vpack.c.bf16 %v2762, %v2761
        %v2790 = vpack.c.bf16 %v2764, %v2763
        %v2791 = vpack.c.bf16 %v2766, %v2765
        %v2792 = vpack.c.bf16 %v2768, %v2767
        %v2793 = vpack.c.bf16 %v2770, %v2769
        %v2794 = vpack.c.bf16 %v2772, %v2771
        %v2795 = vpack.c.bf16 %v2774, %v2773
        %v2796 = vpack.c.bf16 %v2776, %v2775
        %v2797 = vpack.c.bf16 %v2778, %v2777
        %v2798 = vpack.c.bf16 %v2780, %v2779
        %v2799 = vld [vmem:[#allocation2] sm:$0xff]
        %v2800 = vld [vmem:[#allocation2 + $0x8] sm:$0xff]
        %v2801 = vld [vmem:[#allocation2 + $0x10] sm:$0xff]
        %v2802 = vld [vmem:[#allocation2 + $0x18] sm:$0xff]
        %v2803 = vld [vmem:[#allocation2 + $0x20] sm:$0xff]
        %v2804 = vld [vmem:[#allocation2 + $0x28] sm:$0xff]
        %v2805 = vld [vmem:[#allocation2 + $0x30] sm:$0xff]
        %v2806 = vld [vmem:[#allocation2 + $0x38] sm:$0xff]
        %v2807 = vld [vmem:[#allocation2 + $0x40] sm:$0xff]
        %v2808 = vld [vmem:[#allocation2 + $0x48] sm:$0xff]
        %v2809 = vld [vmem:[#allocation2 + $0x50] sm:$0xff]
        %v2810 = vld [vmem:[#allocation2 + $0x58] sm:$0xff]
        %v2811 = vld [vmem:[#allocation2 + $0x60] sm:$0xff]
        %v2812 = vld [vmem:[#allocation2 + $0x68] sm:$0xff]
        %v2813 = vld [vmem:[#allocation2 + $0x70] sm:$0xff]
        %v2814 = vld [vmem:[#allocation2 + $0x78] sm:$0xff]
        %v2815 = vld [vmem:[#allocation2 + $0x80] sm:$0xff]
        %v2816 = vld [vmem:[#allocation2 + $0x88] sm:$0xff]
        %v2817 = vld [vmem:[#allocation2 + $0x90] sm:$0xff]
        %v2818 = vld [vmem:[#allocation2 + $0x98] sm:$0xff]
        %v2819 = vld [vmem:[#allocation2 + $0xa0] sm:$0xff]
        %v2820 = vld [vmem:[#allocation2 + $0xa8] sm:$0xff]
        %v2821 = vld [vmem:[#allocation2 + $0xb0] sm:$0xff]
        %v2822 = vld [vmem:[#allocation2 + $0xb8] sm:$0xff]
        %v2823 = vld [vmem:[#allocation2 + $0xc0] sm:$0xff]
        %v2824 = vld [vmem:[#allocation2 + $0xc8] sm:$0xff]
        %v2825 = vld [vmem:[#allocation2 + $0xd0] sm:$0xff]
        %v2826 = vld [vmem:[#allocation2 + $0xd8] sm:$0xff]
        %v2827 = vld [vmem:[#allocation2 + $0xe0] sm:$0xff]
        %v2828 = vld [vmem:[#allocation2 + $0xe8] sm:$0xff]
        %v2829 = vld [vmem:[#allocation2 + $0xf0] sm:$0xff]
        %v2830 = vld [vmem:[#allocation2 + $0xf8] sm:$0xff]
        %v2831 = vld [vmem:[#allocation2 + $0x100] sm:$0xff]
        %v2832 = vld [vmem:[#allocation2 + $0x108] sm:$0xff]
        %v2833 = vld [vmem:[#allocation2 + $0x110] sm:$0xff]
        %v2834 = vld [vmem:[#allocation2 + $0x118] sm:$0xff]
        %s2835 = scalar_lea.vmem %s1, 384
        %v2836 = vld [vmem:[%s2835] sm:$0xf]
        %v2837 = vld [vmem:[%s2835 + $0x4] sm:$0xf]
        %v2838 = vld [vmem:[%s2835 + $0x8] sm:$0xf]
        %v2839 = vld [vmem:[%s2835 + $0xc] sm:$0xf]
        %v2840 = vld [vmem:[%s2835 + $0x10] sm:$0xf]
        %v2841 = vld [vmem:[%s2835 + $0x14] sm:$0xf]
        %v2842 = vld [vmem:[%s2835 + $0x18] sm:$0xf]
        %v2843 = vld [vmem:[%s2835 + $0x1c] sm:$0xf]
        %v2844 = vld [vmem:[%s2835 + $0x20] sm:$0xf]
        %v2845 = vld [vmem:[%s2835 + $0x24] sm:$0xf]
        %v2846 = vld [vmem:[%s2835 + $0x28] sm:$0xf]
        %v2847 = vld [vmem:[%s2835 + $0x2c] sm:$0xf]
        %v2848 = vld [vmem:[%s2835 + $0x30] sm:$0xf]
        %v2849 = vld [vmem:[%s2835 + $0x34] sm:$0xf]
        %v2850 = vld [vmem:[%s2835 + $0x38] sm:$0xf]
        %v2851 = vld [vmem:[%s2835 + $0x3c] sm:$0xf]
        %v2868 = vunpack.c.l.b16 %v2836
        %v2869 = vunpack.c.l.b16 %v2837
        %v2870 = vunpack.c.l.b16 %v2838
        %v2871 = vunpack.c.l.b16 %v2839
        %v2872 = vunpack.c.l.b16 %v2840
        %v2873 = vunpack.c.l.b16 %v2841
        %v2874 = vunpack.c.l.b16 %v2842
        %v2875 = vunpack.c.l.b16 %v2843
        %v2876 = vunpack.c.l.b16 %v2844
        %v2877 = vunpack.c.l.b16 %v2845
        %v2878 = vunpack.c.l.b16 %v2846
        %v2879 = vunpack.c.l.b16 %v2847
        %v2880 = vunpack.c.l.b16 %v2848
        %v2881 = vunpack.c.l.b16 %v2849
        %v2882 = vunpack.c.l.b16 %v2850
        %v2883 = vunpack.c.l.b16 %v2851
        %v2884 = vpack.c.b16 %v2869, %v2868
        %v2885 = vpack.c.b16 %v2871, %v2870
        %v2886 = vpack.c.b16 %v2873, %v2872
        %v2887 = vpack.c.b16 %v2875, %v2874
        %v2888 = vpack.c.b16 %v2877, %v2876
        %v2889 = vpack.c.b16 %v2879, %v2878
        %v2890 = vpack.c.b16 %v2881, %v2880
        %v2891 = vpack.c.b16 %v2883, %v2882
        %2900 = vmatprep.subr.bf16.mxu0 0
        %2901 = vmatpush1.bf16.msra.mxu0 %v2884
        %2902 = vmatprep.subr.bf16.mxu0 0
        %2903 = vmatpush1.bf16.msra.mxu0 %v2885
        %2904 = vmatprep.subr.bf16.mxu0 0
        %2905 = vmatpush1.bf16.msra.mxu0 %v2886
        %2906 = vmatprep.subr.bf16.mxu0 0
        %2907 = vmatpush1.bf16.msra.mxu0 %v2887
        %2908 = vmatprep.subr.bf16.mxu0 0
        %2909 = vmatpush1.bf16.msra.mxu0 %v2888
        %2910 = vmatprep.subr.bf16.mxu0 0
        %2911 = vmatpush1.bf16.msra.mxu0 %v2889
        %2912 = vmatprep.subr.bf16.mxu0 0
        %2913 = vmatpush1.bf16.msra.mxu0 %v2890
        %2914 = vmatprep.subr.bf16.mxu0 0
        %2915 = vmatpush1.bf16.msra.mxu0 %v2891
        %2916 = vmatprep.subr.bf16.mxu0 0
        %2917 = vmatpush1.bf16.msra.mxu0 0
        %2918 = vmatprep.subr.bf16.mxu0 0
        %2919 = vmatpush1.bf16.msra.mxu0 0
        %2920 = vmatprep.subr.bf16.mxu0 0
        %2921 = vmatpush1.bf16.msra.mxu0 0
        %2922 = vmatprep.subr.bf16.mxu0 0
        %2923 = vmatpush1.bf16.msra.mxu0 0
        %2924 = vmatprep.subr.bf16.mxu0 0
        %2925 = vmatpush1.bf16.msra.mxu0 0
        %2926 = vmatprep.subr.bf16.mxu0 0
        %2927 = vmatpush1.bf16.msra.mxu0 0
        %2928 = vmatprep.subr.bf16.mxu0 0
        %2929 = vmatpush1.bf16.msra.mxu0 0
        %2930 = vmatprep.subr.bf16.mxu0 0
        %2931 = vmatpush1.bf16.msra.mxu0 0
        %2932 = vmatprep.mubr.bf16.mxu0 0
        %2933 = vmatmul.mubr.bf16.gmra.mrb[0].mxu0 %v2781
        %v2934 = vpop.f32.mrb[0].mxu0
        %v2935 = vadd.f32 0.0, %v2934
        %v2936 = vpop.f32.mrb[0].mxu0
        %v2937 = vpop.f32.mrb[0].mxu0
        %v2938 = vadd.f32 0.0, %v2937
        %v2939 = vpop.f32.mrb[0].mxu0
        %2940 = vmatprep.mubr.bf16.mxu0 0
        %2941 = vmatmul.mubr.bf16.gmra.mrb[0].mxu0 %v2782
        %v2942 = vpop.f32.mrb[0].mxu0
        %v2943 = vadd.f32 0.0, %v2942
        %v2944 = vpop.f32.mrb[0].mxu0
        %v2945 = vpop.f32.mrb[0].mxu0
        %v2946 = vadd.f32 0.0, %v2945
        %v2947 = vpop.f32.mrb[0].mxu0
        %2948 = vmatprep.mubr.bf16.mxu0 0
        %2949 = vmatmul.mubr.bf16.gmra.mrb[0].mxu0 %v2783
        %v2950 = vpop.f32.mrb[0].mxu0
        %v2951 = vadd.f32 0.0, %v2950
        %v2952 = vpop.f32.mrb[0].mxu0
        %v2953 = vpop.f32.mrb[0].mxu0
        %v2954 = vadd.f32 0.0, %v2953
        %v2955 = vpop.f32.mrb[0].mxu0
        %2956 = vmatprep.mubr.bf16.mxu0 0
        %2957 = vmatmul.mubr.bf16.gmra.mrb[0].mxu0 %v2784
        %v2958 = vpop.f32.mrb[0].mxu0
        %v2959 = vadd.f32 0.0, %v2958
        %v2960 = vpop.f32.mrb[0].mxu0
        %v2961 = vpop.f32.mrb[0].mxu0
        %v2962 = vadd.f32 0.0, %v2961
        %v2963 = vpop.f32.mrb[0].mxu0
        %2964 = vmatprep.mubr.bf16.mxu0 0
        %2965 = vmatmul.mubr.bf16.gmra.mrb[0].mxu0 %v2785
        %v2966 = vpop.f32.mrb[0].mxu0
        %v2967 = vadd.f32 0.0, %v2966
        %v2968 = vpop.f32.mrb[0].mxu0
        %v2969 = vpop.f32.mrb[0].mxu0
        %v2970 = vadd.f32 0.0, %v2969
        %v2971 = vpop.f32.mrb[0].mxu0
        %2972 = vmatprep.mubr.bf16.mxu0 0
        %2973 = vmatmul.mubr.bf16.gmra.mrb[0].mxu0 %v2786
        %v2974 = vpop.f32.mrb[0].mxu0
        %v2975 = vadd.f32 0.0, %v2974
        %v2976 = vpop.f32.mrb[0].mxu0
        %v2977 = vpop.f32.mrb[0].mxu0
        %v2978 = vadd.f32 0.0, %v2977
        %v2979 = vpop.f32.mrb[0].mxu0
        %2980 = vmatprep.mubr.bf16.mxu0 0
        %2981 = vmatmul.mubr.bf16.gmra.mrb[0].mxu0 %v2787
        %v2982 = vpop.f32.mrb[0].mxu0
        %v2983 = vadd.f32 0.0, %v2982
        %v2984 = vpop.f32.mrb[0].mxu0
        %v2985 = vpop.f32.mrb[0].mxu0
        %v2986 = vadd.f32 0.0, %v2985
        %v2987 = vpop.f32.mrb[0].mxu0
        %2988 = vmatprep.mubr.bf16.mxu0 0
        %2989 = vmatmul.mubr.bf16.gmra.mrb[0].mxu0 %v2788
        %v2990 = vpop.f32.mrb[0].mxu0
        %v2991 = vadd.f32 0.0, %v2990
        %v2992 = vpop.f32.mrb[0].mxu0
        %v2993 = vpop.f32.mrb[0].mxu0
        %v2994 = vadd.f32 0.0, %v2993
        %v2995 = vpop.f32.mrb[0].mxu0
        %2996 = vmatprep.mubr.bf16.mxu0 0
        %2997 = vmatmul.mubr.bf16.gmra.mrb[0].mxu0 %v2789
        %v2998 = vpop.f32.mrb[0].mxu0
        %v2999 = vadd.f32 0.0, %v2998
        %v3000 = vpop.f32.mrb[0].mxu0
        %v3001 = vpop.f32.mrb[0].mxu0
        %v3002 = vadd.f32 0.0, %v3001
        %v3003 = vpop.f32.mrb[0].mxu0
        %3004 = vmatprep.mubr.bf16.mxu0 0
        %3005 = vmatmul.mubr.bf16.gmra.mrb[0].mxu0 %v2790
        %v3006 = vpop.f32.mrb[0].mxu0
        %v3007 = vadd.f32 0.0, %v3006
        %v3008 = vpop.f32.mrb[0].mxu0
        %v3009 = vpop.f32.mrb[0].mxu0
        %v3010 = vadd.f32 0.0, %v3009
        %v3011 = vpop.f32.mrb[0].mxu0
        %3012 = vmatprep.mubr.bf16.mxu0 0
        %3013 = vmatmul.mubr.bf16.gmra.mrb[0].mxu0 %v2791
        %v3014 = vpop.f32.mrb[0].mxu0
        %v3015 = vadd.f32 0.0, %v3014
        %v3016 = vpop.f32.mrb[0].mxu0
        %v3017 = vpop.f32.mrb[0].mxu0
        %v3018 = vadd.f32 0.0, %v3017
        %v3019 = vpop.f32.mrb[0].mxu0
        %3020 = vmatprep.mubr.bf16.mxu0 0
        %3021 = vmatmul.mubr.bf16.gmra.mrb[0].mxu0 %v2792
        %v3022 = vpop.f32.mrb[0].mxu0
        %v3023 = vadd.f32 0.0, %v3022
        %v3024 = vpop.f32.mrb[0].mxu0
        %v3025 = vpop.f32.mrb[0].mxu0
        %v3026 = vadd.f32 0.0, %v3025
        %v3027 = vpop.f32.mrb[0].mxu0
        %3028 = vmatprep.mubr.bf16.mxu0 0
        %3029 = vmatmul.mubr.bf16.gmra.mrb[0].mxu0 %v2793
        %v3030 = vpop.f32.mrb[0].mxu0
        %v3031 = vadd.f32 0.0, %v3030
        %v3032 = vpop.f32.mrb[0].mxu0
        %v3033 = vpop.f32.mrb[0].mxu0
        %v3034 = vadd.f32 0.0, %v3033
        %v3035 = vpop.f32.mrb[0].mxu0
        %3036 = vmatprep.mubr.bf16.mxu0 0
        %3037 = vmatmul.mubr.bf16.gmra.mrb[0].mxu0 %v2794
        %v3038 = vpop.f32.mrb[0].mxu0
        %v3039 = vadd.f32 0.0, %v3038
        %v3040 = vpop.f32.mrb[0].mxu0
        %v3041 = vpop.f32.mrb[0].mxu0
        %v3042 = vadd.f32 0.0, %v3041
        %v3043 = vpop.f32.mrb[0].mxu0
        %3044 = vmatprep.mubr.bf16.mxu0 0
        %3045 = vmatmul.mubr.bf16.gmra.mrb[0].mxu0 %v2795
        %v3046 = vpop.f32.mrb[0].mxu0
        %v3047 = vadd.f32 0.0, %v3046
        %v3048 = vpop.f32.mrb[0].mxu0
        %v3049 = vpop.f32.mrb[0].mxu0
        %v3050 = vadd.f32 0.0, %v3049
        %v3051 = vpop.f32.mrb[0].mxu0
        %3052 = vmatprep.mubr.bf16.mxu0 0
        %3053 = vmatmul.mubr.bf16.gmra.mrb[0].mxu0 %v2796
        %v3054 = vpop.f32.mrb[0].mxu0
        %v3055 = vadd.f32 0.0, %v3054
        %v3056 = vpop.f32.mrb[0].mxu0
        %v3057 = vpop.f32.mrb[0].mxu0
        %v3058 = vadd.f32 0.0, %v3057
        %v3059 = vpop.f32.mrb[0].mxu0
        %3060 = vmatprep.mubr.bf16.mxu0 0
        %3061 = vmatmul.mubr.bf16.gmra.mrb[0].mxu0 %v2797
        %v3062 = vpop.f32.mrb[0].mxu0
        %v3063 = vadd.f32 0.0, %v3062
        %v3064 = vpop.f32.mrb[0].mxu0
        %v3065 = vpop.f32.mrb[0].mxu0
        %v3066 = vadd.f32 0.0, %v3065
        %v3067 = vpop.f32.mrb[0].mxu0
        %3068 = vmatprep.mubr.bf16.mxu0 0
        %3069 = vmatmul.mubr.bf16.gmra.mrb[0].mxu0 %v2798
        %v3070 = vpop.f32.mrb[0].mxu0
        %v3071 = vadd.f32 0.0, %v3070
        %v3072 = vpop.f32.mrb[0].mxu0
        %v3073 = vpop.f32.mrb[0].mxu0
        %v3074 = vadd.f32 0.0, %v3073
        %v3075 = vpop.f32.mrb[0].mxu0
        %3076 = vdwg.mxu0
        %v3077 = vadd.f32 %v2799, %v2935
        %v3078 = vadd.f32 %v2800, %v2938
        %v3079 = vadd.f32 %v2801, %v2943
        %v3080 = vadd.f32 %v2802, %v2946
        %v3081 = vadd.f32 %v2803, %v2951
        %v3082 = vadd.f32 %v2804, %v2954
        %v3083 = vadd.f32 %v2805, %v2959
        %v3084 = vadd.f32 %v2806, %v2962
        %v3085 = vadd.f32 %v2807, %v2967
        %v3086 = vadd.f32 %v2808, %v2970
        %v3087 = vadd.f32 %v2809, %v2975
        %v3088 = vadd.f32 %v2810, %v2978
        %v3089 = vadd.f32 %v2811, %v2983
        %v3090 = vadd.f32 %v2812, %v2986
        %v3091 = vadd.f32 %v2813, %v2991
        %v3092 = vadd.f32 %v2814, %v2994
        %v3093 = vadd.f32 %v2815, %v2999
        %v3094 = vadd.f32 %v2816, %v3002
        %v3095 = vadd.f32 %v2817, %v3007
        %v3096 = vadd.f32 %v2818, %v3010
        %v3097 = vadd.f32 %v2819, %v3015
        %v3098 = vadd.f32 %v2820, %v3018
        %v3099 = vadd.f32 %v2821, %v3023
        %v3100 = vadd.f32 %v2822, %v3026
        %v3101 = vadd.f32 %v2823, %v3031
        %v3102 = vadd.f32 %v2824, %v3034
        %v3103 = vadd.f32 %v2825, %v3039
        %v3104 = vadd.f32 %v2826, %v3042
        %v3105 = vadd.f32 %v2827, %v3047
        %v3106 = vadd.f32 %v2828, %v3050
        %v3107 = vadd.f32 %v2829, %v3055
        %v3108 = vadd.f32 %v2830, %v3058
        %v3109 = vadd.f32 %v2831, %v3063
        %v3110 = vadd.f32 %v2832, %v3066
        %v3111 = vadd.f32 %v2833, %v3071
        %v3112 = vadd.f32 %v2834, %v3074
        %3113 = vst [vmem:[#allocation2] sm:$0xff] %v3077
        %3114 = vst [vmem:[#allocation2 + $0x8] sm:$0xff] %v3078
        %3115 = vst [vmem:[#allocation2 + $0x10] sm:$0xff] %v3079
        %3116 = vst [vmem:[#allocation2 + $0x18] sm:$0xff] %v3080
        %3117 = vst [vmem:[#allocation2 + $0x20] sm:$0xff] %v3081
        %3118 = vst [vmem:[#allocation2 + $0x28] sm:$0xff] %v3082
        %3119 = vst [vmem:[#allocation2 + $0x30] sm:$0xff] %v3083
        %3120 = vst [vmem:[#allocation2 + $0x38] sm:$0xff] %v3084
        %3121 = vst [vmem:[#allocation2 + $0x40] sm:$0xff] %v3085
        %3122 = vst [vmem:[#allocation2 + $0x48] sm:$0xff] %v3086
        %3123 = vst [vmem:[#allocation2 + $0x50] sm:$0xff] %v3087
        %3124 = vst [vmem:[#allocation2 + $0x58] sm:$0xff] %v3088
        %3125 = vst [vmem:[#allocation2 + $0x60] sm:$0xff] %v3089
        %3126 = vst [vmem:[#allocation2 + $0x68] sm:$0xff] %v3090
        %3127 = vst [vmem:[#allocation2 + $0x70] sm:$0xff] %v3091
        %3128 = vst [vmem:[#allocation2 + $0x78] sm:$0xff] %v3092
        %3129 = vst [vmem:[#allocation2 + $0x80] sm:$0xff] %v3093
        %3130 = vst [vmem:[#allocation2 + $0x88] sm:$0xff] %v3094
        %3131 = vst [vmem:[#allocation2 + $0x90] sm:$0xff] %v3095
        %3132 = vst [vmem:[#allocation2 + $0x98] sm:$0xff] %v3096
        %3133 = vst [vmem:[#allocation2 + $0xa0] sm:$0xff] %v3097
        %3134 = vst [vmem:[#allocation2 + $0xa8] sm:$0xff] %v3098
        %3135 = vst [vmem:[#allocation2 + $0xb0] sm:$0xff] %v3099
        %3136 = vst [vmem:[#allocation2 + $0xb8] sm:$0xff] %v3100
        %3137 = vst [vmem:[#allocation2 + $0xc0] sm:$0xff] %v3101
        %3138 = vst [vmem:[#allocation2 + $0xc8] sm:$0xff] %v3102
        %3139 = vst [vmem:[#allocation2 + $0xd0] sm:$0xff] %v3103
        %3140 = vst [vmem:[#allocation2 + $0xd8] sm:$0xff] %v3104
        %3141 = vst [vmem:[#allocation2 + $0xe0] sm:$0xff] %v3105
        %3142 = vst [vmem:[#allocation2 + $0xe8] sm:$0xff] %v3106
        %3143 = vst [vmem:[#allocation2 + $0xf0] sm:$0xff] %v3107
        %3144 = vst [vmem:[#allocation2 + $0xf8] sm:$0xff] %v3108
        %3145 = vst [vmem:[#allocation2 + $0x100] sm:$0xff] %v3109
        %3146 = vst [vmem:[#allocation2 + $0x108] sm:$0xff] %v3110
        %3147 = vst [vmem:[#allocation2 + $0x110] sm:$0xff] %v3111
        %3148 = vst [vmem:[#allocation2 + $0x118] sm:$0xff] %v3112
        %v3149 = vld [vmem:[%s248 + $0x25] sm:$0xff]
        %v3150 = vld [vmem:[%s248 + $0x2d] sm:$0xff]
        %v3151 = vld [vmem:[%s248 + $0x35] sm:$0xff]
        %v3152 = vld [vmem:[%s248 + $0x3d] sm:$0xff]
        %v3153 = vld [vmem:[%s248 + $0x45] sm:$0xff]
        %v3154 = vld [vmem:[%s248 + $0x4d] sm:$0xff]
        %v3155 = vld [vmem:[%s248 + $0x55] sm:$0xff]
        %v3156 = vld [vmem:[%s248 + $0x5d] sm:$0xff]
        %v3157 = vld [vmem:[%s248 + $0x65] sm:$0xff]
        %v3158 = vld [vmem:[%s248 + $0x6d] sm:$0xff]
        %v3159 = vld [vmem:[%s248 + $0x75] sm:$0xff]
        %v3160 = vld [vmem:[%s248 + $0x7d] sm:$0xff]
        %v3161 = vld [vmem:[%s248 + $0x85] sm:$0xff]
        %v3162 = vld [vmem:[%s248 + $0x8d] sm:$0xff]
        %v3163 = vld [vmem:[%s248 + $0x95] sm:$0xff]
        %v3164 = vld [vmem:[%s248 + $0x9d] sm:$0xff]
        %v3165 = vld [vmem:[%s248 + $0xa5] sm:$0xff]
        %v3166 = vld [vmem:[%s248 + $0xad] sm:$0xff]
        %v3167 = vld [vmem:[%s248 + $0xb5] sm:$0xff]
        %v3168 = vld [vmem:[%s248 + $0xbd] sm:$0xff]
        %v3169 = vld [vmem:[%s248 + $0xc5] sm:$0xff]
        %v3170 = vld [vmem:[%s248 + $0xcd] sm:$0xff]
        %v3171 = vld [vmem:[%s248 + $0xd5] sm:$0xff]
        %v3172 = vld [vmem:[%s248 + $0xdd] sm:$0xff]
        %v3173 = vld [vmem:[%s248 + $0xe5] sm:$0xff]
        %v3174 = vld [vmem:[%s248 + $0xed] sm:$0xff]
        %v3175 = vld [vmem:[%s248 + $0xf5] sm:$0xff]
        %v3176 = vld [vmem:[%s248 + $0xfd] sm:$0xff]
        %v3177 = vld [vmem:[%s248 + $0x105] sm:$0xff]
        %v3178 = vld [vmem:[%s248 + $0x10d] sm:$0xff]
        %v3179 = vld [vmem:[%s248 + $0x115] sm:$0xff]
        %v3180 = vld [vmem:[%s248 + $0x11d] sm:$0xff]
        %v3181 = vld [vmem:[%s248 + $0x125] sm:$0xff]
        %v3182 = vld [vmem:[%s248 + $0x12d] sm:$0xff]
        %v3183 = vld [vmem:[%s248 + $0x135] sm:$0xff]
        %v3184 = vld [vmem:[%s248 + $0x13d] sm:$0xff]
        %v3185 = vpack.c.bf16 %v3150, %v3149
        %v3186 = vpack.c.bf16 %v3152, %v3151
        %v3187 = vpack.c.bf16 %v3154, %v3153
        %v3188 = vpack.c.bf16 %v3156, %v3155
        %v3189 = vpack.c.bf16 %v3158, %v3157
        %v3190 = vpack.c.bf16 %v3160, %v3159
        %v3191 = vpack.c.bf16 %v3162, %v3161
        %v3192 = vpack.c.bf16 %v3164, %v3163
        %v3193 = vpack.c.bf16 %v3166, %v3165
        %v3194 = vpack.c.bf16 %v3168, %v3167
        %v3195 = vpack.c.bf16 %v3170, %v3169
        %v3196 = vpack.c.bf16 %v3172, %v3171
        %v3197 = vpack.c.bf16 %v3174, %v3173
        %v3198 = vpack.c.bf16 %v3176, %v3175
        %v3199 = vpack.c.bf16 %v3178, %v3177
        %v3200 = vpack.c.bf16 %v3180, %v3179
        %v3201 = vpack.c.bf16 %v3182, %v3181
        %v3202 = vpack.c.bf16 %v3184, %v3183
        %v3203 = vld [vmem:[#allocation2] sm:$0xff]
        %v3204 = vld [vmem:[#allocation2 + $0x8] sm:$0xff]
        %v3205 = vld [vmem:[#allocation2 + $0x10] sm:$0xff]
        %v3206 = vld [vmem:[#allocation2 + $0x18] sm:$0xff]
        %v3207 = vld [vmem:[#allocation2 + $0x20] sm:$0xff]
        %v3208 = vld [vmem:[#allocation2 + $0x28] sm:$0xff]
        %v3209 = vld [vmem:[#allocation2 + $0x30] sm:$0xff]
        %v3210 = vld [vmem:[#allocation2 + $0x38] sm:$0xff]
        %v3211 = vld [vmem:[#allocation2 + $0x40] sm:$0xff]
        %v3212 = vld [vmem:[#allocation2 + $0x48] sm:$0xff]
        %v3213 = vld [vmem:[#allocation2 + $0x50] sm:$0xff]
        %v3214 = vld [vmem:[#allocation2 + $0x58] sm:$0xff]
        %v3215 = vld [vmem:[#allocation2 + $0x60] sm:$0xff]
        %v3216 = vld [vmem:[#allocation2 + $0x68] sm:$0xff]
        %v3217 = vld [vmem:[#allocation2 + $0x70] sm:$0xff]
        %v3218 = vld [vmem:[#allocation2 + $0x78] sm:$0xff]
        %v3219 = vld [vmem:[#allocation2 + $0x80] sm:$0xff]
        %v3220 = vld [vmem:[#allocation2 + $0x88] sm:$0xff]
        %v3221 = vld [vmem:[#allocation2 + $0x90] sm:$0xff]
        %v3222 = vld [vmem:[#allocation2 + $0x98] sm:$0xff]
        %v3223 = vld [vmem:[#allocation2 + $0xa0] sm:$0xff]
        %v3224 = vld [vmem:[#allocation2 + $0xa8] sm:$0xff]
        %v3225 = vld [vmem:[#allocation2 + $0xb0] sm:$0xff]
        %v3226 = vld [vmem:[#allocation2 + $0xb8] sm:$0xff]
        %v3227 = vld [vmem:[#allocation2 + $0xc0] sm:$0xff]
        %v3228 = vld [vmem:[#allocation2 + $0xc8] sm:$0xff]
        %v3229 = vld [vmem:[#allocation2 + $0xd0] sm:$0xff]
        %v3230 = vld [vmem:[#allocation2 + $0xd8] sm:$0xff]
        %v3231 = vld [vmem:[#allocation2 + $0xe0] sm:$0xff]
        %v3232 = vld [vmem:[#allocation2 + $0xe8] sm:$0xff]
        %v3233 = vld [vmem:[#allocation2 + $0xf0] sm:$0xff]
        %v3234 = vld [vmem:[#allocation2 + $0xf8] sm:$0xff]
        %v3235 = vld [vmem:[#allocation2 + $0x100] sm:$0xff]
        %v3236 = vld [vmem:[#allocation2 + $0x108] sm:$0xff]
        %v3237 = vld [vmem:[#allocation2 + $0x110] sm:$0xff]
        %v3238 = vld [vmem:[#allocation2 + $0x118] sm:$0xff]
        %s3239 = scalar_lea.vmem %s1, 448
        %v3240 = vld [vmem:[%s3239] sm:$0xf]
        %v3241 = vld [vmem:[%s3239 + $0x4] sm:$0xf]
        %v3242 = vld [vmem:[%s3239 + $0x8] sm:$0xf]
        %v3243 = vld [vmem:[%s3239 + $0xc] sm:$0xf]
        %v3244 = vld [vmem:[%s3239 + $0x10] sm:$0xf]
        %v3245 = vld [vmem:[%s3239 + $0x14] sm:$0xf]
        %v3246 = vld [vmem:[%s3239 + $0x18] sm:$0xf]
        %v3247 = vld [vmem:[%s3239 + $0x1c] sm:$0xf]
        %v3248 = vld [vmem:[%s3239 + $0x20] sm:$0xf]
        %v3249 = vld [vmem:[%s3239 + $0x24] sm:$0xf]
        %v3250 = vld [vmem:[%s3239 + $0x28] sm:$0xf]
        %v3251 = vld [vmem:[%s3239 + $0x2c] sm:$0xf]
        %v3252 = vld [vmem:[%s3239 + $0x30] sm:$0xf]
        %v3253 = vld [vmem:[%s3239 + $0x34] sm:$0xf]
        %v3254 = vld [vmem:[%s3239 + $0x38] sm:$0xf]
        %v3255 = vld [vmem:[%s3239 + $0x3c] sm:$0xf]
        %v3272 = vunpack.c.l.b16 %v3240
        %v3273 = vunpack.c.l.b16 %v3241
        %v3274 = vunpack.c.l.b16 %v3242
        %v3275 = vunpack.c.l.b16 %v3243
        %v3276 = vunpack.c.l.b16 %v3244
        %v3277 = vunpack.c.l.b16 %v3245
        %v3278 = vunpack.c.l.b16 %v3246
        %v3279 = vunpack.c.l.b16 %v3247
        %v3280 = vunpack.c.l.b16 %v3248
        %v3281 = vunpack.c.l.b16 %v3249
        %v3282 = vunpack.c.l.b16 %v3250
        %v3283 = vunpack.c.l.b16 %v3251
        %v3284 = vunpack.c.l.b16 %v3252
        %v3285 = vunpack.c.l.b16 %v3253
        %v3286 = vunpack.c.l.b16 %v3254
        %v3287 = vunpack.c.l.b16 %v3255
        %v3288 = vpack.c.b16 %v3273, %v3272
        %v3289 = vpack.c.b16 %v3275, %v3274
        %v3290 = vpack.c.b16 %v3277, %v3276
        %v3291 = vpack.c.b16 %v3279, %v3278
        %v3292 = vpack.c.b16 %v3281, %v3280
        %v3293 = vpack.c.b16 %v3283, %v3282
        %v3294 = vpack.c.b16 %v3285, %v3284
        %v3295 = vpack.c.b16 %v3287, %v3286
        %3304 = vmatprep.subr.bf16.mxu0 0
        %3305 = vmatpush1.bf16.msra.mxu0 %v3288
        %3306 = vmatprep.subr.bf16.mxu0 0
        %3307 = vmatpush1.bf16.msra.mxu0 %v3289
        %3308 = vmatprep.subr.bf16.mxu0 0
        %3309 = vmatpush1.bf16.msra.mxu0 %v3290
        %3310 = vmatprep.subr.bf16.mxu0 0
        %3311 = vmatpush1.bf16.msra.mxu0 %v3291
        %3312 = vmatprep.subr.bf16.mxu0 0
        %3313 = vmatpush1.bf16.msra.mxu0 %v3292
        %3314 = vmatprep.subr.bf16.mxu0 0
        %3315 = vmatpush1.bf16.msra.mxu0 %v3293
        %3316 = vmatprep.subr.bf16.mxu0 0
        %3317 = vmatpush1.bf16.msra.mxu0 %v3294
        %3318 = vmatprep.subr.bf16.mxu0 0
        %3319 = vmatpush1.bf16.msra.mxu0 %v3295
        %3320 = vmatprep.subr.bf16.mxu0 0
        %3321 = vmatpush1.bf16.msra.mxu0 0
        %3322 = vmatprep.subr.bf16.mxu0 0
        %3323 = vmatpush1.bf16.msra.mxu0 0
        %3324 = vmatprep.subr.bf16.mxu0 0
        %3325 = vmatpush1.bf16.msra.mxu0 0
        %3326 = vmatprep.subr.bf16.mxu0 0
        %3327 = vmatpush1.bf16.msra.mxu0 0
        %3328 = vmatprep.subr.bf16.mxu0 0
        %3329 = vmatpush1.bf16.msra.mxu0 0
        %3330 = vmatprep.subr.bf16.mxu0 0
        %3331 = vmatpush1.bf16.msra.mxu0 0
        %3332 = vmatprep.subr.bf16.mxu0 0
        %3333 = vmatpush1.bf16.msra.mxu0 0
        %3334 = vmatprep.subr.bf16.mxu0 0
        %3335 = vmatpush1.bf16.msra.mxu0 0
        %3336 = vmatprep.mubr.bf16.mxu0 0
        %3337 = vmatmul.mubr.bf16.gmra.mrb[0].mxu0 %v3185
        %v3338 = vpop.f32.mrb[0].mxu0
        %v3339 = vadd.f32 0.0, %v3338
        %v3340 = vpop.f32.mrb[0].mxu0
        %v3341 = vpop.f32.mrb[0].mxu0
        %v3342 = vadd.f32 0.0, %v3341
        %v3343 = vpop.f32.mrb[0].mxu0
        %3344 = vmatprep.mubr.bf16.mxu0 0
        %3345 = vmatmul.mubr.bf16.gmra.mrb[0].mxu0 %v3186
        %v3346 = vpop.f32.mrb[0].mxu0
        %v3347 = vadd.f32 0.0, %v3346
        %v3348 = vpop.f32.mrb[0].mxu0
        %v3349 = vpop.f32.mrb[0].mxu0
        %v3350 = vadd.f32 0.0, %v3349
        %v3351 = vpop.f32.mrb[0].mxu0
        %3352 = vmatprep.mubr.bf16.mxu0 0
        %3353 = vmatmul.mubr.bf16.gmra.mrb[0].mxu0 %v3187
        %v3354 = vpop.f32.mrb[0].mxu0
        %v3355 = vadd.f32 0.0, %v3354
        %v3356 = vpop.f32.mrb[0].mxu0
        %v3357 = vpop.f32.mrb[0].mxu0
        %v3358 = vadd.f32 0.0, %v3357
        %v3359 = vpop.f32.mrb[0].mxu0
        %3360 = vmatprep.mubr.bf16.mxu0 0
        %3361 = vmatmul.mubr.bf16.gmra.mrb[0].mxu0 %v3188
        %v3362 = vpop.f32.mrb[0].mxu0
        %v3363 = vadd.f32 0.0, %v3362
        %v3364 = vpop.f32.mrb[0].mxu0
        %v3365 = vpop.f32.mrb[0].mxu0
        %v3366 = vadd.f32 0.0, %v3365
        %v3367 = vpop.f32.mrb[0].mxu0
        %3368 = vmatprep.mubr.bf16.mxu0 0
        %3369 = vmatmul.mubr.bf16.gmra.mrb[0].mxu0 %v3189
        %v3370 = vpop.f32.mrb[0].mxu0
        %v3371 = vadd.f32 0.0, %v3370
        %v3372 = vpop.f32.mrb[0].mxu0
        %v3373 = vpop.f32.mrb[0].mxu0
        %v3374 = vadd.f32 0.0, %v3373
        %v3375 = vpop.f32.mrb[0].mxu0
        %3376 = vmatprep.mubr.bf16.mxu0 0
        %3377 = vmatmul.mubr.bf16.gmra.mrb[0].mxu0 %v3190
        %v3378 = vpop.f32.mrb[0].mxu0
        %v3379 = vadd.f32 0.0, %v3378
        %v3380 = vpop.f32.mrb[0].mxu0
        %v3381 = vpop.f32.mrb[0].mxu0
        %v3382 = vadd.f32 0.0, %v3381
        %v3383 = vpop.f32.mrb[0].mxu0
        %3384 = vmatprep.mubr.bf16.mxu0 0
        %3385 = vmatmul.mubr.bf16.gmra.mrb[0].mxu0 %v3191
        %v3386 = vpop.f32.mrb[0].mxu0
        %v3387 = vadd.f32 0.0, %v3386
        %v3388 = vpop.f32.mrb[0].mxu0
        %v3389 = vpop.f32.mrb[0].mxu0
        %v3390 = vadd.f32 0.0, %v3389
        %v3391 = vpop.f32.mrb[0].mxu0
        %3392 = vmatprep.mubr.bf16.mxu0 0
        %3393 = vmatmul.mubr.bf16.gmra.mrb[0].mxu0 %v3192
        %v3394 = vpop.f32.mrb[0].mxu0
        %v3395 = vadd.f32 0.0, %v3394
        %v3396 = vpop.f32.mrb[0].mxu0
        %v3397 = vpop.f32.mrb[0].mxu0
        %v3398 = vadd.f32 0.0, %v3397
        %v3399 = vpop.f32.mrb[0].mxu0
        %3400 = vmatprep.mubr.bf16.mxu0 0
        %3401 = vmatmul.mubr.bf16.gmra.mrb[0].mxu0 %v3193
        %v3402 = vpop.f32.mrb[0].mxu0
        %v3403 = vadd.f32 0.0, %v3402
        %v3404 = vpop.f32.mrb[0].mxu0
        %v3405 = vpop.f32.mrb[0].mxu0
        %v3406 = vadd.f32 0.0, %v3405
        %v3407 = vpop.f32.mrb[0].mxu0
        %3408 = vmatprep.mubr.bf16.mxu0 0
        %3409 = vmatmul.mubr.bf16.gmra.mrb[0].mxu0 %v3194
        %v3410 = vpop.f32.mrb[0].mxu0
        %v3411 = vadd.f32 0.0, %v3410
        %v3412 = vpop.f32.mrb[0].mxu0
        %v3413 = vpop.f32.mrb[0].mxu0
        %v3414 = vadd.f32 0.0, %v3413
        %v3415 = vpop.f32.mrb[0].mxu0
        %3416 = vmatprep.mubr.bf16.mxu0 0
        %3417 = vmatmul.mubr.bf16.gmra.mrb[0].mxu0 %v3195
        %v3418 = vpop.f32.mrb[0].mxu0
        %v3419 = vadd.f32 0.0, %v3418
        %v3420 = vpop.f32.mrb[0].mxu0
        %v3421 = vpop.f32.mrb[0].mxu0
        %v3422 = vadd.f32 0.0, %v3421
        %v3423 = vpop.f32.mrb[0].mxu0
        %3424 = vmatprep.mubr.bf16.mxu0 0
        %3425 = vmatmul.mubr.bf16.gmra.mrb[0].mxu0 %v3196
        %v3426 = vpop.f32.mrb[0].mxu0
        %v3427 = vadd.f32 0.0, %v3426
        %v3428 = vpop.f32.mrb[0].mxu0
        %v3429 = vpop.f32.mrb[0].mxu0
        %v3430 = vadd.f32 0.0, %v3429
        %v3431 = vpop.f32.mrb[0].mxu0
        %3432 = vmatprep.mubr.bf16.mxu0 0
        %3433 = vmatmul.mubr.bf16.gmra.mrb[0].mxu0 %v3197
        %v3434 = vpop.f32.mrb[0].mxu0
        %v3435 = vadd.f32 0.0, %v3434
        %v3436 = vpop.f32.mrb[0].mxu0
        %v3437 = vpop.f32.mrb[0].mxu0
        %v3438 = vadd.f32 0.0, %v3437
        %v3439 = vpop.f32.mrb[0].mxu0
        %3440 = vmatprep.mubr.bf16.mxu0 0
        %3441 = vmatmul.mubr.bf16.gmra.mrb[0].mxu0 %v3198
        %v3442 = vpop.f32.mrb[0].mxu0
        %v3443 = vadd.f32 0.0, %v3442
        %v3444 = vpop.f32.mrb[0].mxu0
        %v3445 = vpop.f32.mrb[0].mxu0
        %v3446 = vadd.f32 0.0, %v3445
        %v3447 = vpop.f32.mrb[0].mxu0
        %3448 = vmatprep.mubr.bf16.mxu0 0
        %3449 = vmatmul.mubr.bf16.gmra.mrb[0].mxu0 %v3199
        %v3450 = vpop.f32.mrb[0].mxu0
        %v3451 = vadd.f32 0.0, %v3450
        %v3452 = vpop.f32.mrb[0].mxu0
        %v3453 = vpop.f32.mrb[0].mxu0
        %v3454 = vadd.f32 0.0, %v3453
        %v3455 = vpop.f32.mrb[0].mxu0
        %3456 = vmatprep.mubr.bf16.mxu0 0
        %3457 = vmatmul.mubr.bf16.gmra.mrb[0].mxu0 %v3200
        %v3458 = vpop.f32.mrb[0].mxu0
        %v3459 = vadd.f32 0.0, %v3458
        %v3460 = vpop.f32.mrb[0].mxu0
        %v3461 = vpop.f32.mrb[0].mxu0
        %v3462 = vadd.f32 0.0, %v3461
        %v3463 = vpop.f32.mrb[0].mxu0
        %3464 = vmatprep.mubr.bf16.mxu0 0
        %3465 = vmatmul.mubr.bf16.gmra.mrb[0].mxu0 %v3201
        %v3466 = vpop.f32.mrb[0].mxu0
        %v3467 = vadd.f32 0.0, %v3466
        %v3468 = vpop.f32.mrb[0].mxu0
        %v3469 = vpop.f32.mrb[0].mxu0
        %v3470 = vadd.f32 0.0, %v3469
        %v3471 = vpop.f32.mrb[0].mxu0
        %3472 = vmatprep.mubr.bf16.mxu0 0
        %3473 = vmatmul.mubr.bf16.gmra.mrb[0].mxu0 %v3202
        %v3474 = vpop.f32.mrb[0].mxu0
        %v3475 = vadd.f32 0.0, %v3474
        %v3476 = vpop.f32.mrb[0].mxu0
        %v3477 = vpop.f32.mrb[0].mxu0
        %v3478 = vadd.f32 0.0, %v3477
        %v3479 = vpop.f32.mrb[0].mxu0
        %3480 = vdwg.mxu0
        %v3481 = vadd.f32 %v3203, %v3339
        %v3482 = vadd.f32 %v3204, %v3342
        %v3483 = vadd.f32 %v3205, %v3347
        %v3484 = vadd.f32 %v3206, %v3350
        %v3485 = vadd.f32 %v3207, %v3355
        %v3486 = vadd.f32 %v3208, %v3358
        %v3487 = vadd.f32 %v3209, %v3363
        %v3488 = vadd.f32 %v3210, %v3366
        %v3489 = vadd.f32 %v3211, %v3371
        %v3490 = vadd.f32 %v3212, %v3374
        %v3491 = vadd.f32 %v3213, %v3379
        %v3492 = vadd.f32 %v3214, %v3382
        %v3493 = vadd.f32 %v3215, %v3387
        %v3494 = vadd.f32 %v3216, %v3390
        %v3495 = vadd.f32 %v3217, %v3395
        %v3496 = vadd.f32 %v3218, %v3398
        %v3497 = vadd.f32 %v3219, %v3403
        %v3498 = vadd.f32 %v3220, %v3406
        %v3499 = vadd.f32 %v3221, %v3411
        %v3500 = vadd.f32 %v3222, %v3414
        %v3501 = vadd.f32 %v3223, %v3419
        %v3502 = vadd.f32 %v3224, %v3422
        %v3503 = vadd.f32 %v3225, %v3427
        %v3504 = vadd.f32 %v3226, %v3430
        %v3505 = vadd.f32 %v3227, %v3435
        %v3506 = vadd.f32 %v3228, %v3438
        %v3507 = vadd.f32 %v3229, %v3443
        %v3508 = vadd.f32 %v3230, %v3446
        %v3509 = vadd.f32 %v3231, %v3451
        %v3510 = vadd.f32 %v3232, %v3454
        %v3511 = vadd.f32 %v3233, %v3459
        %v3512 = vadd.f32 %v3234, %v3462
        %v3513 = vadd.f32 %v3235, %v3467
        %v3514 = vadd.f32 %v3236, %v3470
        %v3515 = vadd.f32 %v3237, %v3475
        %v3516 = vadd.f32 %v3238, %v3478
        %3517 = vst [vmem:[#allocation2] sm:$0xff] %v3481
        %3518 = vst [vmem:[#allocation2 + $0x8] sm:$0xff] %v3482
        %3519 = vst [vmem:[#allocation2 + $0x10] sm:$0xff] %v3483
        %3520 = vst [vmem:[#allocation2 + $0x18] sm:$0xff] %v3484
        %3521 = vst [vmem:[#allocation2 + $0x20] sm:$0xff] %v3485
        %3522 = vst [vmem:[#allocation2 + $0x28] sm:$0xff] %v3486
        %3523 = vst [vmem:[#allocation2 + $0x30] sm:$0xff] %v3487
        %3524 = vst [vmem:[#allocation2 + $0x38] sm:$0xff] %v3488
        %3525 = vst [vmem:[#allocation2 + $0x40] sm:$0xff] %v3489
        %3526 = vst [vmem:[#allocation2 + $0x48] sm:$0xff] %v3490
        %3527 = vst [vmem:[#allocation2 + $0x50] sm:$0xff] %v3491
        %3528 = vst [vmem:[#allocation2 + $0x58] sm:$0xff] %v3492
        %3529 = vst [vmem:[#allocation2 + $0x60] sm:$0xff] %v3493
        %3530 = vst [vmem:[#allocation2 + $0x68] sm:$0xff] %v3494
        %3531 = vst [vmem:[#allocation2 + $0x70] sm:$0xff] %v3495
        %3532 = vst [vmem:[#allocation2 + $0x78] sm:$0xff] %v3496
        %3533 = vst [vmem:[#allocation2 + $0x80] sm:$0xff] %v3497
        %3534 = vst [vmem:[#allocation2 + $0x88] sm:$0xff] %v3498
        %3535 = vst [vmem:[#allocation2 + $0x90] sm:$0xff] %v3499
        %3536 = vst [vmem:[#allocation2 + $0x98] sm:$0xff] %v3500
        %3537 = vst [vmem:[#allocation2 + $0xa0] sm:$0xff] %v3501
        %3538 = vst [vmem:[#allocation2 + $0xa8] sm:$0xff] %v3502
        %3539 = vst [vmem:[#allocation2 + $0xb0] sm:$0xff] %v3503
        %3540 = vst [vmem:[#allocation2 + $0xb8] sm:$0xff] %v3504
        %3541 = vst [vmem:[#allocation2 + $0xc0] sm:$0xff] %v3505
        %3542 = vst [vmem:[#allocation2 + $0xc8] sm:$0xff] %v3506
        %3543 = vst [vmem:[#allocation2 + $0xd0] sm:$0xff] %v3507
        %3544 = vst [vmem:[#allocation2 + $0xd8] sm:$0xff] %v3508
        %3545 = vst [vmem:[#allocation2 + $0xe0] sm:$0xff] %v3509
        %3546 = vst [vmem:[#allocation2 + $0xe8] sm:$0xff] %v3510
        %3547 = vst [vmem:[#allocation2 + $0xf0] sm:$0xff] %v3511
        %3548 = vst [vmem:[#allocation2 + $0xf8] sm:$0xff] %v3512
        %3549 = vst [vmem:[#allocation2 + $0x100] sm:$0xff] %v3513
        %3550 = vst [vmem:[#allocation2 + $0x108] sm:$0xff] %v3514
        %3551 = vst [vmem:[#allocation2 + $0x110] sm:$0xff] %v3515
        %3552 = vst [vmem:[#allocation2 + $0x118] sm:$0xff] %v3516
        %v3553 = vld [vmem:[%s248 + $0x26] sm:$0xff]
        %v3554 = vld [vmem:[%s248 + $0x2e] sm:$0xff]
        %v3555 = vld [vmem:[%s248 + $0x36] sm:$0xff]
        %v3556 = vld [vmem:[%s248 + $0x3e] sm:$0xff]
        %v3557 = vld [vmem:[%s248 + $0x46] sm:$0xff]
        %v3558 = vld [vmem:[%s248 + $0x4e] sm:$0xff]
        %v3559 = vld [vmem:[%s248 + $0x56] sm:$0xff]
        %v3560 = vld [vmem:[%s248 + $0x5e] sm:$0xff]
        %v3561 = vld [vmem:[%s248 + $0x66] sm:$0xff]
        %v3562 = vld [vmem:[%s248 + $0x6e] sm:$0xff]
        %v3563 = vld [vmem:[%s248 + $0x76] sm:$0xff]
        %v3564 = vld [vmem:[%s248 + $0x7e] sm:$0xff]
        %v3565 = vld [vmem:[%s248 + $0x86] sm:$0xff]
        %v3566 = vld [vmem:[%s248 + $0x8e] sm:$0xff]
        %v3567 = vld [vmem:[%s248 + $0x96] sm:$0xff]
        %v3568 = vld [vmem:[%s248 + $0x9e] sm:$0xff]
        %v3569 = vld [vmem:[%s248 + $0xa6] sm:$0xff]
        %v3570 = vld [vmem:[%s248 + $0xae] sm:$0xff]
        %v3571 = vld [vmem:[%s248 + $0xb6] sm:$0xff]
        %v3572 = vld [vmem:[%s248 + $0xbe] sm:$0xff]
        %v3573 = vld [vmem:[%s248 + $0xc6] sm:$0xff]
        %v3574 = vld [vmem:[%s248 + $0xce] sm:$0xff]
        %v3575 = vld [vmem:[%s248 + $0xd6] sm:$0xff]
        %v3576 = vld [vmem:[%s248 + $0xde] sm:$0xff]
        %v3577 = vld [vmem:[%s248 + $0xe6] sm:$0xff]
        %v3578 = vld [vmem:[%s248 + $0xee] sm:$0xff]
        %v3579 = vld [vmem:[%s248 + $0xf6] sm:$0xff]
        %v3580 = vld [vmem:[%s248 + $0xfe] sm:$0xff]
        %v3581 = vld [vmem:[%s248 + $0x106] sm:$0xff]
        %v3582 = vld [vmem:[%s248 + $0x10e] sm:$0xff]
        %v3583 = vld [vmem:[%s248 + $0x116] sm:$0xff]
        %v3584 = vld [vmem:[%s248 + $0x11e] sm:$0xff]
        %v3585 = vld [vmem:[%s248 + $0x126] sm:$0xff]
        %v3586 = vld [vmem:[%s248 + $0x12e] sm:$0xff]
        %v3587 = vld [vmem:[%s248 + $0x136] sm:$0xff]
        %v3588 = vld [vmem:[%s248 + $0x13e] sm:$0xff]
        %v3589 = vpack.c.bf16 %v3554, %v3553
        %v3590 = vpack.c.bf16 %v3556, %v3555
        %v3591 = vpack.c.bf16 %v3558, %v3557
        %v3592 = vpack.c.bf16 %v3560, %v3559
        %v3593 = vpack.c.bf16 %v3562, %v3561
        %v3594 = vpack.c.bf16 %v3564, %v3563
        %v3595 = vpack.c.bf16 %v3566, %v3565
        %v3596 = vpack.c.bf16 %v3568, %v3567
        %v3597 = vpack.c.bf16 %v3570, %v3569
        %v3598 = vpack.c.bf16 %v3572, %v3571
        %v3599 = vpack.c.bf16 %v3574, %v3573
        %v3600 = vpack.c.bf16 %v3576, %v3575
        %v3601 = vpack.c.bf16 %v3578, %v3577
        %v3602 = vpack.c.bf16 %v3580, %v3579
        %v3603 = vpack.c.bf16 %v3582, %v3581
        %v3604 = vpack.c.bf16 %v3584, %v3583
        %v3605 = vpack.c.bf16 %v3586, %v3585
        %v3606 = vpack.c.bf16 %v3588, %v3587
        %v3607 = vld [vmem:[#allocation2] sm:$0xff]
        %v3608 = vld [vmem:[#allocation2 + $0x8] sm:$0xff]
        %v3609 = vld [vmem:[#allocation2 + $0x10] sm:$0xff]
        %v3610 = vld [vmem:[#allocation2 + $0x18] sm:$0xff]
        %v3611 = vld [vmem:[#allocation2 + $0x20] sm:$0xff]
        %v3612 = vld [vmem:[#allocation2 + $0x28] sm:$0xff]
        %v3613 = vld [vmem:[#allocation2 + $0x30] sm:$0xff]
        %v3614 = vld [vmem:[#allocation2 + $0x38] sm:$0xff]
        %v3615 = vld [vmem:[#allocation2 + $0x40] sm:$0xff]
        %v3616 = vld [vmem:[#allocation2 + $0x48] sm:$0xff]
        %v3617 = vld [vmem:[#allocation2 + $0x50] sm:$0xff]
        %v3618 = vld [vmem:[#allocation2 + $0x58] sm:$0xff]
        %v3619 = vld [vmem:[#allocation2 + $0x60] sm:$0xff]
        %v3620 = vld [vmem:[#allocation2 + $0x68] sm:$0xff]
        %v3621 = vld [vmem:[#allocation2 + $0x70] sm:$0xff]
        %v3622 = vld [vmem:[#allocation2 + $0x78] sm:$0xff]
        %v3623 = vld [vmem:[#allocation2 + $0x80] sm:$0xff]
        %v3624 = vld [vmem:[#allocation2 + $0x88] sm:$0xff]
        %v3625 = vld [vmem:[#allocation2 + $0x90] sm:$0xff]
        %v3626 = vld [vmem:[#allocation2 + $0x98] sm:$0xff]
        %v3627 = vld [vmem:[#allocation2 + $0xa0] sm:$0xff]
        %v3628 = vld [vmem:[#allocation2 + $0xa8] sm:$0xff]
        %v3629 = vld [vmem:[#allocation2 + $0xb0] sm:$0xff]
        %v3630 = vld [vmem:[#allocation2 + $0xb8] sm:$0xff]
        %v3631 = vld [vmem:[#allocation2 + $0xc0] sm:$0xff]
        %v3632 = vld [vmem:[#allocation2 + $0xc8] sm:$0xff]
        %v3633 = vld [vmem:[#allocation2 + $0xd0] sm:$0xff]
        %v3634 = vld [vmem:[#allocation2 + $0xd8] sm:$0xff]
        %v3635 = vld [vmem:[#allocation2 + $0xe0] sm:$0xff]
        %v3636 = vld [vmem:[#allocation2 + $0xe8] sm:$0xff]
        %v3637 = vld [vmem:[#allocation2 + $0xf0] sm:$0xff]
        %v3638 = vld [vmem:[#allocation2 + $0xf8] sm:$0xff]
        %v3639 = vld [vmem:[#allocation2 + $0x100] sm:$0xff]
        %v3640 = vld [vmem:[#allocation2 + $0x108] sm:$0xff]
        %v3641 = vld [vmem:[#allocation2 + $0x110] sm:$0xff]
        %v3642 = vld [vmem:[#allocation2 + $0x118] sm:$0xff]
        %s3643 = scalar_lea.vmem %s1, 512
        %v3644 = vld [vmem:[%s3643] sm:$0xf]
        %v3645 = vld [vmem:[%s3643 + $0x4] sm:$0xf]
        %v3646 = vld [vmem:[%s3643 + $0x8] sm:$0xf]
        %v3647 = vld [vmem:[%s3643 + $0xc] sm:$0xf]
        %v3648 = vld [vmem:[%s3643 + $0x10] sm:$0xf]
        %v3649 = vld [vmem:[%s3643 + $0x14] sm:$0xf]
        %v3650 = vld [vmem:[%s3643 + $0x18] sm:$0xf]
        %v3651 = vld [vmem:[%s3643 + $0x1c] sm:$0xf]
        %v3652 = vld [vmem:[%s3643 + $0x20] sm:$0xf]
        %v3653 = vld [vmem:[%s3643 + $0x24] sm:$0xf]
        %v3654 = vld [vmem:[%s3643 + $0x28] sm:$0xf]
        %v3655 = vld [vmem:[%s3643 + $0x2c] sm:$0xf]
        %v3656 = vld [vmem:[%s3643 + $0x30] sm:$0xf]
        %v3657 = vld [vmem:[%s3643 + $0x34] sm:$0xf]
        %v3658 = vld [vmem:[%s3643 + $0x38] sm:$0xf]
        %v3659 = vld [vmem:[%s3643 + $0x3c] sm:$0xf]
        %v3676 = vunpack.c.l.b16 %v3644
        %v3677 = vunpack.c.l.b16 %v3645
        %v3678 = vunpack.c.l.b16 %v3646
        %v3679 = vunpack.c.l.b16 %v3647
        %v3680 = vunpack.c.l.b16 %v3648
        %v3681 = vunpack.c.l.b16 %v3649
        %v3682 = vunpack.c.l.b16 %v3650
        %v3683 = vunpack.c.l.b16 %v3651
        %v3684 = vunpack.c.l.b16 %v3652
        %v3685 = vunpack.c.l.b16 %v3653
        %v3686 = vunpack.c.l.b16 %v3654
        %v3687 = vunpack.c.l.b16 %v3655
        %v3688 = vunpack.c.l.b16 %v3656
        %v3689 = vunpack.c.l.b16 %v3657
        %v3690 = vunpack.c.l.b16 %v3658
        %v3691 = vunpack.c.l.b16 %v3659
        %v3692 = vpack.c.b16 %v3677, %v3676
        %v3693 = vpack.c.b16 %v3679, %v3678
        %v3694 = vpack.c.b16 %v3681, %v3680
        %v3695 = vpack.c.b16 %v3683, %v3682
        %v3696 = vpack.c.b16 %v3685, %v3684
        %v3697 = vpack.c.b16 %v3687, %v3686
        %v3698 = vpack.c.b16 %v3689, %v3688
        %v3699 = vpack.c.b16 %v3691, %v3690
        %3708 = vmatprep.subr.bf16.mxu0 0
        %3709 = vmatpush1.bf16.msra.mxu0 %v3692
        %3710 = vmatprep.subr.bf16.mxu0 0
        %3711 = vmatpush1.bf16.msra.mxu0 %v3693
        %3712 = vmatprep.subr.bf16.mxu0 0
        %3713 = vmatpush1.bf16.msra.mxu0 %v3694
        %3714 = vmatprep.subr.bf16.mxu0 0
        %3715 = vmatpush1.bf16.msra.mxu0 %v3695
        %3716 = vmatprep.subr.bf16.mxu0 0
        %3717 = vmatpush1.bf16.msra.mxu0 %v3696
        %3718 = vmatprep.subr.bf16.mxu0 0
        %3719 = vmatpush1.bf16.msra.mxu0 %v3697
        %3720 = vmatprep.subr.bf16.mxu0 0
        %3721 = vmatpush1.bf16.msra.mxu0 %v3698
        %3722 = vmatprep.subr.bf16.mxu0 0
        %3723 = vmatpush1.bf16.msra.mxu0 %v3699
        %3724 = vmatprep.subr.bf16.mxu0 0
        %3725 = vmatpush1.bf16.msra.mxu0 0
        %3726 = vmatprep.subr.bf16.mxu0 0
        %3727 = vmatpush1.bf16.msra.mxu0 0
        %3728 = vmatprep.subr.bf16.mxu0 0
        %3729 = vmatpush1.bf16.msra.mxu0 0
        %3730 = vmatprep.subr.bf16.mxu0 0
        %3731 = vmatpush1.bf16.msra.mxu0 0
        %3732 = vmatprep.subr.bf16.mxu0 0
        %3733 = vmatpush1.bf16.msra.mxu0 0
        %3734 = vmatprep.subr.bf16.mxu0 0
        %3735 = vmatpush1.bf16.msra.mxu0 0
        %3736 = vmatprep.subr.bf16.mxu0 0
        %3737 = vmatpush1.bf16.msra.mxu0 0
        %3738 = vmatprep.subr.bf16.mxu0 0
        %3739 = vmatpush1.bf16.msra.mxu0 0
        %3740 = vmatprep.mubr.bf16.mxu0 0
        %3741 = vmatmul.mubr.bf16.gmra.mrb[0].mxu0 %v3589
        %v3742 = vpop.f32.mrb[0].mxu0
        %v3743 = vadd.f32 0.0, %v3742
        %v3744 = vpop.f32.mrb[0].mxu0
        %v3745 = vpop.f32.mrb[0].mxu0
        %v3746 = vadd.f32 0.0, %v3745
        %v3747 = vpop.f32.mrb[0].mxu0
        %3748 = vmatprep.mubr.bf16.mxu0 0
        %3749 = vmatmul.mubr.bf16.gmra.mrb[0].mxu0 %v3590
        %v3750 = vpop.f32.mrb[0].mxu0
        %v3751 = vadd.f32 0.0, %v3750
        %v3752 = vpop.f32.mrb[0].mxu0
        %v3753 = vpop.f32.mrb[0].mxu0
        %v3754 = vadd.f32 0.0, %v3753
        %v3755 = vpop.f32.mrb[0].mxu0
        %3756 = vmatprep.mubr.bf16.mxu0 0
        %3757 = vmatmul.mubr.bf16.gmra.mrb[0].mxu0 %v3591
        %v3758 = vpop.f32.mrb[0].mxu0
        %v3759 = vadd.f32 0.0, %v3758
        %v3760 = vpop.f32.mrb[0].mxu0
        %v3761 = vpop.f32.mrb[0].mxu0
        %v3762 = vadd.f32 0.0, %v3761
        %v3763 = vpop.f32.mrb[0].mxu0
        %3764 = vmatprep.mubr.bf16.mxu0 0
        %3765 = vmatmul.mubr.bf16.gmra.mrb[0].mxu0 %v3592
        %v3766 = vpop.f32.mrb[0].mxu0
        %v3767 = vadd.f32 0.0, %v3766
        %v3768 = vpop.f32.mrb[0].mxu0
        %v3769 = vpop.f32.mrb[0].mxu0
        %v3770 = vadd.f32 0.0, %v3769
        %v3771 = vpop.f32.mrb[0].mxu0
        %3772 = vmatprep.mubr.bf16.mxu0 0
        %3773 = vmatmul.mubr.bf16.gmra.mrb[0].mxu0 %v3593
        %v3774 = vpop.f32.mrb[0].mxu0
        %v3775 = vadd.f32 0.0, %v3774
        %v3776 = vpop.f32.mrb[0].mxu0
        %v3777 = vpop.f32.mrb[0].mxu0
        %v3778 = vadd.f32 0.0, %v3777
        %v3779 = vpop.f32.mrb[0].mxu0
        %3780 = vmatprep.mubr.bf16.mxu0 0
        %3781 = vmatmul.mubr.bf16.gmra.mrb[0].mxu0 %v3594
        %v3782 = vpop.f32.mrb[0].mxu0
        %v3783 = vadd.f32 0.0, %v3782
        %v3784 = vpop.f32.mrb[0].mxu0
        %v3785 = vpop.f32.mrb[0].mxu0
        %v3786 = vadd.f32 0.0, %v3785
        %v3787 = vpop.f32.mrb[0].mxu0
        %3788 = vmatprep.mubr.bf16.mxu0 0
        %3789 = vmatmul.mubr.bf16.gmra.mrb[0].mxu0 %v3595
        %v3790 = vpop.f32.mrb[0].mxu0
        %v3791 = vadd.f32 0.0, %v3790
        %v3792 = vpop.f32.mrb[0].mxu0
        %v3793 = vpop.f32.mrb[0].mxu0
        %v3794 = vadd.f32 0.0, %v3793
        %v3795 = vpop.f32.mrb[0].mxu0
        %3796 = vmatprep.mubr.bf16.mxu0 0
        %3797 = vmatmul.mubr.bf16.gmra.mrb[0].mxu0 %v3596
        %v3798 = vpop.f32.mrb[0].mxu0
        %v3799 = vadd.f32 0.0, %v3798
        %v3800 = vpop.f32.mrb[0].mxu0
        %v3801 = vpop.f32.mrb[0].mxu0
        %v3802 = vadd.f32 0.0, %v3801
        %v3803 = vpop.f32.mrb[0].mxu0
        %3804 = vmatprep.mubr.bf16.mxu0 0
        %3805 = vmatmul.mubr.bf16.gmra.mrb[0].mxu0 %v3597
        %v3806 = vpop.f32.mrb[0].mxu0
        %v3807 = vadd.f32 0.0, %v3806
        %v3808 = vpop.f32.mrb[0].mxu0
        %v3809 = vpop.f32.mrb[0].mxu0
        %v3810 = vadd.f32 0.0, %v3809
        %v3811 = vpop.f32.mrb[0].mxu0
        %3812 = vmatprep.mubr.bf16.mxu0 0
        %3813 = vmatmul.mubr.bf16.gmra.mrb[0].mxu0 %v3598
        %v3814 = vpop.f32.mrb[0].mxu0
        %v3815 = vadd.f32 0.0, %v3814
        %v3816 = vpop.f32.mrb[0].mxu0
        %v3817 = vpop.f32.mrb[0].mxu0
        %v3818 = vadd.f32 0.0, %v3817
        %v3819 = vpop.f32.mrb[0].mxu0
        %3820 = vmatprep.mubr.bf16.mxu0 0
        %3821 = vmatmul.mubr.bf16.gmra.mrb[0].mxu0 %v3599
        %v3822 = vpop.f32.mrb[0].mxu0
        %v3823 = vadd.f32 0.0, %v3822
        %v3824 = vpop.f32.mrb[0].mxu0
        %v3825 = vpop.f32.mrb[0].mxu0
        %v3826 = vadd.f32 0.0, %v3825
        %v3827 = vpop.f32.mrb[0].mxu0
        %3828 = vmatprep.mubr.bf16.mxu0 0
        %3829 = vmatmul.mubr.bf16.gmra.mrb[0].mxu0 %v3600
        %v3830 = vpop.f32.mrb[0].mxu0
        %v3831 = vadd.f32 0.0, %v3830
        %v3832 = vpop.f32.mrb[0].mxu0
        %v3833 = vpop.f32.mrb[0].mxu0
        %v3834 = vadd.f32 0.0, %v3833
        %v3835 = vpop.f32.mrb[0].mxu0
        %3836 = vmatprep.mubr.bf16.mxu0 0
        %3837 = vmatmul.mubr.bf16.gmra.mrb[0].mxu0 %v3601
        %v3838 = vpop.f32.mrb[0].mxu0
        %v3839 = vadd.f32 0.0, %v3838
        %v3840 = vpop.f32.mrb[0].mxu0
        %v3841 = vpop.f32.mrb[0].mxu0
        %v3842 = vadd.f32 0.0, %v3841
        %v3843 = vpop.f32.mrb[0].mxu0
        %3844 = vmatprep.mubr.bf16.mxu0 0
        %3845 = vmatmul.mubr.bf16.gmra.mrb[0].mxu0 %v3602
        %v3846 = vpop.f32.mrb[0].mxu0
        %v3847 = vadd.f32 0.0, %v3846
        %v3848 = vpop.f32.mrb[0].mxu0
        %v3849 = vpop.f32.mrb[0].mxu0
        %v3850 = vadd.f32 0.0, %v3849
        %v3851 = vpop.f32.mrb[0].mxu0
        %3852 = vmatprep.mubr.bf16.mxu0 0
        %3853 = vmatmul.mubr.bf16.gmra.mrb[0].mxu0 %v3603
        %v3854 = vpop.f32.mrb[0].mxu0
        %v3855 = vadd.f32 0.0, %v3854
        %v3856 = vpop.f32.mrb[0].mxu0
        %v3857 = vpop.f32.mrb[0].mxu0
        %v3858 = vadd.f32 0.0, %v3857
        %v3859 = vpop.f32.mrb[0].mxu0
        %3860 = vmatprep.mubr.bf16.mxu0 0
        %3861 = vmatmul.mubr.bf16.gmra.mrb[0].mxu0 %v3604
        %v3862 = vpop.f32.mrb[0].mxu0
        %v3863 = vadd.f32 0.0, %v3862
        %v3864 = vpop.f32.mrb[0].mxu0
        %v3865 = vpop.f32.mrb[0].mxu0
        %v3866 = vadd.f32 0.0, %v3865
        %v3867 = vpop.f32.mrb[0].mxu0
        %3868 = vmatprep.mubr.bf16.mxu0 0
        %3869 = vmatmul.mubr.bf16.gmra.mrb[0].mxu0 %v3605
        %v3870 = vpop.f32.mrb[0].mxu0
        %v3871 = vadd.f32 0.0, %v3870
        %v3872 = vpop.f32.mrb[0].mxu0
        %v3873 = vpop.f32.mrb[0].mxu0
        %v3874 = vadd.f32 0.0, %v3873
        %v3875 = vpop.f32.mrb[0].mxu0
        %3876 = vmatprep.mubr.bf16.mxu0 0
        %3877 = vmatmul.mubr.bf16.gmra.mrb[0].mxu0 %v3606
        %v3878 = vpop.f32.mrb[0].mxu0
        %v3879 = vadd.f32 0.0, %v3878
        %v3880 = vpop.f32.mrb[0].mxu0
        %v3881 = vpop.f32.mrb[0].mxu0
        %v3882 = vadd.f32 0.0, %v3881
        %v3883 = vpop.f32.mrb[0].mxu0
        %3884 = vdwg.mxu0
        %v3885 = vadd.f32 %v3607, %v3743
        %v3886 = vadd.f32 %v3608, %v3746
        %v3887 = vadd.f32 %v3609, %v3751
        %v3888 = vadd.f32 %v3610, %v3754
        %v3889 = vadd.f32 %v3611, %v3759
        %v3890 = vadd.f32 %v3612, %v3762
        %v3891 = vadd.f32 %v3613, %v3767
        %v3892 = vadd.f32 %v3614, %v3770
        %v3893 = vadd.f32 %v3615, %v3775
        %v3894 = vadd.f32 %v3616, %v3778
        %v3895 = vadd.f32 %v3617, %v3783
        %v3896 = vadd.f32 %v3618, %v3786
        %v3897 = vadd.f32 %v3619, %v3791
        %v3898 = vadd.f32 %v3620, %v3794
        %v3899 = vadd.f32 %v3621, %v3799
        %v3900 = vadd.f32 %v3622, %v3802
        %v3901 = vadd.f32 %v3623, %v3807
        %v3902 = vadd.f32 %v3624, %v3810
        %v3903 = vadd.f32 %v3625, %v3815
        %v3904 = vadd.f32 %v3626, %v3818
        %v3905 = vadd.f32 %v3627, %v3823
        %v3906 = vadd.f32 %v3628, %v3826
        %v3907 = vadd.f32 %v3629, %v3831
        %v3908 = vadd.f32 %v3630, %v3834
        %v3909 = vadd.f32 %v3631, %v3839
        %v3910 = vadd.f32 %v3632, %v3842
        %v3911 = vadd.f32 %v3633, %v3847
        %v3912 = vadd.f32 %v3634, %v3850
        %v3913 = vadd.f32 %v3635, %v3855
        %v3914 = vadd.f32 %v3636, %v3858
        %v3915 = vadd.f32 %v3637, %v3863
        %v3916 = vadd.f32 %v3638, %v3866
        %v3917 = vadd.f32 %v3639, %v3871
        %v3918 = vadd.f32 %v3640, %v3874
        %v3919 = vadd.f32 %v3641, %v3879
        %v3920 = vadd.f32 %v3642, %v3882
        %3921 = vst [vmem:[#allocation2] sm:$0xff] %v3885
        %3922 = vst [vmem:[#allocation2 + $0x8] sm:$0xff] %v3886
        %3923 = vst [vmem:[#allocation2 + $0x10] sm:$0xff] %v3887
        %3924 = vst [vmem:[#allocation2 + $0x18] sm:$0xff] %v3888
        %3925 = vst [vmem:[#allocation2 + $0x20] sm:$0xff] %v3889
        %3926 = vst [vmem:[#allocation2 + $0x28] sm:$0xff] %v3890
        %3927 = vst [vmem:[#allocation2 + $0x30] sm:$0xff] %v3891
        %3928 = vst [vmem:[#allocation2 + $0x38] sm:$0xff] %v3892
        %3929 = vst [vmem:[#allocation2 + $0x40] sm:$0xff] %v3893
        %3930 = vst [vmem:[#allocation2 + $0x48] sm:$0xff] %v3894
        %3931 = vst [vmem:[#allocation2 + $0x50] sm:$0xff] %v3895
        %3932 = vst [vmem:[#allocation2 + $0x58] sm:$0xff] %v3896
        %3933 = vst [vmem:[#allocation2 + $0x60] sm:$0xff] %v3897
        %3934 = vst [vmem:[#allocation2 + $0x68] sm:$0xff] %v3898
        %3935 = vst [vmem:[#allocation2 + $0x70] sm:$0xff] %v3899
        %3936 = vst [vmem:[#allocation2 + $0x78] sm:$0xff] %v3900
        %3937 = vst [vmem:[#allocation2 + $0x80] sm:$0xff] %v3901
        %3938 = vst [vmem:[#allocation2 + $0x88] sm:$0xff] %v3902
        %3939 = vst [vmem:[#allocation2 + $0x90] sm:$0xff] %v3903
        %3940 = vst [vmem:[#allocation2 + $0x98] sm:$0xff] %v3904
        %3941 = vst [vmem:[#allocation2 + $0xa0] sm:$0xff] %v3905
        %3942 = vst [vmem:[#allocation2 + $0xa8] sm:$0xff] %v3906
        %3943 = vst [vmem:[#allocation2 + $0xb0] sm:$0xff] %v3907
        %3944 = vst [vmem:[#allocation2 + $0xb8] sm:$0xff] %v3908
        %3945 = vst [vmem:[#allocation2 + $0xc0] sm:$0xff] %v3909
        %3946 = vst [vmem:[#allocation2 + $0xc8] sm:$0xff] %v3910
        %3947 = vst [vmem:[#allocation2 + $0xd0] sm:$0xff] %v3911
        %3948 = vst [vmem:[#allocation2 + $0xd8] sm:$0xff] %v3912
        %3949 = vst [vmem:[#allocation2 + $0xe0] sm:$0xff] %v3913
        %3950 = vst [vmem:[#allocation2 + $0xe8] sm:$0xff] %v3914
        %3951 = vst [vmem:[#allocation2 + $0xf0] sm:$0xff] %v3915
        %3952 = vst [vmem:[#allocation2 + $0xf8] sm:$0xff] %v3916
        %3953 = vst [vmem:[#allocation2 + $0x100] sm:$0xff] %v3917
        %3954 = vst [vmem:[#allocation2 + $0x108] sm:$0xff] %v3918
        %3955 = vst [vmem:[#allocation2 + $0x110] sm:$0xff] %v3919
        %3956 = vst [vmem:[#allocation2 + $0x118] sm:$0xff] %v3920
        %v3957 = vld [vmem:[#allocation2] sm:$0xff]
        %v3958 = vld [vmem:[#allocation2 + $0x8] sm:$0xff]
        %v3959 = vld [vmem:[#allocation2 + $0x10] sm:$0xff]
        %v3960 = vld [vmem:[#allocation2 + $0x18] sm:$0xff]
        %v3961 = vld [vmem:[#allocation2 + $0x20] sm:$0xff]
        %v3962 = vld [vmem:[#allocation2 + $0x28] sm:$0xff]
        %v3963 = vld [vmem:[#allocation2 + $0x30] sm:$0xff]
        %v3964 = vld [vmem:[#allocation2 + $0x38] sm:$0xff]
        %v3965 = vld [vmem:[#allocation2 + $0x40] sm:$0xff]
        %v3966 = vld [vmem:[#allocation2 + $0x48] sm:$0xff]
        %v3967 = vld [vmem:[#allocation2 + $0x50] sm:$0xff]
        %v3968 = vld [vmem:[#allocation2 + $0x58] sm:$0xff]
        %v3969 = vld [vmem:[#allocation2 + $0x60] sm:$0xff]
        %v3970 = vld [vmem:[#allocation2 + $0x68] sm:$0xff]
        %v3971 = vld [vmem:[#allocation2 + $0x70] sm:$0xff]
        %v3972 = vld [vmem:[#allocation2 + $0x78] sm:$0xff]
        %v3973 = vld [vmem:[#allocation2 + $0x80] sm:$0xff]
        %v3974 = vld [vmem:[#allocation2 + $0x88] sm:$0xff]
        %v3975 = vld [vmem:[#allocation2 + $0x90] sm:$0xff]
        %v3976 = vld [vmem:[#allocation2 + $0x98] sm:$0xff]
        %v3977 = vld [vmem:[#allocation2 + $0xa0] sm:$0xff]
        %v3978 = vld [vmem:[#allocation2 + $0xa8] sm:$0xff]
        %v3979 = vld [vmem:[#allocation2 + $0xb0] sm:$0xff]
        %v3980 = vld [vmem:[#allocation2 + $0xb8] sm:$0xff]
        %v3981 = vld [vmem:[#allocation2 + $0xc0] sm:$0xff]
        %v3982 = vld [vmem:[#allocation2 + $0xc8] sm:$0xff]
        %v3983 = vld [vmem:[#allocation2 + $0xd0] sm:$0xff]
        %v3984 = vld [vmem:[#allocation2 + $0xd8] sm:$0xff]
        %v3985 = vld [vmem:[#allocation2 + $0xe0] sm:$0xff]
        %v3986 = vld [vmem:[#allocation2 + $0xe8] sm:$0xff]
        %v3987 = vld [vmem:[#allocation2 + $0xf0] sm:$0xff]
        %v3988 = vld [vmem:[#allocation2 + $0xf8] sm:$0xff]
        %v3989 = vld [vmem:[#allocation2 + $0x100] sm:$0xff]
        %v3990 = vld [vmem:[#allocation2 + $0x108] sm:$0xff]
        %v3991 = vld [vmem:[#allocation2 + $0x110] sm:$0xff]
        %v3992 = vld [vmem:[#allocation2 + $0x118] sm:$0xff]
        %v3993 = vld [vmem:[%s2] sm:$0x1]
        %v3995 = vlaneseq
        %v3996 = vshrl.u32 %v3995, 7
        %v3997 = vsub.s32 0, %v3996
        %v3998 = vrot.slane %v3993, %v3997
        %v4000 = vadd.f32 %v3957, %v3998
        %v4001 = vadd.f32 %v3958, %v3998
        %v4002 = vadd.f32 %v3959, %v3998
        %v4003 = vadd.f32 %v3960, %v3998
        %v4004 = vadd.f32 %v3961, %v3998
        %v4005 = vadd.f32 %v3962, %v3998
        %v4006 = vadd.f32 %v3963, %v3998
        %v4007 = vadd.f32 %v3964, %v3998
        %v4008 = vadd.f32 %v3965, %v3998
        %v4009 = vadd.f32 %v3966, %v3998
        %v4010 = vadd.f32 %v3967, %v3998
        %v4011 = vadd.f32 %v3968, %v3998
        %v4012 = vadd.f32 %v3969, %v3998
        %v4013 = vadd.f32 %v3970, %v3998
        %v4014 = vadd.f32 %v3971, %v3998
        %v4015 = vadd.f32 %v3972, %v3998
        %v4016 = vadd.f32 %v3973, %v3998
        %v4017 = vadd.f32 %v3974, %v3998
        %v4018 = vadd.f32 %v3975, %v3998
        %v4019 = vadd.f32 %v3976, %v3998
        %v4020 = vadd.f32 %v3977, %v3998
        %v4021 = vadd.f32 %v3978, %v3998
        %v4022 = vadd.f32 %v3979, %v3998
        %v4023 = vadd.f32 %v3980, %v3998
        %v4024 = vadd.f32 %v3981, %v3998
        %v4025 = vadd.f32 %v3982, %v3998
        %v4026 = vadd.f32 %v3983, %v3998
        %v4027 = vadd.f32 %v3984, %v3998
        %v4028 = vadd.f32 %v3985, %v3998
        %v4029 = vadd.f32 %v3986, %v3998
        %v4030 = vadd.f32 %v3987, %v3998
        %v4031 = vadd.f32 %v3988, %v3998
        %v4032 = vadd.f32 %v3989, %v3998
        %v4033 = vadd.f32 %v3990, %v3998
        %v4034 = vadd.f32 %v3991, %v3998
        %v4035 = vadd.f32 %v3992, %v3998
        %v4036 = vmax.f32 %v4000, 0.0
        %v4037 = vmax.f32 %v4001, 0.0
        %v4038 = vmax.f32 %v4002, 0.0
        %v4039 = vmax.f32 %v4003, 0.0
        %v4040 = vmax.f32 %v4004, 0.0
        %v4041 = vmax.f32 %v4005, 0.0
        %v4042 = vmax.f32 %v4006, 0.0
        %v4043 = vmax.f32 %v4007, 0.0
        %v4044 = vmax.f32 %v4008, 0.0
        %v4045 = vmax.f32 %v4009, 0.0
        %v4046 = vmax.f32 %v4010, 0.0
        %v4047 = vmax.f32 %v4011, 0.0
        %v4048 = vmax.f32 %v4012, 0.0
        %v4049 = vmax.f32 %v4013, 0.0
        %v4050 = vmax.f32 %v4014, 0.0
        %v4051 = vmax.f32 %v4015, 0.0
        %v4052 = vmax.f32 %v4016, 0.0
        %v4053 = vmax.f32 %v4017, 0.0
        %v4054 = vmax.f32 %v4018, 0.0
        %v4055 = vmax.f32 %v4019, 0.0
        %v4056 = vmax.f32 %v4020, 0.0
        %v4057 = vmax.f32 %v4021, 0.0
        %v4058 = vmax.f32 %v4022, 0.0
        %v4059 = vmax.f32 %v4023, 0.0
        %v4060 = vmax.f32 %v4024, 0.0
        %v4061 = vmax.f32 %v4025, 0.0
        %v4062 = vmax.f32 %v4026, 0.0
        %v4063 = vmax.f32 %v4027, 0.0
        %v4064 = vmax.f32 %v4028, 0.0
        %v4065 = vmax.f32 %v4029, 0.0
        %v4066 = vmax.f32 %v4030, 0.0
        %v4067 = vmax.f32 %v4031, 0.0
        %v4068 = vmax.f32 %v4032, 0.0
        %v4069 = vmax.f32 %v4033, 0.0
        %v4070 = vmax.f32 %v4034, 0.0
        %v4071 = vmax.f32 %v4035, 0.0
        %4073 = vset.pattern.permute.xlu0 0
        %4074 = vperm.xlu0 %4073, %v250
        %v4075 = vpop.permute.xlu0 %4074
        %4078 = vset.pattern.permute.xlu0 0
        %4079 = vperm.xlu0 %4078, %v251
        %v4080 = vpop.permute.xlu0 %4079
        %4083 = vset.pattern.permute.xlu0 0
        %4084 = vperm.xlu0 %4083, %v252
        %v4085 = vpop.permute.xlu0 %4084
        %4088 = vset.pattern.permute.xlu0 0
        %4089 = vperm.xlu0 %4088, %v253
        %v4090 = vpop.permute.xlu0 %4089
        %4093 = vset.pattern.permute.xlu0 0
        %4094 = vperm.xlu0 %4093, %v254
        %v4095 = vpop.permute.xlu0 %4094
        %4098 = vset.pattern.permute.xlu0 0
        %4099 = vperm.xlu0 %4098, %v255
        %v4100 = vpop.permute.xlu0 %4099
        %4103 = vset.pattern.permute.xlu0 0
        %4104 = vperm.xlu0 %4103, %v256
        %v4105 = vpop.permute.xlu0 %4104
        %4108 = vset.pattern.permute.xlu0 0
        %4109 = vperm.xlu0 %4108, %v257
        %v4110 = vpop.permute.xlu0 %4109
        %4113 = vset.pattern.permute.xlu0 0
        %4114 = vperm.xlu0 %4113, %v258
        %v4115 = vpop.permute.xlu0 %4114
        %4118 = vset.pattern.permute.xlu0 0
        %4119 = vperm.xlu0 %4118, %v259
        %v4120 = vpop.permute.xlu0 %4119
        %4123 = vset.pattern.permute.xlu0 0
        %4124 = vperm.xlu0 %4123, %v260
        %v4125 = vpop.permute.xlu0 %4124
        %4128 = vset.pattern.permute.xlu0 0
        %4129 = vperm.xlu0 %4128, %v261
        %v4130 = vpop.permute.xlu0 %4129
        %4133 = vset.pattern.permute.xlu0 0
        %4134 = vperm.xlu0 %4133, %v262
        %v4135 = vpop.permute.xlu0 %4134
        %4138 = vset.pattern.permute.xlu0 0
        %4139 = vperm.xlu0 %4138, %v263
        %v4140 = vpop.permute.xlu0 %4139
        %4143 = vset.pattern.permute.xlu0 0
        %4144 = vperm.xlu0 %4143, %v264
        %v4145 = vpop.permute.xlu0 %4144
        %4148 = vset.pattern.permute.xlu0 0
        %4149 = vperm.xlu0 %4148, %v265
        %v4150 = vpop.permute.xlu0 %4149
        %4153 = vset.pattern.permute.xlu0 0
        %4154 = vperm.xlu0 %4153, %v266
        %v4155 = vpop.permute.xlu0 %4154
        %4158 = vset.pattern.permute.xlu0 0
        %4159 = vperm.xlu0 %4158, %v267
        %v4160 = vpop.permute.xlu0 %4159
        %4163 = vset.pattern.permute.xlu0 0
        %4164 = vperm.xlu0 %4163, %v268
        %v4165 = vpop.permute.xlu0 %4164
        %4168 = vset.pattern.permute.xlu0 0
        %4169 = vperm.xlu0 %4168, %v269
        %v4170 = vpop.permute.xlu0 %4169
        %4173 = vset.pattern.permute.xlu0 0
        %4174 = vperm.xlu0 %4173, %v270
        %v4175 = vpop.permute.xlu0 %4174
        %4178 = vset.pattern.permute.xlu0 0
        %4179 = vperm.xlu0 %4178, %v271
        %v4180 = vpop.permute.xlu0 %4179
        %4183 = vset.pattern.permute.xlu0 0
        %4184 = vperm.xlu0 %4183, %v272
        %v4185 = vpop.permute.xlu0 %4184
        %4188 = vset.pattern.permute.xlu0 0
        %4189 = vperm.xlu0 %4188, %v273
        %v4190 = vpop.permute.xlu0 %4189
        %4193 = vset.pattern.permute.xlu0 0
        %4194 = vperm.xlu0 %4193, %v274
        %v4195 = vpop.permute.xlu0 %4194
        %4198 = vset.pattern.permute.xlu0 0
        %4199 = vperm.xlu0 %4198, %v275
        %v4200 = vpop.permute.xlu0 %4199
        %4203 = vset.pattern.permute.xlu0 0
        %4204 = vperm.xlu0 %4203, %v276
        %v4205 = vpop.permute.xlu0 %4204
        %4208 = vset.pattern.permute.xlu0 0
        %4209 = vperm.xlu0 %4208, %v277
        %v4210 = vpop.permute.xlu0 %4209
        %4213 = vset.pattern.permute.xlu0 0
        %4214 = vperm.xlu0 %4213, %v278
        %v4215 = vpop.permute.xlu0 %4214
        %4218 = vset.pattern.permute.xlu0 0
        %4219 = vperm.xlu0 %4218, %v279
        %v4220 = vpop.permute.xlu0 %4219
        %4223 = vset.pattern.permute.xlu0 0
        %4224 = vperm.xlu0 %4223, %v280
        %v4225 = vpop.permute.xlu0 %4224
        %4228 = vset.pattern.permute.xlu0 0
        %4229 = vperm.xlu0 %4228, %v281
        %v4230 = vpop.permute.xlu0 %4229
        %4233 = vset.pattern.permute.xlu0 0
        %4234 = vperm.xlu0 %4233, %v282
        %v4235 = vpop.permute.xlu0 %4234
        %4238 = vset.pattern.permute.xlu0 0
        %4239 = vperm.xlu0 %4238, %v283
        %v4240 = vpop.permute.xlu0 %4239
        %4243 = vset.pattern.permute.xlu0 0
        %4244 = vperm.xlu0 %4243, %v284
        %v4245 = vpop.permute.xlu0 %4244
        %4248 = vset.pattern.permute.xlu0 0
        %4249 = vperm.xlu0 %4248, %v285
        %v4250 = vpop.permute.xlu0 %4249
        %v4252 = vmul.f32 %v4036, %v4075
        %v4253 = vmul.f32 %v4037, %v4080
        %v4254 = vmul.f32 %v4038, %v4085
        %v4255 = vmul.f32 %v4039, %v4090
        %v4256 = vmul.f32 %v4040, %v4095
        %v4257 = vmul.f32 %v4041, %v4100
        %v4258 = vmul.f32 %v4042, %v4105
        %v4259 = vmul.f32 %v4043, %v4110
        %v4260 = vmul.f32 %v4044, %v4115
        %v4261 = vmul.f32 %v4045, %v4120
        %v4262 = vmul.f32 %v4046, %v4125
        %v4263 = vmul.f32 %v4047, %v4130
        %v4264 = vmul.f32 %v4048, %v4135
        %v4265 = vmul.f32 %v4049, %v4140
        %v4266 = vmul.f32 %v4050, %v4145
        %v4267 = vmul.f32 %v4051, %v4150
        %v4268 = vmul.f32 %v4052, %v4155
        %v4269 = vmul.f32 %v4053, %v4160
        %v4270 = vmul.f32 %v4054, %v4165
        %v4271 = vmul.f32 %v4055, %v4170
        %v4272 = vmul.f32 %v4056, %v4175
        %v4273 = vmul.f32 %v4057, %v4180
        %v4274 = vmul.f32 %v4058, %v4185
        %v4275 = vmul.f32 %v4059, %v4190
        %v4276 = vmul.f32 %v4060, %v4195
        %v4277 = vmul.f32 %v4061, %v4200
        %v4278 = vmul.f32 %v4062, %v4205
        %v4279 = vmul.f32 %v4063, %v4210
        %v4280 = vmul.f32 %v4064, %v4215
        %v4281 = vmul.f32 %v4065, %v4220
        %v4282 = vmul.f32 %v4066, %v4225
        %v4283 = vmul.f32 %v4067, %v4230
        %v4284 = vmul.f32 %v4068, %v4235
        %v4285 = vmul.f32 %v4069, %v4240
        %v4286 = vmul.f32 %v4070, %v4245
        %v4287 = vmul.f32 %v4071, %v4250
        %4288 = vst [vmem:[#allocation3] sm:$0xff] 0.0
        %4289 = vst [vmem:[#allocation3 + $0x8] sm:$0xff] 0.0
        %4290 = vst [vmem:[#allocation3 + $0x10] sm:$0xff] 0.0
        %4291 = vst [vmem:[#allocation3 + $0x18] sm:$0xff] 0.0
        %4292 = vst [vmem:[#allocation3 + $0x20] sm:$0xff] 0.0
        %4293 = vst [vmem:[#allocation3 + $0x28] sm:$0xff] 0.0
        %4294 = vst [vmem:[#allocation3 + $0x30] sm:$0xff] 0.0
        %4295 = vst [vmem:[#allocation3 + $0x38] sm:$0xff] 0.0
        %4296 = vst [vmem:[#allocation3 + $0x40] sm:$0xff] 0.0
        %4297 = vst [vmem:[#allocation3 + $0x48] sm:$0xff] 0.0
        %4298 = vst [vmem:[#allocation3 + $0x50] sm:$0xff] 0.0
        %4299 = vst [vmem:[#allocation3 + $0x58] sm:$0xff] 0.0
        %4300 = vst [vmem:[#allocation3 + $0x60] sm:$0xff] 0.0
        %4301 = vst [vmem:[#allocation3 + $0x68] sm:$0xff] 0.0
        %4302 = vst [vmem:[#allocation3 + $0x70] sm:$0xff] 0.0
        %4303 = vst [vmem:[#allocation3 + $0x78] sm:$0xff] 0.0
        %4304 = vst [vmem:[#allocation3 + $0x80] sm:$0xff] 0.0
        %4305 = vst [vmem:[#allocation3 + $0x88] sm:$0xff] 0.0
        %4306 = vst [vmem:[#allocation3 + $0x90] sm:$0xff] 0.0
        %4307 = vst [vmem:[#allocation3 + $0x98] sm:$0xff] 0.0
        %4308 = vst [vmem:[#allocation3 + $0xa0] sm:$0xff] 0.0
        %4309 = vst [vmem:[#allocation3 + $0xa8] sm:$0xff] 0.0
        %4310 = vst [vmem:[#allocation3 + $0xb0] sm:$0xff] 0.0
        %4311 = vst [vmem:[#allocation3 + $0xb8] sm:$0xff] 0.0
        %4312 = vst [vmem:[#allocation3 + $0xc0] sm:$0xff] 0.0
        %4313 = vst [vmem:[#allocation3 + $0xc8] sm:$0xff] 0.0
        %4314 = vst [vmem:[#allocation3 + $0xd0] sm:$0xff] 0.0
        %4315 = vst [vmem:[#allocation3 + $0xd8] sm:$0xff] 0.0
        %4316 = vst [vmem:[#allocation3 + $0xe0] sm:$0xff] 0.0
        %4317 = vst [vmem:[#allocation3 + $0xe8] sm:$0xff] 0.0
        %4318 = vst [vmem:[#allocation3 + $0xf0] sm:$0xff] 0.0
        %4319 = vst [vmem:[#allocation3 + $0xf8] sm:$0xff] 0.0
        %4320 = vst [vmem:[#allocation3 + $0x100] sm:$0xff] 0.0
        %4321 = vst [vmem:[#allocation3 + $0x108] sm:$0xff] 0.0
        %4322 = vst [vmem:[#allocation3 + $0x110] sm:$0xff] 0.0
        %4323 = vst [vmem:[#allocation3 + $0x118] sm:$0xff] 0.0
        %4324 = vst [vmem:[#allocation3 + $0x120] sm:$0xff] 0.0
        %4325 = vst [vmem:[#allocation3 + $0x128] sm:$0xff] 0.0
        %4326 = vst [vmem:[#allocation3 + $0x130] sm:$0xff] 0.0
        %4327 = vst [vmem:[#allocation3 + $0x138] sm:$0xff] 0.0
        %4328 = vst [vmem:[#allocation3 + $0x140] sm:$0xff] 0.0
        %4329 = vst [vmem:[#allocation3 + $0x148] sm:$0xff] 0.0
        %4330 = vst [vmem:[#allocation3 + $0x18] sm:$0xff] %v4252
        %4331 = vst [vmem:[#allocation3 + $0x20] sm:$0xff] %v4253
        %4332 = vst [vmem:[#allocation3 + $0x28] sm:$0xff] %v4254
        %4333 = vst [vmem:[#allocation3 + $0x30] sm:$0xff] %v4255
        %4334 = vst [vmem:[#allocation3 + $0x38] sm:$0xff] %v4256
        %4335 = vst [vmem:[#allocation3 + $0x40] sm:$0xff] %v4257
        %4336 = vst [vmem:[#allocation3 + $0x48] sm:$0xff] %v4258
        %4337 = vst [vmem:[#allocation3 + $0x50] sm:$0xff] %v4259
        %4338 = vst [vmem:[#allocation3 + $0x58] sm:$0xff] %v4260
        %4339 = vst [vmem:[#allocation3 + $0x60] sm:$0xff] %v4261
        %4340 = vst [vmem:[#allocation3 + $0x68] sm:$0xff] %v4262
        %4341 = vst [vmem:[#allocation3 + $0x70] sm:$0xff] %v4263
        %4342 = vst [vmem:[#allocation3 + $0x78] sm:$0xff] %v4264
        %4343 = vst [vmem:[#allocation3 + $0x80] sm:$0xff] %v4265
        %4344 = vst [vmem:[#allocation3 + $0x88] sm:$0xff] %v4266
        %4345 = vst [vmem:[#allocation3 + $0x90] sm:$0xff] %v4267
        %4346 = vst [vmem:[#allocation3 + $0x98] sm:$0xff] %v4268
        %4347 = vst [vmem:[#allocation3 + $0xa0] sm:$0xff] %v4269
        %4348 = vst [vmem:[#allocation3 + $0xa8] sm:$0xff] %v4270
        %4349 = vst [vmem:[#allocation3 + $0xb0] sm:$0xff] %v4271
        %4350 = vst [vmem:[#allocation3 + $0xb8] sm:$0xff] %v4272
        %4351 = vst [vmem:[#allocation3 + $0xc0] sm:$0xff] %v4273
        %4352 = vst [vmem:[#allocation3 + $0xc8] sm:$0xff] %v4274
        %4353 = vst [vmem:[#allocation3 + $0xd0] sm:$0xff] %v4275
        %4354 = vst [vmem:[#allocation3 + $0xd8] sm:$0xff] %v4276
        %4355 = vst [vmem:[#allocation3 + $0xe0] sm:$0xff] %v4277
        %4356 = vst [vmem:[#allocation3 + $0xe8] sm:$0xff] %v4278
        %4357 = vst [vmem:[#allocation3 + $0xf0] sm:$0xff] %v4279
        %4358 = vst [vmem:[#allocation3 + $0xf8] sm:$0xff] %v4280
        %4359 = vst [vmem:[#allocation3 + $0x100] sm:$0xff] %v4281
        %4360 = vst [vmem:[#allocation3 + $0x108] sm:$0xff] %v4282
        %4361 = vst [vmem:[#allocation3 + $0x110] sm:$0xff] %v4283
        %4362 = vst [vmem:[#allocation3 + $0x118] sm:$0xff] %v4284
        %4363 = vst [vmem:[#allocation3 + $0x120] sm:$0xff] %v4285
        %4364 = vst [vmem:[#allocation3 + $0x128] sm:$0xff] %v4286
        %4365 = vst [vmem:[#allocation3 + $0x130] sm:$0xff] %v4287
        %4366 = vst [vmem:[#allocation2] sm:$0xff] 0.0
        %4367 = vst [vmem:[#allocation2 + $0x8] sm:$0xff] 0.0
        %4368 = vst [vmem:[#allocation2 + $0x10] sm:$0xff] 0.0
        %4369 = vst [vmem:[#allocation2 + $0x18] sm:$0xff] 0.0
        %4370 = vst [vmem:[#allocation2 + $0x20] sm:$0xff] 0.0
        %4371 = vst [vmem:[#allocation2 + $0x28] sm:$0xff] 0.0
        %4372 = vst [vmem:[#allocation2 + $0x30] sm:$0xff] 0.0
        %4373 = vst [vmem:[#allocation2 + $0x38] sm:$0xff] 0.0
        %4374 = vst [vmem:[#allocation2 + $0x40] sm:$0xff] 0.0
        %4375 = vst [vmem:[#allocation2 + $0x48] sm:$0xff] 0.0
        %4376 = vst [vmem:[#allocation2 + $0x50] sm:$0xff] 0.0
        %4377 = vst [vmem:[#allocation2 + $0x58] sm:$0xff] 0.0
        %4378 = vst [vmem:[#allocation2 + $0x60] sm:$0xff] 0.0
        %4379 = vst [vmem:[#allocation2 + $0x68] sm:$0xff] 0.0
        %4380 = vst [vmem:[#allocation2 + $0x70] sm:$0xff] 0.0
        %4381 = vst [vmem:[#allocation2 + $0x78] sm:$0xff] 0.0
        %4382 = vst [vmem:[#allocation2 + $0x80] sm:$0xff] 0.0
        %4383 = vst [vmem:[#allocation2 + $0x88] sm:$0xff] 0.0
        %4384 = vst [vmem:[#allocation2 + $0x90] sm:$0xff] 0.0
        %4385 = vst [vmem:[#allocation2 + $0x98] sm:$0xff] 0.0
        %4386 = vst [vmem:[#allocation2 + $0xa0] sm:$0xff] 0.0
        %4387 = vst [vmem:[#allocation2 + $0xa8] sm:$0xff] 0.0
        %4388 = vst [vmem:[#allocation2 + $0xb0] sm:$0xff] 0.0
        %4389 = vst [vmem:[#allocation2 + $0xb8] sm:$0xff] 0.0
        %4390 = vst [vmem:[#allocation2 + $0xc0] sm:$0xff] 0.0
        %4391 = vst [vmem:[#allocation2 + $0xc8] sm:$0xff] 0.0
        %4392 = vst [vmem:[#allocation2 + $0xd0] sm:$0xff] 0.0
        %4393 = vst [vmem:[#allocation2 + $0xd8] sm:$0xff] 0.0
        %4394 = vst [vmem:[#allocation2 + $0xe0] sm:$0xff] 0.0
        %4395 = vst [vmem:[#allocation2 + $0xe8] sm:$0xff] 0.0
        %4396 = vst [vmem:[#allocation2 + $0xf0] sm:$0xff] 0.0
        %4397 = vst [vmem:[#allocation2 + $0xf8] sm:$0xff] 0.0
        %4398 = vst [vmem:[#allocation2 + $0x100] sm:$0xff] 0.0
        %4399 = vst [vmem:[#allocation2 + $0x108] sm:$0xff] 0.0
        %4400 = vst [vmem:[#allocation2 + $0x110] sm:$0xff] 0.0
        %4401 = vst [vmem:[#allocation2 + $0x118] sm:$0xff] 0.0
        %v4402 = vld [vmem:[#allocation3 + $0x5] sm:$0xff]
        %v4403 = vld [vmem:[#allocation3 + $0xd] sm:$0xff]
        %v4404 = vld [vmem:[#allocation3 + $0x15] sm:$0xff]
        %v4405 = vld [vmem:[#allocation3 + $0x1d] sm:$0xff]
        %v4406 = vld [vmem:[#allocation3 + $0x25] sm:$0xff]
        %v4407 = vld [vmem:[#allocation3 + $0x2d] sm:$0xff]
        %v4408 = vld [vmem:[#allocation3 + $0x35] sm:$0xff]
        %v4409 = vld [vmem:[#allocation3 + $0x3d] sm:$0xff]
        %v4410 = vld [vmem:[#allocation3 + $0x45] sm:$0xff]
        %v4411 = vld [vmem:[#allocation3 + $0x4d] sm:$0xff]
        %v4412 = vld [vmem:[#allocation3 + $0x55] sm:$0xff]
        %v4413 = vld [vmem:[#allocation3 + $0x5d] sm:$0xff]
        %v4414 = vld [vmem:[#allocation3 + $0x65] sm:$0xff]
        %v4415 = vld [vmem:[#allocation3 + $0x6d] sm:$0xff]
        %v4416 = vld [vmem:[#allocation3 + $0x75] sm:$0xff]
        %v4417 = vld [vmem:[#allocation3 + $0x7d] sm:$0xff]
        %v4418 = vld [vmem:[#allocation3 + $0x85] sm:$0xff]
        %v4419 = vld [vmem:[#allocation3 + $0x8d] sm:$0xff]
        %v4420 = vld [vmem:[#allocation3 + $0x95] sm:$0xff]
        %v4421 = vld [vmem:[#allocation3 + $0x9d] sm:$0xff]
        %v4422 = vld [vmem:[#allocation3 + $0xa5] sm:$0xff]
        %v4423 = vld [vmem:[#allocation3 + $0xad] sm:$0xff]
        %v4424 = vld [vmem:[#allocation3 + $0xb5] sm:$0xff]
        %v4425 = vld [vmem:[#allocation3 + $0xbd] sm:$0xff]
        %v4426 = vld [vmem:[#allocation3 + $0xc5] sm:$0xff]
        %v4427 = vld [vmem:[#allocation3 + $0xcd] sm:$0xff]
        %v4428 = vld [vmem:[#allocation3 + $0xd5] sm:$0xff]
        %v4429 = vld [vmem:[#allocation3 + $0xdd] sm:$0xff]
        %v4430 = vld [vmem:[#allocation3 + $0xe5] sm:$0xff]
        %v4431 = vld [vmem:[#allocation3 + $0xed] sm:$0xff]
        %v4432 = vld [vmem:[#allocation3 + $0xf5] sm:$0xff]
        %v4433 = vld [vmem:[#allocation3 + $0xfd] sm:$0xff]
        %v4434 = vld [vmem:[#allocation3 + $0x105] sm:$0xff]
        %v4435 = vld [vmem:[#allocation3 + $0x10d] sm:$0xff]
        %v4436 = vld [vmem:[#allocation3 + $0x115] sm:$0xff]
        %v4437 = vld [vmem:[#allocation3 + $0x11d] sm:$0xff]
        %v4438 = vpack.c.bf16 %v4403, %v4402
        %v4439 = vpack.c.bf16 %v4405, %v4404
        %v4440 = vpack.c.bf16 %v4407, %v4406
        %v4441 = vpack.c.bf16 %v4409, %v4408
        %v4442 = vpack.c.bf16 %v4411, %v4410
        %v4443 = vpack.c.bf16 %v4413, %v4412
        %v4444 = vpack.c.bf16 %v4415, %v4414
        %v4445 = vpack.c.bf16 %v4417, %v4416
        %v4446 = vpack.c.bf16 %v4419, %v4418
        %v4447 = vpack.c.bf16 %v4421, %v4420
        %v4448 = vpack.c.bf16 %v4423, %v4422
        %v4449 = vpack.c.bf16 %v4425, %v4424
        %v4450 = vpack.c.bf16 %v4427, %v4426
        %v4451 = vpack.c.bf16 %v4429, %v4428
        %v4452 = vpack.c.bf16 %v4431, %v4430
        %v4453 = vpack.c.bf16 %v4433, %v4432
        %v4454 = vpack.c.bf16 %v4435, %v4434
        %v4455 = vpack.c.bf16 %v4437, %v4436
        %v4456 = vld [vmem:[#allocation2] sm:$0xff]
        %v4457 = vld [vmem:[#allocation2 + $0x8] sm:$0xff]
        %v4458 = vld [vmem:[#allocation2 + $0x10] sm:$0xff]
        %v4459 = vld [vmem:[#allocation2 + $0x18] sm:$0xff]
        %v4460 = vld [vmem:[#allocation2 + $0x20] sm:$0xff]
        %v4461 = vld [vmem:[#allocation2 + $0x28] sm:$0xff]
        %v4462 = vld [vmem:[#allocation2 + $0x30] sm:$0xff]
        %v4463 = vld [vmem:[#allocation2 + $0x38] sm:$0xff]
        %v4464 = vld [vmem:[#allocation2 + $0x40] sm:$0xff]
        %v4465 = vld [vmem:[#allocation2 + $0x48] sm:$0xff]
        %v4466 = vld [vmem:[#allocation2 + $0x50] sm:$0xff]
        %v4467 = vld [vmem:[#allocation2 + $0x58] sm:$0xff]
        %v4468 = vld [vmem:[#allocation2 + $0x60] sm:$0xff]
        %v4469 = vld [vmem:[#allocation2 + $0x68] sm:$0xff]
        %v4470 = vld [vmem:[#allocation2 + $0x70] sm:$0xff]
        %v4471 = vld [vmem:[#allocation2 + $0x78] sm:$0xff]
        %v4472 = vld [vmem:[#allocation2 + $0x80] sm:$0xff]
        %v4473 = vld [vmem:[#allocation2 + $0x88] sm:$0xff]
        %v4474 = vld [vmem:[#allocation2 + $0x90] sm:$0xff]
        %v4475 = vld [vmem:[#allocation2 + $0x98] sm:$0xff]
        %v4476 = vld [vmem:[#allocation2 + $0xa0] sm:$0xff]
        %v4477 = vld [vmem:[#allocation2 + $0xa8] sm:$0xff]
        %v4478 = vld [vmem:[#allocation2 + $0xb0] sm:$0xff]
        %v4479 = vld [vmem:[#allocation2 + $0xb8] sm:$0xff]
        %v4480 = vld [vmem:[#allocation2 + $0xc0] sm:$0xff]
        %v4481 = vld [vmem:[#allocation2 + $0xc8] sm:$0xff]
        %v4482 = vld [vmem:[#allocation2 + $0xd0] sm:$0xff]
        %v4483 = vld [vmem:[#allocation2 + $0xd8] sm:$0xff]
        %v4484 = vld [vmem:[#allocation2 + $0xe0] sm:$0xff]
        %v4485 = vld [vmem:[#allocation2 + $0xe8] sm:$0xff]
        %v4486 = vld [vmem:[#allocation2 + $0xf0] sm:$0xff]
        %v4487 = vld [vmem:[#allocation2 + $0xf8] sm:$0xff]
        %v4488 = vld [vmem:[#allocation2 + $0x100] sm:$0xff]
        %v4489 = vld [vmem:[#allocation2 + $0x108] sm:$0xff]
        %v4490 = vld [vmem:[#allocation2 + $0x110] sm:$0xff]
        %v4491 = vld [vmem:[#allocation2 + $0x118] sm:$0xff]
        %v4492 = vld [vmem:[%s3] sm:$0xf]
        %v4493 = vld [vmem:[%s3 + $0x4] sm:$0xf]
        %v4494 = vld [vmem:[%s3 + $0x8] sm:$0xf]
        %v4495 = vld [vmem:[%s3 + $0xc] sm:$0xf]
        %v4496 = vld [vmem:[%s3 + $0x10] sm:$0xf]
        %v4497 = vld [vmem:[%s3 + $0x14] sm:$0xf]
        %v4498 = vld [vmem:[%s3 + $0x18] sm:$0xf]
        %v4499 = vld [vmem:[%s3 + $0x1c] sm:$0xf]
        %v4500 = vld [vmem:[%s3 + $0x20] sm:$0xf]
        %v4501 = vld [vmem:[%s3 + $0x24] sm:$0xf]
        %v4502 = vld [vmem:[%s3 + $0x28] sm:$0xf]
        %v4503 = vld [vmem:[%s3 + $0x2c] sm:$0xf]
        %v4504 = vld [vmem:[%s3 + $0x30] sm:$0xf]
        %v4505 = vld [vmem:[%s3 + $0x34] sm:$0xf]
        %v4506 = vld [vmem:[%s3 + $0x38] sm:$0xf]
        %v4507 = vld [vmem:[%s3 + $0x3c] sm:$0xf]
        %v4524 = vunpack.c.l.b16 %v4492
        %v4525 = vunpack.c.l.b16 %v4493
        %v4526 = vunpack.c.l.b16 %v4494
        %v4527 = vunpack.c.l.b16 %v4495
        %v4528 = vunpack.c.l.b16 %v4496
        %v4529 = vunpack.c.l.b16 %v4497
        %v4530 = vunpack.c.l.b16 %v4498
        %v4531 = vunpack.c.l.b16 %v4499
        %v4532 = vunpack.c.l.b16 %v4500
        %v4533 = vunpack.c.l.b16 %v4501
        %v4534 = vunpack.c.l.b16 %v4502
        %v4535 = vunpack.c.l.b16 %v4503
        %v4536 = vunpack.c.l.b16 %v4504
        %v4537 = vunpack.c.l.b16 %v4505
        %v4538 = vunpack.c.l.b16 %v4506
        %v4539 = vunpack.c.l.b16 %v4507
        %v4540 = vpack.c.b16 %v4525, %v4524
        %v4541 = vpack.c.b16 %v4527, %v4526
        %v4542 = vpack.c.b16 %v4529, %v4528
        %v4543 = vpack.c.b16 %v4531, %v4530
        %v4544 = vpack.c.b16 %v4533, %v4532
        %v4545 = vpack.c.b16 %v4535, %v4534
        %v4546 = vpack.c.b16 %v4537, %v4536
        %v4547 = vpack.c.b16 %v4539, %v4538
        %4556 = vmatprep.subr.bf16.mxu0 0
        %4557 = vmatpush1.bf16.msra.mxu0 %v4540
        %4558 = vmatprep.subr.bf16.mxu0 0
        %4559 = vmatpush1.bf16.msra.mxu0 %v4541
        %4560 = vmatprep.subr.bf16.mxu0 0
        %4561 = vmatpush1.bf16.msra.mxu0 %v4542
        %4562 = vmatprep.subr.bf16.mxu0 0
        %4563 = vmatpush1.bf16.msra.mxu0 %v4543
        %4564 = vmatprep.subr.bf16.mxu0 0
        %4565 = vmatpush1.bf16.msra.mxu0 %v4544
        %4566 = vmatprep.subr.bf16.mxu0 0
        %4567 = vmatpush1.bf16.msra.mxu0 %v4545
        %4568 = vmatprep.subr.bf16.mxu0 0
        %4569 = vmatpush1.bf16.msra.mxu0 %v4546
        %4570 = vmatprep.subr.bf16.mxu0 0
        %4571 = vmatpush1.bf16.msra.mxu0 %v4547
        %4572 = vmatprep.subr.bf16.mxu0 0
        %4573 = vmatpush1.bf16.msra.mxu0 0
        %4574 = vmatprep.subr.bf16.mxu0 0
        %4575 = vmatpush1.bf16.msra.mxu0 0
        %4576 = vmatprep.subr.bf16.mxu0 0
        %4577 = vmatpush1.bf16.msra.mxu0 0
        %4578 = vmatprep.subr.bf16.mxu0 0
        %4579 = vmatpush1.bf16.msra.mxu0 0
        %4580 = vmatprep.subr.bf16.mxu0 0
        %4581 = vmatpush1.bf16.msra.mxu0 0
        %4582 = vmatprep.subr.bf16.mxu0 0
        %4583 = vmatpush1.bf16.msra.mxu0 0
        %4584 = vmatprep.subr.bf16.mxu0 0
        %4585 = vmatpush1.bf16.msra.mxu0 0
        %4586 = vmatprep.subr.bf16.mxu0 0
        %4587 = vmatpush1.bf16.msra.mxu0 0
        %4588 = vmatprep.mubr.bf16.mxu0 0
        %4589 = vmatmul.mubr.bf16.gmra.mrb[0].mxu0 %v4438
        %v4590 = vpop.f32.mrb[0].mxu0
        %v4591 = vadd.f32 0.0, %v4590
        %v4592 = vpop.f32.mrb[0].mxu0
        %v4593 = vpop.f32.mrb[0].mxu0
        %v4594 = vadd.f32 0.0, %v4593
        %v4595 = vpop.f32.mrb[0].mxu0
        %4596 = vmatprep.mubr.bf16.mxu0 0
        %4597 = vmatmul.mubr.bf16.gmra.mrb[0].mxu0 %v4439
        %v4598 = vpop.f32.mrb[0].mxu0
        %v4599 = vadd.f32 0.0, %v4598
        %v4600 = vpop.f32.mrb[0].mxu0
        %v4601 = vpop.f32.mrb[0].mxu0
        %v4602 = vadd.f32 0.0, %v4601
        %v4603 = vpop.f32.mrb[0].mxu0
        %4604 = vmatprep.mubr.bf16.mxu0 0
        %4605 = vmatmul.mubr.bf16.gmra.mrb[0].mxu0 %v4440
        %v4606 = vpop.f32.mrb[0].mxu0
        %v4607 = vadd.f32 0.0, %v4606
        %v4608 = vpop.f32.mrb[0].mxu0
        %v4609 = vpop.f32.mrb[0].mxu0
        %v4610 = vadd.f32 0.0, %v4609
        %v4611 = vpop.f32.mrb[0].mxu0
        %4612 = vmatprep.mubr.bf16.mxu0 0
        %4613 = vmatmul.mubr.bf16.gmra.mrb[0].mxu0 %v4441
        %v4614 = vpop.f32.mrb[0].mxu0
        %v4615 = vadd.f32 0.0, %v4614
        %v4616 = vpop.f32.mrb[0].mxu0
        %v4617 = vpop.f32.mrb[0].mxu0
        %v4618 = vadd.f32 0.0, %v4617
        %v4619 = vpop.f32.mrb[0].mxu0
        %4620 = vmatprep.mubr.bf16.mxu0 0
        %4621 = vmatmul.mubr.bf16.gmra.mrb[0].mxu0 %v4442
        %v4622 = vpop.f32.mrb[0].mxu0
        %v4623 = vadd.f32 0.0, %v4622
        %v4624 = vpop.f32.mrb[0].mxu0
        %v4625 = vpop.f32.mrb[0].mxu0
        %v4626 = vadd.f32 0.0, %v4625
        %v4627 = vpop.f32.mrb[0].mxu0
        %4628 = vmatprep.mubr.bf16.mxu0 0
        %4629 = vmatmul.mubr.bf16.gmra.mrb[0].mxu0 %v4443
        %v4630 = vpop.f32.mrb[0].mxu0
        %v4631 = vadd.f32 0.0, %v4630
        %v4632 = vpop.f32.mrb[0].mxu0
        %v4633 = vpop.f32.mrb[0].mxu0
        %v4634 = vadd.f32 0.0, %v4633
        %v4635 = vpop.f32.mrb[0].mxu0
        %4636 = vmatprep.mubr.bf16.mxu0 0
        %4637 = vmatmul.mubr.bf16.gmra.mrb[0].mxu0 %v4444
        %v4638 = vpop.f32.mrb[0].mxu0
        %v4639 = vadd.f32 0.0, %v4638
        %v4640 = vpop.f32.mrb[0].mxu0
        %v4641 = vpop.f32.mrb[0].mxu0
        %v4642 = vadd.f32 0.0, %v4641
        %v4643 = vpop.f32.mrb[0].mxu0
        %4644 = vmatprep.mubr.bf16.mxu0 0
        %4645 = vmatmul.mubr.bf16.gmra.mrb[0].mxu0 %v4445
        %v4646 = vpop.f32.mrb[0].mxu0
        %v4647 = vadd.f32 0.0, %v4646
        %v4648 = vpop.f32.mrb[0].mxu0
        %v4649 = vpop.f32.mrb[0].mxu0
        %v4650 = vadd.f32 0.0, %v4649
        %v4651 = vpop.f32.mrb[0].mxu0
        %4652 = vmatprep.mubr.bf16.mxu0 0
        %4653 = vmatmul.mubr.bf16.gmra.mrb[0].mxu0 %v4446
        %v4654 = vpop.f32.mrb[0].mxu0
        %v4655 = vadd.f32 0.0, %v4654
        %v4656 = vpop.f32.mrb[0].mxu0
        %v4657 = vpop.f32.mrb[0].mxu0
        %v4658 = vadd.f32 0.0, %v4657
        %v4659 = vpop.f32.mrb[0].mxu0
        %4660 = vmatprep.mubr.bf16.mxu0 0
        %4661 = vmatmul.mubr.bf16.gmra.mrb[0].mxu0 %v4447
        %v4662 = vpop.f32.mrb[0].mxu0
        %v4663 = vadd.f32 0.0, %v4662
        %v4664 = vpop.f32.mrb[0].mxu0
        %v4665 = vpop.f32.mrb[0].mxu0
        %v4666 = vadd.f32 0.0, %v4665
        %v4667 = vpop.f32.mrb[0].mxu0
        %4668 = vmatprep.mubr.bf16.mxu0 0
        %4669 = vmatmul.mubr.bf16.gmra.mrb[0].mxu0 %v4448
        %v4670 = vpop.f32.mrb[0].mxu0
        %v4671 = vadd.f32 0.0, %v4670
        %v4672 = vpop.f32.mrb[0].mxu0
        %v4673 = vpop.f32.mrb[0].mxu0
        %v4674 = vadd.f32 0.0, %v4673
        %v4675 = vpop.f32.mrb[0].mxu0
        %4676 = vmatprep.mubr.bf16.mxu0 0
        %4677 = vmatmul.mubr.bf16.gmra.mrb[0].mxu0 %v4449
        %v4678 = vpop.f32.mrb[0].mxu0
        %v4679 = vadd.f32 0.0, %v4678
        %v4680 = vpop.f32.mrb[0].mxu0
        %v4681 = vpop.f32.mrb[0].mxu0
        %v4682 = vadd.f32 0.0, %v4681
        %v4683 = vpop.f32.mrb[0].mxu0
        %4684 = vmatprep.mubr.bf16.mxu0 0
        %4685 = vmatmul.mubr.bf16.gmra.mrb[0].mxu0 %v4450
        %v4686 = vpop.f32.mrb[0].mxu0
        %v4687 = vadd.f32 0.0, %v4686
        %v4688 = vpop.f32.mrb[0].mxu0
        %v4689 = vpop.f32.mrb[0].mxu0
        %v4690 = vadd.f32 0.0, %v4689
        %v4691 = vpop.f32.mrb[0].mxu0
        %4692 = vmatprep.mubr.bf16.mxu0 0
        %4693 = vmatmul.mubr.bf16.gmra.mrb[0].mxu0 %v4451
        %v4694 = vpop.f32.mrb[0].mxu0
        %v4695 = vadd.f32 0.0, %v4694
        %v4696 = vpop.f32.mrb[0].mxu0
        %v4697 = vpop.f32.mrb[0].mxu0
        %v4698 = vadd.f32 0.0, %v4697
        %v4699 = vpop.f32.mrb[0].mxu0
        %4700 = vmatprep.mubr.bf16.mxu0 0
        %4701 = vmatmul.mubr.bf16.gmra.mrb[0].mxu0 %v4452
        %v4702 = vpop.f32.mrb[0].mxu0
        %v4703 = vadd.f32 0.0, %v4702
        %v4704 = vpop.f32.mrb[0].mxu0
        %v4705 = vpop.f32.mrb[0].mxu0
        %v4706 = vadd.f32 0.0, %v4705
        %v4707 = vpop.f32.mrb[0].mxu0
        %4708 = vmatprep.mubr.bf16.mxu0 0
        %4709 = vmatmul.mubr.bf16.gmra.mrb[0].mxu0 %v4453
        %v4710 = vpop.f32.mrb[0].mxu0
        %v4711 = vadd.f32 0.0, %v4710
        %v4712 = vpop.f32.mrb[0].mxu0
        %v4713 = vpop.f32.mrb[0].mxu0
        %v4714 = vadd.f32 0.0, %v4713
        %v4715 = vpop.f32.mrb[0].mxu0
        %4716 = vmatprep.mubr.bf16.mxu0 0
        %4717 = vmatmul.mubr.bf16.gmra.mrb[0].mxu0 %v4454
        %v4718 = vpop.f32.mrb[0].mxu0
        %v4719 = vadd.f32 0.0, %v4718
        %v4720 = vpop.f32.mrb[0].mxu0
        %v4721 = vpop.f32.mrb[0].mxu0
        %v4722 = vadd.f32 0.0, %v4721
        %v4723 = vpop.f32.mrb[0].mxu0
        %4724 = vmatprep.mubr.bf16.mxu0 0
        %4725 = vmatmul.mubr.bf16.gmra.mrb[0].mxu0 %v4455
        %v4726 = vpop.f32.mrb[0].mxu0
        %v4727 = vadd.f32 0.0, %v4726
        %v4728 = vpop.f32.mrb[0].mxu0
        %v4729 = vpop.f32.mrb[0].mxu0
        %v4730 = vadd.f32 0.0, %v4729
        %v4731 = vpop.f32.mrb[0].mxu0
        %4732 = vdwg.mxu0
        %v4733 = vadd.f32 %v4456, %v4591
        %v4734 = vadd.f32 %v4457, %v4594
        %v4735 = vadd.f32 %v4458, %v4599
        %v4736 = vadd.f32 %v4459, %v4602
        %v4737 = vadd.f32 %v4460, %v4607
        %v4738 = vadd.f32 %v4461, %v4610
        %v4739 = vadd.f32 %v4462, %v4615
        %v4740 = vadd.f32 %v4463, %v4618
        %v4741 = vadd.f32 %v4464, %v4623
        %v4742 = vadd.f32 %v4465, %v4626
        %v4743 = vadd.f32 %v4466, %v4631
        %v4744 = vadd.f32 %v4467, %v4634
        %v4745 = vadd.f32 %v4468, %v4639
        %v4746 = vadd.f32 %v4469, %v4642
        %v4747 = vadd.f32 %v4470, %v4647
        %v4748 = vadd.f32 %v4471, %v4650
        %v4749 = vadd.f32 %v4472, %v4655
        %v4750 = vadd.f32 %v4473, %v4658
        %v4751 = vadd.f32 %v4474, %v4663
        %v4752 = vadd.f32 %v4475, %v4666
        %v4753 = vadd.f32 %v4476, %v4671
        %v4754 = vadd.f32 %v4477, %v4674
        %v4755 = vadd.f32 %v4478, %v4679
        %v4756 = vadd.f32 %v4479, %v4682
        %v4757 = vadd.f32 %v4480, %v4687
        %v4758 = vadd.f32 %v4481, %v4690
        %v4759 = vadd.f32 %v4482, %v4695
        %v4760 = vadd.f32 %v4483, %v4698
        %v4761 = vadd.f32 %v4484, %v4703
        %v4762 = vadd.f32 %v4485, %v4706
        %v4763 = vadd.f32 %v4486, %v4711
        %v4764 = vadd.f32 %v4487, %v4714
        %v4765 = vadd.f32 %v4488, %v4719
        %v4766 = vadd.f32 %v4489, %v4722
        %v4767 = vadd.f32 %v4490, %v4727
        %v4768 = vadd.f32 %v4491, %v4730
        %4769 = vst [vmem:[#allocation2] sm:$0xff] %v4733
        %4770 = vst [vmem:[#allocation2 + $0x8] sm:$0xff] %v4734
        %4771 = vst [vmem:[#allocation2 + $0x10] sm:$0xff] %v4735
        %4772 = vst [vmem:[#allocation2 + $0x18] sm:$0xff] %v4736
        %4773 = vst [vmem:[#allocation2 + $0x20] sm:$0xff] %v4737
        %4774 = vst [vmem:[#allocation2 + $0x28] sm:$0xff] %v4738
        %4775 = vst [vmem:[#allocation2 + $0x30] sm:$0xff] %v4739
        %4776 = vst [vmem:[#allocation2 + $0x38] sm:$0xff] %v4740
        %4777 = vst [vmem:[#allocation2 + $0x40] sm:$0xff] %v4741
        %4778 = vst [vmem:[#allocation2 + $0x48] sm:$0xff] %v4742
        %4779 = vst [vmem:[#allocation2 + $0x50] sm:$0xff] %v4743
        %4780 = vst [vmem:[#allocation2 + $0x58] sm:$0xff] %v4744
        %4781 = vst [vmem:[#allocation2 + $0x60] sm:$0xff] %v4745
        %4782 = vst [vmem:[#allocation2 + $0x68] sm:$0xff] %v4746
        %4783 = vst [vmem:[#allocation2 + $0x70] sm:$0xff] %v4747
        %4784 = vst [vmem:[#allocation2 + $0x78] sm:$0xff] %v4748
        %4785 = vst [vmem:[#allocation2 + $0x80] sm:$0xff] %v4749
        %4786 = vst [vmem:[#allocation2 + $0x88] sm:$0xff] %v4750
        %4787 = vst [vmem:[#allocation2 + $0x90] sm:$0xff] %v4751
        %4788 = vst [vmem:[#allocation2 + $0x98] sm:$0xff] %v4752
        %4789 = vst [vmem:[#allocation2 + $0xa0] sm:$0xff] %v4753
        %4790 = vst [vmem:[#allocation2 + $0xa8] sm:$0xff] %v4754
        %4791 = vst [vmem:[#allocation2 + $0xb0] sm:$0xff] %v4755
        %4792 = vst [vmem:[#allocation2 + $0xb8] sm:$0xff] %v4756
        %4793 = vst [vmem:[#allocation2 + $0xc0] sm:$0xff] %v4757
        %4794 = vst [vmem:[#allocation2 + $0xc8] sm:$0xff] %v4758
        %4795 = vst [vmem:[#allocation2 + $0xd0] sm:$0xff] %v4759
        %4796 = vst [vmem:[#allocation2 + $0xd8] sm:$0xff] %v4760
        %4797 = vst [vmem:[#allocation2 + $0xe0] sm:$0xff] %v4761
        %4798 = vst [vmem:[#allocation2 + $0xe8] sm:$0xff] %v4762
        %4799 = vst [vmem:[#allocation2 + $0xf0] sm:$0xff] %v4763
        %4800 = vst [vmem:[#allocation2 + $0xf8] sm:$0xff] %v4764
        %4801 = vst [vmem:[#allocation2 + $0x100] sm:$0xff] %v4765
        %4802 = vst [vmem:[#allocation2 + $0x108] sm:$0xff] %v4766
        %4803 = vst [vmem:[#allocation2 + $0x110] sm:$0xff] %v4767
        %4804 = vst [vmem:[#allocation2 + $0x118] sm:$0xff] %v4768
        %v4805 = vld [vmem:[#allocation3 + $0x6] sm:$0xff]
        %v4806 = vld [vmem:[#allocation3 + $0xe] sm:$0xff]
        %v4807 = vld [vmem:[#allocation3 + $0x16] sm:$0xff]
        %v4808 = vld [vmem:[#allocation3 + $0x1e] sm:$0xff]
        %v4809 = vld [vmem:[#allocation3 + $0x26] sm:$0xff]
        %v4810 = vld [vmem:[#allocation3 + $0x2e] sm:$0xff]
        %v4811 = vld [vmem:[#allocation3 + $0x36] sm:$0xff]
        %v4812 = vld [vmem:[#allocation3 + $0x3e] sm:$0xff]
        %v4813 = vld [vmem:[#allocation3 + $0x46] sm:$0xff]
        %v4814 = vld [vmem:[#allocation3 + $0x4e] sm:$0xff]
        %v4815 = vld [vmem:[#allocation3 + $0x56] sm:$0xff]
        %v4816 = vld [vmem:[#allocation3 + $0x5e] sm:$0xff]
        %v4817 = vld [vmem:[#allocation3 + $0x66] sm:$0xff]
        %v4818 = vld [vmem:[#allocation3 + $0x6e] sm:$0xff]
        %v4819 = vld [vmem:[#allocation3 + $0x76] sm:$0xff]
        %v4820 = vld [vmem:[#allocation3 + $0x7e] sm:$0xff]
        %v4821 = vld [vmem:[#allocation3 + $0x86] sm:$0xff]
        %v4822 = vld [vmem:[#allocation3 + $0x8e] sm:$0xff]
        %v4823 = vld [vmem:[#allocation3 + $0x96] sm:$0xff]
        %v4824 = vld [vmem:[#allocation3 + $0x9e] sm:$0xff]
        %v4825 = vld [vmem:[#allocation3 + $0xa6] sm:$0xff]
        %v4826 = vld [vmem:[#allocation3 + $0xae] sm:$0xff]
        %v4827 = vld [vmem:[#allocation3 + $0xb6] sm:$0xff]
        %v4828 = vld [vmem:[#allocation3 + $0xbe] sm:$0xff]
        %v4829 = vld [vmem:[#allocation3 + $0xc6] sm:$0xff]
        %v4830 = vld [vmem:[#allocation3 + $0xce] sm:$0xff]
        %v4831 = vld [vmem:[#allocation3 + $0xd6] sm:$0xff]
        %v4832 = vld [vmem:[#allocation3 + $0xde] sm:$0xff]
        %v4833 = vld [vmem:[#allocation3 + $0xe6] sm:$0xff]
        %v4834 = vld [vmem:[#allocation3 + $0xee] sm:$0xff]
        %v4835 = vld [vmem:[#allocation3 + $0xf6] sm:$0xff]
        %v4836 = vld [vmem:[#allocation3 + $0xfe] sm:$0xff]
        %v4837 = vld [vmem:[#allocation3 + $0x106] sm:$0xff]
        %v4838 = vld [vmem:[#allocation3 + $0x10e] sm:$0xff]
        %v4839 = vld [vmem:[#allocation3 + $0x116] sm:$0xff]
        %v4840 = vld [vmem:[#allocation3 + $0x11e] sm:$0xff]
        %v4841 = vpack.c.bf16 %v4806, %v4805
        %v4842 = vpack.c.bf16 %v4808, %v4807
        %v4843 = vpack.c.bf16 %v4810, %v4809
        %v4844 = vpack.c.bf16 %v4812, %v4811
        %v4845 = vpack.c.bf16 %v4814, %v4813
        %v4846 = vpack.c.bf16 %v4816, %v4815
        %v4847 = vpack.c.bf16 %v4818, %v4817
        %v4848 = vpack.c.bf16 %v4820, %v4819
        %v4849 = vpack.c.bf16 %v4822, %v4821
        %v4850 = vpack.c.bf16 %v4824, %v4823
        %v4851 = vpack.c.bf16 %v4826, %v4825
        %v4852 = vpack.c.bf16 %v4828, %v4827
        %v4853 = vpack.c.bf16 %v4830, %v4829
        %v4854 = vpack.c.bf16 %v4832, %v4831
        %v4855 = vpack.c.bf16 %v4834, %v4833
        %v4856 = vpack.c.bf16 %v4836, %v4835
        %v4857 = vpack.c.bf16 %v4838, %v4837
        %v4858 = vpack.c.bf16 %v4840, %v4839
        %v4859 = vld [vmem:[#allocation2] sm:$0xff]
        %v4860 = vld [vmem:[#allocation2 + $0x8] sm:$0xff]
        %v4861 = vld [vmem:[#allocation2 + $0x10] sm:$0xff]
        %v4862 = vld [vmem:[#allocation2 + $0x18] sm:$0xff]
        %v4863 = vld [vmem:[#allocation2 + $0x20] sm:$0xff]
        %v4864 = vld [vmem:[#allocation2 + $0x28] sm:$0xff]
        %v4865 = vld [vmem:[#allocation2 + $0x30] sm:$0xff]
        %v4866 = vld [vmem:[#allocation2 + $0x38] sm:$0xff]
        %v4867 = vld [vmem:[#allocation2 + $0x40] sm:$0xff]
        %v4868 = vld [vmem:[#allocation2 + $0x48] sm:$0xff]
        %v4869 = vld [vmem:[#allocation2 + $0x50] sm:$0xff]
        %v4870 = vld [vmem:[#allocation2 + $0x58] sm:$0xff]
        %v4871 = vld [vmem:[#allocation2 + $0x60] sm:$0xff]
        %v4872 = vld [vmem:[#allocation2 + $0x68] sm:$0xff]
        %v4873 = vld [vmem:[#allocation2 + $0x70] sm:$0xff]
        %v4874 = vld [vmem:[#allocation2 + $0x78] sm:$0xff]
        %v4875 = vld [vmem:[#allocation2 + $0x80] sm:$0xff]
        %v4876 = vld [vmem:[#allocation2 + $0x88] sm:$0xff]
        %v4877 = vld [vmem:[#allocation2 + $0x90] sm:$0xff]
        %v4878 = vld [vmem:[#allocation2 + $0x98] sm:$0xff]
        %v4879 = vld [vmem:[#allocation2 + $0xa0] sm:$0xff]
        %v4880 = vld [vmem:[#allocation2 + $0xa8] sm:$0xff]
        %v4881 = vld [vmem:[#allocation2 + $0xb0] sm:$0xff]
        %v4882 = vld [vmem:[#allocation2 + $0xb8] sm:$0xff]
        %v4883 = vld [vmem:[#allocation2 + $0xc0] sm:$0xff]
        %v4884 = vld [vmem:[#allocation2 + $0xc8] sm:$0xff]
        %v4885 = vld [vmem:[#allocation2 + $0xd0] sm:$0xff]
        %v4886 = vld [vmem:[#allocation2 + $0xd8] sm:$0xff]
        %v4887 = vld [vmem:[#allocation2 + $0xe0] sm:$0xff]
        %v4888 = vld [vmem:[#allocation2 + $0xe8] sm:$0xff]
        %v4889 = vld [vmem:[#allocation2 + $0xf0] sm:$0xff]
        %v4890 = vld [vmem:[#allocation2 + $0xf8] sm:$0xff]
        %v4891 = vld [vmem:[#allocation2 + $0x100] sm:$0xff]
        %v4892 = vld [vmem:[#allocation2 + $0x108] sm:$0xff]
        %v4893 = vld [vmem:[#allocation2 + $0x110] sm:$0xff]
        %v4894 = vld [vmem:[#allocation2 + $0x118] sm:$0xff]
        %s4895 = scalar_lea.vmem %s3, 64
        %v4896 = vld [vmem:[%s4895] sm:$0xf]
        %v4897 = vld [vmem:[%s4895 + $0x4] sm:$0xf]
        %v4898 = vld [vmem:[%s4895 + $0x8] sm:$0xf]
        %v4899 = vld [vmem:[%s4895 + $0xc] sm:$0xf]
        %v4900 = vld [vmem:[%s4895 + $0x10] sm:$0xf]
        %v4901 = vld [vmem:[%s4895 + $0x14] sm:$0xf]
        %v4902 = vld [vmem:[%s4895 + $0x18] sm:$0xf]
        %v4903 = vld [vmem:[%s4895 + $0x1c] sm:$0xf]
        %v4904 = vld [vmem:[%s4895 + $0x20] sm:$0xf]
        %v4905 = vld [vmem:[%s4895 + $0x24] sm:$0xf]
        %v4906 = vld [vmem:[%s4895 + $0x28] sm:$0xf]
        %v4907 = vld [vmem:[%s4895 + $0x2c] sm:$0xf]
        %v4908 = vld [vmem:[%s4895 + $0x30] sm:$0xf]
        %v4909 = vld [vmem:[%s4895 + $0x34] sm:$0xf]
        %v4910 = vld [vmem:[%s4895 + $0x38] sm:$0xf]
        %v4911 = vld [vmem:[%s4895 + $0x3c] sm:$0xf]
        %v4928 = vunpack.c.l.b16 %v4896
        %v4929 = vunpack.c.l.b16 %v4897
        %v4930 = vunpack.c.l.b16 %v4898
        %v4931 = vunpack.c.l.b16 %v4899
        %v4932 = vunpack.c.l.b16 %v4900
        %v4933 = vunpack.c.l.b16 %v4901
        %v4934 = vunpack.c.l.b16 %v4902
        %v4935 = vunpack.c.l.b16 %v4903
        %v4936 = vunpack.c.l.b16 %v4904
        %v4937 = vunpack.c.l.b16 %v4905
        %v4938 = vunpack.c.l.b16 %v4906
        %v4939 = vunpack.c.l.b16 %v4907
        %v4940 = vunpack.c.l.b16 %v4908
        %v4941 = vunpack.c.l.b16 %v4909
        %v4942 = vunpack.c.l.b16 %v4910
        %v4943 = vunpack.c.l.b16 %v4911
        %v4944 = vpack.c.b16 %v4929, %v4928
        %v4945 = vpack.c.b16 %v4931, %v4930
        %v4946 = vpack.c.b16 %v4933, %v4932
        %v4947 = vpack.c.b16 %v4935, %v4934
        %v4948 = vpack.c.b16 %v4937, %v4936
        %v4949 = vpack.c.b16 %v4939, %v4938
        %v4950 = vpack.c.b16 %v4941, %v4940
        %v4951 = vpack.c.b16 %v4943, %v4942
        %4960 = vmatprep.subr.bf16.mxu0 0
        %4961 = vmatpush1.bf16.msra.mxu0 %v4944
        %4962 = vmatprep.subr.bf16.mxu0 0
        %4963 = vmatpush1.bf16.msra.mxu0 %v4945
        %4964 = vmatprep.subr.bf16.mxu0 0
        %4965 = vmatpush1.bf16.msra.mxu0 %v4946
        %4966 = vmatprep.subr.bf16.mxu0 0
        %4967 = vmatpush1.bf16.msra.mxu0 %v4947
        %4968 = vmatprep.subr.bf16.mxu0 0
        %4969 = vmatpush1.bf16.msra.mxu0 %v4948
        %4970 = vmatprep.subr.bf16.mxu0 0
        %4971 = vmatpush1.bf16.msra.mxu0 %v4949
        %4972 = vmatprep.subr.bf16.mxu0 0
        %4973 = vmatpush1.bf16.msra.mxu0 %v4950
        %4974 = vmatprep.subr.bf16.mxu0 0
        %4975 = vmatpush1.bf16.msra.mxu0 %v4951
        %4976 = vmatprep.subr.bf16.mxu0 0
        %4977 = vmatpush1.bf16.msra.mxu0 0
        %4978 = vmatprep.subr.bf16.mxu0 0
        %4979 = vmatpush1.bf16.msra.mxu0 0
        %4980 = vmatprep.subr.bf16.mxu0 0
        %4981 = vmatpush1.bf16.msra.mxu0 0
        %4982 = vmatprep.subr.bf16.mxu0 0
        %4983 = vmatpush1.bf16.msra.mxu0 0
        %4984 = vmatprep.subr.bf16.mxu0 0
        %4985 = vmatpush1.bf16.msra.mxu0 0
        %4986 = vmatprep.subr.bf16.mxu0 0
        %4987 = vmatpush1.bf16.msra.mxu0 0
        %4988 = vmatprep.subr.bf16.mxu0 0
        %4989 = vmatpush1.bf16.msra.mxu0 0
        %4990 = vmatprep.subr.bf16.mxu0 0
        %4991 = vmatpush1.bf16.msra.mxu0 0
        %4992 = vmatprep.mubr.bf16.mxu0 0
        %4993 = vmatmul.mubr.bf16.gmra.mrb[0].mxu0 %v4841
        %v4994 = vpop.f32.mrb[0].mxu0
        %v4995 = vadd.f32 0.0, %v4994
        %v4996 = vpop.f32.mrb[0].mxu0
        %v4997 = vpop.f32.mrb[0].mxu0
        %v4998 = vadd.f32 0.0, %v4997
        %v4999 = vpop.f32.mrb[0].mxu0
        %5000 = vmatprep.mubr.bf16.mxu0 0
        %5001 = vmatmul.mubr.bf16.gmra.mrb[0].mxu0 %v4842
        %v5002 = vpop.f32.mrb[0].mxu0
        %v5003 = vadd.f32 0.0, %v5002
        %v5004 = vpop.f32.mrb[0].mxu0
        %v5005 = vpop.f32.mrb[0].mxu0
        %v5006 = vadd.f32 0.0, %v5005
        %v5007 = vpop.f32.mrb[0].mxu0
        %5008 = vmatprep.mubr.bf16.mxu0 0
        %5009 = vmatmul.mubr.bf16.gmra.mrb[0].mxu0 %v4843
        %v5010 = vpop.f32.mrb[0].mxu0
        %v5011 = vadd.f32 0.0, %v5010
        %v5012 = vpop.f32.mrb[0].mxu0
        %v5013 = vpop.f32.mrb[0].mxu0
        %v5014 = vadd.f32 0.0, %v5013
        %v5015 = vpop.f32.mrb[0].mxu0
        %5016 = vmatprep.mubr.bf16.mxu0 0
        %5017 = vmatmul.mubr.bf16.gmra.mrb[0].mxu0 %v4844
        %v5018 = vpop.f32.mrb[0].mxu0
        %v5019 = vadd.f32 0.0, %v5018
        %v5020 = vpop.f32.mrb[0].mxu0
        %v5021 = vpop.f32.mrb[0].mxu0
        %v5022 = vadd.f32 0.0, %v5021
        %v5023 = vpop.f32.mrb[0].mxu0
        %5024 = vmatprep.mubr.bf16.mxu0 0
        %5025 = vmatmul.mubr.bf16.gmra.mrb[0].mxu0 %v4845
        %v5026 = vpop.f32.mrb[0].mxu0
        %v5027 = vadd.f32 0.0, %v5026
        %v5028 = vpop.f32.mrb[0].mxu0
        %v5029 = vpop.f32.mrb[0].mxu0
        %v5030 = vadd.f32 0.0, %v5029
        %v5031 = vpop.f32.mrb[0].mxu0
        %5032 = vmatprep.mubr.bf16.mxu0 0
        %5033 = vmatmul.mubr.bf16.gmra.mrb[0].mxu0 %v4846
        %v5034 = vpop.f32.mrb[0].mxu0
        %v5035 = vadd.f32 0.0, %v5034
        %v5036 = vpop.f32.mrb[0].mxu0
        %v5037 = vpop.f32.mrb[0].mxu0
        %v5038 = vadd.f32 0.0, %v5037
        %v5039 = vpop.f32.mrb[0].mxu0
        %5040 = vmatprep.mubr.bf16.mxu0 0
        %5041 = vmatmul.mubr.bf16.gmra.mrb[0].mxu0 %v4847
        %v5042 = vpop.f32.mrb[0].mxu0
        %v5043 = vadd.f32 0.0, %v5042
        %v5044 = vpop.f32.mrb[0].mxu0
        %v5045 = vpop.f32.mrb[0].mxu0
        %v5046 = vadd.f32 0.0, %v5045
        %v5047 = vpop.f32.mrb[0].mxu0
        %5048 = vmatprep.mubr.bf16.mxu0 0
        %5049 = vmatmul.mubr.bf16.gmra.mrb[0].mxu0 %v4848
        %v5050 = vpop.f32.mrb[0].mxu0
        %v5051 = vadd.f32 0.0, %v5050
        %v5052 = vpop.f32.mrb[0].mxu0
        %v5053 = vpop.f32.mrb[0].mxu0
        %v5054 = vadd.f32 0.0, %v5053
        %v5055 = vpop.f32.mrb[0].mxu0
        %5056 = vmatprep.mubr.bf16.mxu0 0
        %5057 = vmatmul.mubr.bf16.gmra.mrb[0].mxu0 %v4849
        %v5058 = vpop.f32.mrb[0].mxu0
        %v5059 = vadd.f32 0.0, %v5058
        %v5060 = vpop.f32.mrb[0].mxu0
        %v5061 = vpop.f32.mrb[0].mxu0
        %v5062 = vadd.f32 0.0, %v5061
        %v5063 = vpop.f32.mrb[0].mxu0
        %5064 = vmatprep.mubr.bf16.mxu0 0
        %5065 = vmatmul.mubr.bf16.gmra.mrb[0].mxu0 %v4850
        %v5066 = vpop.f32.mrb[0].mxu0
        %v5067 = vadd.f32 0.0, %v5066
        %v5068 = vpop.f32.mrb[0].mxu0
        %v5069 = vpop.f32.mrb[0].mxu0
        %v5070 = vadd.f32 0.0, %v5069
        %v5071 = vpop.f32.mrb[0].mxu0
        %5072 = vmatprep.mubr.bf16.mxu0 0
        %5073 = vmatmul.mubr.bf16.gmra.mrb[0].mxu0 %v4851
        %v5074 = vpop.f32.mrb[0].mxu0
        %v5075 = vadd.f32 0.0, %v5074
        %v5076 = vpop.f32.mrb[0].mxu0
        %v5077 = vpop.f32.mrb[0].mxu0
        %v5078 = vadd.f32 0.0, %v5077
        %v5079 = vpop.f32.mrb[0].mxu0
        %5080 = vmatprep.mubr.bf16.mxu0 0
        %5081 = vmatmul.mubr.bf16.gmra.mrb[0].mxu0 %v4852
        %v5082 = vpop.f32.mrb[0].mxu0
        %v5083 = vadd.f32 0.0, %v5082
        %v5084 = vpop.f32.mrb[0].mxu0
        %v5085 = vpop.f32.mrb[0].mxu0
        %v5086 = vadd.f32 0.0, %v5085
        %v5087 = vpop.f32.mrb[0].mxu0
        %5088 = vmatprep.mubr.bf16.mxu0 0
        %5089 = vmatmul.mubr.bf16.gmra.mrb[0].mxu0 %v4853
        %v5090 = vpop.f32.mrb[0].mxu0
        %v5091 = vadd.f32 0.0, %v5090
        %v5092 = vpop.f32.mrb[0].mxu0
        %v5093 = vpop.f32.mrb[0].mxu0
        %v5094 = vadd.f32 0.0, %v5093
        %v5095 = vpop.f32.mrb[0].mxu0
        %5096 = vmatprep.mubr.bf16.mxu0 0
        %5097 = vmatmul.mubr.bf16.gmra.mrb[0].mxu0 %v4854
        %v5098 = vpop.f32.mrb[0].mxu0
        %v5099 = vadd.f32 0.0, %v5098
        %v5100 = vpop.f32.mrb[0].mxu0
        %v5101 = vpop.f32.mrb[0].mxu0
        %v5102 = vadd.f32 0.0, %v5101
        %v5103 = vpop.f32.mrb[0].mxu0
        %5104 = vmatprep.mubr.bf16.mxu0 0
        %5105 = vmatmul.mubr.bf16.gmra.mrb[0].mxu0 %v4855
        %v5106 = vpop.f32.mrb[0].mxu0
        %v5107 = vadd.f32 0.0, %v5106
        %v5108 = vpop.f32.mrb[0].mxu0
        %v5109 = vpop.f32.mrb[0].mxu0
        %v5110 = vadd.f32 0.0, %v5109
        %v5111 = vpop.f32.mrb[0].mxu0
        %5112 = vmatprep.mubr.bf16.mxu0 0
        %5113 = vmatmul.mubr.bf16.gmra.mrb[0].mxu0 %v4856
        %v5114 = vpop.f32.mrb[0].mxu0
        %v5115 = vadd.f32 0.0, %v5114
        %v5116 = vpop.f32.mrb[0].mxu0
        %v5117 = vpop.f32.mrb[0].mxu0
        %v5118 = vadd.f32 0.0, %v5117
        %v5119 = vpop.f32.mrb[0].mxu0
        %5120 = vmatprep.mubr.bf16.mxu0 0
        %5121 = vmatmul.mubr.bf16.gmra.mrb[0].mxu0 %v4857
        %v5122 = vpop.f32.mrb[0].mxu0
        %v5123 = vadd.f32 0.0, %v5122
        %v5124 = vpop.f32.mrb[0].mxu0
        %v5125 = vpop.f32.mrb[0].mxu0
        %v5126 = vadd.f32 0.0, %v5125
        %v5127 = vpop.f32.mrb[0].mxu0
        %5128 = vmatprep.mubr.bf16.mxu0 0
        %5129 = vmatmul.mubr.bf16.gmra.mrb[0].mxu0 %v4858
        %v5130 = vpop.f32.mrb[0].mxu0
        %v5131 = vadd.f32 0.0, %v5130
        %v5132 = vpop.f32.mrb[0].mxu0
        %v5133 = vpop.f32.mrb[0].mxu0
        %v5134 = vadd.f32 0.0, %v5133
        %v5135 = vpop.f32.mrb[0].mxu0
        %5136 = vdwg.mxu0
        %v5137 = vadd.f32 %v4859, %v4995
        %v5138 = vadd.f32 %v4860, %v4998
        %v5139 = vadd.f32 %v4861, %v5003
        %v5140 = vadd.f32 %v4862, %v5006
        %v5141 = vadd.f32 %v4863, %v5011
        %v5142 = vadd.f32 %v4864, %v5014
        %v5143 = vadd.f32 %v4865, %v5019
        %v5144 = vadd.f32 %v4866, %v5022
        %v5145 = vadd.f32 %v4867, %v5027
        %v5146 = vadd.f32 %v4868, %v5030
        %v5147 = vadd.f32 %v4869, %v5035
        %v5148 = vadd.f32 %v4870, %v5038
        %v5149 = vadd.f32 %v4871, %v5043
        %v5150 = vadd.f32 %v4872, %v5046
        %v5151 = vadd.f32 %v4873, %v5051
        %v5152 = vadd.f32 %v4874, %v5054
        %v5153 = vadd.f32 %v4875, %v5059
        %v5154 = vadd.f32 %v4876, %v5062
        %v5155 = vadd.f32 %v4877, %v5067
        %v5156 = vadd.f32 %v4878, %v5070
        %v5157 = vadd.f32 %v4879, %v5075
        %v5158 = vadd.f32 %v4880, %v5078
        %v5159 = vadd.f32 %v4881, %v5083
        %v5160 = vadd.f32 %v4882, %v5086
        %v5161 = vadd.f32 %v4883, %v5091
        %v5162 = vadd.f32 %v4884, %v5094
        %v5163 = vadd.f32 %v4885, %v5099
        %v5164 = vadd.f32 %v4886, %v5102
        %v5165 = vadd.f32 %v4887, %v5107
        %v5166 = vadd.f32 %v4888, %v5110
        %v5167 = vadd.f32 %v4889, %v5115
        %v5168 = vadd.f32 %v4890, %v5118
        %v5169 = vadd.f32 %v4891, %v5123
        %v5170 = vadd.f32 %v4892, %v5126
        %v5171 = vadd.f32 %v4893, %v5131
        %v5172 = vadd.f32 %v4894, %v5134
        %5173 = vst [vmem:[#allocation2] sm:$0xff] %v5137
        %5174 = vst [vmem:[#allocation2 + $0x8] sm:$0xff] %v5138
        %5175 = vst [vmem:[#allocation2 + $0x10] sm:$0xff] %v5139
        %5176 = vst [vmem:[#allocation2 + $0x18] sm:$0xff] %v5140
        %5177 = vst [vmem:[#allocation2 + $0x20] sm:$0xff] %v5141
        %5178 = vst [vmem:[#allocation2 + $0x28] sm:$0xff] %v5142
        %5179 = vst [vmem:[#allocation2 + $0x30] sm:$0xff] %v5143
        %5180 = vst [vmem:[#allocation2 + $0x38] sm:$0xff] %v5144
        %5181 = vst [vmem:[#allocation2 + $0x40] sm:$0xff] %v5145
        %5182 = vst [vmem:[#allocation2 + $0x48] sm:$0xff] %v5146
        %5183 = vst [vmem:[#allocation2 + $0x50] sm:$0xff] %v5147
        %5184 = vst [vmem:[#allocation2 + $0x58] sm:$0xff] %v5148
        %5185 = vst [vmem:[#allocation2 + $0x60] sm:$0xff] %v5149
        %5186 = vst [vmem:[#allocation2 + $0x68] sm:$0xff] %v5150
        %5187 = vst [vmem:[#allocation2 + $0x70] sm:$0xff] %v5151
        %5188 = vst [vmem:[#allocation2 + $0x78] sm:$0xff] %v5152
        %5189 = vst [vmem:[#allocation2 + $0x80] sm:$0xff] %v5153
        %5190 = vst [vmem:[#allocation2 + $0x88] sm:$0xff] %v5154
        %5191 = vst [vmem:[#allocation2 + $0x90] sm:$0xff] %v5155
        %5192 = vst [vmem:[#allocation2 + $0x98] sm:$0xff] %v5156
        %5193 = vst [vmem:[#allocation2 + $0xa0] sm:$0xff] %v5157
        %5194 = vst [vmem:[#allocation2 + $0xa8] sm:$0xff] %v5158
        %5195 = vst [vmem:[#allocation2 + $0xb0] sm:$0xff] %v5159
        %5196 = vst [vmem:[#allocation2 + $0xb8] sm:$0xff] %v5160
        %5197 = vst [vmem:[#allocation2 + $0xc0] sm:$0xff] %v5161
        %5198 = vst [vmem:[#allocation2 + $0xc8] sm:$0xff] %v5162
        %5199 = vst [vmem:[#allocation2 + $0xd0] sm:$0xff] %v5163
        %5200 = vst [vmem:[#allocation2 + $0xd8] sm:$0xff] %v5164
        %5201 = vst [vmem:[#allocation2 + $0xe0] sm:$0xff] %v5165
        %5202 = vst [vmem:[#allocation2 + $0xe8] sm:$0xff] %v5166
        %5203 = vst [vmem:[#allocation2 + $0xf0] sm:$0xff] %v5167
        %5204 = vst [vmem:[#allocation2 + $0xf8] sm:$0xff] %v5168
        %5205 = vst [vmem:[#allocation2 + $0x100] sm:$0xff] %v5169
        %5206 = vst [vmem:[#allocation2 + $0x108] sm:$0xff] %v5170
        %5207 = vst [vmem:[#allocation2 + $0x110] sm:$0xff] %v5171
        %5208 = vst [vmem:[#allocation2 + $0x118] sm:$0xff] %v5172
        %v5209 = vld [vmem:[#allocation3 + $0x7] sm:$0xff]
        %v5210 = vld [vmem:[#allocation3 + $0xf] sm:$0xff]
        %v5211 = vld [vmem:[#allocation3 + $0x17] sm:$0xff]
        %v5212 = vld [vmem:[#allocation3 + $0x1f] sm:$0xff]
        %v5213 = vld [vmem:[#allocation3 + $0x27] sm:$0xff]
        %v5214 = vld [vmem:[#allocation3 + $0x2f] sm:$0xff]
        %v5215 = vld [vmem:[#allocation3 + $0x37] sm:$0xff]
        %v5216 = vld [vmem:[#allocation3 + $0x3f] sm:$0xff]
        %v5217 = vld [vmem:[#allocation3 + $0x47] sm:$0xff]
        %v5218 = vld [vmem:[#allocation3 + $0x4f] sm:$0xff]
        %v5219 = vld [vmem:[#allocation3 + $0x57] sm:$0xff]
        %v5220 = vld [vmem:[#allocation3 + $0x5f] sm:$0xff]
        %v5221 = vld [vmem:[#allocation3 + $0x67] sm:$0xff]
        %v5222 = vld [vmem:[#allocation3 + $0x6f] sm:$0xff]
        %v5223 = vld [vmem:[#allocation3 + $0x77] sm:$0xff]
        %v5224 = vld [vmem:[#allocation3 + $0x7f] sm:$0xff]
        %v5225 = vld [vmem:[#allocation3 + $0x87] sm:$0xff]
        %v5226 = vld [vmem:[#allocation3 + $0x8f] sm:$0xff]
        %v5227 = vld [vmem:[#allocation3 + $0x97] sm:$0xff]
        %v5228 = vld [vmem:[#allocation3 + $0x9f] sm:$0xff]
        %v5229 = vld [vmem:[#allocation3 + $0xa7] sm:$0xff]
        %v5230 = vld [vmem:[#allocation3 + $0xaf] sm:$0xff]
        %v5231 = vld [vmem:[#allocation3 + $0xb7] sm:$0xff]
        %v5232 = vld [vmem:[#allocation3 + $0xbf] sm:$0xff]
        %v5233 = vld [vmem:[#allocation3 + $0xc7] sm:$0xff]
        %v5234 = vld [vmem:[#allocation3 + $0xcf] sm:$0xff]
        %v5235 = vld [vmem:[#allocation3 + $0xd7] sm:$0xff]
        %v5236 = vld [vmem:[#allocation3 + $0xdf] sm:$0xff]
        %v5237 = vld [vmem:[#allocation3 + $0xe7] sm:$0xff]
        %v5238 = vld [vmem:[#allocation3 + $0xef] sm:$0xff]
        %v5239 = vld [vmem:[#allocation3 + $0xf7] sm:$0xff]
        %v5240 = vld [vmem:[#allocation3 + $0xff] sm:$0xff]
        %v5241 = vld [vmem:[#allocation3 + $0x107] sm:$0xff]
        %v5242 = vld [vmem:[#allocation3 + $0x10f] sm:$0xff]
        %v5243 = vld [vmem:[#allocation3 + $0x117] sm:$0xff]
        %v5244 = vld [vmem:[#allocation3 + $0x11f] sm:$0xff]
        %v5245 = vpack.c.bf16 %v5210, %v5209
        %v5246 = vpack.c.bf16 %v5212, %v5211
        %v5247 = vpack.c.bf16 %v5214, %v5213
        %v5248 = vpack.c.bf16 %v5216, %v5215
        %v5249 = vpack.c.bf16 %v5218, %v5217
        %v5250 = vpack.c.bf16 %v5220, %v5219
        %v5251 = vpack.c.bf16 %v5222, %v5221
        %v5252 = vpack.c.bf16 %v5224, %v5223
        %v5253 = vpack.c.bf16 %v5226, %v5225
        %v5254 = vpack.c.bf16 %v5228, %v5227
        %v5255 = vpack.c.bf16 %v5230, %v5229
        %v5256 = vpack.c.bf16 %v5232, %v5231
        %v5257 = vpack.c.bf16 %v5234, %v5233
        %v5258 = vpack.c.bf16 %v5236, %v5235
        %v5259 = vpack.c.bf16 %v5238, %v5237
        %v5260 = vpack.c.bf16 %v5240, %v5239
        %v5261 = vpack.c.bf16 %v5242, %v5241
        %v5262 = vpack.c.bf16 %v5244, %v5243
        %v5263 = vld [vmem:[#allocation2] sm:$0xff]
        %v5264 = vld [vmem:[#allocation2 + $0x8] sm:$0xff]
        %v5265 = vld [vmem:[#allocation2 + $0x10] sm:$0xff]
        %v5266 = vld [vmem:[#allocation2 + $0x18] sm:$0xff]
        %v5267 = vld [vmem:[#allocation2 + $0x20] sm:$0xff]
        %v5268 = vld [vmem:[#allocation2 + $0x28] sm:$0xff]
        %v5269 = vld [vmem:[#allocation2 + $0x30] sm:$0xff]
        %v5270 = vld [vmem:[#allocation2 + $0x38] sm:$0xff]
        %v5271 = vld [vmem:[#allocation2 + $0x40] sm:$0xff]
        %v5272 = vld [vmem:[#allocation2 + $0x48] sm:$0xff]
        %v5273 = vld [vmem:[#allocation2 + $0x50] sm:$0xff]
        %v5274 = vld [vmem:[#allocation2 + $0x58] sm:$0xff]
        %v5275 = vld [vmem:[#allocation2 + $0x60] sm:$0xff]
        %v5276 = vld [vmem:[#allocation2 + $0x68] sm:$0xff]
        %v5277 = vld [vmem:[#allocation2 + $0x70] sm:$0xff]
        %v5278 = vld [vmem:[#allocation2 + $0x78] sm:$0xff]
        %v5279 = vld [vmem:[#allocation2 + $0x80] sm:$0xff]
        %v5280 = vld [vmem:[#allocation2 + $0x88] sm:$0xff]
        %v5281 = vld [vmem:[#allocation2 + $0x90] sm:$0xff]
        %v5282 = vld [vmem:[#allocation2 + $0x98] sm:$0xff]
        %v5283 = vld [vmem:[#allocation2 + $0xa0] sm:$0xff]
        %v5284 = vld [vmem:[#allocation2 + $0xa8] sm:$0xff]
        %v5285 = vld [vmem:[#allocation2 + $0xb0] sm:$0xff]
        %v5286 = vld [vmem:[#allocation2 + $0xb8] sm:$0xff]
        %v5287 = vld [vmem:[#allocation2 + $0xc0] sm:$0xff]
        %v5288 = vld [vmem:[#allocation2 + $0xc8] sm:$0xff]
        %v5289 = vld [vmem:[#allocation2 + $0xd0] sm:$0xff]
        %v5290 = vld [vmem:[#allocation2 + $0xd8] sm:$0xff]
        %v5291 = vld [vmem:[#allocation2 + $0xe0] sm:$0xff]
        %v5292 = vld [vmem:[#allocation2 + $0xe8] sm:$0xff]
        %v5293 = vld [vmem:[#allocation2 + $0xf0] sm:$0xff]
        %v5294 = vld [vmem:[#allocation2 + $0xf8] sm:$0xff]
        %v5295 = vld [vmem:[#allocation2 + $0x100] sm:$0xff]
        %v5296 = vld [vmem:[#allocation2 + $0x108] sm:$0xff]
        %v5297 = vld [vmem:[#allocation2 + $0x110] sm:$0xff]
        %v5298 = vld [vmem:[#allocation2 + $0x118] sm:$0xff]
        %s5299 = scalar_lea.vmem %s3, 128
        %v5300 = vld [vmem:[%s5299] sm:$0xf]
        %v5301 = vld [vmem:[%s5299 + $0x4] sm:$0xf]
        %v5302 = vld [vmem:[%s5299 + $0x8] sm:$0xf]
        %v5303 = vld [vmem:[%s5299 + $0xc] sm:$0xf]
        %v5304 = vld [vmem:[%s5299 + $0x10] sm:$0xf]
        %v5305 = vld [vmem:[%s5299 + $0x14] sm:$0xf]
        %v5306 = vld [vmem:[%s5299 + $0x18] sm:$0xf]
        %v5307 = vld [vmem:[%s5299 + $0x1c] sm:$0xf]
        %v5308 = vld [vmem:[%s5299 + $0x20] sm:$0xf]
        %v5309 = vld [vmem:[%s5299 + $0x24] sm:$0xf]
        %v5310 = vld [vmem:[%s5299 + $0x28] sm:$0xf]
        %v5311 = vld [vmem:[%s5299 + $0x2c] sm:$0xf]
        %v5312 = vld [vmem:[%s5299 + $0x30] sm:$0xf]
        %v5313 = vld [vmem:[%s5299 + $0x34] sm:$0xf]
        %v5314 = vld [vmem:[%s5299 + $0x38] sm:$0xf]
        %v5315 = vld [vmem:[%s5299 + $0x3c] sm:$0xf]
        %v5332 = vunpack.c.l.b16 %v5300
        %v5333 = vunpack.c.l.b16 %v5301
        %v5334 = vunpack.c.l.b16 %v5302
        %v5335 = vunpack.c.l.b16 %v5303
        %v5336 = vunpack.c.l.b16 %v5304
        %v5337 = vunpack.c.l.b16 %v5305
        %v5338 = vunpack.c.l.b16 %v5306
        %v5339 = vunpack.c.l.b16 %v5307
        %v5340 = vunpack.c.l.b16 %v5308
        %v5341 = vunpack.c.l.b16 %v5309
        %v5342 = vunpack.c.l.b16 %v5310
        %v5343 = vunpack.c.l.b16 %v5311
        %v5344 = vunpack.c.l.b16 %v5312
        %v5345 = vunpack.c.l.b16 %v5313
        %v5346 = vunpack.c.l.b16 %v5314
        %v5347 = vunpack.c.l.b16 %v5315
        %v5348 = vpack.c.b16 %v5333, %v5332
        %v5349 = vpack.c.b16 %v5335, %v5334
        %v5350 = vpack.c.b16 %v5337, %v5336
        %v5351 = vpack.c.b16 %v5339, %v5338
        %v5352 = vpack.c.b16 %v5341, %v5340
        %v5353 = vpack.c.b16 %v5343, %v5342
        %v5354 = vpack.c.b16 %v5345, %v5344
        %v5355 = vpack.c.b16 %v5347, %v5346
        %5364 = vmatprep.subr.bf16.mxu0 0
        %5365 = vmatpush1.bf16.msra.mxu0 %v5348
        %5366 = vmatprep.subr.bf16.mxu0 0
        %5367 = vmatpush1.bf16.msra.mxu0 %v5349
        %5368 = vmatprep.subr.bf16.mxu0 0
        %5369 = vmatpush1.bf16.msra.mxu0 %v5350
        %5370 = vmatprep.subr.bf16.mxu0 0
        %5371 = vmatpush1.bf16.msra.mxu0 %v5351
        %5372 = vmatprep.subr.bf16.mxu0 0
        %5373 = vmatpush1.bf16.msra.mxu0 %v5352
        %5374 = vmatprep.subr.bf16.mxu0 0
        %5375 = vmatpush1.bf16.msra.mxu0 %v5353
        %5376 = vmatprep.subr.bf16.mxu0 0
        %5377 = vmatpush1.bf16.msra.mxu0 %v5354
        %5378 = vmatprep.subr.bf16.mxu0 0
        %5379 = vmatpush1.bf16.msra.mxu0 %v5355
        %5380 = vmatprep.subr.bf16.mxu0 0
        %5381 = vmatpush1.bf16.msra.mxu0 0
        %5382 = vmatprep.subr.bf16.mxu0 0
        %5383 = vmatpush1.bf16.msra.mxu0 0
        %5384 = vmatprep.subr.bf16.mxu0 0
        %5385 = vmatpush1.bf16.msra.mxu0 0
        %5386 = vmatprep.subr.bf16.mxu0 0
        %5387 = vmatpush1.bf16.msra.mxu0 0
        %5388 = vmatprep.subr.bf16.mxu0 0
        %5389 = vmatpush1.bf16.msra.mxu0 0
        %5390 = vmatprep.subr.bf16.mxu0 0
        %5391 = vmatpush1.bf16.msra.mxu0 0
        %5392 = vmatprep.subr.bf16.mxu0 0
        %5393 = vmatpush1.bf16.msra.mxu0 0
        %5394 = vmatprep.subr.bf16.mxu0 0
        %5395 = vmatpush1.bf16.msra.mxu0 0
        %5396 = vmatprep.mubr.bf16.mxu0 0
        %5397 = vmatmul.mubr.bf16.gmra.mrb[0].mxu0 %v5245
        %v5398 = vpop.f32.mrb[0].mxu0
        %v5399 = vadd.f32 0.0, %v5398
        %v5400 = vpop.f32.mrb[0].mxu0
        %v5401 = vpop.f32.mrb[0].mxu0
        %v5402 = vadd.f32 0.0, %v5401
        %v5403 = vpop.f32.mrb[0].mxu0
        %5404 = vmatprep.mubr.bf16.mxu0 0
        %5405 = vmatmul.mubr.bf16.gmra.mrb[0].mxu0 %v5246
        %v5406 = vpop.f32.mrb[0].mxu0
        %v5407 = vadd.f32 0.0, %v5406
        %v5408 = vpop.f32.mrb[0].mxu0
        %v5409 = vpop.f32.mrb[0].mxu0
        %v5410 = vadd.f32 0.0, %v5409
        %v5411 = vpop.f32.mrb[0].mxu0
        %5412 = vmatprep.mubr.bf16.mxu0 0
        %5413 = vmatmul.mubr.bf16.gmra.mrb[0].mxu0 %v5247
        %v5414 = vpop.f32.mrb[0].mxu0
        %v5415 = vadd.f32 0.0, %v5414
        %v5416 = vpop.f32.mrb[0].mxu0
        %v5417 = vpop.f32.mrb[0].mxu0
        %v5418 = vadd.f32 0.0, %v5417
        %v5419 = vpop.f32.mrb[0].mxu0
        %5420 = vmatprep.mubr.bf16.mxu0 0
        %5421 = vmatmul.mubr.bf16.gmra.mrb[0].mxu0 %v5248
        %v5422 = vpop.f32.mrb[0].mxu0
        %v5423 = vadd.f32 0.0, %v5422
        %v5424 = vpop.f32.mrb[0].mxu0
        %v5425 = vpop.f32.mrb[0].mxu0
        %v5426 = vadd.f32 0.0, %v5425
        %v5427 = vpop.f32.mrb[0].mxu0
        %5428 = vmatprep.mubr.bf16.mxu0 0
        %5429 = vmatmul.mubr.bf16.gmra.mrb[0].mxu0 %v5249
        %v5430 = vpop.f32.mrb[0].mxu0
        %v5431 = vadd.f32 0.0, %v5430
        %v5432 = vpop.f32.mrb[0].mxu0
        %v5433 = vpop.f32.mrb[0].mxu0
        %v5434 = vadd.f32 0.0, %v5433
        %v5435 = vpop.f32.mrb[0].mxu0
        %5436 = vmatprep.mubr.bf16.mxu0 0
        %5437 = vmatmul.mubr.bf16.gmra.mrb[0].mxu0 %v5250
        %v5438 = vpop.f32.mrb[0].mxu0
        %v5439 = vadd.f32 0.0, %v5438
        %v5440 = vpop.f32.mrb[0].mxu0
        %v5441 = vpop.f32.mrb[0].mxu0
        %v5442 = vadd.f32 0.0, %v5441
        %v5443 = vpop.f32.mrb[0].mxu0
        %5444 = vmatprep.mubr.bf16.mxu0 0
        %5445 = vmatmul.mubr.bf16.gmra.mrb[0].mxu0 %v5251
        %v5446 = vpop.f32.mrb[0].mxu0
        %v5447 = vadd.f32 0.0, %v5446
        %v5448 = vpop.f32.mrb[0].mxu0
        %v5449 = vpop.f32.mrb[0].mxu0
        %v5450 = vadd.f32 0.0, %v5449
        %v5451 = vpop.f32.mrb[0].mxu0
        %5452 = vmatprep.mubr.bf16.mxu0 0
        %5453 = vmatmul.mubr.bf16.gmra.mrb[0].mxu0 %v5252
        %v5454 = vpop.f32.mrb[0].mxu0
        %v5455 = vadd.f32 0.0, %v5454
        %v5456 = vpop.f32.mrb[0].mxu0
        %v5457 = vpop.f32.mrb[0].mxu0
        %v5458 = vadd.f32 0.0, %v5457
        %v5459 = vpop.f32.mrb[0].mxu0
        %5460 = vmatprep.mubr.bf16.mxu0 0
        %5461 = vmatmul.mubr.bf16.gmra.mrb[0].mxu0 %v5253
        %v5462 = vpop.f32.mrb[0].mxu0
        %v5463 = vadd.f32 0.0, %v5462
        %v5464 = vpop.f32.mrb[0].mxu0
        %v5465 = vpop.f32.mrb[0].mxu0
        %v5466 = vadd.f32 0.0, %v5465
        %v5467 = vpop.f32.mrb[0].mxu0
        %5468 = vmatprep.mubr.bf16.mxu0 0
        %5469 = vmatmul.mubr.bf16.gmra.mrb[0].mxu0 %v5254
        %v5470 = vpop.f32.mrb[0].mxu0
        %v5471 = vadd.f32 0.0, %v5470
        %v5472 = vpop.f32.mrb[0].mxu0
        %v5473 = vpop.f32.mrb[0].mxu0
        %v5474 = vadd.f32 0.0, %v5473
        %v5475 = vpop.f32.mrb[0].mxu0
        %5476 = vmatprep.mubr.bf16.mxu0 0
        %5477 = vmatmul.mubr.bf16.gmra.mrb[0].mxu0 %v5255
        %v5478 = vpop.f32.mrb[0].mxu0
        %v5479 = vadd.f32 0.0, %v5478
        %v5480 = vpop.f32.mrb[0].mxu0
        %v5481 = vpop.f32.mrb[0].mxu0
        %v5482 = vadd.f32 0.0, %v5481
        %v5483 = vpop.f32.mrb[0].mxu0
        %5484 = vmatprep.mubr.bf16.mxu0 0
        %5485 = vmatmul.mubr.bf16.gmra.mrb[0].mxu0 %v5256
        %v5486 = vpop.f32.mrb[0].mxu0
        %v5487 = vadd.f32 0.0, %v5486
        %v5488 = vpop.f32.mrb[0].mxu0
        %v5489 = vpop.f32.mrb[0].mxu0
        %v5490 = vadd.f32 0.0, %v5489
        %v5491 = vpop.f32.mrb[0].mxu0
        %5492 = vmatprep.mubr.bf16.mxu0 0
        %5493 = vmatmul.mubr.bf16.gmra.mrb[0].mxu0 %v5257
        %v5494 = vpop.f32.mrb[0].mxu0
        %v5495 = vadd.f32 0.0, %v5494
        %v5496 = vpop.f32.mrb[0].mxu0
        %v5497 = vpop.f32.mrb[0].mxu0
        %v5498 = vadd.f32 0.0, %v5497
        %v5499 = vpop.f32.mrb[0].mxu0
        %5500 = vmatprep.mubr.bf16.mxu0 0
        %5501 = vmatmul.mubr.bf16.gmra.mrb[0].mxu0 %v5258
        %v5502 = vpop.f32.mrb[0].mxu0
        %v5503 = vadd.f32 0.0, %v5502
        %v5504 = vpop.f32.mrb[0].mxu0
        %v5505 = vpop.f32.mrb[0].mxu0
        %v5506 = vadd.f32 0.0, %v5505
        %v5507 = vpop.f32.mrb[0].mxu0
        %5508 = vmatprep.mubr.bf16.mxu0 0
        %5509 = vmatmul.mubr.bf16.gmra.mrb[0].mxu0 %v5259
        %v5510 = vpop.f32.mrb[0].mxu0
        %v5511 = vadd.f32 0.0, %v5510
        %v5512 = vpop.f32.mrb[0].mxu0
        %v5513 = vpop.f32.mrb[0].mxu0
        %v5514 = vadd.f32 0.0, %v5513
        %v5515 = vpop.f32.mrb[0].mxu0
        %5516 = vmatprep.mubr.bf16.mxu0 0
        %5517 = vmatmul.mubr.bf16.gmra.mrb[0].mxu0 %v5260
        %v5518 = vpop.f32.mrb[0].mxu0
        %v5519 = vadd.f32 0.0, %v5518
        %v5520 = vpop.f32.mrb[0].mxu0
        %v5521 = vpop.f32.mrb[0].mxu0
        %v5522 = vadd.f32 0.0, %v5521
        %v5523 = vpop.f32.mrb[0].mxu0
        %5524 = vmatprep.mubr.bf16.mxu0 0
        %5525 = vmatmul.mubr.bf16.gmra.mrb[0].mxu0 %v5261
        %v5526 = vpop.f32.mrb[0].mxu0
        %v5527 = vadd.f32 0.0, %v5526
        %v5528 = vpop.f32.mrb[0].mxu0
        %v5529 = vpop.f32.mrb[0].mxu0
        %v5530 = vadd.f32 0.0, %v5529
        %v5531 = vpop.f32.mrb[0].mxu0
        %5532 = vmatprep.mubr.bf16.mxu0 0
        %5533 = vmatmul.mubr.bf16.gmra.mrb[0].mxu0 %v5262
        %v5534 = vpop.f32.mrb[0].mxu0
        %v5535 = vadd.f32 0.0, %v5534
        %v5536 = vpop.f32.mrb[0].mxu0
        %v5537 = vpop.f32.mrb[0].mxu0
        %v5538 = vadd.f32 0.0, %v5537
        %v5539 = vpop.f32.mrb[0].mxu0
        %5540 = vdwg.mxu0
        %v5541 = vadd.f32 %v5263, %v5399
        %v5542 = vadd.f32 %v5264, %v5402
        %v5543 = vadd.f32 %v5265, %v5407
        %v5544 = vadd.f32 %v5266, %v5410
        %v5545 = vadd.f32 %v5267, %v5415
        %v5546 = vadd.f32 %v5268, %v5418
        %v5547 = vadd.f32 %v5269, %v5423
        %v5548 = vadd.f32 %v5270, %v5426
        %v5549 = vadd.f32 %v5271, %v5431
        %v5550 = vadd.f32 %v5272, %v5434
        %v5551 = vadd.f32 %v5273, %v5439
        %v5552 = vadd.f32 %v5274, %v5442
        %v5553 = vadd.f32 %v5275, %v5447
        %v5554 = vadd.f32 %v5276, %v5450
        %v5555 = vadd.f32 %v5277, %v5455
        %v5556 = vadd.f32 %v5278, %v5458
        %v5557 = vadd.f32 %v5279, %v5463
        %v5558 = vadd.f32 %v5280, %v5466
        %v5559 = vadd.f32 %v5281, %v5471
        %v5560 = vadd.f32 %v5282, %v5474
        %v5561 = vadd.f32 %v5283, %v5479
        %v5562 = vadd.f32 %v5284, %v5482
        %v5563 = vadd.f32 %v5285, %v5487
        %v5564 = vadd.f32 %v5286, %v5490
        %v5565 = vadd.f32 %v5287, %v5495
        %v5566 = vadd.f32 %v5288, %v5498
        %v5567 = vadd.f32 %v5289, %v5503
        %v5568 = vadd.f32 %v5290, %v5506
        %v5569 = vadd.f32 %v5291, %v5511
        %v5570 = vadd.f32 %v5292, %v5514
        %v5571 = vadd.f32 %v5293, %v5519
        %v5572 = vadd.f32 %v5294, %v5522
        %v5573 = vadd.f32 %v5295, %v5527
        %v5574 = vadd.f32 %v5296, %v5530
        %v5575 = vadd.f32 %v5297, %v5535
        %v5576 = vadd.f32 %v5298, %v5538
        %5577 = vst [vmem:[#allocation2] sm:$0xff] %v5541
        %5578 = vst [vmem:[#allocation2 + $0x8] sm:$0xff] %v5542
        %5579 = vst [vmem:[#allocation2 + $0x10] sm:$0xff] %v5543
        %5580 = vst [vmem:[#allocation2 + $0x18] sm:$0xff] %v5544
        %5581 = vst [vmem:[#allocation2 + $0x20] sm:$0xff] %v5545
        %5582 = vst [vmem:[#allocation2 + $0x28] sm:$0xff] %v5546
        %5583 = vst [vmem:[#allocation2 + $0x30] sm:$0xff] %v5547
        %5584 = vst [vmem:[#allocation2 + $0x38] sm:$0xff] %v5548
        %5585 = vst [vmem:[#allocation2 + $0x40] sm:$0xff] %v5549
        %5586 = vst [vmem:[#allocation2 + $0x48] sm:$0xff] %v5550
        %5587 = vst [vmem:[#allocation2 + $0x50] sm:$0xff] %v5551
        %5588 = vst [vmem:[#allocation2 + $0x58] sm:$0xff] %v5552
        %5589 = vst [vmem:[#allocation2 + $0x60] sm:$0xff] %v5553
        %5590 = vst [vmem:[#allocation2 + $0x68] sm:$0xff] %v5554
        %5591 = vst [vmem:[#allocation2 + $0x70] sm:$0xff] %v5555
        %5592 = vst [vmem:[#allocation2 + $0x78] sm:$0xff] %v5556
        %5593 = vst [vmem:[#allocation2 + $0x80] sm:$0xff] %v5557
        %5594 = vst [vmem:[#allocation2 + $0x88] sm:$0xff] %v5558
        %5595 = vst [vmem:[#allocation2 + $0x90] sm:$0xff] %v5559
        %5596 = vst [vmem:[#allocation2 + $0x98] sm:$0xff] %v5560
        %5597 = vst [vmem:[#allocation2 + $0xa0] sm:$0xff] %v5561
        %5598 = vst [vmem:[#allocation2 + $0xa8] sm:$0xff] %v5562
        %5599 = vst [vmem:[#allocation2 + $0xb0] sm:$0xff] %v5563
        %5600 = vst [vmem:[#allocation2 + $0xb8] sm:$0xff] %v5564
        %5601 = vst [vmem:[#allocation2 + $0xc0] sm:$0xff] %v5565
        %5602 = vst [vmem:[#allocation2 + $0xc8] sm:$0xff] %v5566
        %5603 = vst [vmem:[#allocation2 + $0xd0] sm:$0xff] %v5567
        %5604 = vst [vmem:[#allocation2 + $0xd8] sm:$0xff] %v5568
        %5605 = vst [vmem:[#allocation2 + $0xe0] sm:$0xff] %v5569
        %5606 = vst [vmem:[#allocation2 + $0xe8] sm:$0xff] %v5570
        %5607 = vst [vmem:[#allocation2 + $0xf0] sm:$0xff] %v5571
        %5608 = vst [vmem:[#allocation2 + $0xf8] sm:$0xff] %v5572
        %5609 = vst [vmem:[#allocation2 + $0x100] sm:$0xff] %v5573
        %5610 = vst [vmem:[#allocation2 + $0x108] sm:$0xff] %v5574
        %5611 = vst [vmem:[#allocation2 + $0x110] sm:$0xff] %v5575
        %5612 = vst [vmem:[#allocation2 + $0x118] sm:$0xff] %v5576
        %v5613 = vld [vmem:[#allocation3 + $0x17] sm:$0xff]
        %v5614 = vld [vmem:[#allocation3 + $0x1f] sm:$0xff]
        %v5615 = vld [vmem:[#allocation3 + $0x27] sm:$0xff]
        %v5616 = vld [vmem:[#allocation3 + $0x2f] sm:$0xff]
        %v5617 = vld [vmem:[#allocation3 + $0x37] sm:$0xff]
        %v5618 = vld [vmem:[#allocation3 + $0x3f] sm:$0xff]
        %v5619 = vld [vmem:[#allocation3 + $0x47] sm:$0xff]
        %v5620 = vld [vmem:[#allocation3 + $0x4f] sm:$0xff]
        %v5621 = vld [vmem:[#allocation3 + $0x57] sm:$0xff]
        %v5622 = vld [vmem:[#allocation3 + $0x5f] sm:$0xff]
        %v5623 = vld [vmem:[#allocation3 + $0x67] sm:$0xff]
        %v5624 = vld [vmem:[#allocation3 + $0x6f] sm:$0xff]
        %v5625 = vld [vmem:[#allocation3 + $0x77] sm:$0xff]
        %v5626 = vld [vmem:[#allocation3 + $0x7f] sm:$0xff]
        %v5627 = vld [vmem:[#allocation3 + $0x87] sm:$0xff]
        %v5628 = vld [vmem:[#allocation3 + $0x8f] sm:$0xff]
        %v5629 = vld [vmem:[#allocation3 + $0x97] sm:$0xff]
        %v5630 = vld [vmem:[#allocation3 + $0x9f] sm:$0xff]
        %v5631 = vld [vmem:[#allocation3 + $0xa7] sm:$0xff]
        %v5632 = vld [vmem:[#allocation3 + $0xaf] sm:$0xff]
        %v5633 = vld [vmem:[#allocation3 + $0xb7] sm:$0xff]
        %v5634 = vld [vmem:[#allocation3 + $0xbf] sm:$0xff]
        %v5635 = vld [vmem:[#allocation3 + $0xc7] sm:$0xff]
        %v5636 = vld [vmem:[#allocation3 + $0xcf] sm:$0xff]
        %v5637 = vld [vmem:[#allocation3 + $0xd7] sm:$0xff]
        %v5638 = vld [vmem:[#allocation3 + $0xdf] sm:$0xff]
        %v5639 = vld [vmem:[#allocation3 + $0xe7] sm:$0xff]
        %v5640 = vld [vmem:[#allocation3 + $0xef] sm:$0xff]
        %v5641 = vld [vmem:[#allocation3 + $0xf7] sm:$0xff]
        %v5642 = vld [vmem:[#allocation3 + $0xff] sm:$0xff]
        %v5643 = vld [vmem:[#allocation3 + $0x107] sm:$0xff]
        %v5644 = vld [vmem:[#allocation3 + $0x10f] sm:$0xff]
        %v5645 = vld [vmem:[#allocation3 + $0x117] sm:$0xff]
        %v5646 = vld [vmem:[#allocation3 + $0x11f] sm:$0xff]
        %v5647 = vld [vmem:[#allocation3 + $0x127] sm:$0xff]
        %v5648 = vld [vmem:[#allocation3 + $0x12f] sm:$0xff]
        %v5649 = vpack.c.bf16 %v5614, %v5613
        %v5650 = vpack.c.bf16 %v5616, %v5615
        %v5651 = vpack.c.bf16 %v5618, %v5617
        %v5652 = vpack.c.bf16 %v5620, %v5619
        %v5653 = vpack.c.bf16 %v5622, %v5621
        %v5654 = vpack.c.bf16 %v5624, %v5623
        %v5655 = vpack.c.bf16 %v5626, %v5625
        %v5656 = vpack.c.bf16 %v5628, %v5627
        %v5657 = vpack.c.bf16 %v5630, %v5629
        %v5658 = vpack.c.bf16 %v5632, %v5631
        %v5659 = vpack.c.bf16 %v5634, %v5633
        %v5660 = vpack.c.bf16 %v5636, %v5635
        %v5661 = vpack.c.bf16 %v5638, %v5637
        %v5662 = vpack.c.bf16 %v5640, %v5639
        %v5663 = vpack.c.bf16 %v5642, %v5641
        %v5664 = vpack.c.bf16 %v5644, %v5643
        %v5665 = vpack.c.bf16 %v5646, %v5645
        %v5666 = vpack.c.bf16 %v5648, %v5647
        %v5667 = vld [vmem:[#allocation2] sm:$0xff]
        %v5668 = vld [vmem:[#allocation2 + $0x8] sm:$0xff]
        %v5669 = vld [vmem:[#allocation2 + $0x10] sm:$0xff]
        %v5670 = vld [vmem:[#allocation2 + $0x18] sm:$0xff]
        %v5671 = vld [vmem:[#allocation2 + $0x20] sm:$0xff]
        %v5672 = vld [vmem:[#allocation2 + $0x28] sm:$0xff]
        %v5673 = vld [vmem:[#allocation2 + $0x30] sm:$0xff]
        %v5674 = vld [vmem:[#allocation2 + $0x38] sm:$0xff]
        %v5675 = vld [vmem:[#allocation2 + $0x40] sm:$0xff]
        %v5676 = vld [vmem:[#allocation2 + $0x48] sm:$0xff]
        %v5677 = vld [vmem:[#allocation2 + $0x50] sm:$0xff]
        %v5678 = vld [vmem:[#allocation2 + $0x58] sm:$0xff]
        %v5679 = vld [vmem:[#allocation2 + $0x60] sm:$0xff]
        %v5680 = vld [vmem:[#allocation2 + $0x68] sm:$0xff]
        %v5681 = vld [vmem:[#allocation2 + $0x70] sm:$0xff]
        %v5682 = vld [vmem:[#allocation2 + $0x78] sm:$0xff]
        %v5683 = vld [vmem:[#allocation2 + $0x80] sm:$0xff]
        %v5684 = vld [vmem:[#allocation2 + $0x88] sm:$0xff]
        %v5685 = vld [vmem:[#allocation2 + $0x90] sm:$0xff]
        %v5686 = vld [vmem:[#allocation2 + $0x98] sm:$0xff]
        %v5687 = vld [vmem:[#allocation2 + $0xa0] sm:$0xff]
        %v5688 = vld [vmem:[#allocation2 + $0xa8] sm:$0xff]
        %v5689 = vld [vmem:[#allocation2 + $0xb0] sm:$0xff]
        %v5690 = vld [vmem:[#allocation2 + $0xb8] sm:$0xff]
        %v5691 = vld [vmem:[#allocation2 + $0xc0] sm:$0xff]
        %v5692 = vld [vmem:[#allocation2 + $0xc8] sm:$0xff]
        %v5693 = vld [vmem:[#allocation2 + $0xd0] sm:$0xff]
        %v5694 = vld [vmem:[#allocation2 + $0xd8] sm:$0xff]
        %v5695 = vld [vmem:[#allocation2 + $0xe0] sm:$0xff]
        %v5696 = vld [vmem:[#allocation2 + $0xe8] sm:$0xff]
        %v5697 = vld [vmem:[#allocation2 + $0xf0] sm:$0xff]
        %v5698 = vld [vmem:[#allocation2 + $0xf8] sm:$0xff]
        %v5699 = vld [vmem:[#allocation2 + $0x100] sm:$0xff]
        %v5700 = vld [vmem:[#allocation2 + $0x108] sm:$0xff]
        %v5701 = vld [vmem:[#allocation2 + $0x110] sm:$0xff]
        %v5702 = vld [vmem:[#allocation2 + $0x118] sm:$0xff]
        %s5703 = scalar_lea.vmem %s3, 192
        %v5704 = vld [vmem:[%s5703] sm:$0xf]
        %v5705 = vld [vmem:[%s5703 + $0x4] sm:$0xf]
        %v5706 = vld [vmem:[%s5703 + $0x8] sm:$0xf]
        %v5707 = vld [vmem:[%s5703 + $0xc] sm:$0xf]
        %v5708 = vld [vmem:[%s5703 + $0x10] sm:$0xf]
        %v5709 = vld [vmem:[%s5703 + $0x14] sm:$0xf]
        %v5710 = vld [vmem:[%s5703 + $0x18] sm:$0xf]
        %v5711 = vld [vmem:[%s5703 + $0x1c] sm:$0xf]
        %v5712 = vld [vmem:[%s5703 + $0x20] sm:$0xf]
        %v5713 = vld [vmem:[%s5703 + $0x24] sm:$0xf]
        %v5714 = vld [vmem:[%s5703 + $0x28] sm:$0xf]
        %v5715 = vld [vmem:[%s5703 + $0x2c] sm:$0xf]
        %v5716 = vld [vmem:[%s5703 + $0x30] sm:$0xf]
        %v5717 = vld [vmem:[%s5703 + $0x34] sm:$0xf]
        %v5718 = vld [vmem:[%s5703 + $0x38] sm:$0xf]
        %v5719 = vld [vmem:[%s5703 + $0x3c] sm:$0xf]
        %v5736 = vunpack.c.l.b16 %v5704
        %v5737 = vunpack.c.l.b16 %v5705
        %v5738 = vunpack.c.l.b16 %v5706
        %v5739 = vunpack.c.l.b16 %v5707
        %v5740 = vunpack.c.l.b16 %v5708
        %v5741 = vunpack.c.l.b16 %v5709
        %v5742 = vunpack.c.l.b16 %v5710
        %v5743 = vunpack.c.l.b16 %v5711
        %v5744 = vunpack.c.l.b16 %v5712
        %v5745 = vunpack.c.l.b16 %v5713
        %v5746 = vunpack.c.l.b16 %v5714
        %v5747 = vunpack.c.l.b16 %v5715
        %v5748 = vunpack.c.l.b16 %v5716
        %v5749 = vunpack.c.l.b16 %v5717
        %v5750 = vunpack.c.l.b16 %v5718
        %v5751 = vunpack.c.l.b16 %v5719
        %v5752 = vpack.c.b16 %v5737, %v5736
        %v5753 = vpack.c.b16 %v5739, %v5738
        %v5754 = vpack.c.b16 %v5741, %v5740
        %v5755 = vpack.c.b16 %v5743, %v5742
        %v5756 = vpack.c.b16 %v5745, %v5744
        %v5757 = vpack.c.b16 %v5747, %v5746
        %v5758 = vpack.c.b16 %v5749, %v5748
        %v5759 = vpack.c.b16 %v5751, %v5750
        %5768 = vmatprep.subr.bf16.mxu0 0
        %5769 = vmatpush1.bf16.msra.mxu0 %v5752
        %5770 = vmatprep.subr.bf16.mxu0 0
        %5771 = vmatpush1.bf16.msra.mxu0 %v5753
        %5772 = vmatprep.subr.bf16.mxu0 0
        %5773 = vmatpush1.bf16.msra.mxu0 %v5754
        %5774 = vmatprep.subr.bf16.mxu0 0
        %5775 = vmatpush1.bf16.msra.mxu0 %v5755
        %5776 = vmatprep.subr.bf16.mxu0 0
        %5777 = vmatpush1.bf16.msra.mxu0 %v5756
        %5778 = vmatprep.subr.bf16.mxu0 0
        %5779 = vmatpush1.bf16.msra.mxu0 %v5757
        %5780 = vmatprep.subr.bf16.mxu0 0
        %5781 = vmatpush1.bf16.msra.mxu0 %v5758
        %5782 = vmatprep.subr.bf16.mxu0 0
        %5783 = vmatpush1.bf16.msra.mxu0 %v5759
        %5784 = vmatprep.subr.bf16.mxu0 0
        %5785 = vmatpush1.bf16.msra.mxu0 0
        %5786 = vmatprep.subr.bf16.mxu0 0
        %5787 = vmatpush1.bf16.msra.mxu0 0
        %5788 = vmatprep.subr.bf16.mxu0 0
        %5789 = vmatpush1.bf16.msra.mxu0 0
        %5790 = vmatprep.subr.bf16.mxu0 0
        %5791 = vmatpush1.bf16.msra.mxu0 0
        %5792 = vmatprep.subr.bf16.mxu0 0
        %5793 = vmatpush1.bf16.msra.mxu0 0
        %5794 = vmatprep.subr.bf16.mxu0 0
        %5795 = vmatpush1.bf16.msra.mxu0 0
        %5796 = vmatprep.subr.bf16.mxu0 0
        %5797 = vmatpush1.bf16.msra.mxu0 0
        %5798 = vmatprep.subr.bf16.mxu0 0
        %5799 = vmatpush1.bf16.msra.mxu0 0
        %5800 = vmatprep.mubr.bf16.mxu0 0
        %5801 = vmatmul.mubr.bf16.gmra.mrb[0].mxu0 %v5649
        %v5802 = vpop.f32.mrb[0].mxu0
        %v5803 = vadd.f32 0.0, %v5802
        %v5804 = vpop.f32.mrb[0].mxu0
        %v5805 = vpop.f32.mrb[0].mxu0
        %v5806 = vadd.f32 0.0, %v5805
        %v5807 = vpop.f32.mrb[0].mxu0
        %5808 = vmatprep.mubr.bf16.mxu0 0
        %5809 = vmatmul.mubr.bf16.gmra.mrb[0].mxu0 %v5650
        %v5810 = vpop.f32.mrb[0].mxu0
        %v5811 = vadd.f32 0.0, %v5810
        %v5812 = vpop.f32.mrb[0].mxu0
        %v5813 = vpop.f32.mrb[0].mxu0
        %v5814 = vadd.f32 0.0, %v5813
        %v5815 = vpop.f32.mrb[0].mxu0
        %5816 = vmatprep.mubr.bf16.mxu0 0
        %5817 = vmatmul.mubr.bf16.gmra.mrb[0].mxu0 %v5651
        %v5818 = vpop.f32.mrb[0].mxu0
        %v5819 = vadd.f32 0.0, %v5818
        %v5820 = vpop.f32.mrb[0].mxu0
        %v5821 = vpop.f32.mrb[0].mxu0
        %v5822 = vadd.f32 0.0, %v5821
        %v5823 = vpop.f32.mrb[0].mxu0
        %5824 = vmatprep.mubr.bf16.mxu0 0
        %5825 = vmatmul.mubr.bf16.gmra.mrb[0].mxu0 %v5652
        %v5826 = vpop.f32.mrb[0].mxu0
        %v5827 = vadd.f32 0.0, %v5826
        %v5828 = vpop.f32.mrb[0].mxu0
        %v5829 = vpop.f32.mrb[0].mxu0
        %v5830 = vadd.f32 0.0, %v5829
        %v5831 = vpop.f32.mrb[0].mxu0
        %5832 = vmatprep.mubr.bf16.mxu0 0
        %5833 = vmatmul.mubr.bf16.gmra.mrb[0].mxu0 %v5653
        %v5834 = vpop.f32.mrb[0].mxu0
        %v5835 = vadd.f32 0.0, %v5834
        %v5836 = vpop.f32.mrb[0].mxu0
        %v5837 = vpop.f32.mrb[0].mxu0
        %v5838 = vadd.f32 0.0, %v5837
        %v5839 = vpop.f32.mrb[0].mxu0
        %5840 = vmatprep.mubr.bf16.mxu0 0
        %5841 = vmatmul.mubr.bf16.gmra.mrb[0].mxu0 %v5654
        %v5842 = vpop.f32.mrb[0].mxu0
        %v5843 = vadd.f32 0.0, %v5842
        %v5844 = vpop.f32.mrb[0].mxu0
        %v5845 = vpop.f32.mrb[0].mxu0
        %v5846 = vadd.f32 0.0, %v5845
        %v5847 = vpop.f32.mrb[0].mxu0
        %5848 = vmatprep.mubr.bf16.mxu0 0
        %5849 = vmatmul.mubr.bf16.gmra.mrb[0].mxu0 %v5655
        %v5850 = vpop.f32.mrb[0].mxu0
        %v5851 = vadd.f32 0.0, %v5850
        %v5852 = vpop.f32.mrb[0].mxu0
        %v5853 = vpop.f32.mrb[0].mxu0
        %v5854 = vadd.f32 0.0, %v5853
        %v5855 = vpop.f32.mrb[0].mxu0
        %5856 = vmatprep.mubr.bf16.mxu0 0
        %5857 = vmatmul.mubr.bf16.gmra.mrb[0].mxu0 %v5656
        %v5858 = vpop.f32.mrb[0].mxu0
        %v5859 = vadd.f32 0.0, %v5858
        %v5860 = vpop.f32.mrb[0].mxu0
        %v5861 = vpop.f32.mrb[0].mxu0
        %v5862 = vadd.f32 0.0, %v5861
        %v5863 = vpop.f32.mrb[0].mxu0
        %5864 = vmatprep.mubr.bf16.mxu0 0
        %5865 = vmatmul.mubr.bf16.gmra.mrb[0].mxu0 %v5657
        %v5866 = vpop.f32.mrb[0].mxu0
        %v5867 = vadd.f32 0.0, %v5866
        %v5868 = vpop.f32.mrb[0].mxu0
        %v5869 = vpop.f32.mrb[0].mxu0
        %v5870 = vadd.f32 0.0, %v5869
        %v5871 = vpop.f32.mrb[0].mxu0
        %5872 = vmatprep.mubr.bf16.mxu0 0
        %5873 = vmatmul.mubr.bf16.gmra.mrb[0].mxu0 %v5658
        %v5874 = vpop.f32.mrb[0].mxu0
        %v5875 = vadd.f32 0.0, %v5874
        %v5876 = vpop.f32.mrb[0].mxu0
        %v5877 = vpop.f32.mrb[0].mxu0
        %v5878 = vadd.f32 0.0, %v5877
        %v5879 = vpop.f32.mrb[0].mxu0
        %5880 = vmatprep.mubr.bf16.mxu0 0
        %5881 = vmatmul.mubr.bf16.gmra.mrb[0].mxu0 %v5659
        %v5882 = vpop.f32.mrb[0].mxu0
        %v5883 = vadd.f32 0.0, %v5882
        %v5884 = vpop.f32.mrb[0].mxu0
        %v5885 = vpop.f32.mrb[0].mxu0
        %v5886 = vadd.f32 0.0, %v5885
        %v5887 = vpop.f32.mrb[0].mxu0
        %5888 = vmatprep.mubr.bf16.mxu0 0
        %5889 = vmatmul.mubr.bf16.gmra.mrb[0].mxu0 %v5660
        %v5890 = vpop.f32.mrb[0].mxu0
        %v5891 = vadd.f32 0.0, %v5890
        %v5892 = vpop.f32.mrb[0].mxu0
        %v5893 = vpop.f32.mrb[0].mxu0
        %v5894 = vadd.f32 0.0, %v5893
        %v5895 = vpop.f32.mrb[0].mxu0
        %5896 = vmatprep.mubr.bf16.mxu0 0
        %5897 = vmatmul.mubr.bf16.gmra.mrb[0].mxu0 %v5661
        %v5898 = vpop.f32.mrb[0].mxu0
        %v5899 = vadd.f32 0.0, %v5898
        %v5900 = vpop.f32.mrb[0].mxu0
        %v5901 = vpop.f32.mrb[0].mxu0
        %v5902 = vadd.f32 0.0, %v5901
        %v5903 = vpop.f32.mrb[0].mxu0
        %5904 = vmatprep.mubr.bf16.mxu0 0
        %5905 = vmatmul.mubr.bf16.gmra.mrb[0].mxu0 %v5662
        %v5906 = vpop.f32.mrb[0].mxu0
        %v5907 = vadd.f32 0.0, %v5906
        %v5908 = vpop.f32.mrb[0].mxu0
        %v5909 = vpop.f32.mrb[0].mxu0
        %v5910 = vadd.f32 0.0, %v5909
        %v5911 = vpop.f32.mrb[0].mxu0
        %5912 = vmatprep.mubr.bf16.mxu0 0
        %5913 = vmatmul.mubr.bf16.gmra.mrb[0].mxu0 %v5663
        %v5914 = vpop.f32.mrb[0].mxu0
        %v5915 = vadd.f32 0.0, %v5914
        %v5916 = vpop.f32.mrb[0].mxu0
        %v5917 = vpop.f32.mrb[0].mxu0
        %v5918 = vadd.f32 0.0, %v5917
        %v5919 = vpop.f32.mrb[0].mxu0
        %5920 = vmatprep.mubr.bf16.mxu0 0
        %5921 = vmatmul.mubr.bf16.gmra.mrb[0].mxu0 %v5664
        %v5922 = vpop.f32.mrb[0].mxu0
        %v5923 = vadd.f32 0.0, %v5922
        %v5924 = vpop.f32.mrb[0].mxu0
        %v5925 = vpop.f32.mrb[0].mxu0
        %v5926 = vadd.f32 0.0, %v5925
        %v5927 = vpop.f32.mrb[0].mxu0
        %5928 = vmatprep.mubr.bf16.mxu0 0
        %5929 = vmatmul.mubr.bf16.gmra.mrb[0].mxu0 %v5665
        %v5930 = vpop.f32.mrb[0].mxu0
        %v5931 = vadd.f32 0.0, %v5930
        %v5932 = vpop.f32.mrb[0].mxu0
        %v5933 = vpop.f32.mrb[0].mxu0
        %v5934 = vadd.f32 0.0, %v5933
        %v5935 = vpop.f32.mrb[0].mxu0
        %5936 = vmatprep.mubr.bf16.mxu0 0
        %5937 = vmatmul.mubr.bf16.gmra.mrb[0].mxu0 %v5666
        %v5938 = vpop.f32.mrb[0].mxu0
        %v5939 = vadd.f32 0.0, %v5938
        %v5940 = vpop.f32.mrb[0].mxu0
        %v5941 = vpop.f32.mrb[0].mxu0
        %v5942 = vadd.f32 0.0, %v5941
        %v5943 = vpop.f32.mrb[0].mxu0
        %5944 = vdwg.mxu0
        %v5945 = vadd.f32 %v5667, %v5803
        %v5946 = vadd.f32 %v5668, %v5806
        %v5947 = vadd.f32 %v5669, %v5811
        %v5948 = vadd.f32 %v5670, %v5814
        %v5949 = vadd.f32 %v5671, %v5819
        %v5950 = vadd.f32 %v5672, %v5822
        %v5951 = vadd.f32 %v5673, %v5827
        %v5952 = vadd.f32 %v5674, %v5830
        %v5953 = vadd.f32 %v5675, %v5835
        %v5954 = vadd.f32 %v5676, %v5838
        %v5955 = vadd.f32 %v5677, %v5843
        %v5956 = vadd.f32 %v5678, %v5846
        %v5957 = vadd.f32 %v5679, %v5851
        %v5958 = vadd.f32 %v5680, %v5854
        %v5959 = vadd.f32 %v5681, %v5859
        %v5960 = vadd.f32 %v5682, %v5862
        %v5961 = vadd.f32 %v5683, %v5867
        %v5962 = vadd.f32 %v5684, %v5870
        %v5963 = vadd.f32 %v5685, %v5875
        %v5964 = vadd.f32 %v5686, %v5878
        %v5965 = vadd.f32 %v5687, %v5883
        %v5966 = vadd.f32 %v5688, %v5886
        %v5967 = vadd.f32 %v5689, %v5891
        %v5968 = vadd.f32 %v5690, %v5894
        %v5969 = vadd.f32 %v5691, %v5899
        %v5970 = vadd.f32 %v5692, %v5902
        %v5971 = vadd.f32 %v5693, %v5907
        %v5972 = vadd.f32 %v5694, %v5910
        %v5973 = vadd.f32 %v5695, %v5915
        %v5974 = vadd.f32 %v5696, %v5918
        %v5975 = vadd.f32 %v5697, %v5923
        %v5976 = vadd.f32 %v5698, %v5926
        %v5977 = vadd.f32 %v5699, %v5931
        %v5978 = vadd.f32 %v5700, %v5934
        %v5979 = vadd.f32 %v5701, %v5939
        %v5980 = vadd.f32 %v5702, %v5942
        %5981 = vst [vmem:[#allocation2] sm:$0xff] %v5945
        %5982 = vst [vmem:[#allocation2 + $0x8] sm:$0xff] %v5946
        %5983 = vst [vmem:[#allocation2 + $0x10] sm:$0xff] %v5947
        %5984 = vst [vmem:[#allocation2 + $0x18] sm:$0xff] %v5948
        %5985 = vst [vmem:[#allocation2 + $0x20] sm:$0xff] %v5949
        %5986 = vst [vmem:[#allocation2 + $0x28] sm:$0xff] %v5950
        %5987 = vst [vmem:[#allocation2 + $0x30] sm:$0xff] %v5951
        %5988 = vst [vmem:[#allocation2 + $0x38] sm:$0xff] %v5952
        %5989 = vst [vmem:[#allocation2 + $0x40] sm:$0xff] %v5953
        %5990 = vst [vmem:[#allocation2 + $0x48] sm:$0xff] %v5954
        %5991 = vst [vmem:[#allocation2 + $0x50] sm:$0xff] %v5955
        %5992 = vst [vmem:[#allocation2 + $0x58] sm:$0xff] %v5956
        %5993 = vst [vmem:[#allocation2 + $0x60] sm:$0xff] %v5957
        %5994 = vst [vmem:[#allocation2 + $0x68] sm:$0xff] %v5958
        %5995 = vst [vmem:[#allocation2 + $0x70] sm:$0xff] %v5959
        %5996 = vst [vmem:[#allocation2 + $0x78] sm:$0xff] %v5960
        %5997 = vst [vmem:[#allocation2 + $0x80] sm:$0xff] %v5961
        %5998 = vst [vmem:[#allocation2 + $0x88] sm:$0xff] %v5962
        %5999 = vst [vmem:[#allocation2 + $0x90] sm:$0xff] %v5963
        %6000 = vst [vmem:[#allocation2 + $0x98] sm:$0xff] %v5964
        %6001 = vst [vmem:[#allocation2 + $0xa0] sm:$0xff] %v5965
        %6002 = vst [vmem:[#allocation2 + $0xa8] sm:$0xff] %v5966
        %6003 = vst [vmem:[#allocation2 + $0xb0] sm:$0xff] %v5967
        %6004 = vst [vmem:[#allocation2 + $0xb8] sm:$0xff] %v5968
        %6005 = vst [vmem:[#allocation2 + $0xc0] sm:$0xff] %v5969
        %6006 = vst [vmem:[#allocation2 + $0xc8] sm:$0xff] %v5970
        %6007 = vst [vmem:[#allocation2 + $0xd0] sm:$0xff] %v5971
        %6008 = vst [vmem:[#allocation2 + $0xd8] sm:$0xff] %v5972
        %6009 = vst [vmem:[#allocation2 + $0xe0] sm:$0xff] %v5973
        %6010 = vst [vmem:[#allocation2 + $0xe8] sm:$0xff] %v5974
        %6011 = vst [vmem:[#allocation2 + $0xf0] sm:$0xff] %v5975
        %6012 = vst [vmem:[#allocation2 + $0xf8] sm:$0xff] %v5976
        %6013 = vst [vmem:[#allocation2 + $0x100] sm:$0xff] %v5977
        %6014 = vst [vmem:[#allocation2 + $0x108] sm:$0xff] %v5978
        %6015 = vst [vmem:[#allocation2 + $0x110] sm:$0xff] %v5979
        %6016 = vst [vmem:[#allocation2 + $0x118] sm:$0xff] %v5980
        %v6017 = vld [vmem:[#allocation3 + $0x18] sm:$0xff]
        %v6018 = vld [vmem:[#allocation3 + $0x20] sm:$0xff]
        %v6019 = vld [vmem:[#allocation3 + $0x28] sm:$0xff]
        %v6020 = vld [vmem:[#allocation3 + $0x30] sm:$0xff]
        %v6021 = vld [vmem:[#allocation3 + $0x38] sm:$0xff]
        %v6022 = vld [vmem:[#allocation3 + $0x40] sm:$0xff]
        %v6023 = vld [vmem:[#allocation3 + $0x48] sm:$0xff]
        %v6024 = vld [vmem:[#allocation3 + $0x50] sm:$0xff]
        %v6025 = vld [vmem:[#allocation3 + $0x58] sm:$0xff]
        %v6026 = vld [vmem:[#allocation3 + $0x60] sm:$0xff]
        %v6027 = vld [vmem:[#allocation3 + $0x68] sm:$0xff]
        %v6028 = vld [vmem:[#allocation3 + $0x70] sm:$0xff]
        %v6029 = vld [vmem:[#allocation3 + $0x78] sm:$0xff]
        %v6030 = vld [vmem:[#allocation3 + $0x80] sm:$0xff]
        %v6031 = vld [vmem:[#allocation3 + $0x88] sm:$0xff]
        %v6032 = vld [vmem:[#allocation3 + $0x90] sm:$0xff]
        %v6033 = vld [vmem:[#allocation3 + $0x98] sm:$0xff]
        %v6034 = vld [vmem:[#allocation3 + $0xa0] sm:$0xff]
        %v6035 = vld [vmem:[#allocation3 + $0xa8] sm:$0xff]
        %v6036 = vld [vmem:[#allocation3 + $0xb0] sm:$0xff]
        %v6037 = vld [vmem:[#allocation3 + $0xb8] sm:$0xff]
        %v6038 = vld [vmem:[#allocation3 + $0xc0] sm:$0xff]
        %v6039 = vld [vmem:[#allocation3 + $0xc8] sm:$0xff]
        %v6040 = vld [vmem:[#allocation3 + $0xd0] sm:$0xff]
        %v6041 = vld [vmem:[#allocation3 + $0xd8] sm:$0xff]
        %v6042 = vld [vmem:[#allocation3 + $0xe0] sm:$0xff]
        %v6043 = vld [vmem:[#allocation3 + $0xe8] sm:$0xff]
        %v6044 = vld [vmem:[#allocation3 + $0xf0] sm:$0xff]
        %v6045 = vld [vmem:[#allocation3 + $0xf8] sm:$0xff]
        %v6046 = vld [vmem:[#allocation3 + $0x100] sm:$0xff]
        %v6047 = vld [vmem:[#allocation3 + $0x108] sm:$0xff]
        %v6048 = vld [vmem:[#allocation3 + $0x110] sm:$0xff]
        %v6049 = vld [vmem:[#allocation3 + $0x118] sm:$0xff]
        %v6050 = vld [vmem:[#allocation3 + $0x120] sm:$0xff]
        %v6051 = vld [vmem:[#allocation3 + $0x128] sm:$0xff]
        %v6052 = vld [vmem:[#allocation3 + $0x130] sm:$0xff]
        %v6053 = vpack.c.bf16 %v6018, %v6017
        %v6054 = vpack.c.bf16 %v6020, %v6019
        %v6055 = vpack.c.bf16 %v6022, %v6021
        %v6056 = vpack.c.bf16 %v6024, %v6023
        %v6057 = vpack.c.bf16 %v6026, %v6025
        %v6058 = vpack.c.bf16 %v6028, %v6027
        %v6059 = vpack.c.bf16 %v6030, %v6029
        %v6060 = vpack.c.bf16 %v6032, %v6031
        %v6061 = vpack.c.bf16 %v6034, %v6033
        %v6062 = vpack.c.bf16 %v6036, %v6035
        %v6063 = vpack.c.bf16 %v6038, %v6037
        %v6064 = vpack.c.bf16 %v6040, %v6039
        %v6065 = vpack.c.bf16 %v6042, %v6041
        %v6066 = vpack.c.bf16 %v6044, %v6043
        %v6067 = vpack.c.bf16 %v6046, %v6045
        %v6068 = vpack.c.bf16 %v6048, %v6047
        %v6069 = vpack.c.bf16 %v6050, %v6049
        %v6070 = vpack.c.bf16 %v6052, %v6051
        %v6071 = vld [vmem:[#allocation2] sm:$0xff]
        %v6072 = vld [vmem:[#allocation2 + $0x8] sm:$0xff]
        %v6073 = vld [vmem:[#allocation2 + $0x10] sm:$0xff]
        %v6074 = vld [vmem:[#allocation2 + $0x18] sm:$0xff]
        %v6075 = vld [vmem:[#allocation2 + $0x20] sm:$0xff]
        %v6076 = vld [vmem:[#allocation2 + $0x28] sm:$0xff]
        %v6077 = vld [vmem:[#allocation2 + $0x30] sm:$0xff]
        %v6078 = vld [vmem:[#allocation2 + $0x38] sm:$0xff]
        %v6079 = vld [vmem:[#allocation2 + $0x40] sm:$0xff]
        %v6080 = vld [vmem:[#allocation2 + $0x48] sm:$0xff]
        %v6081 = vld [vmem:[#allocation2 + $0x50] sm:$0xff]
        %v6082 = vld [vmem:[#allocation2 + $0x58] sm:$0xff]
        %v6083 = vld [vmem:[#allocation2 + $0x60] sm:$0xff]
        %v6084 = vld [vmem:[#allocation2 + $0x68] sm:$0xff]
        %v6085 = vld [vmem:[#allocation2 + $0x70] sm:$0xff]
        %v6086 = vld [vmem:[#allocation2 + $0x78] sm:$0xff]
        %v6087 = vld [vmem:[#allocation2 + $0x80] sm:$0xff]
        %v6088 = vld [vmem:[#allocation2 + $0x88] sm:$0xff]
        %v6089 = vld [vmem:[#allocation2 + $0x90] sm:$0xff]
        %v6090 = vld [vmem:[#allocation2 + $0x98] sm:$0xff]
        %v6091 = vld [vmem:[#allocation2 + $0xa0] sm:$0xff]
        %v6092 = vld [vmem:[#allocation2 + $0xa8] sm:$0xff]
        %v6093 = vld [vmem:[#allocation2 + $0xb0] sm:$0xff]
        %v6094 = vld [vmem:[#allocation2 + $0xb8] sm:$0xff]
        %v6095 = vld [vmem:[#allocation2 + $0xc0] sm:$0xff]
        %v6096 = vld [vmem:[#allocation2 + $0xc8] sm:$0xff]
        %v6097 = vld [vmem:[#allocation2 + $0xd0] sm:$0xff]
        %v6098 = vld [vmem:[#allocation2 + $0xd8] sm:$0xff]
        %v6099 = vld [vmem:[#allocation2 + $0xe0] sm:$0xff]
        %v6100 = vld [vmem:[#allocation2 + $0xe8] sm:$0xff]
        %v6101 = vld [vmem:[#allocation2 + $0xf0] sm:$0xff]
        %v6102 = vld [vmem:[#allocation2 + $0xf8] sm:$0xff]
        %v6103 = vld [vmem:[#allocation2 + $0x100] sm:$0xff]
        %v6104 = vld [vmem:[#allocation2 + $0x108] sm:$0xff]
        %v6105 = vld [vmem:[#allocation2 + $0x110] sm:$0xff]
        %v6106 = vld [vmem:[#allocation2 + $0x118] sm:$0xff]
        %s6107 = scalar_lea.vmem %s3, 256
        %v6108 = vld [vmem:[%s6107] sm:$0xf]
        %v6109 = vld [vmem:[%s6107 + $0x4] sm:$0xf]
        %v6110 = vld [vmem:[%s6107 + $0x8] sm:$0xf]
        %v6111 = vld [vmem:[%s6107 + $0xc] sm:$0xf]
        %v6112 = vld [vmem:[%s6107 + $0x10] sm:$0xf]
        %v6113 = vld [vmem:[%s6107 + $0x14] sm:$0xf]
        %v6114 = vld [vmem:[%s6107 + $0x18] sm:$0xf]
        %v6115 = vld [vmem:[%s6107 + $0x1c] sm:$0xf]
        %v6116 = vld [vmem:[%s6107 + $0x20] sm:$0xf]
        %v6117 = vld [vmem:[%s6107 + $0x24] sm:$0xf]
        %v6118 = vld [vmem:[%s6107 + $0x28] sm:$0xf]
        %v6119 = vld [vmem:[%s6107 + $0x2c] sm:$0xf]
        %v6120 = vld [vmem:[%s6107 + $0x30] sm:$0xf]
        %v6121 = vld [vmem:[%s6107 + $0x34] sm:$0xf]
        %v6122 = vld [vmem:[%s6107 + $0x38] sm:$0xf]
        %v6123 = vld [vmem:[%s6107 + $0x3c] sm:$0xf]
        %v6140 = vunpack.c.l.b16 %v6108
        %v6141 = vunpack.c.l.b16 %v6109
        %v6142 = vunpack.c.l.b16 %v6110
        %v6143 = vunpack.c.l.b16 %v6111
        %v6144 = vunpack.c.l.b16 %v6112
        %v6145 = vunpack.c.l.b16 %v6113
        %v6146 = vunpack.c.l.b16 %v6114
        %v6147 = vunpack.c.l.b16 %v6115
        %v6148 = vunpack.c.l.b16 %v6116
        %v6149 = vunpack.c.l.b16 %v6117
        %v6150 = vunpack.c.l.b16 %v6118
        %v6151 = vunpack.c.l.b16 %v6119
        %v6152 = vunpack.c.l.b16 %v6120
        %v6153 = vunpack.c.l.b16 %v6121
        %v6154 = vunpack.c.l.b16 %v6122
        %v6155 = vunpack.c.l.b16 %v6123
        %v6156 = vpack.c.b16 %v6141, %v6140
        %v6157 = vpack.c.b16 %v6143, %v6142
        %v6158 = vpack.c.b16 %v6145, %v6144
        %v6159 = vpack.c.b16 %v6147, %v6146
        %v6160 = vpack.c.b16 %v6149, %v6148
        %v6161 = vpack.c.b16 %v6151, %v6150
        %v6162 = vpack.c.b16 %v6153, %v6152
        %v6163 = vpack.c.b16 %v6155, %v6154
        %6172 = vmatprep.subr.bf16.mxu0 0
        %6173 = vmatpush1.bf16.msra.mxu0 %v6156
        %6174 = vmatprep.subr.bf16.mxu0 0
        %6175 = vmatpush1.bf16.msra.mxu0 %v6157
        %6176 = vmatprep.subr.bf16.mxu0 0
        %6177 = vmatpush1.bf16.msra.mxu0 %v6158
        %6178 = vmatprep.subr.bf16.mxu0 0
        %6179 = vmatpush1.bf16.msra.mxu0 %v6159
        %6180 = vmatprep.subr.bf16.mxu0 0
        %6181 = vmatpush1.bf16.msra.mxu0 %v6160
        %6182 = vmatprep.subr.bf16.mxu0 0
        %6183 = vmatpush1.bf16.msra.mxu0 %v6161
        %6184 = vmatprep.subr.bf16.mxu0 0
        %6185 = vmatpush1.bf16.msra.mxu0 %v6162
        %6186 = vmatprep.subr.bf16.mxu0 0
        %6187 = vmatpush1.bf16.msra.mxu0 %v6163
        %6188 = vmatprep.subr.bf16.mxu0 0
        %6189 = vmatpush1.bf16.msra.mxu0 0
        %6190 = vmatprep.subr.bf16.mxu0 0
        %6191 = vmatpush1.bf16.msra.mxu0 0
        %6192 = vmatprep.subr.bf16.mxu0 0
        %6193 = vmatpush1.bf16.msra.mxu0 0
        %6194 = vmatprep.subr.bf16.mxu0 0
        %6195 = vmatpush1.bf16.msra.mxu0 0
        %6196 = vmatprep.subr.bf16.mxu0 0
        %6197 = vmatpush1.bf16.msra.mxu0 0
        %6198 = vmatprep.subr.bf16.mxu0 0
        %6199 = vmatpush1.bf16.msra.mxu0 0
        %6200 = vmatprep.subr.bf16.mxu0 0
        %6201 = vmatpush1.bf16.msra.mxu0 0
        %6202 = vmatprep.subr.bf16.mxu0 0
        %6203 = vmatpush1.bf16.msra.mxu0 0
        %6204 = vmatprep.mubr.bf16.mxu0 0
        %6205 = vmatmul.mubr.bf16.gmra.mrb[0].mxu0 %v6053
        %v6206 = vpop.f32.mrb[0].mxu0
        %v6207 = vadd.f32 0.0, %v6206
        %v6208 = vpop.f32.mrb[0].mxu0
        %v6209 = vpop.f32.mrb[0].mxu0
        %v6210 = vadd.f32 0.0, %v6209
        %v6211 = vpop.f32.mrb[0].mxu0
        %6212 = vmatprep.mubr.bf16.mxu0 0
        %6213 = vmatmul.mubr.bf16.gmra.mrb[0].mxu0 %v6054
        %v6214 = vpop.f32.mrb[0].mxu0
        %v6215 = vadd.f32 0.0, %v6214
        %v6216 = vpop.f32.mrb[0].mxu0
        %v6217 = vpop.f32.mrb[0].mxu0
        %v6218 = vadd.f32 0.0, %v6217
        %v6219 = vpop.f32.mrb[0].mxu0
        %6220 = vmatprep.mubr.bf16.mxu0 0
        %6221 = vmatmul.mubr.bf16.gmra.mrb[0].mxu0 %v6055
        %v6222 = vpop.f32.mrb[0].mxu0
        %v6223 = vadd.f32 0.0, %v6222
        %v6224 = vpop.f32.mrb[0].mxu0
        %v6225 = vpop.f32.mrb[0].mxu0
        %v6226 = vadd.f32 0.0, %v6225
        %v6227 = vpop.f32.mrb[0].mxu0
        %6228 = vmatprep.mubr.bf16.mxu0 0
        %6229 = vmatmul.mubr.bf16.gmra.mrb[0].mxu0 %v6056
        %v6230 = vpop.f32.mrb[0].mxu0
        %v6231 = vadd.f32 0.0, %v6230
        %v6232 = vpop.f32.mrb[0].mxu0
        %v6233 = vpop.f32.mrb[0].mxu0
        %v6234 = vadd.f32 0.0, %v6233
        %v6235 = vpop.f32.mrb[0].mxu0
        %6236 = vmatprep.mubr.bf16.mxu0 0
        %6237 = vmatmul.mubr.bf16.gmra.mrb[0].mxu0 %v6057
        %v6238 = vpop.f32.mrb[0].mxu0
        %v6239 = vadd.f32 0.0, %v6238
        %v6240 = vpop.f32.mrb[0].mxu0
        %v6241 = vpop.f32.mrb[0].mxu0
        %v6242 = vadd.f32 0.0, %v6241
        %v6243 = vpop.f32.mrb[0].mxu0
        %6244 = vmatprep.mubr.bf16.mxu0 0
        %6245 = vmatmul.mubr.bf16.gmra.mrb[0].mxu0 %v6058
        %v6246 = vpop.f32.mrb[0].mxu0
        %v6247 = vadd.f32 0.0, %v6246
        %v6248 = vpop.f32.mrb[0].mxu0
        %v6249 = vpop.f32.mrb[0].mxu0
        %v6250 = vadd.f32 0.0, %v6249
        %v6251 = vpop.f32.mrb[0].mxu0
        %6252 = vmatprep.mubr.bf16.mxu0 0
        %6253 = vmatmul.mubr.bf16.gmra.mrb[0].mxu0 %v6059
        %v6254 = vpop.f32.mrb[0].mxu0
        %v6255 = vadd.f32 0.0, %v6254
        %v6256 = vpop.f32.mrb[0].mxu0
        %v6257 = vpop.f32.mrb[0].mxu0
        %v6258 = vadd.f32 0.0, %v6257
        %v6259 = vpop.f32.mrb[0].mxu0
        %6260 = vmatprep.mubr.bf16.mxu0 0
        %6261 = vmatmul.mubr.bf16.gmra.mrb[0].mxu0 %v6060
        %v6262 = vpop.f32.mrb[0].mxu0
        %v6263 = vadd.f32 0.0, %v6262
        %v6264 = vpop.f32.mrb[0].mxu0
        %v6265 = vpop.f32.mrb[0].mxu0
        %v6266 = vadd.f32 0.0, %v6265
        %v6267 = vpop.f32.mrb[0].mxu0
        %6268 = vmatprep.mubr.bf16.mxu0 0
        %6269 = vmatmul.mubr.bf16.gmra.mrb[0].mxu0 %v6061
        %v6270 = vpop.f32.mrb[0].mxu0
        %v6271 = vadd.f32 0.0, %v6270
        %v6272 = vpop.f32.mrb[0].mxu0
        %v6273 = vpop.f32.mrb[0].mxu0
        %v6274 = vadd.f32 0.0, %v6273
        %v6275 = vpop.f32.mrb[0].mxu0
        %6276 = vmatprep.mubr.bf16.mxu0 0
        %6277 = vmatmul.mubr.bf16.gmra.mrb[0].mxu0 %v6062
        %v6278 = vpop.f32.mrb[0].mxu0
        %v6279 = vadd.f32 0.0, %v6278
        %v6280 = vpop.f32.mrb[0].mxu0
        %v6281 = vpop.f32.mrb[0].mxu0
        %v6282 = vadd.f32 0.0, %v6281
        %v6283 = vpop.f32.mrb[0].mxu0
        %6284 = vmatprep.mubr.bf16.mxu0 0
        %6285 = vmatmul.mubr.bf16.gmra.mrb[0].mxu0 %v6063
        %v6286 = vpop.f32.mrb[0].mxu0
        %v6287 = vadd.f32 0.0, %v6286
        %v6288 = vpop.f32.mrb[0].mxu0
        %v6289 = vpop.f32.mrb[0].mxu0
        %v6290 = vadd.f32 0.0, %v6289
        %v6291 = vpop.f32.mrb[0].mxu0
        %6292 = vmatprep.mubr.bf16.mxu0 0
        %6293 = vmatmul.mubr.bf16.gmra.mrb[0].mxu0 %v6064
        %v6294 = vpop.f32.mrb[0].mxu0
        %v6295 = vadd.f32 0.0, %v6294
        %v6296 = vpop.f32.mrb[0].mxu0
        %v6297 = vpop.f32.mrb[0].mxu0
        %v6298 = vadd.f32 0.0, %v6297
        %v6299 = vpop.f32.mrb[0].mxu0
        %6300 = vmatprep.mubr.bf16.mxu0 0
        %6301 = vmatmul.mubr.bf16.gmra.mrb[0].mxu0 %v6065
        %v6302 = vpop.f32.mrb[0].mxu0
        %v6303 = vadd.f32 0.0, %v6302
        %v6304 = vpop.f32.mrb[0].mxu0
        %v6305 = vpop.f32.mrb[0].mxu0
        %v6306 = vadd.f32 0.0, %v6305
        %v6307 = vpop.f32.mrb[0].mxu0
        %6308 = vmatprep.mubr.bf16.mxu0 0
        %6309 = vmatmul.mubr.bf16.gmra.mrb[0].mxu0 %v6066
        %v6310 = vpop.f32.mrb[0].mxu0
        %v6311 = vadd.f32 0.0, %v6310
        %v6312 = vpop.f32.mrb[0].mxu0
        %v6313 = vpop.f32.mrb[0].mxu0
        %v6314 = vadd.f32 0.0, %v6313
        %v6315 = vpop.f32.mrb[0].mxu0
        %6316 = vmatprep.mubr.bf16.mxu0 0
        %6317 = vmatmul.mubr.bf16.gmra.mrb[0].mxu0 %v6067
        %v6318 = vpop.f32.mrb[0].mxu0
        %v6319 = vadd.f32 0.0, %v6318
        %v6320 = vpop.f32.mrb[0].mxu0
        %v6321 = vpop.f32.mrb[0].mxu0
        %v6322 = vadd.f32 0.0, %v6321
        %v6323 = vpop.f32.mrb[0].mxu0
        %6324 = vmatprep.mubr.bf16.mxu0 0
        %6325 = vmatmul.mubr.bf16.gmra.mrb[0].mxu0 %v6068
        %v6326 = vpop.f32.mrb[0].mxu0
        %v6327 = vadd.f32 0.0, %v6326
        %v6328 = vpop.f32.mrb[0].mxu0
        %v6329 = vpop.f32.mrb[0].mxu0
        %v6330 = vadd.f32 0.0, %v6329
        %v6331 = vpop.f32.mrb[0].mxu0
        %6332 = vmatprep.mubr.bf16.mxu0 0
        %6333 = vmatmul.mubr.bf16.gmra.mrb[0].mxu0 %v6069
        %v6334 = vpop.f32.mrb[0].mxu0
        %v6335 = vadd.f32 0.0, %v6334
        %v6336 = vpop.f32.mrb[0].mxu0
        %v6337 = vpop.f32.mrb[0].mxu0
        %v6338 = vadd.f32 0.0, %v6337
        %v6339 = vpop.f32.mrb[0].mxu0
        %6340 = vmatprep.mubr.bf16.mxu0 0
        %6341 = vmatmul.mubr.bf16.gmra.mrb[0].mxu0 %v6070
        %v6342 = vpop.f32.mrb[0].mxu0
        %v6343 = vadd.f32 0.0, %v6342
        %v6344 = vpop.f32.mrb[0].mxu0
        %v6345 = vpop.f32.mrb[0].mxu0
        %v6346 = vadd.f32 0.0, %v6345
        %v6347 = vpop.f32.mrb[0].mxu0
        %6348 = vdwg.mxu0
        %v6349 = vadd.f32 %v6071, %v6207
        %v6350 = vadd.f32 %v6072, %v6210
        %v6351 = vadd.f32 %v6073, %v6215
        %v6352 = vadd.f32 %v6074, %v6218
        %v6353 = vadd.f32 %v6075, %v6223
        %v6354 = vadd.f32 %v6076, %v6226
        %v6355 = vadd.f32 %v6077, %v6231
        %v6356 = vadd.f32 %v6078, %v6234
        %v6357 = vadd.f32 %v6079, %v6239
        %v6358 = vadd.f32 %v6080, %v6242
        %v6359 = vadd.f32 %v6081, %v6247
        %v6360 = vadd.f32 %v6082, %v6250
        %v6361 = vadd.f32 %v6083, %v6255
        %v6362 = vadd.f32 %v6084, %v6258
        %v6363 = vadd.f32 %v6085, %v6263
        %v6364 = vadd.f32 %v6086, %v6266
        %v6365 = vadd.f32 %v6087, %v6271
        %v6366 = vadd.f32 %v6088, %v6274
        %v6367 = vadd.f32 %v6089, %v6279
        %v6368 = vadd.f32 %v6090, %v6282
        %v6369 = vadd.f32 %v6091, %v6287
        %v6370 = vadd.f32 %v6092, %v6290
        %v6371 = vadd.f32 %v6093, %v6295
        %v6372 = vadd.f32 %v6094, %v6298
        %v6373 = vadd.f32 %v6095, %v6303
        %v6374 = vadd.f32 %v6096, %v6306
        %v6375 = vadd.f32 %v6097, %v6311
        %v6376 = vadd.f32 %v6098, %v6314
        %v6377 = vadd.f32 %v6099, %v6319
        %v6378 = vadd.f32 %v6100, %v6322
        %v6379 = vadd.f32 %v6101, %v6327
        %v6380 = vadd.f32 %v6102, %v6330
        %v6381 = vadd.f32 %v6103, %v6335
        %v6382 = vadd.f32 %v6104, %v6338
        %v6383 = vadd.f32 %v6105, %v6343
        %v6384 = vadd.f32 %v6106, %v6346
        %6385 = vst [vmem:[#allocation2] sm:$0xff] %v6349
        %6386 = vst [vmem:[#allocation2 + $0x8] sm:$0xff] %v6350
        %6387 = vst [vmem:[#allocation2 + $0x10] sm:$0xff] %v6351
        %6388 = vst [vmem:[#allocation2 + $0x18] sm:$0xff] %v6352
        %6389 = vst [vmem:[#allocation2 + $0x20] sm:$0xff] %v6353
        %6390 = vst [vmem:[#allocation2 + $0x28] sm:$0xff] %v6354
        %6391 = vst [vmem:[#allocation2 + $0x30] sm:$0xff] %v6355
        %6392 = vst [vmem:[#allocation2 + $0x38] sm:$0xff] %v6356
        %6393 = vst [vmem:[#allocation2 + $0x40] sm:$0xff] %v6357
        %6394 = vst [vmem:[#allocation2 + $0x48] sm:$0xff] %v6358
        %6395 = vst [vmem:[#allocation2 + $0x50] sm:$0xff] %v6359
        %6396 = vst [vmem:[#allocation2 + $0x58] sm:$0xff] %v6360
        %6397 = vst [vmem:[#allocation2 + $0x60] sm:$0xff] %v6361
        %6398 = vst [vmem:[#allocation2 + $0x68] sm:$0xff] %v6362
        %6399 = vst [vmem:[#allocation2 + $0x70] sm:$0xff] %v6363
        %6400 = vst [vmem:[#allocation2 + $0x78] sm:$0xff] %v6364
        %6401 = vst [vmem:[#allocation2 + $0x80] sm:$0xff] %v6365
        %6402 = vst [vmem:[#allocation2 + $0x88] sm:$0xff] %v6366
        %6403 = vst [vmem:[#allocation2 + $0x90] sm:$0xff] %v6367
        %6404 = vst [vmem:[#allocation2 + $0x98] sm:$0xff] %v6368
        %6405 = vst [vmem:[#allocation2 + $0xa0] sm:$0xff] %v6369
        %6406 = vst [vmem:[#allocation2 + $0xa8] sm:$0xff] %v6370
        %6407 = vst [vmem:[#allocation2 + $0xb0] sm:$0xff] %v6371
        %6408 = vst [vmem:[#allocation2 + $0xb8] sm:$0xff] %v6372
        %6409 = vst [vmem:[#allocation2 + $0xc0] sm:$0xff] %v6373
        %6410 = vst [vmem:[#allocation2 + $0xc8] sm:$0xff] %v6374
        %6411 = vst [vmem:[#allocation2 + $0xd0] sm:$0xff] %v6375
        %6412 = vst [vmem:[#allocation2 + $0xd8] sm:$0xff] %v6376
        %6413 = vst [vmem:[#allocation2 + $0xe0] sm:$0xff] %v6377
        %6414 = vst [vmem:[#allocation2 + $0xe8] sm:$0xff] %v6378
        %6415 = vst [vmem:[#allocation2 + $0xf0] sm:$0xff] %v6379
        %6416 = vst [vmem:[#allocation2 + $0xf8] sm:$0xff] %v6380
        %6417 = vst [vmem:[#allocation2 + $0x100] sm:$0xff] %v6381
        %6418 = vst [vmem:[#allocation2 + $0x108] sm:$0xff] %v6382
        %6419 = vst [vmem:[#allocation2 + $0x110] sm:$0xff] %v6383
        %6420 = vst [vmem:[#allocation2 + $0x118] sm:$0xff] %v6384
        %v6421 = vld [vmem:[#allocation3 + $0x19] sm:$0xff]
        %v6422 = vld [vmem:[#allocation3 + $0x21] sm:$0xff]
        %v6423 = vld [vmem:[#allocation3 + $0x29] sm:$0xff]
        %v6424 = vld [vmem:[#allocation3 + $0x31] sm:$0xff]
        %v6425 = vld [vmem:[#allocation3 + $0x39] sm:$0xff]
        %v6426 = vld [vmem:[#allocation3 + $0x41] sm:$0xff]
        %v6427 = vld [vmem:[#allocation3 + $0x49] sm:$0xff]
        %v6428 = vld [vmem:[#allocation3 + $0x51] sm:$0xff]
        %v6429 = vld [vmem:[#allocation3 + $0x59] sm:$0xff]
        %v6430 = vld [vmem:[#allocation3 + $0x61] sm:$0xff]
        %v6431 = vld [vmem:[#allocation3 + $0x69] sm:$0xff]
        %v6432 = vld [vmem:[#allocation3 + $0x71] sm:$0xff]
        %v6433 = vld [vmem:[#allocation3 + $0x79] sm:$0xff]
        %v6434 = vld [vmem:[#allocation3 + $0x81] sm:$0xff]
        %v6435 = vld [vmem:[#allocation3 + $0x89] sm:$0xff]
        %v6436 = vld [vmem:[#allocation3 + $0x91] sm:$0xff]
        %v6437 = vld [vmem:[#allocation3 + $0x99] sm:$0xff]
        %v6438 = vld [vmem:[#allocation3 + $0xa1] sm:$0xff]
        %v6439 = vld [vmem:[#allocation3 + $0xa9] sm:$0xff]
        %v6440 = vld [vmem:[#allocation3 + $0xb1] sm:$0xff]
        %v6441 = vld [vmem:[#allocation3 + $0xb9] sm:$0xff]
        %v6442 = vld [vmem:[#allocation3 + $0xc1] sm:$0xff]
        %v6443 = vld [vmem:[#allocation3 + $0xc9] sm:$0xff]
        %v6444 = vld [vmem:[#allocation3 + $0xd1] sm:$0xff]
        %v6445 = vld [vmem:[#allocation3 + $0xd9] sm:$0xff]
        %v6446 = vld [vmem:[#allocation3 + $0xe1] sm:$0xff]
        %v6447 = vld [vmem:[#allocation3 + $0xe9] sm:$0xff]
        %v6448 = vld [vmem:[#allocation3 + $0xf1] sm:$0xff]
        %v6449 = vld [vmem:[#allocation3 + $0xf9] sm:$0xff]
        %v6450 = vld [vmem:[#allocation3 + $0x101] sm:$0xff]
        %v6451 = vld [vmem:[#allocation3 + $0x109] sm:$0xff]
        %v6452 = vld [vmem:[#allocation3 + $0x111] sm:$0xff]
        %v6453 = vld [vmem:[#allocation3 + $0x119] sm:$0xff]
        %v6454 = vld [vmem:[#allocation3 + $0x121] sm:$0xff]
        %v6455 = vld [vmem:[#allocation3 + $0x129] sm:$0xff]
        %v6456 = vld [vmem:[#allocation3 + $0x131] sm:$0xff]
        %v6457 = vpack.c.bf16 %v6422, %v6421
        %v6458 = vpack.c.bf16 %v6424, %v6423
        %v6459 = vpack.c.bf16 %v6426, %v6425
        %v6460 = vpack.c.bf16 %v6428, %v6427
        %v6461 = vpack.c.bf16 %v6430, %v6429
        %v6462 = vpack.c.bf16 %v6432, %v6431
        %v6463 = vpack.c.bf16 %v6434, %v6433
        %v6464 = vpack.c.bf16 %v6436, %v6435
        %v6465 = vpack.c.bf16 %v6438, %v6437
        %v6466 = vpack.c.bf16 %v6440, %v6439
        %v6467 = vpack.c.bf16 %v6442, %v6441
        %v6468 = vpack.c.bf16 %v6444, %v6443
        %v6469 = vpack.c.bf16 %v6446, %v6445
        %v6470 = vpack.c.bf16 %v6448, %v6447
        %v6471 = vpack.c.bf16 %v6450, %v6449
        %v6472 = vpack.c.bf16 %v6452, %v6451
        %v6473 = vpack.c.bf16 %v6454, %v6453
        %v6474 = vpack.c.bf16 %v6456, %v6455
        %v6475 = vld [vmem:[#allocation2] sm:$0xff]
        %v6476 = vld [vmem:[#allocation2 + $0x8] sm:$0xff]
        %v6477 = vld [vmem:[#allocation2 + $0x10] sm:$0xff]
        %v6478 = vld [vmem:[#allocation2 + $0x18] sm:$0xff]
        %v6479 = vld [vmem:[#allocation2 + $0x20] sm:$0xff]
        %v6480 = vld [vmem:[#allocation2 + $0x28] sm:$0xff]
        %v6481 = vld [vmem:[#allocation2 + $0x30] sm:$0xff]
        %v6482 = vld [vmem:[#allocation2 + $0x38] sm:$0xff]
        %v6483 = vld [vmem:[#allocation2 + $0x40] sm:$0xff]
        %v6484 = vld [vmem:[#allocation2 + $0x48] sm:$0xff]
        %v6485 = vld [vmem:[#allocation2 + $0x50] sm:$0xff]
        %v6486 = vld [vmem:[#allocation2 + $0x58] sm:$0xff]
        %v6487 = vld [vmem:[#allocation2 + $0x60] sm:$0xff]
        %v6488 = vld [vmem:[#allocation2 + $0x68] sm:$0xff]
        %v6489 = vld [vmem:[#allocation2 + $0x70] sm:$0xff]
        %v6490 = vld [vmem:[#allocation2 + $0x78] sm:$0xff]
        %v6491 = vld [vmem:[#allocation2 + $0x80] sm:$0xff]
        %v6492 = vld [vmem:[#allocation2 + $0x88] sm:$0xff]
        %v6493 = vld [vmem:[#allocation2 + $0x90] sm:$0xff]
        %v6494 = vld [vmem:[#allocation2 + $0x98] sm:$0xff]
        %v6495 = vld [vmem:[#allocation2 + $0xa0] sm:$0xff]
        %v6496 = vld [vmem:[#allocation2 + $0xa8] sm:$0xff]
        %v6497 = vld [vmem:[#allocation2 + $0xb0] sm:$0xff]
        %v6498 = vld [vmem:[#allocation2 + $0xb8] sm:$0xff]
        %v6499 = vld [vmem:[#allocation2 + $0xc0] sm:$0xff]
        %v6500 = vld [vmem:[#allocation2 + $0xc8] sm:$0xff]
        %v6501 = vld [vmem:[#allocation2 + $0xd0] sm:$0xff]
        %v6502 = vld [vmem:[#allocation2 + $0xd8] sm:$0xff]
        %v6503 = vld [vmem:[#allocation2 + $0xe0] sm:$0xff]
        %v6504 = vld [vmem:[#allocation2 + $0xe8] sm:$0xff]
        %v6505 = vld [vmem:[#allocation2 + $0xf0] sm:$0xff]
        %v6506 = vld [vmem:[#allocation2 + $0xf8] sm:$0xff]
        %v6507 = vld [vmem:[#allocation2 + $0x100] sm:$0xff]
        %v6508 = vld [vmem:[#allocation2 + $0x108] sm:$0xff]
        %v6509 = vld [vmem:[#allocation2 + $0x110] sm:$0xff]
        %v6510 = vld [vmem:[#allocation2 + $0x118] sm:$0xff]
        %s6511 = scalar_lea.vmem %s3, 320
        %v6512 = vld [vmem:[%s6511] sm:$0xf]
        %v6513 = vld [vmem:[%s6511 + $0x4] sm:$0xf]
        %v6514 = vld [vmem:[%s6511 + $0x8] sm:$0xf]
        %v6515 = vld [vmem:[%s6511 + $0xc] sm:$0xf]
        %v6516 = vld [vmem:[%s6511 + $0x10] sm:$0xf]
        %v6517 = vld [vmem:[%s6511 + $0x14] sm:$0xf]
        %v6518 = vld [vmem:[%s6511 + $0x18] sm:$0xf]
        %v6519 = vld [vmem:[%s6511 + $0x1c] sm:$0xf]
        %v6520 = vld [vmem:[%s6511 + $0x20] sm:$0xf]
        %v6521 = vld [vmem:[%s6511 + $0x24] sm:$0xf]
        %v6522 = vld [vmem:[%s6511 + $0x28] sm:$0xf]
        %v6523 = vld [vmem:[%s6511 + $0x2c] sm:$0xf]
        %v6524 = vld [vmem:[%s6511 + $0x30] sm:$0xf]
        %v6525 = vld [vmem:[%s6511 + $0x34] sm:$0xf]
        %v6526 = vld [vmem:[%s6511 + $0x38] sm:$0xf]
        %v6527 = vld [vmem:[%s6511 + $0x3c] sm:$0xf]
        %v6544 = vunpack.c.l.b16 %v6512
        %v6545 = vunpack.c.l.b16 %v6513
        %v6546 = vunpack.c.l.b16 %v6514
        %v6547 = vunpack.c.l.b16 %v6515
        %v6548 = vunpack.c.l.b16 %v6516
        %v6549 = vunpack.c.l.b16 %v6517
        %v6550 = vunpack.c.l.b16 %v6518
        %v6551 = vunpack.c.l.b16 %v6519
        %v6552 = vunpack.c.l.b16 %v6520
        %v6553 = vunpack.c.l.b16 %v6521
        %v6554 = vunpack.c.l.b16 %v6522
        %v6555 = vunpack.c.l.b16 %v6523
        %v6556 = vunpack.c.l.b16 %v6524
        %v6557 = vunpack.c.l.b16 %v6525
        %v6558 = vunpack.c.l.b16 %v6526
        %v6559 = vunpack.c.l.b16 %v6527
        %v6560 = vpack.c.b16 %v6545, %v6544
        %v6561 = vpack.c.b16 %v6547, %v6546
        %v6562 = vpack.c.b16 %v6549, %v6548
        %v6563 = vpack.c.b16 %v6551, %v6550
        %v6564 = vpack.c.b16 %v6553, %v6552
        %v6565 = vpack.c.b16 %v6555, %v6554
        %v6566 = vpack.c.b16 %v6557, %v6556
        %v6567 = vpack.c.b16 %v6559, %v6558
        %6576 = vmatprep.subr.bf16.mxu0 0
        %6577 = vmatpush1.bf16.msra.mxu0 %v6560
        %6578 = vmatprep.subr.bf16.mxu0 0
        %6579 = vmatpush1.bf16.msra.mxu0 %v6561
        %6580 = vmatprep.subr.bf16.mxu0 0
        %6581 = vmatpush1.bf16.msra.mxu0 %v6562
        %6582 = vmatprep.subr.bf16.mxu0 0
        %6583 = vmatpush1.bf16.msra.mxu0 %v6563
        %6584 = vmatprep.subr.bf16.mxu0 0
        %6585 = vmatpush1.bf16.msra.mxu0 %v6564
        %6586 = vmatprep.subr.bf16.mxu0 0
        %6587 = vmatpush1.bf16.msra.mxu0 %v6565
        %6588 = vmatprep.subr.bf16.mxu0 0
        %6589 = vmatpush1.bf16.msra.mxu0 %v6566
        %6590 = vmatprep.subr.bf16.mxu0 0
        %6591 = vmatpush1.bf16.msra.mxu0 %v6567
        %6592 = vmatprep.subr.bf16.mxu0 0
        %6593 = vmatpush1.bf16.msra.mxu0 0
        %6594 = vmatprep.subr.bf16.mxu0 0
        %6595 = vmatpush1.bf16.msra.mxu0 0
        %6596 = vmatprep.subr.bf16.mxu0 0
        %6597 = vmatpush1.bf16.msra.mxu0 0
        %6598 = vmatprep.subr.bf16.mxu0 0
        %6599 = vmatpush1.bf16.msra.mxu0 0
        %6600 = vmatprep.subr.bf16.mxu0 0
        %6601 = vmatpush1.bf16.msra.mxu0 0
        %6602 = vmatprep.subr.bf16.mxu0 0
        %6603 = vmatpush1.bf16.msra.mxu0 0
        %6604 = vmatprep.subr.bf16.mxu0 0
        %6605 = vmatpush1.bf16.msra.mxu0 0
        %6606 = vmatprep.subr.bf16.mxu0 0
        %6607 = vmatpush1.bf16.msra.mxu0 0
        %6608 = vmatprep.mubr.bf16.mxu0 0
        %6609 = vmatmul.mubr.bf16.gmra.mrb[0].mxu0 %v6457
        %v6610 = vpop.f32.mrb[0].mxu0
        %v6611 = vadd.f32 0.0, %v6610
        %v6612 = vpop.f32.mrb[0].mxu0
        %v6613 = vpop.f32.mrb[0].mxu0
        %v6614 = vadd.f32 0.0, %v6613
        %v6615 = vpop.f32.mrb[0].mxu0
        %6616 = vmatprep.mubr.bf16.mxu0 0
        %6617 = vmatmul.mubr.bf16.gmra.mrb[0].mxu0 %v6458
        %v6618 = vpop.f32.mrb[0].mxu0
        %v6619 = vadd.f32 0.0, %v6618
        %v6620 = vpop.f32.mrb[0].mxu0
        %v6621 = vpop.f32.mrb[0].mxu0
        %v6622 = vadd.f32 0.0, %v6621
        %v6623 = vpop.f32.mrb[0].mxu0
        %6624 = vmatprep.mubr.bf16.mxu0 0
        %6625 = vmatmul.mubr.bf16.gmra.mrb[0].mxu0 %v6459
        %v6626 = vpop.f32.mrb[0].mxu0
        %v6627 = vadd.f32 0.0, %v6626
        %v6628 = vpop.f32.mrb[0].mxu0
        %v6629 = vpop.f32.mrb[0].mxu0
        %v6630 = vadd.f32 0.0, %v6629
        %v6631 = vpop.f32.mrb[0].mxu0
        %6632 = vmatprep.mubr.bf16.mxu0 0
        %6633 = vmatmul.mubr.bf16.gmra.mrb[0].mxu0 %v6460
        %v6634 = vpop.f32.mrb[0].mxu0
        %v6635 = vadd.f32 0.0, %v6634
        %v6636 = vpop.f32.mrb[0].mxu0
        %v6637 = vpop.f32.mrb[0].mxu0
        %v6638 = vadd.f32 0.0, %v6637
        %v6639 = vpop.f32.mrb[0].mxu0
        %6640 = vmatprep.mubr.bf16.mxu0 0
        %6641 = vmatmul.mubr.bf16.gmra.mrb[0].mxu0 %v6461
        %v6642 = vpop.f32.mrb[0].mxu0
        %v6643 = vadd.f32 0.0, %v6642
        %v6644 = vpop.f32.mrb[0].mxu0
        %v6645 = vpop.f32.mrb[0].mxu0
        %v6646 = vadd.f32 0.0, %v6645
        %v6647 = vpop.f32.mrb[0].mxu0
        %6648 = vmatprep.mubr.bf16.mxu0 0
        %6649 = vmatmul.mubr.bf16.gmra.mrb[0].mxu0 %v6462
        %v6650 = vpop.f32.mrb[0].mxu0
        %v6651 = vadd.f32 0.0, %v6650
        %v6652 = vpop.f32.mrb[0].mxu0
        %v6653 = vpop.f32.mrb[0].mxu0
        %v6654 = vadd.f32 0.0, %v6653
        %v6655 = vpop.f32.mrb[0].mxu0
        %6656 = vmatprep.mubr.bf16.mxu0 0
        %6657 = vmatmul.mubr.bf16.gmra.mrb[0].mxu0 %v6463
        %v6658 = vpop.f32.mrb[0].mxu0
        %v6659 = vadd.f32 0.0, %v6658
        %v6660 = vpop.f32.mrb[0].mxu0
        %v6661 = vpop.f32.mrb[0].mxu0
        %v6662 = vadd.f32 0.0, %v6661
        %v6663 = vpop.f32.mrb[0].mxu0
        %6664 = vmatprep.mubr.bf16.mxu0 0
        %6665 = vmatmul.mubr.bf16.gmra.mrb[0].mxu0 %v6464
        %v6666 = vpop.f32.mrb[0].mxu0
        %v6667 = vadd.f32 0.0, %v6666
        %v6668 = vpop.f32.mrb[0].mxu0
        %v6669 = vpop.f32.mrb[0].mxu0
        %v6670 = vadd.f32 0.0, %v6669
        %v6671 = vpop.f32.mrb[0].mxu0
        %6672 = vmatprep.mubr.bf16.mxu0 0
        %6673 = vmatmul.mubr.bf16.gmra.mrb[0].mxu0 %v6465
        %v6674 = vpop.f32.mrb[0].mxu0
        %v6675 = vadd.f32 0.0, %v6674
        %v6676 = vpop.f32.mrb[0].mxu0
        %v6677 = vpop.f32.mrb[0].mxu0
        %v6678 = vadd.f32 0.0, %v6677
        %v6679 = vpop.f32.mrb[0].mxu0
        %6680 = vmatprep.mubr.bf16.mxu0 0
        %6681 = vmatmul.mubr.bf16.gmra.mrb[0].mxu0 %v6466
        %v6682 = vpop.f32.mrb[0].mxu0
        %v6683 = vadd.f32 0.0, %v6682
        %v6684 = vpop.f32.mrb[0].mxu0
        %v6685 = vpop.f32.mrb[0].mxu0
        %v6686 = vadd.f32 0.0, %v6685
        %v6687 = vpop.f32.mrb[0].mxu0
        %6688 = vmatprep.mubr.bf16.mxu0 0
        %6689 = vmatmul.mubr.bf16.gmra.mrb[0].mxu0 %v6467
        %v6690 = vpop.f32.mrb[0].mxu0
        %v6691 = vadd.f32 0.0, %v6690
        %v6692 = vpop.f32.mrb[0].mxu0
        %v6693 = vpop.f32.mrb[0].mxu0
        %v6694 = vadd.f32 0.0, %v6693
        %v6695 = vpop.f32.mrb[0].mxu0
        %6696 = vmatprep.mubr.bf16.mxu0 0
        %6697 = vmatmul.mubr.bf16.gmra.mrb[0].mxu0 %v6468
        %v6698 = vpop.f32.mrb[0].mxu0
        %v6699 = vadd.f32 0.0, %v6698
        %v6700 = vpop.f32.mrb[0].mxu0
        %v6701 = vpop.f32.mrb[0].mxu0
        %v6702 = vadd.f32 0.0, %v6701
        %v6703 = vpop.f32.mrb[0].mxu0
        %6704 = vmatprep.mubr.bf16.mxu0 0
        %6705 = vmatmul.mubr.bf16.gmra.mrb[0].mxu0 %v6469
        %v6706 = vpop.f32.mrb[0].mxu0
        %v6707 = vadd.f32 0.0, %v6706
        %v6708 = vpop.f32.mrb[0].mxu0
        %v6709 = vpop.f32.mrb[0].mxu0
        %v6710 = vadd.f32 0.0, %v6709
        %v6711 = vpop.f32.mrb[0].mxu0
        %6712 = vmatprep.mubr.bf16.mxu0 0
        %6713 = vmatmul.mubr.bf16.gmra.mrb[0].mxu0 %v6470
        %v6714 = vpop.f32.mrb[0].mxu0
        %v6715 = vadd.f32 0.0, %v6714
        %v6716 = vpop.f32.mrb[0].mxu0
        %v6717 = vpop.f32.mrb[0].mxu0
        %v6718 = vadd.f32 0.0, %v6717
        %v6719 = vpop.f32.mrb[0].mxu0
        %6720 = vmatprep.mubr.bf16.mxu0 0
        %6721 = vmatmul.mubr.bf16.gmra.mrb[0].mxu0 %v6471
        %v6722 = vpop.f32.mrb[0].mxu0
        %v6723 = vadd.f32 0.0, %v6722
        %v6724 = vpop.f32.mrb[0].mxu0
        %v6725 = vpop.f32.mrb[0].mxu0
        %v6726 = vadd.f32 0.0, %v6725
        %v6727 = vpop.f32.mrb[0].mxu0
        %6728 = vmatprep.mubr.bf16.mxu0 0
        %6729 = vmatmul.mubr.bf16.gmra.mrb[0].mxu0 %v6472
        %v6730 = vpop.f32.mrb[0].mxu0
        %v6731 = vadd.f32 0.0, %v6730
        %v6732 = vpop.f32.mrb[0].mxu0
        %v6733 = vpop.f32.mrb[0].mxu0
        %v6734 = vadd.f32 0.0, %v6733
        %v6735 = vpop.f32.mrb[0].mxu0
        %6736 = vmatprep.mubr.bf16.mxu0 0
        %6737 = vmatmul.mubr.bf16.gmra.mrb[0].mxu0 %v6473
        %v6738 = vpop.f32.mrb[0].mxu0
        %v6739 = vadd.f32 0.0, %v6738
        %v6740 = vpop.f32.mrb[0].mxu0
        %v6741 = vpop.f32.mrb[0].mxu0
        %v6742 = vadd.f32 0.0, %v6741
        %v6743 = vpop.f32.mrb[0].mxu0
        %6744 = vmatprep.mubr.bf16.mxu0 0
        %6745 = vmatmul.mubr.bf16.gmra.mrb[0].mxu0 %v6474
        %v6746 = vpop.f32.mrb[0].mxu0
        %v6747 = vadd.f32 0.0, %v6746
        %v6748 = vpop.f32.mrb[0].mxu0
        %v6749 = vpop.f32.mrb[0].mxu0
        %v6750 = vadd.f32 0.0, %v6749
        %v6751 = vpop.f32.mrb[0].mxu0
        %6752 = vdwg.mxu0
        %v6753 = vadd.f32 %v6475, %v6611
        %v6754 = vadd.f32 %v6476, %v6614
        %v6755 = vadd.f32 %v6477, %v6619
        %v6756 = vadd.f32 %v6478, %v6622
        %v6757 = vadd.f32 %v6479, %v6627
        %v6758 = vadd.f32 %v6480, %v6630
        %v6759 = vadd.f32 %v6481, %v6635
        %v6760 = vadd.f32 %v6482, %v6638
        %v6761 = vadd.f32 %v6483, %v6643
        %v6762 = vadd.f32 %v6484, %v6646
        %v6763 = vadd.f32 %v6485, %v6651
        %v6764 = vadd.f32 %v6486, %v6654
        %v6765 = vadd.f32 %v6487, %v6659
        %v6766 = vadd.f32 %v6488, %v6662
        %v6767 = vadd.f32 %v6489, %v6667
        %v6768 = vadd.f32 %v6490, %v6670
        %v6769 = vadd.f32 %v6491, %v6675
        %v6770 = vadd.f32 %v6492, %v6678
        %v6771 = vadd.f32 %v6493, %v6683
        %v6772 = vadd.f32 %v6494, %v6686
        %v6773 = vadd.f32 %v6495, %v6691
        %v6774 = vadd.f32 %v6496, %v6694
        %v6775 = vadd.f32 %v6497, %v6699
        %v6776 = vadd.f32 %v6498, %v6702
        %v6777 = vadd.f32 %v6499, %v6707
        %v6778 = vadd.f32 %v6500, %v6710
        %v6779 = vadd.f32 %v6501, %v6715
        %v6780 = vadd.f32 %v6502, %v6718
        %v6781 = vadd.f32 %v6503, %v6723
        %v6782 = vadd.f32 %v6504, %v6726
        %v6783 = vadd.f32 %v6505, %v6731
        %v6784 = vadd.f32 %v6506, %v6734
        %v6785 = vadd.f32 %v6507, %v6739
        %v6786 = vadd.f32 %v6508, %v6742
        %v6787 = vadd.f32 %v6509, %v6747
        %v6788 = vadd.f32 %v6510, %v6750
        %6789 = vst [vmem:[#allocation2] sm:$0xff] %v6753
        %6790 = vst [vmem:[#allocation2 + $0x8] sm:$0xff] %v6754
        %6791 = vst [vmem:[#allocation2 + $0x10] sm:$0xff] %v6755
        %6792 = vst [vmem:[#allocation2 + $0x18] sm:$0xff] %v6756
        %6793 = vst [vmem:[#allocation2 + $0x20] sm:$0xff] %v6757
        %6794 = vst [vmem:[#allocation2 + $0x28] sm:$0xff] %v6758
        %6795 = vst [vmem:[#allocation2 + $0x30] sm:$0xff] %v6759
        %6796 = vst [vmem:[#allocation2 + $0x38] sm:$0xff] %v6760
        %6797 = vst [vmem:[#allocation2 + $0x40] sm:$0xff] %v6761
        %6798 = vst [vmem:[#allocation2 + $0x48] sm:$0xff] %v6762
        %6799 = vst [vmem:[#allocation2 + $0x50] sm:$0xff] %v6763
        %6800 = vst [vmem:[#allocation2 + $0x58] sm:$0xff] %v6764
        %6801 = vst [vmem:[#allocation2 + $0x60] sm:$0xff] %v6765
        %6802 = vst [vmem:[#allocation2 + $0x68] sm:$0xff] %v6766
        %6803 = vst [vmem:[#allocation2 + $0x70] sm:$0xff] %v6767
        %6804 = vst [vmem:[#allocation2 + $0x78] sm:$0xff] %v6768
        %6805 = vst [vmem:[#allocation2 + $0x80] sm:$0xff] %v6769
        %6806 = vst [vmem:[#allocation2 + $0x88] sm:$0xff] %v6770
        %6807 = vst [vmem:[#allocation2 + $0x90] sm:$0xff] %v6771
        %6808 = vst [vmem:[#allocation2 + $0x98] sm:$0xff] %v6772
        %6809 = vst [vmem:[#allocation2 + $0xa0] sm:$0xff] %v6773
        %6810 = vst [vmem:[#allocation2 + $0xa8] sm:$0xff] %v6774
        %6811 = vst [vmem:[#allocation2 + $0xb0] sm:$0xff] %v6775
        %6812 = vst [vmem:[#allocation2 + $0xb8] sm:$0xff] %v6776
        %6813 = vst [vmem:[#allocation2 + $0xc0] sm:$0xff] %v6777
        %6814 = vst [vmem:[#allocation2 + $0xc8] sm:$0xff] %v6778
        %6815 = vst [vmem:[#allocation2 + $0xd0] sm:$0xff] %v6779
        %6816 = vst [vmem:[#allocation2 + $0xd8] sm:$0xff] %v6780
        %6817 = vst [vmem:[#allocation2 + $0xe0] sm:$0xff] %v6781
        %6818 = vst [vmem:[#allocation2 + $0xe8] sm:$0xff] %v6782
        %6819 = vst [vmem:[#allocation2 + $0xf0] sm:$0xff] %v6783
        %6820 = vst [vmem:[#allocation2 + $0xf8] sm:$0xff] %v6784
        %6821 = vst [vmem:[#allocation2 + $0x100] sm:$0xff] %v6785
        %6822 = vst [vmem:[#allocation2 + $0x108] sm:$0xff] %v6786
        %6823 = vst [vmem:[#allocation2 + $0x110] sm:$0xff] %v6787
        %6824 = vst [vmem:[#allocation2 + $0x118] sm:$0xff] %v6788
        %v6825 = vld [vmem:[#allocation3 + $0x29] sm:$0xff]
        %v6826 = vld [vmem:[#allocation3 + $0x31] sm:$0xff]
        %v6827 = vld [vmem:[#allocation3 + $0x39] sm:$0xff]
        %v6828 = vld [vmem:[#allocation3 + $0x41] sm:$0xff]
        %v6829 = vld [vmem:[#allocation3 + $0x49] sm:$0xff]
        %v6830 = vld [vmem:[#allocation3 + $0x51] sm:$0xff]
        %v6831 = vld [vmem:[#allocation3 + $0x59] sm:$0xff]
        %v6832 = vld [vmem:[#allocation3 + $0x61] sm:$0xff]
        %v6833 = vld [vmem:[#allocation3 + $0x69] sm:$0xff]
        %v6834 = vld [vmem:[#allocation3 + $0x71] sm:$0xff]
        %v6835 = vld [vmem:[#allocation3 + $0x79] sm:$0xff]
        %v6836 = vld [vmem:[#allocation3 + $0x81] sm:$0xff]
        %v6837 = vld [vmem:[#allocation3 + $0x89] sm:$0xff]
        %v6838 = vld [vmem:[#allocation3 + $0x91] sm:$0xff]
        %v6839 = vld [vmem:[#allocation3 + $0x99] sm:$0xff]
        %v6840 = vld [vmem:[#allocation3 + $0xa1] sm:$0xff]
        %v6841 = vld [vmem:[#allocation3 + $0xa9] sm:$0xff]
        %v6842 = vld [vmem:[#allocation3 + $0xb1] sm:$0xff]
        %v6843 = vld [vmem:[#allocation3 + $0xb9] sm:$0xff]
        %v6844 = vld [vmem:[#allocation3 + $0xc1] sm:$0xff]
        %v6845 = vld [vmem:[#allocation3 + $0xc9] sm:$0xff]
        %v6846 = vld [vmem:[#allocation3 + $0xd1] sm:$0xff]
        %v6847 = vld [vmem:[#allocation3 + $0xd9] sm:$0xff]
        %v6848 = vld [vmem:[#allocation3 + $0xe1] sm:$0xff]
        %v6849 = vld [vmem:[#allocation3 + $0xe9] sm:$0xff]
        %v6850 = vld [vmem:[#allocation3 + $0xf1] sm:$0xff]
        %v6851 = vld [vmem:[#allocation3 + $0xf9] sm:$0xff]
        %v6852 = vld [vmem:[#allocation3 + $0x101] sm:$0xff]
        %v6853 = vld [vmem:[#allocation3 + $0x109] sm:$0xff]
        %v6854 = vld [vmem:[#allocation3 + $0x111] sm:$0xff]
        %v6855 = vld [vmem:[#allocation3 + $0x119] sm:$0xff]
        %v6856 = vld [vmem:[#allocation3 + $0x121] sm:$0xff]
        %v6857 = vld [vmem:[#allocation3 + $0x129] sm:$0xff]
        %v6858 = vld [vmem:[#allocation3 + $0x131] sm:$0xff]
        %v6859 = vld [vmem:[#allocation3 + $0x139] sm:$0xff]
        %v6860 = vld [vmem:[#allocation3 + $0x141] sm:$0xff]
        %v6861 = vpack.c.bf16 %v6826, %v6825
        %v6862 = vpack.c.bf16 %v6828, %v6827
        %v6863 = vpack.c.bf16 %v6830, %v6829
        %v6864 = vpack.c.bf16 %v6832, %v6831
        %v6865 = vpack.c.bf16 %v6834, %v6833
        %v6866 = vpack.c.bf16 %v6836, %v6835
        %v6867 = vpack.c.bf16 %v6838, %v6837
        %v6868 = vpack.c.bf16 %v6840, %v6839
        %v6869 = vpack.c.bf16 %v6842, %v6841
        %v6870 = vpack.c.bf16 %v6844, %v6843
        %v6871 = vpack.c.bf16 %v6846, %v6845
        %v6872 = vpack.c.bf16 %v6848, %v6847
        %v6873 = vpack.c.bf16 %v6850, %v6849
        %v6874 = vpack.c.bf16 %v6852, %v6851
        %v6875 = vpack.c.bf16 %v6854, %v6853
        %v6876 = vpack.c.bf16 %v6856, %v6855
        %v6877 = vpack.c.bf16 %v6858, %v6857
        %v6878 = vpack.c.bf16 %v6860, %v6859
        %v6879 = vld [vmem:[#allocation2] sm:$0xff]
        %v6880 = vld [vmem:[#allocation2 + $0x8] sm:$0xff]
        %v6881 = vld [vmem:[#allocation2 + $0x10] sm:$0xff]
        %v6882 = vld [vmem:[#allocation2 + $0x18] sm:$0xff]
        %v6883 = vld [vmem:[#allocation2 + $0x20] sm:$0xff]
        %v6884 = vld [vmem:[#allocation2 + $0x28] sm:$0xff]
        %v6885 = vld [vmem:[#allocation2 + $0x30] sm:$0xff]
        %v6886 = vld [vmem:[#allocation2 + $0x38] sm:$0xff]
        %v6887 = vld [vmem:[#allocation2 + $0x40] sm:$0xff]
        %v6888 = vld [vmem:[#allocation2 + $0x48] sm:$0xff]
        %v6889 = vld [vmem:[#allocation2 + $0x50] sm:$0xff]
        %v6890 = vld [vmem:[#allocation2 + $0x58] sm:$0xff]
        %v6891 = vld [vmem:[#allocation2 + $0x60] sm:$0xff]
        %v6892 = vld [vmem:[#allocation2 + $0x68] sm:$0xff]
        %v6893 = vld [vmem:[#allocation2 + $0x70] sm:$0xff]
        %v6894 = vld [vmem:[#allocation2 + $0x78] sm:$0xff]
        %v6895 = vld [vmem:[#allocation2 + $0x80] sm:$0xff]
        %v6896 = vld [vmem:[#allocation2 + $0x88] sm:$0xff]
        %v6897 = vld [vmem:[#allocation2 + $0x90] sm:$0xff]
        %v6898 = vld [vmem:[#allocation2 + $0x98] sm:$0xff]
        %v6899 = vld [vmem:[#allocation2 + $0xa0] sm:$0xff]
        %v6900 = vld [vmem:[#allocation2 + $0xa8] sm:$0xff]
        %v6901 = vld [vmem:[#allocation2 + $0xb0] sm:$0xff]
        %v6902 = vld [vmem:[#allocation2 + $0xb8] sm:$0xff]
        %v6903 = vld [vmem:[#allocation2 + $0xc0] sm:$0xff]
        %v6904 = vld [vmem:[#allocation2 + $0xc8] sm:$0xff]
        %v6905 = vld [vmem:[#allocation2 + $0xd0] sm:$0xff]
        %v6906 = vld [vmem:[#allocation2 + $0xd8] sm:$0xff]
        %v6907 = vld [vmem:[#allocation2 + $0xe0] sm:$0xff]
        %v6908 = vld [vmem:[#allocation2 + $0xe8] sm:$0xff]
        %v6909 = vld [vmem:[#allocation2 + $0xf0] sm:$0xff]
        %v6910 = vld [vmem:[#allocation2 + $0xf8] sm:$0xff]
        %v6911 = vld [vmem:[#allocation2 + $0x100] sm:$0xff]
        %v6912 = vld [vmem:[#allocation2 + $0x108] sm:$0xff]
        %v6913 = vld [vmem:[#allocation2 + $0x110] sm:$0xff]
        %v6914 = vld [vmem:[#allocation2 + $0x118] sm:$0xff]
        %s6915 = scalar_lea.vmem %s3, 384
        %v6916 = vld [vmem:[%s6915] sm:$0xf]
        %v6917 = vld [vmem:[%s6915 + $0x4] sm:$0xf]
        %v6918 = vld [vmem:[%s6915 + $0x8] sm:$0xf]
        %v6919 = vld [vmem:[%s6915 + $0xc] sm:$0xf]
        %v6920 = vld [vmem:[%s6915 + $0x10] sm:$0xf]
        %v6921 = vld [vmem:[%s6915 + $0x14] sm:$0xf]
        %v6922 = vld [vmem:[%s6915 + $0x18] sm:$0xf]
        %v6923 = vld [vmem:[%s6915 + $0x1c] sm:$0xf]
        %v6924 = vld [vmem:[%s6915 + $0x20] sm:$0xf]
        %v6925 = vld [vmem:[%s6915 + $0x24] sm:$0xf]
        %v6926 = vld [vmem:[%s6915 + $0x28] sm:$0xf]
        %v6927 = vld [vmem:[%s6915 + $0x2c] sm:$0xf]
        %v6928 = vld [vmem:[%s6915 + $0x30] sm:$0xf]
        %v6929 = vld [vmem:[%s6915 + $0x34] sm:$0xf]
        %v6930 = vld [vmem:[%s6915 + $0x38] sm:$0xf]
        %v6931 = vld [vmem:[%s6915 + $0x3c] sm:$0xf]
        %v6948 = vunpack.c.l.b16 %v6916
        %v6949 = vunpack.c.l.b16 %v6917
        %v6950 = vunpack.c.l.b16 %v6918
        %v6951 = vunpack.c.l.b16 %v6919
        %v6952 = vunpack.c.l.b16 %v6920
        %v6953 = vunpack.c.l.b16 %v6921
        %v6954 = vunpack.c.l.b16 %v6922
        %v6955 = vunpack.c.l.b16 %v6923
        %v6956 = vunpack.c.l.b16 %v6924
        %v6957 = vunpack.c.l.b16 %v6925
        %v6958 = vunpack.c.l.b16 %v6926
        %v6959 = vunpack.c.l.b16 %v6927
        %v6960 = vunpack.c.l.b16 %v6928
        %v6961 = vunpack.c.l.b16 %v6929
        %v6962 = vunpack.c.l.b16 %v6930
        %v6963 = vunpack.c.l.b16 %v6931
        %v6964 = vpack.c.b16 %v6949, %v6948
        %v6965 = vpack.c.b16 %v6951, %v6950
        %v6966 = vpack.c.b16 %v6953, %v6952
        %v6967 = vpack.c.b16 %v6955, %v6954
        %v6968 = vpack.c.b16 %v6957, %v6956
        %v6969 = vpack.c.b16 %v6959, %v6958
        %v6970 = vpack.c.b16 %v6961, %v6960
        %v6971 = vpack.c.b16 %v6963, %v6962
        %6980 = vmatprep.subr.bf16.mxu0 0
        %6981 = vmatpush1.bf16.msra.mxu0 %v6964
        %6982 = vmatprep.subr.bf16.mxu0 0
        %6983 = vmatpush1.bf16.msra.mxu0 %v6965
        %6984 = vmatprep.subr.bf16.mxu0 0
        %6985 = vmatpush1.bf16.msra.mxu0 %v6966
        %6986 = vmatprep.subr.bf16.mxu0 0
        %6987 = vmatpush1.bf16.msra.mxu0 %v6967
        %6988 = vmatprep.subr.bf16.mxu0 0
        %6989 = vmatpush1.bf16.msra.mxu0 %v6968
        %6990 = vmatprep.subr.bf16.mxu0 0
        %6991 = vmatpush1.bf16.msra.mxu0 %v6969
        %6992 = vmatprep.subr.bf16.mxu0 0
        %6993 = vmatpush1.bf16.msra.mxu0 %v6970
        %6994 = vmatprep.subr.bf16.mxu0 0
        %6995 = vmatpush1.bf16.msra.mxu0 %v6971
        %6996 = vmatprep.subr.bf16.mxu0 0
        %6997 = vmatpush1.bf16.msra.mxu0 0
        %6998 = vmatprep.subr.bf16.mxu0 0
        %6999 = vmatpush1.bf16.msra.mxu0 0
        %7000 = vmatprep.subr.bf16.mxu0 0
        %7001 = vmatpush1.bf16.msra.mxu0 0
        %7002 = vmatprep.subr.bf16.mxu0 0
        %7003 = vmatpush1.bf16.msra.mxu0 0
        %7004 = vmatprep.subr.bf16.mxu0 0
        %7005 = vmatpush1.bf16.msra.mxu0 0
        %7006 = vmatprep.subr.bf16.mxu0 0
        %7007 = vmatpush1.bf16.msra.mxu0 0
        %7008 = vmatprep.subr.bf16.mxu0 0
        %7009 = vmatpush1.bf16.msra.mxu0 0
        %7010 = vmatprep.subr.bf16.mxu0 0
        %7011 = vmatpush1.bf16.msra.mxu0 0
        %7012 = vmatprep.mubr.bf16.mxu0 0
        %7013 = vmatmul.mubr.bf16.gmra.mrb[0].mxu0 %v6861
        %v7014 = vpop.f32.mrb[0].mxu0
        %v7015 = vadd.f32 0.0, %v7014
        %v7016 = vpop.f32.mrb[0].mxu0
        %v7017 = vpop.f32.mrb[0].mxu0
        %v7018 = vadd.f32 0.0, %v7017
        %v7019 = vpop.f32.mrb[0].mxu0
        %7020 = vmatprep.mubr.bf16.mxu0 0
        %7021 = vmatmul.mubr.bf16.gmra.mrb[0].mxu0 %v6862
        %v7022 = vpop.f32.mrb[0].mxu0
        %v7023 = vadd.f32 0.0, %v7022
        %v7024 = vpop.f32.mrb[0].mxu0
        %v7025 = vpop.f32.mrb[0].mxu0
        %v7026 = vadd.f32 0.0, %v7025
        %v7027 = vpop.f32.mrb[0].mxu0
        %7028 = vmatprep.mubr.bf16.mxu0 0
        %7029 = vmatmul.mubr.bf16.gmra.mrb[0].mxu0 %v6863
        %v7030 = vpop.f32.mrb[0].mxu0
        %v7031 = vadd.f32 0.0, %v7030
        %v7032 = vpop.f32.mrb[0].mxu0
        %v7033 = vpop.f32.mrb[0].mxu0
        %v7034 = vadd.f32 0.0, %v7033
        %v7035 = vpop.f32.mrb[0].mxu0
        %7036 = vmatprep.mubr.bf16.mxu0 0
        %7037 = vmatmul.mubr.bf16.gmra.mrb[0].mxu0 %v6864
        %v7038 = vpop.f32.mrb[0].mxu0
        %v7039 = vadd.f32 0.0, %v7038
        %v7040 = vpop.f32.mrb[0].mxu0
        %v7041 = vpop.f32.mrb[0].mxu0
        %v7042 = vadd.f32 0.0, %v7041
        %v7043 = vpop.f32.mrb[0].mxu0
        %7044 = vmatprep.mubr.bf16.mxu0 0
        %7045 = vmatmul.mubr.bf16.gmra.mrb[0].mxu0 %v6865
        %v7046 = vpop.f32.mrb[0].mxu0
        %v7047 = vadd.f32 0.0, %v7046
        %v7048 = vpop.f32.mrb[0].mxu0
        %v7049 = vpop.f32.mrb[0].mxu0
        %v7050 = vadd.f32 0.0, %v7049
        %v7051 = vpop.f32.mrb[0].mxu0
        %7052 = vmatprep.mubr.bf16.mxu0 0
        %7053 = vmatmul.mubr.bf16.gmra.mrb[0].mxu0 %v6866
        %v7054 = vpop.f32.mrb[0].mxu0
        %v7055 = vadd.f32 0.0, %v7054
        %v7056 = vpop.f32.mrb[0].mxu0
        %v7057 = vpop.f32.mrb[0].mxu0
        %v7058 = vadd.f32 0.0, %v7057
        %v7059 = vpop.f32.mrb[0].mxu0
        %7060 = vmatprep.mubr.bf16.mxu0 0
        %7061 = vmatmul.mubr.bf16.gmra.mrb[0].mxu0 %v6867
        %v7062 = vpop.f32.mrb[0].mxu0
        %v7063 = vadd.f32 0.0, %v7062
        %v7064 = vpop.f32.mrb[0].mxu0
        %v7065 = vpop.f32.mrb[0].mxu0
        %v7066 = vadd.f32 0.0, %v7065
        %v7067 = vpop.f32.mrb[0].mxu0
        %7068 = vmatprep.mubr.bf16.mxu0 0
        %7069 = vmatmul.mubr.bf16.gmra.mrb[0].mxu0 %v6868
        %v7070 = vpop.f32.mrb[0].mxu0
        %v7071 = vadd.f32 0.0, %v7070
        %v7072 = vpop.f32.mrb[0].mxu0
        %v7073 = vpop.f32.mrb[0].mxu0
        %v7074 = vadd.f32 0.0, %v7073
        %v7075 = vpop.f32.mrb[0].mxu0
        %7076 = vmatprep.mubr.bf16.mxu0 0
        %7077 = vmatmul.mubr.bf16.gmra.mrb[0].mxu0 %v6869
        %v7078 = vpop.f32.mrb[0].mxu0
        %v7079 = vadd.f32 0.0, %v7078
        %v7080 = vpop.f32.mrb[0].mxu0
        %v7081 = vpop.f32.mrb[0].mxu0
        %v7082 = vadd.f32 0.0, %v7081
        %v7083 = vpop.f32.mrb[0].mxu0
        %7084 = vmatprep.mubr.bf16.mxu0 0
        %7085 = vmatmul.mubr.bf16.gmra.mrb[0].mxu0 %v6870
        %v7086 = vpop.f32.mrb[0].mxu0
        %v7087 = vadd.f32 0.0, %v7086
        %v7088 = vpop.f32.mrb[0].mxu0
        %v7089 = vpop.f32.mrb[0].mxu0
        %v7090 = vadd.f32 0.0, %v7089
        %v7091 = vpop.f32.mrb[0].mxu0
        %7092 = vmatprep.mubr.bf16.mxu0 0
        %7093 = vmatmul.mubr.bf16.gmra.mrb[0].mxu0 %v6871
        %v7094 = vpop.f32.mrb[0].mxu0
        %v7095 = vadd.f32 0.0, %v7094
        %v7096 = vpop.f32.mrb[0].mxu0
        %v7097 = vpop.f32.mrb[0].mxu0
        %v7098 = vadd.f32 0.0, %v7097
        %v7099 = vpop.f32.mrb[0].mxu0
        %7100 = vmatprep.mubr.bf16.mxu0 0
        %7101 = vmatmul.mubr.bf16.gmra.mrb[0].mxu0 %v6872
        %v7102 = vpop.f32.mrb[0].mxu0
        %v7103 = vadd.f32 0.0, %v7102
        %v7104 = vpop.f32.mrb[0].mxu0
        %v7105 = vpop.f32.mrb[0].mxu0
        %v7106 = vadd.f32 0.0, %v7105
        %v7107 = vpop.f32.mrb[0].mxu0
        %7108 = vmatprep.mubr.bf16.mxu0 0
        %7109 = vmatmul.mubr.bf16.gmra.mrb[0].mxu0 %v6873
        %v7110 = vpop.f32.mrb[0].mxu0
        %v7111 = vadd.f32 0.0, %v7110
        %v7112 = vpop.f32.mrb[0].mxu0
        %v7113 = vpop.f32.mrb[0].mxu0
        %v7114 = vadd.f32 0.0, %v7113
        %v7115 = vpop.f32.mrb[0].mxu0
        %7116 = vmatprep.mubr.bf16.mxu0 0
        %7117 = vmatmul.mubr.bf16.gmra.mrb[0].mxu0 %v6874
        %v7118 = vpop.f32.mrb[0].mxu0
        %v7119 = vadd.f32 0.0, %v7118
        %v7120 = vpop.f32.mrb[0].mxu0
        %v7121 = vpop.f32.mrb[0].mxu0
        %v7122 = vadd.f32 0.0, %v7121
        %v7123 = vpop.f32.mrb[0].mxu0
        %7124 = vmatprep.mubr.bf16.mxu0 0
        %7125 = vmatmul.mubr.bf16.gmra.mrb[0].mxu0 %v6875
        %v7126 = vpop.f32.mrb[0].mxu0
        %v7127 = vadd.f32 0.0, %v7126
        %v7128 = vpop.f32.mrb[0].mxu0
        %v7129 = vpop.f32.mrb[0].mxu0
        %v7130 = vadd.f32 0.0, %v7129
        %v7131 = vpop.f32.mrb[0].mxu0
        %7132 = vmatprep.mubr.bf16.mxu0 0
        %7133 = vmatmul.mubr.bf16.gmra.mrb[0].mxu0 %v6876
        %v7134 = vpop.f32.mrb[0].mxu0
        %v7135 = vadd.f32 0.0, %v7134
        %v7136 = vpop.f32.mrb[0].mxu0
        %v7137 = vpop.f32.mrb[0].mxu0
        %v7138 = vadd.f32 0.0, %v7137
        %v7139 = vpop.f32.mrb[0].mxu0
        %7140 = vmatprep.mubr.bf16.mxu0 0
        %7141 = vmatmul.mubr.bf16.gmra.mrb[0].mxu0 %v6877
        %v7142 = vpop.f32.mrb[0].mxu0
        %v7143 = vadd.f32 0.0, %v7142
        %v7144 = vpop.f32.mrb[0].mxu0
        %v7145 = vpop.f32.mrb[0].mxu0
        %v7146 = vadd.f32 0.0, %v7145
        %v7147 = vpop.f32.mrb[0].mxu0
        %7148 = vmatprep.mubr.bf16.mxu0 0
        %7149 = vmatmul.mubr.bf16.gmra.mrb[0].mxu0 %v6878
        %v7150 = vpop.f32.mrb[0].mxu0
        %v7151 = vadd.f32 0.0, %v7150
        %v7152 = vpop.f32.mrb[0].mxu0
        %v7153 = vpop.f32.mrb[0].mxu0
        %v7154 = vadd.f32 0.0, %v7153
        %v7155 = vpop.f32.mrb[0].mxu0
        %7156 = vdwg.mxu0
        %v7157 = vadd.f32 %v6879, %v7015
        %v7158 = vadd.f32 %v6880, %v7018
        %v7159 = vadd.f32 %v6881, %v7023
        %v7160 = vadd.f32 %v6882, %v7026
        %v7161 = vadd.f32 %v6883, %v7031
        %v7162 = vadd.f32 %v6884, %v7034
        %v7163 = vadd.f32 %v6885, %v7039
        %v7164 = vadd.f32 %v6886, %v7042
        %v7165 = vadd.f32 %v6887, %v7047
        %v7166 = vadd.f32 %v6888, %v7050
        %v7167 = vadd.f32 %v6889, %v7055
        %v7168 = vadd.f32 %v6890, %v7058
        %v7169 = vadd.f32 %v6891, %v7063
        %v7170 = vadd.f32 %v6892, %v7066
        %v7171 = vadd.f32 %v6893, %v7071
        %v7172 = vadd.f32 %v6894, %v7074
        %v7173 = vadd.f32 %v6895, %v7079
        %v7174 = vadd.f32 %v6896, %v7082
        %v7175 = vadd.f32 %v6897, %v7087
        %v7176 = vadd.f32 %v6898, %v7090
        %v7177 = vadd.f32 %v6899, %v7095
        %v7178 = vadd.f32 %v6900, %v7098
        %v7179 = vadd.f32 %v6901, %v7103
        %v7180 = vadd.f32 %v6902, %v7106
        %v7181 = vadd.f32 %v6903, %v7111
        %v7182 = vadd.f32 %v6904, %v7114
        %v7183 = vadd.f32 %v6905, %v7119
        %v7184 = vadd.f32 %v6906, %v7122
        %v7185 = vadd.f32 %v6907, %v7127
        %v7186 = vadd.f32 %v6908, %v7130
        %v7187 = vadd.f32 %v6909, %v7135
        %v7188 = vadd.f32 %v6910, %v7138
        %v7189 = vadd.f32 %v6911, %v7143
        %v7190 = vadd.f32 %v6912, %v7146
        %v7191 = vadd.f32 %v6913, %v7151
        %v7192 = vadd.f32 %v6914, %v7154
        %7193 = vst [vmem:[#allocation2] sm:$0xff] %v7157
        %7194 = vst [vmem:[#allocation2 + $0x8] sm:$0xff] %v7158
        %7195 = vst [vmem:[#allocation2 + $0x10] sm:$0xff] %v7159
        %7196 = vst [vmem:[#allocation2 + $0x18] sm:$0xff] %v7160
        %7197 = vst [vmem:[#allocation2 + $0x20] sm:$0xff] %v7161
        %7198 = vst [vmem:[#allocation2 + $0x28] sm:$0xff] %v7162
        %7199 = vst [vmem:[#allocation2 + $0x30] sm:$0xff] %v7163
        %7200 = vst [vmem:[#allocation2 + $0x38] sm:$0xff] %v7164
        %7201 = vst [vmem:[#allocation2 + $0x40] sm:$0xff] %v7165
        %7202 = vst [vmem:[#allocation2 + $0x48] sm:$0xff] %v7166
        %7203 = vst [vmem:[#allocation2 + $0x50] sm:$0xff] %v7167
        %7204 = vst [vmem:[#allocation2 + $0x58] sm:$0xff] %v7168
        %7205 = vst [vmem:[#allocation2 + $0x60] sm:$0xff] %v7169
        %7206 = vst [vmem:[#allocation2 + $0x68] sm:$0xff] %v7170
        %7207 = vst [vmem:[#allocation2 + $0x70] sm:$0xff] %v7171
        %7208 = vst [vmem:[#allocation2 + $0x78] sm:$0xff] %v7172
        %7209 = vst [vmem:[#allocation2 + $0x80] sm:$0xff] %v7173
        %7210 = vst [vmem:[#allocation2 + $0x88] sm:$0xff] %v7174
        %7211 = vst [vmem:[#allocation2 + $0x90] sm:$0xff] %v7175
        %7212 = vst [vmem:[#allocation2 + $0x98] sm:$0xff] %v7176
        %7213 = vst [vmem:[#allocation2 + $0xa0] sm:$0xff] %v7177
        %7214 = vst [vmem:[#allocation2 + $0xa8] sm:$0xff] %v7178
        %7215 = vst [vmem:[#allocation2 + $0xb0] sm:$0xff] %v7179
        %7216 = vst [vmem:[#allocation2 + $0xb8] sm:$0xff] %v7180
        %7217 = vst [vmem:[#allocation2 + $0xc0] sm:$0xff] %v7181
        %7218 = vst [vmem:[#allocation2 + $0xc8] sm:$0xff] %v7182
        %7219 = vst [vmem:[#allocation2 + $0xd0] sm:$0xff] %v7183
        %7220 = vst [vmem:[#allocation2 + $0xd8] sm:$0xff] %v7184
        %7221 = vst [vmem:[#allocation2 + $0xe0] sm:$0xff] %v7185
        %7222 = vst [vmem:[#allocation2 + $0xe8] sm:$0xff] %v7186
        %7223 = vst [vmem:[#allocation2 + $0xf0] sm:$0xff] %v7187
        %7224 = vst [vmem:[#allocation2 + $0xf8] sm:$0xff] %v7188
        %7225 = vst [vmem:[#allocation2 + $0x100] sm:$0xff] %v7189
        %7226 = vst [vmem:[#allocation2 + $0x108] sm:$0xff] %v7190
        %7227 = vst [vmem:[#allocation2 + $0x110] sm:$0xff] %v7191
        %7228 = vst [vmem:[#allocation2 + $0x118] sm:$0xff] %v7192
        %v7229 = vld [vmem:[#allocation3 + $0x2a] sm:$0xff]
        %v7230 = vld [vmem:[#allocation3 + $0x32] sm:$0xff]
        %v7231 = vld [vmem:[#allocation3 + $0x3a] sm:$0xff]
        %v7232 = vld [vmem:[#allocation3 + $0x42] sm:$0xff]
        %v7233 = vld [vmem:[#allocation3 + $0x4a] sm:$0xff]
        %v7234 = vld [vmem:[#allocation3 + $0x52] sm:$0xff]
        %v7235 = vld [vmem:[#allocation3 + $0x5a] sm:$0xff]
        %v7236 = vld [vmem:[#allocation3 + $0x62] sm:$0xff]
        %v7237 = vld [vmem:[#allocation3 + $0x6a] sm:$0xff]
        %v7238 = vld [vmem:[#allocation3 + $0x72] sm:$0xff]
        %v7239 = vld [vmem:[#allocation3 + $0x7a] sm:$0xff]
        %v7240 = vld [vmem:[#allocation3 + $0x82] sm:$0xff]
        %v7241 = vld [vmem:[#allocation3 + $0x8a] sm:$0xff]
        %v7242 = vld [vmem:[#allocation3 + $0x92] sm:$0xff]
        %v7243 = vld [vmem:[#allocation3 + $0x9a] sm:$0xff]
        %v7244 = vld [vmem:[#allocation3 + $0xa2] sm:$0xff]
        %v7245 = vld [vmem:[#allocation3 + $0xaa] sm:$0xff]
        %v7246 = vld [vmem:[#allocation3 + $0xb2] sm:$0xff]
        %v7247 = vld [vmem:[#allocation3 + $0xba] sm:$0xff]
        %v7248 = vld [vmem:[#allocation3 + $0xc2] sm:$0xff]
        %v7249 = vld [vmem:[#allocation3 + $0xca] sm:$0xff]
        %v7250 = vld [vmem:[#allocation3 + $0xd2] sm:$0xff]
        %v7251 = vld [vmem:[#allocation3 + $0xda] sm:$0xff]
        %v7252 = vld [vmem:[#allocation3 + $0xe2] sm:$0xff]
        %v7253 = vld [vmem:[#allocation3 + $0xea] sm:$0xff]
        %v7254 = vld [vmem:[#allocation3 + $0xf2] sm:$0xff]
        %v7255 = vld [vmem:[#allocation3 + $0xfa] sm:$0xff]
        %v7256 = vld [vmem:[#allocation3 + $0x102] sm:$0xff]
        %v7257 = vld [vmem:[#allocation3 + $0x10a] sm:$0xff]
        %v7258 = vld [vmem:[#allocation3 + $0x112] sm:$0xff]
        %v7259 = vld [vmem:[#allocation3 + $0x11a] sm:$0xff]
        %v7260 = vld [vmem:[#allocation3 + $0x122] sm:$0xff]
        %v7261 = vld [vmem:[#allocation3 + $0x12a] sm:$0xff]
        %v7262 = vld [vmem:[#allocation3 + $0x132] sm:$0xff]
        %v7263 = vld [vmem:[#allocation3 + $0x13a] sm:$0xff]
        %v7264 = vld [vmem:[#allocation3 + $0x142] sm:$0xff]
        %v7265 = vpack.c.bf16 %v7230, %v7229
        %v7266 = vpack.c.bf16 %v7232, %v7231
        %v7267 = vpack.c.bf16 %v7234, %v7233
        %v7268 = vpack.c.bf16 %v7236, %v7235
        %v7269 = vpack.c.bf16 %v7238, %v7237
        %v7270 = vpack.c.bf16 %v7240, %v7239
        %v7271 = vpack.c.bf16 %v7242, %v7241
        %v7272 = vpack.c.bf16 %v7244, %v7243
        %v7273 = vpack.c.bf16 %v7246, %v7245
        %v7274 = vpack.c.bf16 %v7248, %v7247
        %v7275 = vpack.c.bf16 %v7250, %v7249
        %v7276 = vpack.c.bf16 %v7252, %v7251
        %v7277 = vpack.c.bf16 %v7254, %v7253
        %v7278 = vpack.c.bf16 %v7256, %v7255
        %v7279 = vpack.c.bf16 %v7258, %v7257
        %v7280 = vpack.c.bf16 %v7260, %v7259
        %v7281 = vpack.c.bf16 %v7262, %v7261
        %v7282 = vpack.c.bf16 %v7264, %v7263
        %v7283 = vld [vmem:[#allocation2] sm:$0xff]
        %v7284 = vld [vmem:[#allocation2 + $0x8] sm:$0xff]
        %v7285 = vld [vmem:[#allocation2 + $0x10] sm:$0xff]
        %v7286 = vld [vmem:[#allocation2 + $0x18] sm:$0xff]
        %v7287 = vld [vmem:[#allocation2 + $0x20] sm:$0xff]
        %v7288 = vld [vmem:[#allocation2 + $0x28] sm:$0xff]
        %v7289 = vld [vmem:[#allocation2 + $0x30] sm:$0xff]
        %v7290 = vld [vmem:[#allocation2 + $0x38] sm:$0xff]
        %v7291 = vld [vmem:[#allocation2 + $0x40] sm:$0xff]
        %v7292 = vld [vmem:[#allocation2 + $0x48] sm:$0xff]
        %v7293 = vld [vmem:[#allocation2 + $0x50] sm:$0xff]
        %v7294 = vld [vmem:[#allocation2 + $0x58] sm:$0xff]
        %v7295 = vld [vmem:[#allocation2 + $0x60] sm:$0xff]
        %v7296 = vld [vmem:[#allocation2 + $0x68] sm:$0xff]
        %v7297 = vld [vmem:[#allocation2 + $0x70] sm:$0xff]
        %v7298 = vld [vmem:[#allocation2 + $0x78] sm:$0xff]
        %v7299 = vld [vmem:[#allocation2 + $0x80] sm:$0xff]
        %v7300 = vld [vmem:[#allocation2 + $0x88] sm:$0xff]
        %v7301 = vld [vmem:[#allocation2 + $0x90] sm:$0xff]
        %v7302 = vld [vmem:[#allocation2 + $0x98] sm:$0xff]
        %v7303 = vld [vmem:[#allocation2 + $0xa0] sm:$0xff]
        %v7304 = vld [vmem:[#allocation2 + $0xa8] sm:$0xff]
        %v7305 = vld [vmem:[#allocation2 + $0xb0] sm:$0xff]
        %v7306 = vld [vmem:[#allocation2 + $0xb8] sm:$0xff]
        %v7307 = vld [vmem:[#allocation2 + $0xc0] sm:$0xff]
        %v7308 = vld [vmem:[#allocation2 + $0xc8] sm:$0xff]
        %v7309 = vld [vmem:[#allocation2 + $0xd0] sm:$0xff]
        %v7310 = vld [vmem:[#allocation2 + $0xd8] sm:$0xff]
        %v7311 = vld [vmem:[#allocation2 + $0xe0] sm:$0xff]
        %v7312 = vld [vmem:[#allocation2 + $0xe8] sm:$0xff]
        %v7313 = vld [vmem:[#allocation2 + $0xf0] sm:$0xff]
        %v7314 = vld [vmem:[#allocation2 + $0xf8] sm:$0xff]
        %v7315 = vld [vmem:[#allocation2 + $0x100] sm:$0xff]
        %v7316 = vld [vmem:[#allocation2 + $0x108] sm:$0xff]
        %v7317 = vld [vmem:[#allocation2 + $0x110] sm:$0xff]
        %v7318 = vld [vmem:[#allocation2 + $0x118] sm:$0xff]
        %s7319 = scalar_lea.vmem %s3, 448
        %v7320 = vld [vmem:[%s7319] sm:$0xf]
        %v7321 = vld [vmem:[%s7319 + $0x4] sm:$0xf]
        %v7322 = vld [vmem:[%s7319 + $0x8] sm:$0xf]
        %v7323 = vld [vmem:[%s7319 + $0xc] sm:$0xf]
        %v7324 = vld [vmem:[%s7319 + $0x10] sm:$0xf]
        %v7325 = vld [vmem:[%s7319 + $0x14] sm:$0xf]
        %v7326 = vld [vmem:[%s7319 + $0x18] sm:$0xf]
        %v7327 = vld [vmem:[%s7319 + $0x1c] sm:$0xf]
        %v7328 = vld [vmem:[%s7319 + $0x20] sm:$0xf]
        %v7329 = vld [vmem:[%s7319 + $0x24] sm:$0xf]
        %v7330 = vld [vmem:[%s7319 + $0x28] sm:$0xf]
        %v7331 = vld [vmem:[%s7319 + $0x2c] sm:$0xf]
        %v7332 = vld [vmem:[%s7319 + $0x30] sm:$0xf]
        %v7333 = vld [vmem:[%s7319 + $0x34] sm:$0xf]
        %v7334 = vld [vmem:[%s7319 + $0x38] sm:$0xf]
        %v7335 = vld [vmem:[%s7319 + $0x3c] sm:$0xf]
        %v7352 = vunpack.c.l.b16 %v7320
        %v7353 = vunpack.c.l.b16 %v7321
        %v7354 = vunpack.c.l.b16 %v7322
        %v7355 = vunpack.c.l.b16 %v7323
        %v7356 = vunpack.c.l.b16 %v7324
        %v7357 = vunpack.c.l.b16 %v7325
        %v7358 = vunpack.c.l.b16 %v7326
        %v7359 = vunpack.c.l.b16 %v7327
        %v7360 = vunpack.c.l.b16 %v7328
        %v7361 = vunpack.c.l.b16 %v7329
        %v7362 = vunpack.c.l.b16 %v7330
        %v7363 = vunpack.c.l.b16 %v7331
        %v7364 = vunpack.c.l.b16 %v7332
        %v7365 = vunpack.c.l.b16 %v7333
        %v7366 = vunpack.c.l.b16 %v7334
        %v7367 = vunpack.c.l.b16 %v7335
        %v7368 = vpack.c.b16 %v7353, %v7352
        %v7369 = vpack.c.b16 %v7355, %v7354
        %v7370 = vpack.c.b16 %v7357, %v7356
        %v7371 = vpack.c.b16 %v7359, %v7358
        %v7372 = vpack.c.b16 %v7361, %v7360
        %v7373 = vpack.c.b16 %v7363, %v7362
        %v7374 = vpack.c.b16 %v7365, %v7364
        %v7375 = vpack.c.b16 %v7367, %v7366
        %7384 = vmatprep.subr.bf16.mxu0 0
        %7385 = vmatpush1.bf16.msra.mxu0 %v7368
        %7386 = vmatprep.subr.bf16.mxu0 0
        %7387 = vmatpush1.bf16.msra.mxu0 %v7369
        %7388 = vmatprep.subr.bf16.mxu0 0
        %7389 = vmatpush1.bf16.msra.mxu0 %v7370
        %7390 = vmatprep.subr.bf16.mxu0 0
        %7391 = vmatpush1.bf16.msra.mxu0 %v7371
        %7392 = vmatprep.subr.bf16.mxu0 0
        %7393 = vmatpush1.bf16.msra.mxu0 %v7372
        %7394 = vmatprep.subr.bf16.mxu0 0
        %7395 = vmatpush1.bf16.msra.mxu0 %v7373
        %7396 = vmatprep.subr.bf16.mxu0 0
        %7397 = vmatpush1.bf16.msra.mxu0 %v7374
        %7398 = vmatprep.subr.bf16.mxu0 0
        %7399 = vmatpush1.bf16.msra.mxu0 %v7375
        %7400 = vmatprep.subr.bf16.mxu0 0
        %7401 = vmatpush1.bf16.msra.mxu0 0
        %7402 = vmatprep.subr.bf16.mxu0 0
        %7403 = vmatpush1.bf16.msra.mxu0 0
        %7404 = vmatprep.subr.bf16.mxu0 0
        %7405 = vmatpush1.bf16.msra.mxu0 0
        %7406 = vmatprep.subr.bf16.mxu0 0
        %7407 = vmatpush1.bf16.msra.mxu0 0
        %7408 = vmatprep.subr.bf16.mxu0 0
        %7409 = vmatpush1.bf16.msra.mxu0 0
        %7410 = vmatprep.subr.bf16.mxu0 0
        %7411 = vmatpush1.bf16.msra.mxu0 0
        %7412 = vmatprep.subr.bf16.mxu0 0
        %7413 = vmatpush1.bf16.msra.mxu0 0
        %7414 = vmatprep.subr.bf16.mxu0 0
        %7415 = vmatpush1.bf16.msra.mxu0 0
        %7416 = vmatprep.mubr.bf16.mxu0 0
        %7417 = vmatmul.mubr.bf16.gmra.mrb[0].mxu0 %v7265
        %v7418 = vpop.f32.mrb[0].mxu0
        %v7419 = vadd.f32 0.0, %v7418
        %v7420 = vpop.f32.mrb[0].mxu0
        %v7421 = vpop.f32.mrb[0].mxu0
        %v7422 = vadd.f32 0.0, %v7421
        %v7423 = vpop.f32.mrb[0].mxu0
        %7424 = vmatprep.mubr.bf16.mxu0 0
        %7425 = vmatmul.mubr.bf16.gmra.mrb[0].mxu0 %v7266
        %v7426 = vpop.f32.mrb[0].mxu0
        %v7427 = vadd.f32 0.0, %v7426
        %v7428 = vpop.f32.mrb[0].mxu0
        %v7429 = vpop.f32.mrb[0].mxu0
        %v7430 = vadd.f32 0.0, %v7429
        %v7431 = vpop.f32.mrb[0].mxu0
        %7432 = vmatprep.mubr.bf16.mxu0 0
        %7433 = vmatmul.mubr.bf16.gmra.mrb[0].mxu0 %v7267
        %v7434 = vpop.f32.mrb[0].mxu0
        %v7435 = vadd.f32 0.0, %v7434
        %v7436 = vpop.f32.mrb[0].mxu0
        %v7437 = vpop.f32.mrb[0].mxu0
        %v7438 = vadd.f32 0.0, %v7437
        %v7439 = vpop.f32.mrb[0].mxu0
        %7440 = vmatprep.mubr.bf16.mxu0 0
        %7441 = vmatmul.mubr.bf16.gmra.mrb[0].mxu0 %v7268
        %v7442 = vpop.f32.mrb[0].mxu0
        %v7443 = vadd.f32 0.0, %v7442
        %v7444 = vpop.f32.mrb[0].mxu0
        %v7445 = vpop.f32.mrb[0].mxu0
        %v7446 = vadd.f32 0.0, %v7445
        %v7447 = vpop.f32.mrb[0].mxu0
        %7448 = vmatprep.mubr.bf16.mxu0 0
        %7449 = vmatmul.mubr.bf16.gmra.mrb[0].mxu0 %v7269
        %v7450 = vpop.f32.mrb[0].mxu0
        %v7451 = vadd.f32 0.0, %v7450
        %v7452 = vpop.f32.mrb[0].mxu0
        %v7453 = vpop.f32.mrb[0].mxu0
        %v7454 = vadd.f32 0.0, %v7453
        %v7455 = vpop.f32.mrb[0].mxu0
        %7456 = vmatprep.mubr.bf16.mxu0 0
        %7457 = vmatmul.mubr.bf16.gmra.mrb[0].mxu0 %v7270
        %v7458 = vpop.f32.mrb[0].mxu0
        %v7459 = vadd.f32 0.0, %v7458
        %v7460 = vpop.f32.mrb[0].mxu0
        %v7461 = vpop.f32.mrb[0].mxu0
        %v7462 = vadd.f32 0.0, %v7461
        %v7463 = vpop.f32.mrb[0].mxu0
        %7464 = vmatprep.mubr.bf16.mxu0 0
        %7465 = vmatmul.mubr.bf16.gmra.mrb[0].mxu0 %v7271
        %v7466 = vpop.f32.mrb[0].mxu0
        %v7467 = vadd.f32 0.0, %v7466
        %v7468 = vpop.f32.mrb[0].mxu0
        %v7469 = vpop.f32.mrb[0].mxu0
        %v7470 = vadd.f32 0.0, %v7469
        %v7471 = vpop.f32.mrb[0].mxu0
        %7472 = vmatprep.mubr.bf16.mxu0 0
        %7473 = vmatmul.mubr.bf16.gmra.mrb[0].mxu0 %v7272
        %v7474 = vpop.f32.mrb[0].mxu0
        %v7475 = vadd.f32 0.0, %v7474
        %v7476 = vpop.f32.mrb[0].mxu0
        %v7477 = vpop.f32.mrb[0].mxu0
        %v7478 = vadd.f32 0.0, %v7477
        %v7479 = vpop.f32.mrb[0].mxu0
        %7480 = vmatprep.mubr.bf16.mxu0 0
        %7481 = vmatmul.mubr.bf16.gmra.mrb[0].mxu0 %v7273
        %v7482 = vpop.f32.mrb[0].mxu0
        %v7483 = vadd.f32 0.0, %v7482
        %v7484 = vpop.f32.mrb[0].mxu0
        %v7485 = vpop.f32.mrb[0].mxu0
        %v7486 = vadd.f32 0.0, %v7485
        %v7487 = vpop.f32.mrb[0].mxu0
        %7488 = vmatprep.mubr.bf16.mxu0 0
        %7489 = vmatmul.mubr.bf16.gmra.mrb[0].mxu0 %v7274
        %v7490 = vpop.f32.mrb[0].mxu0
        %v7491 = vadd.f32 0.0, %v7490
        %v7492 = vpop.f32.mrb[0].mxu0
        %v7493 = vpop.f32.mrb[0].mxu0
        %v7494 = vadd.f32 0.0, %v7493
        %v7495 = vpop.f32.mrb[0].mxu0
        %7496 = vmatprep.mubr.bf16.mxu0 0
        %7497 = vmatmul.mubr.bf16.gmra.mrb[0].mxu0 %v7275
        %v7498 = vpop.f32.mrb[0].mxu0
        %v7499 = vadd.f32 0.0, %v7498
        %v7500 = vpop.f32.mrb[0].mxu0
        %v7501 = vpop.f32.mrb[0].mxu0
        %v7502 = vadd.f32 0.0, %v7501
        %v7503 = vpop.f32.mrb[0].mxu0
        %7504 = vmatprep.mubr.bf16.mxu0 0
        %7505 = vmatmul.mubr.bf16.gmra.mrb[0].mxu0 %v7276
        %v7506 = vpop.f32.mrb[0].mxu0
        %v7507 = vadd.f32 0.0, %v7506
        %v7508 = vpop.f32.mrb[0].mxu0
        %v7509 = vpop.f32.mrb[0].mxu0
        %v7510 = vadd.f32 0.0, %v7509
        %v7511 = vpop.f32.mrb[0].mxu0
        %7512 = vmatprep.mubr.bf16.mxu0 0
        %7513 = vmatmul.mubr.bf16.gmra.mrb[0].mxu0 %v7277
        %v7514 = vpop.f32.mrb[0].mxu0
        %v7515 = vadd.f32 0.0, %v7514
        %v7516 = vpop.f32.mrb[0].mxu0
        %v7517 = vpop.f32.mrb[0].mxu0
        %v7518 = vadd.f32 0.0, %v7517
        %v7519 = vpop.f32.mrb[0].mxu0
        %7520 = vmatprep.mubr.bf16.mxu0 0
        %7521 = vmatmul.mubr.bf16.gmra.mrb[0].mxu0 %v7278
        %v7522 = vpop.f32.mrb[0].mxu0
        %v7523 = vadd.f32 0.0, %v7522
        %v7524 = vpop.f32.mrb[0].mxu0
        %v7525 = vpop.f32.mrb[0].mxu0
        %v7526 = vadd.f32 0.0, %v7525
        %v7527 = vpop.f32.mrb[0].mxu0
        %7528 = vmatprep.mubr.bf16.mxu0 0
        %7529 = vmatmul.mubr.bf16.gmra.mrb[0].mxu0 %v7279
        %v7530 = vpop.f32.mrb[0].mxu0
        %v7531 = vadd.f32 0.0, %v7530
        %v7532 = vpop.f32.mrb[0].mxu0
        %v7533 = vpop.f32.mrb[0].mxu0
        %v7534 = vadd.f32 0.0, %v7533
        %v7535 = vpop.f32.mrb[0].mxu0
        %7536 = vmatprep.mubr.bf16.mxu0 0
        %7537 = vmatmul.mubr.bf16.gmra.mrb[0].mxu0 %v7280
        %v7538 = vpop.f32.mrb[0].mxu0
        %v7539 = vadd.f32 0.0, %v7538
        %v7540 = vpop.f32.mrb[0].mxu0
        %v7541 = vpop.f32.mrb[0].mxu0
        %v7542 = vadd.f32 0.0, %v7541
        %v7543 = vpop.f32.mrb[0].mxu0
        %7544 = vmatprep.mubr.bf16.mxu0 0
        %7545 = vmatmul.mubr.bf16.gmra.mrb[0].mxu0 %v7281
        %v7546 = vpop.f32.mrb[0].mxu0
        %v7547 = vadd.f32 0.0, %v7546
        %v7548 = vpop.f32.mrb[0].mxu0
        %v7549 = vpop.f32.mrb[0].mxu0
        %v7550 = vadd.f32 0.0, %v7549
        %v7551 = vpop.f32.mrb[0].mxu0
        %7552 = vmatprep.mubr.bf16.mxu0 0
        %7553 = vmatmul.mubr.bf16.gmra.mrb[0].mxu0 %v7282
        %v7554 = vpop.f32.mrb[0].mxu0
        %v7555 = vadd.f32 0.0, %v7554
        %v7556 = vpop.f32.mrb[0].mxu0
        %v7557 = vpop.f32.mrb[0].mxu0
        %v7558 = vadd.f32 0.0, %v7557
        %v7559 = vpop.f32.mrb[0].mxu0
        %7560 = vdwg.mxu0
        %v7561 = vadd.f32 %v7283, %v7419
        %v7562 = vadd.f32 %v7284, %v7422
        %v7563 = vadd.f32 %v7285, %v7427
        %v7564 = vadd.f32 %v7286, %v7430
        %v7565 = vadd.f32 %v7287, %v7435
        %v7566 = vadd.f32 %v7288, %v7438
        %v7567 = vadd.f32 %v7289, %v7443
        %v7568 = vadd.f32 %v7290, %v7446
        %v7569 = vadd.f32 %v7291, %v7451
        %v7570 = vadd.f32 %v7292, %v7454
        %v7571 = vadd.f32 %v7293, %v7459
        %v7572 = vadd.f32 %v7294, %v7462
        %v7573 = vadd.f32 %v7295, %v7467
        %v7574 = vadd.f32 %v7296, %v7470
        %v7575 = vadd.f32 %v7297, %v7475
        %v7576 = vadd.f32 %v7298, %v7478
        %v7577 = vadd.f32 %v7299, %v7483
        %v7578 = vadd.f32 %v7300, %v7486
        %v7579 = vadd.f32 %v7301, %v7491
        %v7580 = vadd.f32 %v7302, %v7494
        %v7581 = vadd.f32 %v7303, %v7499
        %v7582 = vadd.f32 %v7304, %v7502
        %v7583 = vadd.f32 %v7305, %v7507
        %v7584 = vadd.f32 %v7306, %v7510
        %v7585 = vadd.f32 %v7307, %v7515
        %v7586 = vadd.f32 %v7308, %v7518
        %v7587 = vadd.f32 %v7309, %v7523
        %v7588 = vadd.f32 %v7310, %v7526
        %v7589 = vadd.f32 %v7311, %v7531
        %v7590 = vadd.f32 %v7312, %v7534
        %v7591 = vadd.f32 %v7313, %v7539
        %v7592 = vadd.f32 %v7314, %v7542
        %v7593 = vadd.f32 %v7315, %v7547
        %v7594 = vadd.f32 %v7316, %v7550
        %v7595 = vadd.f32 %v7317, %v7555
        %v7596 = vadd.f32 %v7318, %v7558
        %7597 = vst [vmem:[#allocation2] sm:$0xff] %v7561
        %7598 = vst [vmem:[#allocation2 + $0x8] sm:$0xff] %v7562
        %7599 = vst [vmem:[#allocation2 + $0x10] sm:$0xff] %v7563
        %7600 = vst [vmem:[#allocation2 + $0x18] sm:$0xff] %v7564
        %7601 = vst [vmem:[#allocation2 + $0x20] sm:$0xff] %v7565
        %7602 = vst [vmem:[#allocation2 + $0x28] sm:$0xff] %v7566
        %7603 = vst [vmem:[#allocation2 + $0x30] sm:$0xff] %v7567
        %7604 = vst [vmem:[#allocation2 + $0x38] sm:$0xff] %v7568
        %7605 = vst [vmem:[#allocation2 + $0x40] sm:$0xff] %v7569
        %7606 = vst [vmem:[#allocation2 + $0x48] sm:$0xff] %v7570
        %7607 = vst [vmem:[#allocation2 + $0x50] sm:$0xff] %v7571
        %7608 = vst [vmem:[#allocation2 + $0x58] sm:$0xff] %v7572
        %7609 = vst [vmem:[#allocation2 + $0x60] sm:$0xff] %v7573
        %7610 = vst [vmem:[#allocation2 + $0x68] sm:$0xff] %v7574
        %7611 = vst [vmem:[#allocation2 + $0x70] sm:$0xff] %v7575
        %7612 = vst [vmem:[#allocation2 + $0x78] sm:$0xff] %v7576
        %7613 = vst [vmem:[#allocation2 + $0x80] sm:$0xff] %v7577
        %7614 = vst [vmem:[#allocation2 + $0x88] sm:$0xff] %v7578
        %7615 = vst [vmem:[#allocation2 + $0x90] sm:$0xff] %v7579
        %7616 = vst [vmem:[#allocation2 + $0x98] sm:$0xff] %v7580
        %7617 = vst [vmem:[#allocation2 + $0xa0] sm:$0xff] %v7581
        %7618 = vst [vmem:[#allocation2 + $0xa8] sm:$0xff] %v7582
        %7619 = vst [vmem:[#allocation2 + $0xb0] sm:$0xff] %v7583
        %7620 = vst [vmem:[#allocation2 + $0xb8] sm:$0xff] %v7584
        %7621 = vst [vmem:[#allocation2 + $0xc0] sm:$0xff] %v7585
        %7622 = vst [vmem:[#allocation2 + $0xc8] sm:$0xff] %v7586
        %7623 = vst [vmem:[#allocation2 + $0xd0] sm:$0xff] %v7587
        %7624 = vst [vmem:[#allocation2 + $0xd8] sm:$0xff] %v7588
        %7625 = vst [vmem:[#allocation2 + $0xe0] sm:$0xff] %v7589
        %7626 = vst [vmem:[#allocation2 + $0xe8] sm:$0xff] %v7590
        %7627 = vst [vmem:[#allocation2 + $0xf0] sm:$0xff] %v7591
        %7628 = vst [vmem:[#allocation2 + $0xf8] sm:$0xff] %v7592
        %7629 = vst [vmem:[#allocation2 + $0x100] sm:$0xff] %v7593
        %7630 = vst [vmem:[#allocation2 + $0x108] sm:$0xff] %v7594
        %7631 = vst [vmem:[#allocation2 + $0x110] sm:$0xff] %v7595
        %7632 = vst [vmem:[#allocation2 + $0x118] sm:$0xff] %v7596
        %v7633 = vld [vmem:[#allocation3 + $0x2b] sm:$0xff]
        %v7634 = vld [vmem:[#allocation3 + $0x33] sm:$0xff]
        %v7635 = vld [vmem:[#allocation3 + $0x3b] sm:$0xff]
        %v7636 = vld [vmem:[#allocation3 + $0x43] sm:$0xff]
        %v7637 = vld [vmem:[#allocation3 + $0x4b] sm:$0xff]
        %v7638 = vld [vmem:[#allocation3 + $0x53] sm:$0xff]
        %v7639 = vld [vmem:[#allocation3 + $0x5b] sm:$0xff]
        %v7640 = vld [vmem:[#allocation3 + $0x63] sm:$0xff]
        %v7641 = vld [vmem:[#allocation3 + $0x6b] sm:$0xff]
        %v7642 = vld [vmem:[#allocation3 + $0x73] sm:$0xff]
        %v7643 = vld [vmem:[#allocation3 + $0x7b] sm:$0xff]
        %v7644 = vld [vmem:[#allocation3 + $0x83] sm:$0xff]
        %v7645 = vld [vmem:[#allocation3 + $0x8b] sm:$0xff]
        %v7646 = vld [vmem:[#allocation3 + $0x93] sm:$0xff]
        %v7647 = vld [vmem:[#allocation3 + $0x9b] sm:$0xff]
        %v7648 = vld [vmem:[#allocation3 + $0xa3] sm:$0xff]
        %v7649 = vld [vmem:[#allocation3 + $0xab] sm:$0xff]
        %v7650 = vld [vmem:[#allocation3 + $0xb3] sm:$0xff]
        %v7651 = vld [vmem:[#allocation3 + $0xbb] sm:$0xff]
        %v7652 = vld [vmem:[#allocation3 + $0xc3] sm:$0xff]
        %v7653 = vld [vmem:[#allocation3 + $0xcb] sm:$0xff]
        %v7654 = vld [vmem:[#allocation3 + $0xd3] sm:$0xff]
        %v7655 = vld [vmem:[#allocation3 + $0xdb] sm:$0xff]
        %v7656 = vld [vmem:[#allocation3 + $0xe3] sm:$0xff]
        %v7657 = vld [vmem:[#allocation3 + $0xeb] sm:$0xff]
        %v7658 = vld [vmem:[#allocation3 + $0xf3] sm:$0xff]
        %v7659 = vld [vmem:[#allocation3 + $0xfb] sm:$0xff]
        %v7660 = vld [vmem:[#allocation3 + $0x103] sm:$0xff]
        %v7661 = vld [vmem:[#allocation3 + $0x10b] sm:$0xff]
        %v7662 = vld [vmem:[#allocation3 + $0x113] sm:$0xff]
        %v7663 = vld [vmem:[#allocation3 + $0x11b] sm:$0xff]
        %v7664 = vld [vmem:[#allocation3 + $0x123] sm:$0xff]
        %v7665 = vld [vmem:[#allocation3 + $0x12b] sm:$0xff]
        %v7666 = vld [vmem:[#allocation3 + $0x133] sm:$0xff]
        %v7667 = vld [vmem:[#allocation3 + $0x13b] sm:$0xff]
        %v7668 = vld [vmem:[#allocation3 + $0x143] sm:$0xff]
        %v7669 = vpack.c.bf16 %v7634, %v7633
        %v7670 = vpack.c.bf16 %v7636, %v7635
        %v7671 = vpack.c.bf16 %v7638, %v7637
        %v7672 = vpack.c.bf16 %v7640, %v7639
        %v7673 = vpack.c.bf16 %v7642, %v7641
        %v7674 = vpack.c.bf16 %v7644, %v7643
        %v7675 = vpack.c.bf16 %v7646, %v7645
        %v7676 = vpack.c.bf16 %v7648, %v7647
        %v7677 = vpack.c.bf16 %v7650, %v7649
        %v7678 = vpack.c.bf16 %v7652, %v7651
        %v7679 = vpack.c.bf16 %v7654, %v7653
        %v7680 = vpack.c.bf16 %v7656, %v7655
        %v7681 = vpack.c.bf16 %v7658, %v7657
        %v7682 = vpack.c.bf16 %v7660, %v7659
        %v7683 = vpack.c.bf16 %v7662, %v7661
        %v7684 = vpack.c.bf16 %v7664, %v7663
        %v7685 = vpack.c.bf16 %v7666, %v7665
        %v7686 = vpack.c.bf16 %v7668, %v7667
        %v7687 = vld [vmem:[#allocation2] sm:$0xff]
        %v7688 = vld [vmem:[#allocation2 + $0x8] sm:$0xff]
        %v7689 = vld [vmem:[#allocation2 + $0x10] sm:$0xff]
        %v7690 = vld [vmem:[#allocation2 + $0x18] sm:$0xff]
        %v7691 = vld [vmem:[#allocation2 + $0x20] sm:$0xff]
        %v7692 = vld [vmem:[#allocation2 + $0x28] sm:$0xff]
        %v7693 = vld [vmem:[#allocation2 + $0x30] sm:$0xff]
        %v7694 = vld [vmem:[#allocation2 + $0x38] sm:$0xff]
        %v7695 = vld [vmem:[#allocation2 + $0x40] sm:$0xff]
        %v7696 = vld [vmem:[#allocation2 + $0x48] sm:$0xff]
        %v7697 = vld [vmem:[#allocation2 + $0x50] sm:$0xff]
        %v7698 = vld [vmem:[#allocation2 + $0x58] sm:$0xff]
        %v7699 = vld [vmem:[#allocation2 + $0x60] sm:$0xff]
        %v7700 = vld [vmem:[#allocation2 + $0x68] sm:$0xff]
        %v7701 = vld [vmem:[#allocation2 + $0x70] sm:$0xff]
        %v7702 = vld [vmem:[#allocation2 + $0x78] sm:$0xff]
        %v7703 = vld [vmem:[#allocation2 + $0x80] sm:$0xff]
        %v7704 = vld [vmem:[#allocation2 + $0x88] sm:$0xff]
        %v7705 = vld [vmem:[#allocation2 + $0x90] sm:$0xff]
        %v7706 = vld [vmem:[#allocation2 + $0x98] sm:$0xff]
        %v7707 = vld [vmem:[#allocation2 + $0xa0] sm:$0xff]
        %v7708 = vld [vmem:[#allocation2 + $0xa8] sm:$0xff]
        %v7709 = vld [vmem:[#allocation2 + $0xb0] sm:$0xff]
        %v7710 = vld [vmem:[#allocation2 + $0xb8] sm:$0xff]
        %v7711 = vld [vmem:[#allocation2 + $0xc0] sm:$0xff]
        %v7712 = vld [vmem:[#allocation2 + $0xc8] sm:$0xff]
        %v7713 = vld [vmem:[#allocation2 + $0xd0] sm:$0xff]
        %v7714 = vld [vmem:[#allocation2 + $0xd8] sm:$0xff]
        %v7715 = vld [vmem:[#allocation2 + $0xe0] sm:$0xff]
        %v7716 = vld [vmem:[#allocation2 + $0xe8] sm:$0xff]
        %v7717 = vld [vmem:[#allocation2 + $0xf0] sm:$0xff]
        %v7718 = vld [vmem:[#allocation2 + $0xf8] sm:$0xff]
        %v7719 = vld [vmem:[#allocation2 + $0x100] sm:$0xff]
        %v7720 = vld [vmem:[#allocation2 + $0x108] sm:$0xff]
        %v7721 = vld [vmem:[#allocation2 + $0x110] sm:$0xff]
        %v7722 = vld [vmem:[#allocation2 + $0x118] sm:$0xff]
        %s7723 = scalar_lea.vmem %s3, 512
        %v7724 = vld [vmem:[%s7723] sm:$0xf]
        %v7725 = vld [vmem:[%s7723 + $0x4] sm:$0xf]
        %v7726 = vld [vmem:[%s7723 + $0x8] sm:$0xf]
        %v7727 = vld [vmem:[%s7723 + $0xc] sm:$0xf]
        %v7728 = vld [vmem:[%s7723 + $0x10] sm:$0xf]
        %v7729 = vld [vmem:[%s7723 + $0x14] sm:$0xf]
        %v7730 = vld [vmem:[%s7723 + $0x18] sm:$0xf]
        %v7731 = vld [vmem:[%s7723 + $0x1c] sm:$0xf]
        %v7732 = vld [vmem:[%s7723 + $0x20] sm:$0xf]
        %v7733 = vld [vmem:[%s7723 + $0x24] sm:$0xf]
        %v7734 = vld [vmem:[%s7723 + $0x28] sm:$0xf]
        %v7735 = vld [vmem:[%s7723 + $0x2c] sm:$0xf]
        %v7736 = vld [vmem:[%s7723 + $0x30] sm:$0xf]
        %v7737 = vld [vmem:[%s7723 + $0x34] sm:$0xf]
        %v7738 = vld [vmem:[%s7723 + $0x38] sm:$0xf]
        %v7739 = vld [vmem:[%s7723 + $0x3c] sm:$0xf]
        %v7756 = vunpack.c.l.b16 %v7724
        %v7757 = vunpack.c.l.b16 %v7725
        %v7758 = vunpack.c.l.b16 %v7726
        %v7759 = vunpack.c.l.b16 %v7727
        %v7760 = vunpack.c.l.b16 %v7728
        %v7761 = vunpack.c.l.b16 %v7729
        %v7762 = vunpack.c.l.b16 %v7730
        %v7763 = vunpack.c.l.b16 %v7731
        %v7764 = vunpack.c.l.b16 %v7732
        %v7765 = vunpack.c.l.b16 %v7733
        %v7766 = vunpack.c.l.b16 %v7734
        %v7767 = vunpack.c.l.b16 %v7735
        %v7768 = vunpack.c.l.b16 %v7736
        %v7769 = vunpack.c.l.b16 %v7737
        %v7770 = vunpack.c.l.b16 %v7738
        %v7771 = vunpack.c.l.b16 %v7739
        %v7772 = vpack.c.b16 %v7757, %v7756
        %v7773 = vpack.c.b16 %v7759, %v7758
        %v7774 = vpack.c.b16 %v7761, %v7760
        %v7775 = vpack.c.b16 %v7763, %v7762
        %v7776 = vpack.c.b16 %v7765, %v7764
        %v7777 = vpack.c.b16 %v7767, %v7766
        %v7778 = vpack.c.b16 %v7769, %v7768
        %v7779 = vpack.c.b16 %v7771, %v7770
        %7788 = vmatprep.subr.bf16.mxu0 0
        %7789 = vmatpush1.bf16.msra.mxu0 %v7772
        %7790 = vmatprep.subr.bf16.mxu0 0
        %7791 = vmatpush1.bf16.msra.mxu0 %v7773
        %7792 = vmatprep.subr.bf16.mxu0 0
        %7793 = vmatpush1.bf16.msra.mxu0 %v7774
        %7794 = vmatprep.subr.bf16.mxu0 0
        %7795 = vmatpush1.bf16.msra.mxu0 %v7775
        %7796 = vmatprep.subr.bf16.mxu0 0
        %7797 = vmatpush1.bf16.msra.mxu0 %v7776
        %7798 = vmatprep.subr.bf16.mxu0 0
        %7799 = vmatpush1.bf16.msra.mxu0 %v7777
        %7800 = vmatprep.subr.bf16.mxu0 0
        %7801 = vmatpush1.bf16.msra.mxu0 %v7778
        %7802 = vmatprep.subr.bf16.mxu0 0
        %7803 = vmatpush1.bf16.msra.mxu0 %v7779
        %7804 = vmatprep.subr.bf16.mxu0 0
        %7805 = vmatpush1.bf16.msra.mxu0 0
        %7806 = vmatprep.subr.bf16.mxu0 0
        %7807 = vmatpush1.bf16.msra.mxu0 0
        %7808 = vmatprep.subr.bf16.mxu0 0
        %7809 = vmatpush1.bf16.msra.mxu0 0
        %7810 = vmatprep.subr.bf16.mxu0 0
        %7811 = vmatpush1.bf16.msra.mxu0 0
        %7812 = vmatprep.subr.bf16.mxu0 0
        %7813 = vmatpush1.bf16.msra.mxu0 0
        %7814 = vmatprep.subr.bf16.mxu0 0
        %7815 = vmatpush1.bf16.msra.mxu0 0
        %7816 = vmatprep.subr.bf16.mxu0 0
        %7817 = vmatpush1.bf16.msra.mxu0 0
        %7818 = vmatprep.subr.bf16.mxu0 0
        %7819 = vmatpush1.bf16.msra.mxu0 0
        %7820 = vmatprep.mubr.bf16.mxu0 0
        %7821 = vmatmul.mubr.bf16.gmra.mrb[0].mxu0 %v7669
        %v7822 = vpop.f32.mrb[0].mxu0
        %v7823 = vadd.f32 0.0, %v7822
        %v7824 = vpop.f32.mrb[0].mxu0
        %v7825 = vpop.f32.mrb[0].mxu0
        %v7826 = vadd.f32 0.0, %v7825
        %v7827 = vpop.f32.mrb[0].mxu0
        %7828 = vmatprep.mubr.bf16.mxu0 0
        %7829 = vmatmul.mubr.bf16.gmra.mrb[0].mxu0 %v7670
        %v7830 = vpop.f32.mrb[0].mxu0
        %v7831 = vadd.f32 0.0, %v7830
        %v7832 = vpop.f32.mrb[0].mxu0
        %v7833 = vpop.f32.mrb[0].mxu0
        %v7834 = vadd.f32 0.0, %v7833
        %v7835 = vpop.f32.mrb[0].mxu0
        %7836 = vmatprep.mubr.bf16.mxu0 0
        %7837 = vmatmul.mubr.bf16.gmra.mrb[0].mxu0 %v7671
        %v7838 = vpop.f32.mrb[0].mxu0
        %v7839 = vadd.f32 0.0, %v7838
        %v7840 = vpop.f32.mrb[0].mxu0
        %v7841 = vpop.f32.mrb[0].mxu0
        %v7842 = vadd.f32 0.0, %v7841
        %v7843 = vpop.f32.mrb[0].mxu0
        %7844 = vmatprep.mubr.bf16.mxu0 0
        %7845 = vmatmul.mubr.bf16.gmra.mrb[0].mxu0 %v7672
        %v7846 = vpop.f32.mrb[0].mxu0
        %v7847 = vadd.f32 0.0, %v7846
        %v7848 = vpop.f32.mrb[0].mxu0
        %v7849 = vpop.f32.mrb[0].mxu0
        %v7850 = vadd.f32 0.0, %v7849
        %v7851 = vpop.f32.mrb[0].mxu0
        %7852 = vmatprep.mubr.bf16.mxu0 0
        %7853 = vmatmul.mubr.bf16.gmra.mrb[0].mxu0 %v7673
        %v7854 = vpop.f32.mrb[0].mxu0
        %v7855 = vadd.f32 0.0, %v7854
        %v7856 = vpop.f32.mrb[0].mxu0
        %v7857 = vpop.f32.mrb[0].mxu0
        %v7858 = vadd.f32 0.0, %v7857
        %v7859 = vpop.f32.mrb[0].mxu0
        %7860 = vmatprep.mubr.bf16.mxu0 0
        %7861 = vmatmul.mubr.bf16.gmra.mrb[0].mxu0 %v7674
        %v7862 = vpop.f32.mrb[0].mxu0
        %v7863 = vadd.f32 0.0, %v7862
        %v7864 = vpop.f32.mrb[0].mxu0
        %v7865 = vpop.f32.mrb[0].mxu0
        %v7866 = vadd.f32 0.0, %v7865
        %v7867 = vpop.f32.mrb[0].mxu0
        %7868 = vmatprep.mubr.bf16.mxu0 0
        %7869 = vmatmul.mubr.bf16.gmra.mrb[0].mxu0 %v7675
        %v7870 = vpop.f32.mrb[0].mxu0
        %v7871 = vadd.f32 0.0, %v7870
        %v7872 = vpop.f32.mrb[0].mxu0
        %v7873 = vpop.f32.mrb[0].mxu0
        %v7874 = vadd.f32 0.0, %v7873
        %v7875 = vpop.f32.mrb[0].mxu0
        %7876 = vmatprep.mubr.bf16.mxu0 0
        %7877 = vmatmul.mubr.bf16.gmra.mrb[0].mxu0 %v7676
        %v7878 = vpop.f32.mrb[0].mxu0
        %v7879 = vadd.f32 0.0, %v7878
        %v7880 = vpop.f32.mrb[0].mxu0
        %v7881 = vpop.f32.mrb[0].mxu0
        %v7882 = vadd.f32 0.0, %v7881
        %v7883 = vpop.f32.mrb[0].mxu0
        %7884 = vmatprep.mubr.bf16.mxu0 0
        %7885 = vmatmul.mubr.bf16.gmra.mrb[0].mxu0 %v7677
        %v7886 = vpop.f32.mrb[0].mxu0
        %v7887 = vadd.f32 0.0, %v7886
        %v7888 = vpop.f32.mrb[0].mxu0
        %v7889 = vpop.f32.mrb[0].mxu0
        %v7890 = vadd.f32 0.0, %v7889
        %v7891 = vpop.f32.mrb[0].mxu0
        %7892 = vmatprep.mubr.bf16.mxu0 0
        %7893 = vmatmul.mubr.bf16.gmra.mrb[0].mxu0 %v7678
        %v7894 = vpop.f32.mrb[0].mxu0
        %v7895 = vadd.f32 0.0, %v7894
        %v7896 = vpop.f32.mrb[0].mxu0
        %v7897 = vpop.f32.mrb[0].mxu0
        %v7898 = vadd.f32 0.0, %v7897
        %v7899 = vpop.f32.mrb[0].mxu0
        %7900 = vmatprep.mubr.bf16.mxu0 0
        %7901 = vmatmul.mubr.bf16.gmra.mrb[0].mxu0 %v7679
        %v7902 = vpop.f32.mrb[0].mxu0
        %v7903 = vadd.f32 0.0, %v7902
        %v7904 = vpop.f32.mrb[0].mxu0
        %v7905 = vpop.f32.mrb[0].mxu0
        %v7906 = vadd.f32 0.0, %v7905
        %v7907 = vpop.f32.mrb[0].mxu0
        %7908 = vmatprep.mubr.bf16.mxu0 0
        %7909 = vmatmul.mubr.bf16.gmra.mrb[0].mxu0 %v7680
        %v7910 = vpop.f32.mrb[0].mxu0
        %v7911 = vadd.f32 0.0, %v7910
        %v7912 = vpop.f32.mrb[0].mxu0
        %v7913 = vpop.f32.mrb[0].mxu0
        %v7914 = vadd.f32 0.0, %v7913
        %v7915 = vpop.f32.mrb[0].mxu0
        %7916 = vmatprep.mubr.bf16.mxu0 0
        %7917 = vmatmul.mubr.bf16.gmra.mrb[0].mxu0 %v7681
        %v7918 = vpop.f32.mrb[0].mxu0
        %v7919 = vadd.f32 0.0, %v7918
        %v7920 = vpop.f32.mrb[0].mxu0
        %v7921 = vpop.f32.mrb[0].mxu0
        %v7922 = vadd.f32 0.0, %v7921
        %v7923 = vpop.f32.mrb[0].mxu0
        %7924 = vmatprep.mubr.bf16.mxu0 0
        %7925 = vmatmul.mubr.bf16.gmra.mrb[0].mxu0 %v7682
        %v7926 = vpop.f32.mrb[0].mxu0
        %v7927 = vadd.f32 0.0, %v7926
        %v7928 = vpop.f32.mrb[0].mxu0
        %v7929 = vpop.f32.mrb[0].mxu0
        %v7930 = vadd.f32 0.0, %v7929
        %v7931 = vpop.f32.mrb[0].mxu0
        %7932 = vmatprep.mubr.bf16.mxu0 0
        %7933 = vmatmul.mubr.bf16.gmra.mrb[0].mxu0 %v7683
        %v7934 = vpop.f32.mrb[0].mxu0
        %v7935 = vadd.f32 0.0, %v7934
        %v7936 = vpop.f32.mrb[0].mxu0
        %v7937 = vpop.f32.mrb[0].mxu0
        %v7938 = vadd.f32 0.0, %v7937
        %v7939 = vpop.f32.mrb[0].mxu0
        %7940 = vmatprep.mubr.bf16.mxu0 0
        %7941 = vmatmul.mubr.bf16.gmra.mrb[0].mxu0 %v7684
        %v7942 = vpop.f32.mrb[0].mxu0
        %v7943 = vadd.f32 0.0, %v7942
        %v7944 = vpop.f32.mrb[0].mxu0
        %v7945 = vpop.f32.mrb[0].mxu0
        %v7946 = vadd.f32 0.0, %v7945
        %v7947 = vpop.f32.mrb[0].mxu0
        %7948 = vmatprep.mubr.bf16.mxu0 0
        %7949 = vmatmul.mubr.bf16.gmra.mrb[0].mxu0 %v7685
        %v7950 = vpop.f32.mrb[0].mxu0
        %v7951 = vadd.f32 0.0, %v7950
        %v7952 = vpop.f32.mrb[0].mxu0
        %v7953 = vpop.f32.mrb[0].mxu0
        %v7954 = vadd.f32 0.0, %v7953
        %v7955 = vpop.f32.mrb[0].mxu0
        %7956 = vmatprep.mubr.bf16.mxu0 0
        %7957 = vmatmul.mubr.bf16.gmra.mrb[0].mxu0 %v7686
        %v7958 = vpop.f32.mrb[0].mxu0
        %v7959 = vadd.f32 0.0, %v7958
        %v7960 = vpop.f32.mrb[0].mxu0
        %v7961 = vpop.f32.mrb[0].mxu0
        %v7962 = vadd.f32 0.0, %v7961
        %v7963 = vpop.f32.mrb[0].mxu0
        %7964 = vdwg.mxu0
        %v7965 = vadd.f32 %v7687, %v7823
        %v7966 = vadd.f32 %v7688, %v7826
        %v7967 = vadd.f32 %v7689, %v7831
        %v7968 = vadd.f32 %v7690, %v7834
        %v7969 = vadd.f32 %v7691, %v7839
        %v7970 = vadd.f32 %v7692, %v7842
        %v7971 = vadd.f32 %v7693, %v7847
        %v7972 = vadd.f32 %v7694, %v7850
        %v7973 = vadd.f32 %v7695, %v7855
        %v7974 = vadd.f32 %v7696, %v7858
        %v7975 = vadd.f32 %v7697, %v7863
        %v7976 = vadd.f32 %v7698, %v7866
        %v7977 = vadd.f32 %v7699, %v7871
        %v7978 = vadd.f32 %v7700, %v7874
        %v7979 = vadd.f32 %v7701, %v7879
        %v7980 = vadd.f32 %v7702, %v7882
        %v7981 = vadd.f32 %v7703, %v7887
        %v7982 = vadd.f32 %v7704, %v7890
        %v7983 = vadd.f32 %v7705, %v7895
        %v7984 = vadd.f32 %v7706, %v7898
        %v7985 = vadd.f32 %v7707, %v7903
        %v7986 = vadd.f32 %v7708, %v7906
        %v7987 = vadd.f32 %v7709, %v7911
        %v7988 = vadd.f32 %v7710, %v7914
        %v7989 = vadd.f32 %v7711, %v7919
        %v7990 = vadd.f32 %v7712, %v7922
        %v7991 = vadd.f32 %v7713, %v7927
        %v7992 = vadd.f32 %v7714, %v7930
        %v7993 = vadd.f32 %v7715, %v7935
        %v7994 = vadd.f32 %v7716, %v7938
        %v7995 = vadd.f32 %v7717, %v7943
        %v7996 = vadd.f32 %v7718, %v7946
        %v7997 = vadd.f32 %v7719, %v7951
        %v7998 = vadd.f32 %v7720, %v7954
        %v7999 = vadd.f32 %v7721, %v7959
        %v8000 = vadd.f32 %v7722, %v7962
        %8001 = vst [vmem:[#allocation2] sm:$0xff] %v7965
        %8002 = vst [vmem:[#allocation2 + $0x8] sm:$0xff] %v7966
        %8003 = vst [vmem:[#allocation2 + $0x10] sm:$0xff] %v7967
        %8004 = vst [vmem:[#allocation2 + $0x18] sm:$0xff] %v7968
        %8005 = vst [vmem:[#allocation2 + $0x20] sm:$0xff] %v7969
        %8006 = vst [vmem:[#allocation2 + $0x28] sm:$0xff] %v7970
        %8007 = vst [vmem:[#allocation2 + $0x30] sm:$0xff] %v7971
        %8008 = vst [vmem:[#allocation2 + $0x38] sm:$0xff] %v7972
        %8009 = vst [vmem:[#allocation2 + $0x40] sm:$0xff] %v7973
        %8010 = vst [vmem:[#allocation2 + $0x48] sm:$0xff] %v7974
        %8011 = vst [vmem:[#allocation2 + $0x50] sm:$0xff] %v7975
        %8012 = vst [vmem:[#allocation2 + $0x58] sm:$0xff] %v7976
        %8013 = vst [vmem:[#allocation2 + $0x60] sm:$0xff] %v7977
        %8014 = vst [vmem:[#allocation2 + $0x68] sm:$0xff] %v7978
        %8015 = vst [vmem:[#allocation2 + $0x70] sm:$0xff] %v7979
        %8016 = vst [vmem:[#allocation2 + $0x78] sm:$0xff] %v7980
        %8017 = vst [vmem:[#allocation2 + $0x80] sm:$0xff] %v7981
        %8018 = vst [vmem:[#allocation2 + $0x88] sm:$0xff] %v7982
        %8019 = vst [vmem:[#allocation2 + $0x90] sm:$0xff] %v7983
        %8020 = vst [vmem:[#allocation2 + $0x98] sm:$0xff] %v7984
        %8021 = vst [vmem:[#allocation2 + $0xa0] sm:$0xff] %v7985
        %8022 = vst [vmem:[#allocation2 + $0xa8] sm:$0xff] %v7986
        %8023 = vst [vmem:[#allocation2 + $0xb0] sm:$0xff] %v7987
        %8024 = vst [vmem:[#allocation2 + $0xb8] sm:$0xff] %v7988
        %8025 = vst [vmem:[#allocation2 + $0xc0] sm:$0xff] %v7989
        %8026 = vst [vmem:[#allocation2 + $0xc8] sm:$0xff] %v7990
        %8027 = vst [vmem:[#allocation2 + $0xd0] sm:$0xff] %v7991
        %8028 = vst [vmem:[#allocation2 + $0xd8] sm:$0xff] %v7992
        %8029 = vst [vmem:[#allocation2 + $0xe0] sm:$0xff] %v7993
        %8030 = vst [vmem:[#allocation2 + $0xe8] sm:$0xff] %v7994
        %8031 = vst [vmem:[#allocation2 + $0xf0] sm:$0xff] %v7995
        %8032 = vst [vmem:[#allocation2 + $0xf8] sm:$0xff] %v7996
        %8033 = vst [vmem:[#allocation2 + $0x100] sm:$0xff] %v7997
        %8034 = vst [vmem:[#allocation2 + $0x108] sm:$0xff] %v7998
        %8035 = vst [vmem:[#allocation2 + $0x110] sm:$0xff] %v7999
        %8036 = vst [vmem:[#allocation2 + $0x118] sm:$0xff] %v8000
        %v8037 = vld [vmem:[%s248 + $0x13] sm:$0xff]
        %v8038 = vld [vmem:[%s248 + $0x1b] sm:$0xff]
        %v8039 = vld [vmem:[%s248 + $0x23] sm:$0xff]
        %v8040 = vld [vmem:[%s248 + $0x2b] sm:$0xff]
        %v8041 = vld [vmem:[%s248 + $0x33] sm:$0xff]
        %v8042 = vld [vmem:[%s248 + $0x3b] sm:$0xff]
        %v8043 = vld [vmem:[%s248 + $0x43] sm:$0xff]
        %v8044 = vld [vmem:[%s248 + $0x4b] sm:$0xff]
        %v8045 = vld [vmem:[%s248 + $0x53] sm:$0xff]
        %v8046 = vld [vmem:[%s248 + $0x5b] sm:$0xff]
        %v8047 = vld [vmem:[%s248 + $0x63] sm:$0xff]
        %v8048 = vld [vmem:[%s248 + $0x6b] sm:$0xff]
        %v8049 = vld [vmem:[%s248 + $0x73] sm:$0xff]
        %v8050 = vld [vmem:[%s248 + $0x7b] sm:$0xff]
        %v8051 = vld [vmem:[%s248 + $0x83] sm:$0xff]
        %v8052 = vld [vmem:[%s248 + $0x8b] sm:$0xff]
        %v8053 = vld [vmem:[%s248 + $0x93] sm:$0xff]
        %v8054 = vld [vmem:[%s248 + $0x9b] sm:$0xff]
        %v8055 = vld [vmem:[%s248 + $0xa3] sm:$0xff]
        %v8056 = vld [vmem:[%s248 + $0xab] sm:$0xff]
        %v8057 = vld [vmem:[%s248 + $0xb3] sm:$0xff]
        %v8058 = vld [vmem:[%s248 + $0xbb] sm:$0xff]
        %v8059 = vld [vmem:[%s248 + $0xc3] sm:$0xff]
        %v8060 = vld [vmem:[%s248 + $0xcb] sm:$0xff]
        %v8061 = vld [vmem:[%s248 + $0xd3] sm:$0xff]
        %v8062 = vld [vmem:[%s248 + $0xdb] sm:$0xff]
        %v8063 = vld [vmem:[%s248 + $0xe3] sm:$0xff]
        %v8064 = vld [vmem:[%s248 + $0xeb] sm:$0xff]
        %v8065 = vld [vmem:[%s248 + $0xf3] sm:$0xff]
        %v8066 = vld [vmem:[%s248 + $0xfb] sm:$0xff]
        %v8067 = vld [vmem:[%s248 + $0x103] sm:$0xff]
        %v8068 = vld [vmem:[%s248 + $0x10b] sm:$0xff]
        %v8069 = vld [vmem:[%s248 + $0x113] sm:$0xff]
        %v8070 = vld [vmem:[%s248 + $0x11b] sm:$0xff]
        %v8071 = vld [vmem:[%s248 + $0x123] sm:$0xff]
        %v8072 = vld [vmem:[%s248 + $0x12b] sm:$0xff]
        %v8073 = vld [vmem:[#allocation2] sm:$0xff]
        %v8074 = vld [vmem:[#allocation2 + $0x8] sm:$0xff]
        %v8075 = vld [vmem:[#allocation2 + $0x10] sm:$0xff]
        %v8076 = vld [vmem:[#allocation2 + $0x18] sm:$0xff]
        %v8077 = vld [vmem:[#allocation2 + $0x20] sm:$0xff]
        %v8078 = vld [vmem:[#allocation2 + $0x28] sm:$0xff]
        %v8079 = vld [vmem:[#allocation2 + $0x30] sm:$0xff]
        %v8080 = vld [vmem:[#allocation2 + $0x38] sm:$0xff]
        %v8081 = vld [vmem:[#allocation2 + $0x40] sm:$0xff]
        %v8082 = vld [vmem:[#allocation2 + $0x48] sm:$0xff]
        %v8083 = vld [vmem:[#allocation2 + $0x50] sm:$0xff]
        %v8084 = vld [vmem:[#allocation2 + $0x58] sm:$0xff]
        %v8085 = vld [vmem:[#allocation2 + $0x60] sm:$0xff]
        %v8086 = vld [vmem:[#allocation2 + $0x68] sm:$0xff]
        %v8087 = vld [vmem:[#allocation2 + $0x70] sm:$0xff]
        %v8088 = vld [vmem:[#allocation2 + $0x78] sm:$0xff]
        %v8089 = vld [vmem:[#allocation2 + $0x80] sm:$0xff]
        %v8090 = vld [vmem:[#allocation2 + $0x88] sm:$0xff]
        %v8091 = vld [vmem:[#allocation2 + $0x90] sm:$0xff]
        %v8092 = vld [vmem:[#allocation2 + $0x98] sm:$0xff]
        %v8093 = vld [vmem:[#allocation2 + $0xa0] sm:$0xff]
        %v8094 = vld [vmem:[#allocation2 + $0xa8] sm:$0xff]
        %v8095 = vld [vmem:[#allocation2 + $0xb0] sm:$0xff]
        %v8096 = vld [vmem:[#allocation2 + $0xb8] sm:$0xff]
        %v8097 = vld [vmem:[#allocation2 + $0xc0] sm:$0xff]
        %v8098 = vld [vmem:[#allocation2 + $0xc8] sm:$0xff]
        %v8099 = vld [vmem:[#allocation2 + $0xd0] sm:$0xff]
        %v8100 = vld [vmem:[#allocation2 + $0xd8] sm:$0xff]
        %v8101 = vld [vmem:[#allocation2 + $0xe0] sm:$0xff]
        %v8102 = vld [vmem:[#allocation2 + $0xe8] sm:$0xff]
        %v8103 = vld [vmem:[#allocation2 + $0xf0] sm:$0xff]
        %v8104 = vld [vmem:[#allocation2 + $0xf8] sm:$0xff]
        %v8105 = vld [vmem:[#allocation2 + $0x100] sm:$0xff]
        %v8106 = vld [vmem:[#allocation2 + $0x108] sm:$0xff]
        %v8107 = vld [vmem:[#allocation2 + $0x110] sm:$0xff]
        %v8108 = vld [vmem:[#allocation2 + $0x118] sm:$0xff]
        %v8109 = vld [vmem:[%s4] sm:$0x1]
        %v8111 = vlaneseq
        %v8112 = vshrl.u32 %v8111, 7
        %v8113 = vsub.s32 0, %v8112
        %v8114 = vrot.slane %v8109, %v8113
        %v8116 = vadd.f32 %v8073, %v8114
        %v8117 = vadd.f32 %v8074, %v8114
        %v8118 = vadd.f32 %v8075, %v8114
        %v8119 = vadd.f32 %v8076, %v8114
        %v8120 = vadd.f32 %v8077, %v8114
        %v8121 = vadd.f32 %v8078, %v8114
        %v8122 = vadd.f32 %v8079, %v8114
        %v8123 = vadd.f32 %v8080, %v8114
        %v8124 = vadd.f32 %v8081, %v8114
        %v8125 = vadd.f32 %v8082, %v8114
        %v8126 = vadd.f32 %v8083, %v8114
        %v8127 = vadd.f32 %v8084, %v8114
        %v8128 = vadd.f32 %v8085, %v8114
        %v8129 = vadd.f32 %v8086, %v8114
        %v8130 = vadd.f32 %v8087, %v8114
        %v8131 = vadd.f32 %v8088, %v8114
        %v8132 = vadd.f32 %v8089, %v8114
        %v8133 = vadd.f32 %v8090, %v8114
        %v8134 = vadd.f32 %v8091, %v8114
        %v8135 = vadd.f32 %v8092, %v8114
        %v8136 = vadd.f32 %v8093, %v8114
        %v8137 = vadd.f32 %v8094, %v8114
        %v8138 = vadd.f32 %v8095, %v8114
        %v8139 = vadd.f32 %v8096, %v8114
        %v8140 = vadd.f32 %v8097, %v8114
        %v8141 = vadd.f32 %v8098, %v8114
        %v8142 = vadd.f32 %v8099, %v8114
        %v8143 = vadd.f32 %v8100, %v8114
        %v8144 = vadd.f32 %v8101, %v8114
        %v8145 = vadd.f32 %v8102, %v8114
        %v8146 = vadd.f32 %v8103, %v8114
        %v8147 = vadd.f32 %v8104, %v8114
        %v8148 = vadd.f32 %v8105, %v8114
        %v8149 = vadd.f32 %v8106, %v8114
        %v8150 = vadd.f32 %v8107, %v8114
        %v8151 = vadd.f32 %v8108, %v8114
        %v8152 = vadd.f32 %v8116, %v8037
        %v8153 = vadd.f32 %v8117, %v8038
        %v8154 = vadd.f32 %v8118, %v8039
        %v8155 = vadd.f32 %v8119, %v8040
        %v8156 = vadd.f32 %v8120, %v8041
        %v8157 = vadd.f32 %v8121, %v8042
        %v8158 = vadd.f32 %v8122, %v8043
        %v8159 = vadd.f32 %v8123, %v8044
        %v8160 = vadd.f32 %v8124, %v8045
        %v8161 = vadd.f32 %v8125, %v8046
        %v8162 = vadd.f32 %v8126, %v8047
        %v8163 = vadd.f32 %v8127, %v8048
        %v8164 = vadd.f32 %v8128, %v8049
        %v8165 = vadd.f32 %v8129, %v8050
        %v8166 = vadd.f32 %v8130, %v8051
        %v8167 = vadd.f32 %v8131, %v8052
        %v8168 = vadd.f32 %v8132, %v8053
        %v8169 = vadd.f32 %v8133, %v8054
        %v8170 = vadd.f32 %v8134, %v8055
        %v8171 = vadd.f32 %v8135, %v8056
        %v8172 = vadd.f32 %v8136, %v8057
        %v8173 = vadd.f32 %v8137, %v8058
        %v8174 = vadd.f32 %v8138, %v8059
        %v8175 = vadd.f32 %v8139, %v8060
        %v8176 = vadd.f32 %v8140, %v8061
        %v8177 = vadd.f32 %v8141, %v8062
        %v8178 = vadd.f32 %v8142, %v8063
        %v8179 = vadd.f32 %v8143, %v8064
        %v8180 = vadd.f32 %v8144, %v8065
        %v8181 = vadd.f32 %v8145, %v8066
        %v8182 = vadd.f32 %v8146, %v8067
        %v8183 = vadd.f32 %v8147, %v8068
        %v8184 = vadd.f32 %v8148, %v8069
        %v8185 = vadd.f32 %v8149, %v8070
        %v8186 = vadd.f32 %v8150, %v8071
        %v8187 = vadd.f32 %v8151, %v8072
        %v8188 = vmax.f32 %v8152, 0.0
        %v8189 = vmax.f32 %v8153, 0.0
        %v8190 = vmax.f32 %v8154, 0.0
        %v8191 = vmax.f32 %v8155, 0.0
        %v8192 = vmax.f32 %v8156, 0.0
        %v8193 = vmax.f32 %v8157, 0.0
        %v8194 = vmax.f32 %v8158, 0.0
        %v8195 = vmax.f32 %v8159, 0.0
        %v8196 = vmax.f32 %v8160, 0.0
        %v8197 = vmax.f32 %v8161, 0.0
        %v8198 = vmax.f32 %v8162, 0.0
        %v8199 = vmax.f32 %v8163, 0.0
        %v8200 = vmax.f32 %v8164, 0.0
        %v8201 = vmax.f32 %v8165, 0.0
        %v8202 = vmax.f32 %v8166, 0.0
        %v8203 = vmax.f32 %v8167, 0.0
        %v8204 = vmax.f32 %v8168, 0.0
        %v8205 = vmax.f32 %v8169, 0.0
        %v8206 = vmax.f32 %v8170, 0.0
        %v8207 = vmax.f32 %v8171, 0.0
        %v8208 = vmax.f32 %v8172, 0.0
        %v8209 = vmax.f32 %v8173, 0.0
        %v8210 = vmax.f32 %v8174, 0.0
        %v8211 = vmax.f32 %v8175, 0.0
        %v8212 = vmax.f32 %v8176, 0.0
        %v8213 = vmax.f32 %v8177, 0.0
        %v8214 = vmax.f32 %v8178, 0.0
        %v8215 = vmax.f32 %v8179, 0.0
        %v8216 = vmax.f32 %v8180, 0.0
        %v8217 = vmax.f32 %v8181, 0.0
        %v8218 = vmax.f32 %v8182, 0.0
        %v8219 = vmax.f32 %v8183, 0.0
        %v8220 = vmax.f32 %v8184, 0.0
        %v8221 = vmax.f32 %v8185, 0.0
        %v8222 = vmax.f32 %v8186, 0.0
        %v8223 = vmax.f32 %v8187, 0.0
        %v8224 = vmul.f32 %v8188, %v4075
        %v8225 = vmul.f32 %v8189, %v4080
        %v8226 = vmul.f32 %v8190, %v4085
        %v8227 = vmul.f32 %v8191, %v4090
        %v8228 = vmul.f32 %v8192, %v4095
        %v8229 = vmul.f32 %v8193, %v4100
        %v8230 = vmul.f32 %v8194, %v4105
        %v8231 = vmul.f32 %v8195, %v4110
        %v8232 = vmul.f32 %v8196, %v4115
        %v8233 = vmul.f32 %v8197, %v4120
        %v8234 = vmul.f32 %v8198, %v4125
        %v8235 = vmul.f32 %v8199, %v4130
        %v8236 = vmul.f32 %v8200, %v4135
        %v8237 = vmul.f32 %v8201, %v4140
        %v8238 = vmul.f32 %v8202, %v4145
        %v8239 = vmul.f32 %v8203, %v4150
        %v8240 = vmul.f32 %v8204, %v4155
        %v8241 = vmul.f32 %v8205, %v4160
        %v8242 = vmul.f32 %v8206, %v4165
        %v8243 = vmul.f32 %v8207, %v4170
        %v8244 = vmul.f32 %v8208, %v4175
        %v8245 = vmul.f32 %v8209, %v4180
        %v8246 = vmul.f32 %v8210, %v4185
        %v8247 = vmul.f32 %v8211, %v4190
        %v8248 = vmul.f32 %v8212, %v4195
        %v8249 = vmul.f32 %v8213, %v4200
        %v8250 = vmul.f32 %v8214, %v4205
        %v8251 = vmul.f32 %v8215, %v4210
        %v8252 = vmul.f32 %v8216, %v4215
        %v8253 = vmul.f32 %v8217, %v4220
        %v8254 = vmul.f32 %v8218, %v4225
        %v8255 = vmul.f32 %v8219, %v4230
        %v8256 = vmul.f32 %v8220, %v4235
        %v8257 = vmul.f32 %v8221, %v4240
        %v8258 = vmul.f32 %v8222, %v4245
        %v8259 = vmul.f32 %v8223, %v4250
        %v8260 = vadd.f32 %v8224, %v8225
        %v8261 = vadd.f32 %v8260, %v8226
        %v8262 = vadd.f32 %v8261, %v8227
        %v8263 = vadd.f32 %v8262, %v8228
        %v8264 = vadd.f32 %v8263, %v8229
        %v8265 = vadd.f32 %v8264, %v8230
        %v8266 = vadd.f32 %v8265, %v8231
        %v8267 = vadd.f32 %v8266, %v8232
        %v8268 = vadd.f32 %v8267, %v8233
        %v8269 = vadd.f32 %v8268, %v8234
        %v8270 = vadd.f32 %v8269, %v8235
        %v8271 = vadd.f32 %v8270, %v8236
        %v8272 = vadd.f32 %v8271, %v8237
        %v8273 = vadd.f32 %v8272, %v8238
        %v8274 = vadd.f32 %v8273, %v8239
        %v8275 = vadd.f32 %v8274, %v8240
        %v8276 = vadd.f32 %v8275, %v8241
        %v8277 = vadd.f32 %v8276, %v8242
        %v8278 = vadd.f32 %v8277, %v8243
        %v8279 = vadd.f32 %v8278, %v8244
        %v8280 = vadd.f32 %v8279, %v8245
        %v8281 = vadd.f32 %v8280, %v8246
        %v8282 = vadd.f32 %v8281, %v8247
        %v8283 = vadd.f32 %v8282, %v8248
        %v8284 = vadd.f32 %v8283, %v8249
        %v8285 = vadd.f32 %v8284, %v8250
        %v8286 = vadd.f32 %v8285, %v8251
        %v8287 = vadd.f32 %v8286, %v8252
        %v8288 = vadd.f32 %v8287, %v8253
        %v8289 = vadd.f32 %v8288, %v8254
        %v8290 = vadd.f32 %v8289, %v8255
        %v8291 = vadd.f32 %v8290, %v8256
        %v8292 = vadd.f32 %v8291, %v8257
        %v8293 = vadd.f32 %v8292, %v8258
        %v8294 = vadd.f32 %v8293, %v8259
        %v8295 = vrot.slane %v8294, 4
        %v8296 = vadd.f32 %v8294, %v8295
        %v8297 = vrot.slane %v8296, 2
        %v8298 = vadd.f32 %v8296, %v8297
        %v8299 = vrot.slane %v8298, 1
        %v8300 = vadd.f32 %v8298, %v8299
        %v8301 = vmul.f32 %v8300, 0.00390625
        %8302 = vst [vmem:[%s243] sm:$0x1] %v8301
        %s8303 = sand.u32 %s159, 1
        %s8304 = scalar_lea.sflag [#allocation5], %s8303
        %s8305 = sand.u32 %s159, 1
        %s8306 = scalar_lea.vmem [#allocation4], %s8305
        // Predicated region
        $region45: #{pallas_forward.3} parent=43 // pred_check
          %p8307 = pneg %p169
        $region46: #{pallas_forward.3} parent=43 // pred_check_branch
          %8309 = sbr.rel (%p8307) target = $region48
        $region47: #{pallas_forward.3} parent=43 // pred_region
          %s8311 = ssub.s32 16, 16
          %8312 = vsyncadd %s8304, %s8311
          %s8313 = smul.addr %s20, 16
          %s8314 = scalar_lea.hbm %s6, %s8313
          %s8316 = sshll.u32 %s8306, 4
          %s8317 = int_to_ptr.vmem [resolvable:$true] %s8316
          %8319 = dma.vmem_to_hbm [thread:$0]  %s8317, 16, %s8314, %s8304
        $region48: #{pallas_forward.3} parent=43 // pred_fallthru
          _
      $region44: #{pallas_forward.3} parent=5 // pred_fallthru
        _
      %p8320 = scmp.le.s32.totalorder 2, %s15
      // Predicated region
      $region49: #{pallas_forward.3} parent=5 // pred_check
        %p8321 = pneg %p8320
      $region50: #{pallas_forward.3} parent=5 // pred_check_branch
        %8323 = sbr.rel (%p8321) target = $region52
      $region51: #{pallas_forward.3} parent=5 // pred_region
        %s8324 = ssub.s32 %s15, 2
        // Predicated region
        $region53: #{pallas_forward.3} parent=51 // pred_check
          %p8325 = pneg %p175
        $region54: #{pallas_forward.3} parent=51 // pred_check_branch
          %8327 = sbr.rel (%p8325) target = $region56
        $region55: #{pallas_forward.3} parent=51 // pred_region
          %s8328 = sand.u32 %s160, 1
          %s8329 = scalar_lea.sflag [#allocation5], %s8328
          %s8330 = sand.u32 %s160, 1
          %s8331 = scalar_lea.vmem [#allocation4], %s8330
          %8332 = dma.done %s8329, 16
        $region56: #{pallas_forward.3} parent=51 // pred_fallthru
          _
      $region52: #{pallas_forward.3} parent=5 // pred_fallthru
        _
    $region6: #{pallas_forward.3} parent=1 // loop_footer
      %s19 = sadd.s32 1, %s15
    $region7: #{pallas_forward.3} parent=1 // loop_footer_branch
      %14 = sbr.rel target = $region3
    $region8: #{pallas_forward.3} parent=1 // loop_exit
      _
    %8333 = vsyncpa [#allocation5], 1
    %s8334 = scalar_lea.sflag [#allocation5], 1
    %8335 = vsyncpa %s8334, 1

</llo_original>
